<compile_context>
chip_gen: v7x
topology: tpu7x:2x2x1
jax: 0.10.0
libtpu: 0.0.40
codegen_flags: <defaults>
</compile_context>

<pallas_src>
import numpy as np
import jax
import jax.numpy as jnp
from jax.experimental import pallas as pl
from jax.experimental.pallas import tpu as pltpu

IN_FEATURES = 32
HIDDEN = 784
HIDDEN_PAD = 896          # 7 * 128, lane-aligned hidden width
OUT_FEATURES = 10
OUT_PAD = 128             # lane-dense output slab, sliced to 10 outside


def _round_up(n, m):
    return ((n + m - 1) // m) * m


def _device_kind():
    try:
        return jax.devices()[0].device_kind.lower()
    except Exception:
        return ""


def _num_tensorcores(kind=None):
    kind = _device_kind() if kind is None else kind
    # v4 and v7x expose two TensorCores per device (megacore); v5e/v5p/v6e: one.
    return 2 if ("v4" in kind or "v7" in kind or "7x" in kind) else 1


def _use_bf16_intermediates(kind=None):
    kind = _device_kind() if kind is None else kind
    # v6e / v7x have a native bf16 VPU path for the bias adds; elsewhere (v5e
    # and unknown chips) keep the safer f32-accumulate / f32-bias path.
    return ("v6" in kind) or ("v7" in kind) or ("7x" in kind)


def _default_bm(batch, num_cores):
    """Batch tile.  Single-TC chips get one big step (no pointless halving);
    megacore chips split only when each core still gets an MXU-filling
    (>=256-row) tile.  Cap 512 keeps per-step VMEM tiny on every generation."""
    b8 = _round_up(max(batch, 1), 8)
    cap = 512
    if num_cores >= 2 and b8 >= 2 * 256:
        return min(cap, _round_up((b8 + num_cores - 1) // num_cores, 8))
    return min(cap, b8)


def _make_kernel(bf16_intermediates):
    def kernel(x_ref, w1_ref, b1_ref, w2_ref, b2_ref,
               w3_ref, b3_ref, w4_ref, b4_ref, o_ref):
        if bf16_intermediates:
            # v6e/v7x: keep the (bm, 896) inter-layer activation in bf16 to
            # relieve the vst slot; MXU still accumulates in f32 internally.
            h = jnp.dot(x_ref[...], w1_ref[...],
                        preferred_element_type=jnp.bfloat16) + b1_ref[...]
            h = jnp.dot(h, w2_ref[...],
                        preferred_element_type=jnp.bfloat16) + b2_ref[...]
            h = jnp.dot(h, w3_ref[...],
                        preferred_element_type=jnp.bfloat16) + b3_ref[...]
            h = jnp.dot(h, w4_ref[...],
                        preferred_element_type=jnp.float32) + b4_ref[...]
        else:
            # v5e (no bf16 VPU): f32 accumulation + f32 bias adds, cast to
            # bf16 right before each MXU matmul.
            h = jnp.dot(x_ref[...], w1_ref[...],
                        preferred_element_type=jnp.float32) + b1_ref[...]
            h = jnp.dot(h.astype(jnp.bfloat16), w2_ref[...],
                        preferred_element_type=jnp.float32) + b2_ref[...]
            h = jnp.dot(h.astype(jnp.bfloat16), w3_ref[...],
                        preferred_element_type=jnp.float32) + b3_ref[...]
            h = jnp.dot(h.astype(jnp.bfloat16), w4_ref[...],
                        preferred_element_type=jnp.float32) + b4_ref[...]
        o_ref[...] = h.astype(o_ref.dtype)
    return kernel


def prepare_params(raw_params):
    """raw_params: list of (W, b) in PyTorch layout, W:(out,in) f32, b:(out,) f32.

    Returns kernel params: W transposed to (in, out), zero-padded to
    lane-aligned sizes (896 hidden / 128 out), cast to bf16; biases zero-padded
    and kept f32 with shape (1, out_pad)."""
    dims_in = (IN_FEATURES, HIDDEN_PAD, HIDDEN_PAD, HIDDEN_PAD)
    dims_out = (HIDDEN_PAD, HIDDEN_PAD, HIDDEN_PAD, OUT_PAD)
    prepped = []
    for (w, b), di, do in zip(raw_params, dims_in, dims_out):
        wt = jnp.asarray(w, jnp.float32).T                      # (in, out)
        wt = jnp.pad(wt, ((0, di - wt.shape[0]), (0, do - wt.shape[1])))
        bb = jnp.pad(jnp.asarray(b, jnp.float32), (0, do - b.shape[0]))
        prepped.append((wt.astype(jnp.bfloat16), bb.reshape(1, do)))
    return prepped


def mymodel2_forward(x, prepped_params, *, bm=None):
    """x: (B, IN_FEATURES) float.  prepped_params: output of prepare_params."""
    B, F = x.shape
    assert F == IN_FEATURES
    kind = _device_kind()
    num_cores = _num_tensorcores(kind)
    bf16_inter = _use_bf16_intermediates(kind)
    if bm is None:
        bm = _default_bm(B, num_cores)

    steps = pl.cdiv(B, bm)
    b_pad = steps * bm
    # Cast x to bf16 in the wrapper: halves the x HBM->VMEM DMA and removes
    # the in-kernel cast.
    x_p = jnp.pad(x.astype(jnp.bfloat16), ((0, b_pad - B), (0, 0)))

    (w1, b1), (w2, b2), (w3, b3), (w4, b4) = prepped_params
    if bf16_inter:
        b1 = b1.astype(jnp.bfloat16)
        b2 = b2.astype(jnp.bfloat16)
        b3 = b3.astype(jnp.bfloat16)
        # b4 stays f32 (last layer accumulates and adds bias in f32).

    def resident_spec(arr):
        # Grid-invariant operand: DMA'd once; Buffered(1) avoids a dead second
        # copy of the ~3.5 MB weight set in scoped VMEM.
        return pl.BlockSpec(arr.shape, lambda i: (0, 0),
                            pipeline_mode=pl.Buffered(1))

    in_specs = [
        pl.BlockSpec((bm, IN_FEATURES), lambda i: (i, 0)),   # x tile over batch
        resident_spec(w1), resident_spec(b1),
        resident_spec(w2), resident_spec(b2),
        resident_spec(w3), resident_spec(b3),
        resident_spec(w4), resident_spec(b4),
    ]
    out_spec = pl.BlockSpec((bm, OUT_PAD), lambda i: (i, 0))

    flops = 2 * b_pad * (IN_FEATURES * HIDDEN_PAD
                         + 2 * HIDDEN_PAD * HIDDEN_PAD
                         + HIDDEN_PAD * OUT_PAD)
    param_list = ((w1, b1), (w2, b2), (w3, b3), (w4, b4))
    bytes_accessed = int(
        x_p.size * x_p.dtype.itemsize + b_pad * OUT_PAD * 4
        + sum(w.size * w.dtype.itemsize + b.size * b.dtype.itemsize
              for w, b in param_list))

    out = pl.pallas_call(
        _make_kernel(bf16_inter),
        out_shape=jax.ShapeDtypeStruct((b_pad, OUT_PAD), jnp.float32),
        grid_spec=pltpu.PrefetchScalarGridSpec(
            num_scalar_prefetch=0,
            grid=(steps,),
            in_specs=in_specs,
            out_specs=out_spec,
        ),
        compiler_params=pltpu.CompilerParams(
            dimension_semantics=("parallel",),
            vmem_limit_bytes=32 * 1024 * 1024),
        cost_estimate=pl.CostEstimate(
            flops=flops, transcendentals=0, bytes_accessed=bytes_accessed),
    )(x_p, w1, b1, w2, b2, w3, b3, w4, b4)

    # Drop batch padding and the zero-padded output lanes.
    return out[:B, :OUT_FEATURES]


def init_linear(key, fan_in, fan_out):
    """Deterministic PyTorch-style init: U(-1/sqrt(fan_in), 1/sqrt(fan_in)).
    Returns PyTorch layout: W (out, in), b (out,)."""
    kw, kb = jax.random.split(key)
    bound = 1.0 / np.sqrt(fan_in)
    w = jax.random.uniform(kw, (fan_out, fan_in), jnp.float32, -bound, bound)
    b = jax.random.uniform(kb, (fan_out,), jnp.float32, -bound, bound)
    return w, b


def _reference_same_math(x, prepped, bf16_inter):
    """Plain-JAX forward matching the dtype path chosen inside the kernel."""
    (w1, b1), (w2, b2), (w3, b3), (w4, b4) = prepped
    h = x.astype(jnp.bfloat16)
    if bf16_inter:
        h = jnp.dot(h, w1, preferred_element_type=jnp.bfloat16) + b1.astype(jnp.bfloat16)
        h = jnp.dot(h, w2, preferred_element_type=jnp.bfloat16) + b2.astype(jnp.bfloat16)
        h = jnp.dot(h, w3, preferred_element_type=jnp.bfloat16) + b3.astype(jnp.bfloat16)
        h = jnp.dot(h, w4, preferred_element_type=jnp.float32) + b4
    else:
        h = jnp.dot(h, w1, preferred_element_type=jnp.float32) + b1
        h = jnp.dot(h.astype(jnp.bfloat16), w2, preferred_element_type=jnp.float32) + b2
        h = jnp.dot(h.astype(jnp.bfloat16), w3, preferred_element_type=jnp.float32) + b3
        h = jnp.dot(h.astype(jnp.bfloat16), w4, preferred_element_type=jnp.float32) + b4
    return h[:, :OUT_FEATURES].astype(jnp.float32)


if __name__ == "__main__":
    key = jax.random.PRNGKey(0)
    k_x, k1, k2, k3, k4 = jax.random.split(key, 5)

    B = 24   # small, non-multiple of 128 -> exercises tile sizing / padding
    x = jax.random.normal(k_x, (B, IN_FEATURES), jnp.float32)

    raw_params = [
        init_linear(k1, IN_FEATURES, HIDDEN),
        init_linear(k2, HIDDEN, HIDDEN),
        init_linear(k3, HIDDEN, HIDDEN),
        init_linear(k4, HIDDEN, OUT_FEATURES),
    ]
    params = prepare_params(raw_params)

    out = mymodel2_forward(x, params)
    out = jax.block_until_ready(out)
    assert out.shape == (B, OUT_FEATURES)

    # Reference 1: identical dtype path in plain JAX (tight tolerance).
    bf16_inter = _use_bf16_intermediates()
    ref_same = _reference_same_math(x, params, bf16_inter)
    np.testing.assert_allclose(np.asarray(out), np.asarray(ref_same),
                               rtol=2e-2, atol=2e-2)

    # Reference 2: full-f32 PyTorch-semantics forward (looser tolerance due to
    # the bf16 weight/activation casts recommended by the perf review).
    ref_f32 = x
    for w, b in raw_params:
        ref_f32 = ref_f32 @ w.T + b
    np.testing.assert_allclose(np.asarray(out), np.asarray(ref_f32),
                               rtol=5e-2, atol=5e-2)

    print("KERNEL_OK")
</pallas_src>

<mosaic_0001>
module attributes {stable_mosaic.version = 11 : i64} {
  func.func @kernel(%arg0: i32, %arg1: memref<24x32xbf16, #tpu.memory_space<vmem>>, %arg2: memref<32x896xbf16, #tpu.memory_space<vmem>>, %arg3: memref<1x896xf32, #tpu.memory_space<vmem>>, %arg4: memref<896x896xbf16, #tpu.memory_space<vmem>>, %arg5: memref<1x896xf32, #tpu.memory_space<vmem>>, %arg6: memref<896x896xbf16, #tpu.memory_space<vmem>>, %arg7: memref<1x896xf32, #tpu.memory_space<vmem>>, %arg8: memref<896x128xbf16, #tpu.memory_space<vmem>>, %arg9: memref<1x128xf32, #tpu.memory_space<vmem>>, %arg10: memref<24x128xf32, #tpu.memory_space<vmem>>) attributes {dimension_semantics = [#tpu.dimension_semantics<parallel>], iteration_bounds = array<i64: 1>, scalar_prefetch = 0 : i64, scratch_operands = 0 : i64, tpu.core_type = #tpu.core_type<tc>, window_params = [{transform_indices = @transform_0, window_bounds = array<i64: 24, 32>}, {pipeline_mode = #tpu.pipeline_mode<synchronous>, transform_indices = @transform_1, window_bounds = array<i64: 32, 896>}, {pipeline_mode = #tpu.pipeline_mode<synchronous>, transform_indices = @transform_2, window_bounds = array<i64: 1, 896>}, {pipeline_mode = #tpu.pipeline_mode<synchronous>, transform_indices = @transform_3, window_bounds = array<i64: 896, 896>}, {pipeline_mode = #tpu.pipeline_mode<synchronous>, transform_indices = @transform_4, window_bounds = array<i64: 1, 896>}, {pipeline_mode = #tpu.pipeline_mode<synchronous>, transform_indices = @transform_5, window_bounds = array<i64: 896, 896>}, {pipeline_mode = #tpu.pipeline_mode<synchronous>, transform_indices = @transform_6, window_bounds = array<i64: 1, 896>}, {pipeline_mode = #tpu.pipeline_mode<synchronous>, transform_indices = @transform_7, window_bounds = array<i64: 896, 128>}, {pipeline_mode = #tpu.pipeline_mode<synchronous>, transform_indices = @transform_8, window_bounds = array<i64: 1, 128>}, {transform_indices = @transform_9, window_bounds = array<i64: 24, 128>}]} {
    %c0 = arith.constant 0 : index
    %c0_0 = arith.constant 0 : index
    %0 = vector.load %arg1[%c0, %c0_0] : memref<24x32xbf16, #tpu.memory_space<vmem>>, vector<24x32xbf16>
    %c0_1 = arith.constant 0 : index
    %c0_2 = arith.constant 0 : index
    %1 = vector.load %arg2[%c0_1, %c0_2] : memref<32x896xbf16, #tpu.memory_space<vmem>>, vector<32x896xbf16>
    %cst = arith.constant dense<0.000000e+00> : vector<24x896xf32>
    %2 = tpu.matmul %0, %1, %cst {dimension_numbers = #tpu.dot_dimension_numbers<[1], [0], [0], [1], [0, 0, 1, 1], [], []>} : vector<24x32xbf16>, vector<32x896xbf16>, vector<24x896xf32> -> vector<24x896xf32>
    %c0_3 = arith.constant 0 : index
    %c0_4 = arith.constant 0 : index
    %3 = vector.load %arg3[%c0_3, %c0_4] : memref<1x896xf32, #tpu.memory_space<vmem>>, vector<1x896xf32>
    %4 = vector.broadcast %3 : vector<1x896xf32> to vector<24x896xf32>
    %5 = arith.addf %2, %4 : vector<24x896xf32>
    %6 = arith.truncf %5 : vector<24x896xf32> to vector<24x896xbf16>
    %c0_5 = arith.constant 0 : index
    %c0_6 = arith.constant 0 : index
    %7 = vector.load %arg4[%c0_5, %c0_6] : memref<896x896xbf16, #tpu.memory_space<vmem>>, vector<896x896xbf16>
    %cst_7 = arith.constant dense<0.000000e+00> : vector<24x896xf32>
    %8 = tpu.matmul %6, %7, %cst_7 {dimension_numbers = #tpu.dot_dimension_numbers<[1], [0], [0], [1], [0, 0, 1, 1], [], []>} : vector<24x896xbf16>, vector<896x896xbf16>, vector<24x896xf32> -> vector<24x896xf32>
    %c0_8 = arith.constant 0 : index
    %c0_9 = arith.constant 0 : index
    %9 = vector.load %arg5[%c0_8, %c0_9] : memref<1x896xf32, #tpu.memory_space<vmem>>, vector<1x896xf32>
    %10 = vector.broadcast %9 : vector<1x896xf32> to vector<24x896xf32>
    %11 = arith.addf %8, %10 : vector<24x896xf32>
    %12 = arith.truncf %11 : vector<24x896xf32> to vector<24x896xbf16>
    %c0_10 = arith.constant 0 : index
    %c0_11 = arith.constant 0 : index
    %13 = vector.load %arg6[%c0_10, %c0_11] : memref<896x896xbf16, #tpu.memory_space<vmem>>, vector<896x896xbf16>
    %cst_12 = arith.constant dense<0.000000e+00> : vector<24x896xf32>
    %14 = tpu.matmul %12, %13, %cst_12 {dimension_numbers = #tpu.dot_dimension_numbers<[1], [0], [0], [1], [0, 0, 1, 1], [], []>} : vector<24x896xbf16>, vector<896x896xbf16>, vector<24x896xf32> -> vector<24x896xf32>
    %c0_13 = arith.constant 0 : index
    %c0_14 = arith.constant 0 : index
    %15 = vector.load %arg7[%c0_13, %c0_14] : memref<1x896xf32, #tpu.memory_space<vmem>>, vector<1x896xf32>
    %16 = vector.broadcast %15 : vector<1x896xf32> to vector<24x896xf32>
    %17 = arith.addf %14, %16 : vector<24x896xf32>
    %18 = arith.truncf %17 : vector<24x896xf32> to vector<24x896xbf16>
    %c0_15 = arith.constant 0 : index
    %c0_16 = arith.constant 0 : index
    %19 = vector.load %arg8[%c0_15, %c0_16] : memref<896x128xbf16, #tpu.memory_space<vmem>>, vector<896x128xbf16>
    %cst_17 = arith.constant dense<0.000000e+00> : vector<24x128xf32>
    %20 = tpu.matmul %18, %19, %cst_17 {dimension_numbers = #tpu.dot_dimension_numbers<[1], [0], [0], [1], [0, 0, 1, 1], [], []>} : vector<24x896xbf16>, vector<896x128xbf16>, vector<24x128xf32> -> vector<24x128xf32>
    %c0_18 = arith.constant 0 : index
    %c0_19 = arith.constant 0 : index
    %21 = vector.load %arg9[%c0_18, %c0_19] : memref<1x128xf32, #tpu.memory_space<vmem>>, vector<1x128xf32>
    %22 = vector.broadcast %21 : vector<1x128xf32> to vector<24x128xf32>
    %23 = arith.addf %20, %22 : vector<24x128xf32>
    %c0_20 = arith.constant 0 : index
    %c0_21 = arith.constant 0 : index
    %24 = vector.load %arg10[%c0_20, %c0_21] : memref<24x128xf32, #tpu.memory_space<vmem>>, vector<24x128xf32>
    tpu.vector_store %arg10[%c0_20, %c0_21], %23 {strides = array<i32>} : memref<24x128xf32, #tpu.memory_space<vmem>>, vector<24x128xf32>,
    return
  }
  func.func @transform_0(%arg0: i32) -> (i32, i32) {
    %c0_i32 = arith.constant 0 : i32
    %c0_i32_0 = arith.constant 0 : i32
    return %arg0, %c0_i32 : i32, i32
  }
  func.func @transform_1(%arg0: i32) -> (i32, i32) {
    %c0_i32 = arith.constant 0 : i32
    %c0_i32_0 = arith.constant 0 : i32
    %c0_i32_1 = arith.constant 0 : i32
    return %c0_i32, %c0_i32_0 : i32, i32
  }
  func.func @transform_2(%arg0: i32) -> (i32, i32) {
    %c0_i32 = arith.constant 0 : i32
    %c0_i32_0 = arith.constant 0 : i32
    %c0_i32_1 = arith.constant 0 : i32
    return %c0_i32, %c0_i32_0 : i32, i32
  }
  func.func @transform_3(%arg0: i32) -> (i32, i32) {
    %c0_i32 = arith.constant 0 : i32
    %c0_i32_0 = arith.constant 0 : i32
    %c0_i32_1 = arith.constant 0 : i32
    return %c0_i32, %c0_i32_0 : i32, i32
  }
  func.func @transform_4(%arg0: i32) -> (i32, i32) {
    %c0_i32 = arith.constant 0 : i32
    %c0_i32_0 = arith.constant 0 : i32
    %c0_i32_1 = arith.constant 0 : i32
    return %c0_i32, %c0_i32_0 : i32, i32
  }
  func.func @transform_5(%arg0: i32) -> (i32, i32) {
    %c0_i32 = arith.constant 0 : i32
    %c0_i32_0 = arith.constant 0 : i32
    %c0_i32_1 = arith.constant 0 : i32
    return %c0_i32, %c0_i32_0 : i32, i32
  }
  func.func @transform_6(%arg0: i32) -> (i32, i32) {
    %c0_i32 = arith.constant 0 : i32
    %c0_i32_0 = arith.constant 0 : i32
    %c0_i32_1 = arith.constant 0 : i32
    return %c0_i32, %c0_i32_0 : i32, i32
  }
  func.func @transform_7(%arg0: i32) -> (i32, i32) {
    %c0_i32 = arith.constant 0 : i32
    %c0_i32_0 = arith.constant 0 : i32
    %c0_i32_1 = arith.constant 0 : i32
    return %c0_i32, %c0_i32_0 : i32, i32
  }
  func.func @transform_8(%arg0: i32) -> (i32, i32) {
    %c0_i32 = arith.constant 0 : i32
    %c0_i32_0 = arith.constant 0 : i32
    %c0_i32_1 = arith.constant 0 : i32
    return %c0_i32, %c0_i32_0 : i32, i32
  }
  func.func @transform_9(%arg0: i32) -> (i32, i32) {
    %c0_i32 = arith.constant 0 : i32
    %c0_i32_0 = arith.constant 0 : i32
    return %arg0, %c0_i32 : i32, i32
  }
}

</mosaic_0001>

<llo_original>
// kernel: tpu_custom_call.1
$region0: #{tpu_custom_call.1}
  #allocation0 [shape = 'u32[]', space=smem, size = 0x4, offset = 0x4, fixed_abs, tag = 'smem constant byte address 0x4 - core index']
  #allocation1 [shape = 'u32[144,128]{1,0:T(1,128)}', space=vmem, size = 0x12000, scoped, tag = 'internal scratch']
  %s0 = inlined_call_operand.hbm [shape: bf16[24,32], index: 0, kind: input, shape index: {}]
  %s1 = inlined_call_operand.hbm [shape: bf16[32,896], index: 1, kind: input, shape index: {}]
  %s2 = inlined_call_operand.hbm [shape: f32[1,896], index: 2, kind: input, shape index: {}]
  %s3 = inlined_call_operand.hbm [shape: bf16[896,896], index: 3, kind: input, shape index: {}]
  %s4 = inlined_call_operand.hbm [shape: f32[1,896], index: 4, kind: input, shape index: {}]
  %s5 = inlined_call_operand.hbm [shape: bf16[896,896], index: 5, kind: input, shape index: {}]
  %s6 = inlined_call_operand.hbm [shape: f32[1,896], index: 6, kind: input, shape index: {}]
  %s7 = inlined_call_operand.hbm [shape: bf16[896,128], index: 7, kind: input, shape index: {}]
  %s8 = inlined_call_operand.hbm [shape: f32[1,128], index: 8, kind: input, shape index: {}]
  %s9 = inlined_call_operand.hbm [shape: f32[24,128], index: 9, kind: output, shape index: {}]
  %s10 = sld [smem:[#allocation0]]
  $region82: #{tpu_custom_call.1} parent=0
    _
  %s12 = ssub.s32 1, %s10
  %s13 = scalar_select 0, %s12, %s10
  $region1: #{tpu_custom_call.1} parent=0
    #allocation2 [shape = 'u8[6144]{0}', space=vmem, size = 0x1800, scoped, tag = 'input window, operand 0, single buffered']
    #allocation3 [shape = 's32[1]{0}', space=sflag, size = 0x4, scoped, tag = 'scoped memory for tpu_custom_call.1']
    #allocation4 [shape = 's32[1]{0}', space=sflag, size = 0x4, scoped, tag = 'scoped memory for tpu_custom_call.1']
    #allocation5 [shape = 'u8[57344]{0}', space=vmem, size = 0xe000, scoped, tag = 'input window, operand 1, single buffered']
    #allocation6 [shape = 's32[1]{0}', space=sflag, size = 0x4, scoped, tag = 'scoped memory for tpu_custom_call.1']
    #allocation7 [shape = 'u8[3584]{0}', space=vmem, size = 0x1000, scoped, tag = 'input window, operand 2, single buffered']
    #allocation8 [shape = 'u8[1605632]{0}', space=vmem, size = 0x188000, scoped, tag = 'input window, operand 3, single buffered']
    #allocation9 [shape = 's32[1]{0}', space=sflag, size = 0x4, scoped, tag = 'scoped memory for tpu_custom_call.1']
    #allocation10 [shape = 'u8[3584]{0}', space=vmem, size = 0x1000, scoped, tag = 'input window, operand 4, single buffered']
    #allocation11 [shape = 'u8[1605632]{0}', space=vmem, size = 0x188000, scoped, tag = 'input window, operand 5, single buffered']
    #allocation12 [shape = 's32[1]{0}', space=sflag, size = 0x4, scoped, tag = 'scoped memory for tpu_custom_call.1']
    #allocation13 [shape = 'u8[3584]{0}', space=vmem, size = 0x1000, scoped, tag = 'input window, operand 6, single buffered']
    #allocation14 [shape = 'u8[229376]{0}', space=vmem, size = 0x38000, scoped, tag = 'input window, operand 7, single buffered']
    #allocation15 [shape = 's32[1]{0}', space=sflag, size = 0x4, scoped, tag = 'scoped memory for tpu_custom_call.1']
    #allocation16 [shape = 'u8[512]{0}', space=vmem, size = 0x400, scoped, tag = 'input window, operand 8, single buffered']
    #allocation17 [shape = 'u8[12288]{0}', space=vmem, size = 0x3000, scoped, tag = 'output window, operand 0, single buffered']
    %14 = vsyncpa [#allocation3], 0
    %15 = vsyncpa [#allocation6], 0
    %16 = vsyncpa [#allocation9], 0
    %17 = vsyncpa [#allocation12], 0
    %18 = vsyncpa [#allocation15], 0
    %19 = vsyncpa [#allocation4], 0
    // Predicated region
    $region2: #{tpu_custom_call.1} parent=1 // pred_check
      _
    $region3: #{tpu_custom_call.1} parent=1 // pred_check_branch
      %21 = sbr.rel (0) target = $region5
    $region4: #{tpu_custom_call.1} parent=1 // pred_region
      %s23 = ssub.s32 192, 192
      %24 = vsyncadd [#allocation3], %s23
      %s25 = sshll.u32 [#allocation2], 4
      %s26 = int_to_ptr.vmem [resolvable:$true] %s25
      %31 = dma.hbm_to_vmem [thread:$0]  %s0, 192, %s26, [#allocation3], 64, 64, 4
    $region5: #{tpu_custom_call.1} parent=1 // pred_fallthru
      _
    // Predicated region
    $region6: #{tpu_custom_call.1} parent=1 // pred_check
      _
    $region7: #{tpu_custom_call.1} parent=1 // pred_check_branch
      %33 = sbr.rel (0) target = $region9
    $region8: #{tpu_custom_call.1} parent=1 // pred_region
      %s35 = ssub.s32 1792, 1792
      %36 = vsyncadd [#allocation6], %s35
      %s37 = sshll.u32 [#allocation5], 4
      %s38 = int_to_ptr.vmem [resolvable:$true] %s37
      %43 = dma.hbm_to_vmem [thread:$0]  %s1, 1792, %s38, [#allocation6], 448, 448, 28
    $region9: #{tpu_custom_call.1} parent=1 // pred_fallthru
      _
    // Predicated region
    $region10: #{tpu_custom_call.1} parent=1 // pred_check
      _
    $region11: #{tpu_custom_call.1} parent=1 // pred_check_branch
      %45 = sbr.rel (0) target = $region13
    $region12: #{tpu_custom_call.1} parent=1 // pred_region
      %s47 = ssub.s32 112, 112
      %48 = vsyncadd [#allocation6], %s47
      %s50 = sshll.u32 [#allocation7], 4
      %s51 = int_to_ptr.vmem [resolvable:$true] %s50
      %53 = dma.hbm_to_vmem [thread:$0]  %s2, 112, %s51, [#allocation6]
    $region13: #{tpu_custom_call.1} parent=1 // pred_fallthru
      _
    // Predicated region
    $region14: #{tpu_custom_call.1} parent=1 // pred_check
      _
    $region15: #{tpu_custom_call.1} parent=1 // pred_check_branch
      %55 = sbr.rel (0) target = $region17
    $region16: #{tpu_custom_call.1} parent=1 // pred_region
      %s57 = ssub.s32 50176, 50176
      %58 = vsyncadd [#allocation9], %s57
      %s59 = sshll.u32 [#allocation8], 4
      %s60 = int_to_ptr.vmem [resolvable:$true] %s59
      %65 = dma.hbm_to_vmem [thread:$0]  %s3, 50176, %s60, [#allocation9], 448, 448, 28
    $region17: #{tpu_custom_call.1} parent=1 // pred_fallthru
      _
    // Predicated region
    $region18: #{tpu_custom_call.1} parent=1 // pred_check
      _
    $region19: #{tpu_custom_call.1} parent=1 // pred_check_branch
      %67 = sbr.rel (0) target = $region21
    $region20: #{tpu_custom_call.1} parent=1 // pred_region
      %s69 = ssub.s32 112, 112
      %70 = vsyncadd [#allocation9], %s69
      %s72 = sshll.u32 [#allocation10], 4
      %s73 = int_to_ptr.vmem [resolvable:$true] %s72
      %75 = dma.hbm_to_vmem [thread:$0]  %s4, 112, %s73, [#allocation9]
    $region21: #{tpu_custom_call.1} parent=1 // pred_fallthru
      _
    // Predicated region
    $region22: #{tpu_custom_call.1} parent=1 // pred_check
      _
    $region23: #{tpu_custom_call.1} parent=1 // pred_check_branch
      %77 = sbr.rel (0) target = $region25
    $region24: #{tpu_custom_call.1} parent=1 // pred_region
      %s79 = ssub.s32 50176, 50176
      %80 = vsyncadd [#allocation12], %s79
      %s81 = sshll.u32 [#allocation11], 4
      %s82 = int_to_ptr.vmem [resolvable:$true] %s81
      %87 = dma.hbm_to_vmem [thread:$0]  %s5, 50176, %s82, [#allocation12], 448, 448, 28
    $region25: #{tpu_custom_call.1} parent=1 // pred_fallthru
      _
    // Predicated region
    $region26: #{tpu_custom_call.1} parent=1 // pred_check
      _
    $region27: #{tpu_custom_call.1} parent=1 // pred_check_branch
      %89 = sbr.rel (0) target = $region29
    $region28: #{tpu_custom_call.1} parent=1 // pred_region
      %s91 = ssub.s32 112, 112
      %92 = vsyncadd [#allocation12], %s91
      %s94 = sshll.u32 [#allocation13], 4
      %s95 = int_to_ptr.vmem [resolvable:$true] %s94
      %97 = dma.hbm_to_vmem [thread:$0]  %s6, 112, %s95, [#allocation12]
    $region29: #{tpu_custom_call.1} parent=1 // pred_fallthru
      _
    // Predicated region
    $region30: #{tpu_custom_call.1} parent=1 // pred_check
      _
    $region31: #{tpu_custom_call.1} parent=1 // pred_check_branch
      %99 = sbr.rel (0) target = $region33
    $region32: #{tpu_custom_call.1} parent=1 // pred_region
      %s101 = ssub.s32 7168, 7168
      %102 = vsyncadd [#allocation15], %s101
      %s103 = sshll.u32 [#allocation14], 4
      %s104 = int_to_ptr.vmem [resolvable:$true] %s103
      %109 = dma.hbm_to_vmem [thread:$0]  %s7, 7168, %s104, [#allocation15], 64, 64, 4
    $region33: #{tpu_custom_call.1} parent=1 // pred_fallthru
      _
    // Predicated region
    $region34: #{tpu_custom_call.1} parent=1 // pred_check
      _
    $region35: #{tpu_custom_call.1} parent=1 // pred_check_branch
      %111 = sbr.rel (0) target = $region37
    $region36: #{tpu_custom_call.1} parent=1 // pred_region
      %s113 = ssub.s32 16, 16
      %114 = vsyncadd [#allocation15], %s113
      %s116 = sshll.u32 [#allocation16], 4
      %s117 = int_to_ptr.vmem [resolvable:$true] %s116
      %119 = dma.hbm_to_vmem [thread:$0]  %s8, 16, %s117, [#allocation15]
    $region37: #{tpu_custom_call.1} parent=1 // pred_fallthru
      _
    // Predicated region
    $region38: #{tpu_custom_call.1} parent=1 // pred_check
      _
    $region39: #{tpu_custom_call.1} parent=1 // pred_check_branch
      %121 = sbr.rel (0) target = $region41
    $region40: #{tpu_custom_call.1} parent=1 // pred_region
      %122 = dma.done [#allocation3], 192
    $region41: #{tpu_custom_call.1} parent=1 // pred_fallthru
      _
    // Predicated region
    $region42: #{tpu_custom_call.1} parent=1 // pred_check
      _
    $region43: #{tpu_custom_call.1} parent=1 // pred_check_branch
      %124 = sbr.rel (0) target = $region45
    $region44: #{tpu_custom_call.1} parent=1 // pred_region
      %125 = dma.done [#allocation6], 1792
    $region45: #{tpu_custom_call.1} parent=1 // pred_fallthru
      _
    // Predicated region
    $region46: #{tpu_custom_call.1} parent=1 // pred_check
      _
    $region47: #{tpu_custom_call.1} parent=1 // pred_check_branch
      %127 = sbr.rel (0) target = $region49
    $region48: #{tpu_custom_call.1} parent=1 // pred_region
      %128 = dma.done [#allocation6], 112
    $region49: #{tpu_custom_call.1} parent=1 // pred_fallthru
      _
    // Predicated region
    $region50: #{tpu_custom_call.1} parent=1 // pred_check
      _
    $region51: #{tpu_custom_call.1} parent=1 // pred_check_branch
      %130 = sbr.rel (0) target = $region53
    $region52: #{tpu_custom_call.1} parent=1 // pred_region
      %131 = dma.done [#allocation9], 50176
    $region53: #{tpu_custom_call.1} parent=1 // pred_fallthru
      _
    // Predicated region
    $region54: #{tpu_custom_call.1} parent=1 // pred_check
      _
    $region55: #{tpu_custom_call.1} parent=1 // pred_check_branch
      %133 = sbr.rel (0) target = $region57
    $region56: #{tpu_custom_call.1} parent=1 // pred_region
      %134 = dma.done [#allocation9], 112
    $region57: #{tpu_custom_call.1} parent=1 // pred_fallthru
      _
    // Predicated region
    $region58: #{tpu_custom_call.1} parent=1 // pred_check
      _
    $region59: #{tpu_custom_call.1} parent=1 // pred_check_branch
      %136 = sbr.rel (0) target = $region61
    $region60: #{tpu_custom_call.1} parent=1 // pred_region
      %137 = dma.done [#allocation12], 50176
    $region61: #{tpu_custom_call.1} parent=1 // pred_fallthru
      _
    // Predicated region
    $region62: #{tpu_custom_call.1} parent=1 // pred_check
      _
    $region63: #{tpu_custom_call.1} parent=1 // pred_check_branch
      %139 = sbr.rel (0) target = $region65
    $region64: #{tpu_custom_call.1} parent=1 // pred_region
      %140 = dma.done [#allocation12], 112
    $region65: #{tpu_custom_call.1} parent=1 // pred_fallthru
      _
    // Predicated region
    $region66: #{tpu_custom_call.1} parent=1 // pred_check
      _
    $region67: #{tpu_custom_call.1} parent=1 // pred_check_branch
      %142 = sbr.rel (0) target = $region69
    $region68: #{tpu_custom_call.1} parent=1 // pred_region
      %143 = dma.done [#allocation15], 7168
    $region69: #{tpu_custom_call.1} parent=1 // pred_fallthru
      _
    // Predicated region
    $region70: #{tpu_custom_call.1} parent=1 // pred_check
      _
    $region71: #{tpu_custom_call.1} parent=1 // pred_check_branch
      %145 = sbr.rel (0) target = $region73
    $region72: #{tpu_custom_call.1} parent=1 // pred_region
      %146 = dma.done [#allocation15], 16
    $region73: #{tpu_custom_call.1} parent=1 // pred_fallthru
      _
    %v148 = vld [vmem:[#allocation2] sm:$0xf]
    %v149 = vld [vmem:[#allocation2 + $0x4] sm:$0xf]
    %v150 = vld [vmem:[#allocation2 + $0x8] sm:$0xf]
    %v151 = vld [vmem:[#allocation5] sm:$0xff]
    %v152 = vld [vmem:[#allocation5 + $0x8] sm:$0xff]
    %v153 = vld [vmem:[#allocation5 + $0x10] sm:$0xff]
    %v154 = vld [vmem:[#allocation5 + $0x18] sm:$0xf]
    %v155 = vld [vmem:[#allocation5 + $0x1c] sm:$0xff]
    %v156 = vld [vmem:[#allocation5 + $0x24] sm:$0xff]
    %v157 = vld [vmem:[#allocation5 + $0x2c] sm:$0xff]
    %v158 = vld [vmem:[#allocation5 + $0x34] sm:$0xf]
    %v159 = vld [vmem:[#allocation5 + $0x38] sm:$0xff]
    %v160 = vld [vmem:[#allocation5 + $0x40] sm:$0xff]
    %v161 = vld [vmem:[#allocation5 + $0x48] sm:$0xff]
    %v162 = vld [vmem:[#allocation5 + $0x50] sm:$0xf]
    %v163 = vld [vmem:[#allocation5 + $0x54] sm:$0xff]
    %v164 = vld [vmem:[#allocation5 + $0x5c] sm:$0xff]
    %v165 = vld [vmem:[#allocation5 + $0x64] sm:$0xff]
    %v166 = vld [vmem:[#allocation5 + $0x6c] sm:$0xf]
    %v167 = vld [vmem:[#allocation7] sm:$0xff]
    %v169 = vlaneseq
    %v170 = vshrl.u32 %v169, 7
    %v171 = vsub.s32 0, %v170
    %v172 = vrot.slane %v167, %v171
    %v173 = vlaneseq
    %v174 = vshrl.u32 %v173, 7
    %v175 = vsub.s32 1, %v174
    %v176 = vrot.slane %v167, %v175
    %v177 = vlaneseq
    %v178 = vshrl.u32 %v177, 7
    %v179 = vsub.s32 2, %v178
    %v180 = vrot.slane %v167, %v179
    %v181 = vlaneseq
    %v182 = vshrl.u32 %v181, 7
    %v183 = vsub.s32 3, %v182
    %v184 = vrot.slane %v167, %v183
    %v185 = vlaneseq
    %v186 = vshrl.u32 %v185, 7
    %v187 = vsub.s32 4, %v186
    %v188 = vrot.slane %v167, %v187
    %v189 = vlaneseq
    %v190 = vshrl.u32 %v189, 7
    %v191 = vsub.s32 5, %v190
    %v192 = vrot.slane %v167, %v191
    %v193 = vlaneseq
    %v194 = vshrl.u32 %v193, 7
    %v195 = vsub.s32 6, %v194
    %v196 = vrot.slane %v167, %v195
    %v207 = vunpack.c.l.b16 %v148
    %v208 = vunpack.c.l.b16 %v149
    %v209 = vunpack.c.l.b16 %v150
    %v210 = vpack.c.b16 %v208, %v207
    %v211 = vpack.c.b16 %v209, %v209
    %v228 = vunpack.c.l.b16 %v151
    %v229 = vunpack.c.h.b16 %v151
    %v230 = vunpack.c.l.b16 %v152
    %v231 = vunpack.c.h.b16 %v152
    %v232 = vunpack.c.l.b16 %v153
    %v233 = vunpack.c.h.b16 %v153
    %v234 = vunpack.c.l.b16 %v154
    %v235 = vunpack.c.l.b16 %v155
    %v236 = vunpack.c.h.b16 %v155
    %v237 = vunpack.c.l.b16 %v156
    %v238 = vunpack.c.h.b16 %v156
    %v239 = vunpack.c.l.b16 %v157
    %v240 = vunpack.c.h.b16 %v157
    %v241 = vunpack.c.l.b16 %v158
    %v242 = vunpack.c.l.b16 %v159
    %v243 = vunpack.c.h.b16 %v159
    %v244 = vunpack.c.l.b16 %v160
    %v245 = vunpack.c.h.b16 %v160
    %v246 = vunpack.c.l.b16 %v161
    %v247 = vunpack.c.h.b16 %v161
    %v248 = vunpack.c.l.b16 %v162
    %v249 = vunpack.c.l.b16 %v163
    %v250 = vunpack.c.h.b16 %v163
    %v251 = vunpack.c.l.b16 %v164
    %v252 = vunpack.c.h.b16 %v164
    %v253 = vunpack.c.l.b16 %v165
    %v254 = vunpack.c.h.b16 %v165
    %v255 = vunpack.c.l.b16 %v166
    %v256 = vpack.c.b16 %v235, %v228
    %v257 = vpack.c.b16 %v236, %v229
    %v258 = vpack.c.b16 %v237, %v230
    %v259 = vpack.c.b16 %v238, %v231
    %v260 = vpack.c.b16 %v239, %v232
    %v261 = vpack.c.b16 %v240, %v233
    %v262 = vpack.c.b16 %v241, %v234
    %v263 = vpack.c.b16 %v249, %v242
    %v264 = vpack.c.b16 %v250, %v243
    %v265 = vpack.c.b16 %v251, %v244
    %v266 = vpack.c.b16 %v252, %v245
    %v267 = vpack.c.b16 %v253, %v246
    %v268 = vpack.c.b16 %v254, %v247
    %v269 = vpack.c.b16 %v255, %v248
    %vm284 = vcmask 261120
    %v286 = vsel %vm284, %v210, 0
    %v289 = vsel %vm284, %v211, 0
    %291 = vmatprep.subr.bf16.mxu0 %v257
    %292 = vmatpush1.bf16.msra.mxu0 %v256
    %293 = vmatprep.subr.bf16.mxu0 %v264
    %294 = vmatpush1.bf16.msra.mxu0 %v263
    %295 = vmatprep.subr.bf16.mxu0 0
    %296 = vmatpush1.bf16.msra.mxu0 0
    %297 = vmatprep.subr.bf16.mxu0 0
    %298 = vmatpush1.bf16.msra.mxu0 0
    %299 = vmatprep.subr.bf16.mxu0 0
    %300 = vmatpush1.bf16.msra.mxu0 0
    %301 = vmatprep.subr.bf16.mxu0 0
    %302 = vmatpush1.bf16.msra.mxu0 0
    %303 = vmatprep.subr.bf16.mxu0 0
    %304 = vmatpush1.bf16.msra.mxu0 0
    %305 = vmatprep.subr.bf16.mxu0 0
    %306 = vmatpush1.bf16.msra.mxu0 0
    %307 = vmatprep.subr.bf16.mxu0 0
    %308 = vmatpush1.bf16.msra.mxu0 0
    %309 = vmatprep.subr.bf16.mxu0 0
    %310 = vmatpush1.bf16.msra.mxu0 0
    %311 = vmatprep.subr.bf16.mxu0 0
    %312 = vmatpush1.bf16.msra.mxu0 0
    %313 = vmatprep.subr.bf16.mxu0 0
    %314 = vmatpush1.bf16.msra.mxu0 0
    %315 = vmatprep.subr.bf16.mxu0 0
    %316 = vmatpush1.bf16.msra.mxu0 0
    %317 = vmatprep.subr.bf16.mxu0 0
    %318 = vmatpush1.bf16.msra.mxu0 0
    %319 = vmatprep.subr.bf16.mxu0 0
    %320 = vmatpush1.bf16.msra.mxu0 0
    %321 = vmatprep.subr.bf16.mxu0 0
    %322 = vmatpush1.bf16.msra.mxu0 0
    %323 = vmatprep.mubr.bf16.mxu0 0
    %324 = vmatmul.mubr.bf16.gmra.mrb[0].mxu0 %v286
    %v325 = vpop.f32.mrb[0].mxu0
    %v326 = vadd.f32 %v172, %v325
    %v327 = vpop.f32.mrb[0].mxu0
    %v328 = vadd.f32 %v176, %v327
    %v329 = vpop.f32.mrb[0].mxu0
    %v330 = vadd.f32 %v172, %v329
    %v331 = vpop.f32.mrb[0].mxu0
    %v332 = vadd.f32 %v176, %v331
    %333 = vmatprep.mubr.bf16.mxu0 0
    %334 = vmatmul.mubr.bf16.gmra.mrb[0].mxu0 %v289
    %v335 = vpop.f32.mrb[0].mxu0
    %v336 = vadd.f32 %v172, %v335
    %v337 = vpop.f32.mrb[0].mxu0
    %v338 = vadd.f32 %v176, %v337
    %v339 = vpop.f32.mrb[0].mxu0
    %v340 = vpop.f32.mrb[0].mxu0
    %341 = vdwg.mxu0
    %342 = vmatprep.subr.bf16.mxu0 %v259
    %343 = vmatpush1.bf16.msra.mxu0 %v258
    %344 = vmatprep.subr.bf16.mxu0 %v266
    %345 = vmatpush1.bf16.msra.mxu0 %v265
    %346 = vmatprep.subr.bf16.mxu0 0
    %347 = vmatpush1.bf16.msra.mxu0 0
    %348 = vmatprep.subr.bf16.mxu0 0
    %349 = vmatpush1.bf16.msra.mxu0 0
    %350 = vmatprep.subr.bf16.mxu0 0
    %351 = vmatpush1.bf16.msra.mxu0 0
    %352 = vmatprep.subr.bf16.mxu0 0
    %353 = vmatpush1.bf16.msra.mxu0 0
    %354 = vmatprep.subr.bf16.mxu0 0
    %355 = vmatpush1.bf16.msra.mxu0 0
    %356 = vmatprep.subr.bf16.mxu0 0
    %357 = vmatpush1.bf16.msra.mxu0 0
    %358 = vmatprep.subr.bf16.mxu0 0
    %359 = vmatpush1.bf16.msra.mxu0 0
    %360 = vmatprep.subr.bf16.mxu0 0
    %361 = vmatpush1.bf16.msra.mxu0 0
    %362 = vmatprep.subr.bf16.mxu0 0
    %363 = vmatpush1.bf16.msra.mxu0 0
    %364 = vmatprep.subr.bf16.mxu0 0
    %365 = vmatpush1.bf16.msra.mxu0 0
    %366 = vmatprep.subr.bf16.mxu0 0
    %367 = vmatpush1.bf16.msra.mxu0 0
    %368 = vmatprep.subr.bf16.mxu0 0
    %369 = vmatpush1.bf16.msra.mxu0 0
    %370 = vmatprep.subr.bf16.mxu0 0
    %371 = vmatpush1.bf16.msra.mxu0 0
    %372 = vmatprep.subr.bf16.mxu0 0
    %373 = vmatpush1.bf16.msra.mxu0 0
    %374 = vmatprep.mubr.bf16.mxu0 0
    %375 = vmatmul.mubr.bf16.gmra.mrb[0].mxu0 %v286
    %v376 = vpop.f32.mrb[0].mxu0
    %v377 = vadd.f32 %v180, %v376
    %v378 = vpop.f32.mrb[0].mxu0
    %v379 = vadd.f32 %v184, %v378
    %v380 = vpop.f32.mrb[0].mxu0
    %v381 = vadd.f32 %v180, %v380
    %v382 = vpop.f32.mrb[0].mxu0
    %v383 = vadd.f32 %v184, %v382
    %384 = vmatprep.mubr.bf16.mxu0 0
    %385 = vmatmul.mubr.bf16.gmra.mrb[0].mxu0 %v289
    %v386 = vpop.f32.mrb[0].mxu0
    %v387 = vadd.f32 %v180, %v386
    %v388 = vpop.f32.mrb[0].mxu0
    %v389 = vadd.f32 %v184, %v388
    %v390 = vpop.f32.mrb[0].mxu0
    %v391 = vpop.f32.mrb[0].mxu0
    %392 = vdwg.mxu0
    %393 = vmatprep.subr.bf16.mxu0 %v261
    %394 = vmatpush1.bf16.msra.mxu0 %v260
    %395 = vmatprep.subr.bf16.mxu0 %v268
    %396 = vmatpush1.bf16.msra.mxu0 %v267
    %397 = vmatprep.subr.bf16.mxu0 0
    %398 = vmatpush1.bf16.msra.mxu0 0
    %399 = vmatprep.subr.bf16.mxu0 0
    %400 = vmatpush1.bf16.msra.mxu0 0
    %401 = vmatprep.subr.bf16.mxu0 0
    %402 = vmatpush1.bf16.msra.mxu0 0
    %403 = vmatprep.subr.bf16.mxu0 0
    %404 = vmatpush1.bf16.msra.mxu0 0
    %405 = vmatprep.subr.bf16.mxu0 0
    %406 = vmatpush1.bf16.msra.mxu0 0
    %407 = vmatprep.subr.bf16.mxu0 0
    %408 = vmatpush1.bf16.msra.mxu0 0
    %409 = vmatprep.subr.bf16.mxu0 0
    %410 = vmatpush1.bf16.msra.mxu0 0
    %411 = vmatprep.subr.bf16.mxu0 0
    %412 = vmatpush1.bf16.msra.mxu0 0
    %413 = vmatprep.subr.bf16.mxu0 0
    %414 = vmatpush1.bf16.msra.mxu0 0
    %415 = vmatprep.subr.bf16.mxu0 0
    %416 = vmatpush1.bf16.msra.mxu0 0
    %417 = vmatprep.subr.bf16.mxu0 0
    %418 = vmatpush1.bf16.msra.mxu0 0
    %419 = vmatprep.subr.bf16.mxu0 0
    %420 = vmatpush1.bf16.msra.mxu0 0
    %421 = vmatprep.subr.bf16.mxu0 0
    %422 = vmatpush1.bf16.msra.mxu0 0
    %423 = vmatprep.subr.bf16.mxu0 0
    %424 = vmatpush1.bf16.msra.mxu0 0
    %425 = vmatprep.mubr.bf16.mxu0 0
    %426 = vmatmul.mubr.bf16.gmra.mrb[0].mxu0 %v286
    %v427 = vpop.f32.mrb[0].mxu0
    %v428 = vadd.f32 %v188, %v427
    %v429 = vpop.f32.mrb[0].mxu0
    %v430 = vadd.f32 %v192, %v429
    %v431 = vpop.f32.mrb[0].mxu0
    %v432 = vadd.f32 %v188, %v431
    %v433 = vpop.f32.mrb[0].mxu0
    %v434 = vadd.f32 %v192, %v433
    %435 = vmatprep.mubr.bf16.mxu0 0
    %436 = vmatmul.mubr.bf16.gmra.mrb[0].mxu0 %v289
    %v437 = vpop.f32.mrb[0].mxu0
    %v438 = vadd.f32 %v188, %v437
    %v439 = vpop.f32.mrb[0].mxu0
    %v440 = vadd.f32 %v192, %v439
    %v441 = vpop.f32.mrb[0].mxu0
    %v442 = vpop.f32.mrb[0].mxu0
    %443 = vdwg.mxu0
    %444 = vmatprep.subr.bf16.mxu0 0
    %445 = vmatpush1.bf16.msra.mxu0 %v262
    %446 = vmatprep.subr.bf16.mxu0 0
    %447 = vmatpush1.bf16.msra.mxu0 %v269
    %448 = vmatprep.subr.bf16.mxu0 0
    %449 = vmatpush1.bf16.msra.mxu0 0
    %450 = vmatprep.subr.bf16.mxu0 0
    %451 = vmatpush1.bf16.msra.mxu0 0
    %452 = vmatprep.subr.bf16.mxu0 0
    %453 = vmatpush1.bf16.msra.mxu0 0
    %454 = vmatprep.subr.bf16.mxu0 0
    %455 = vmatpush1.bf16.msra.mxu0 0
    %456 = vmatprep.subr.bf16.mxu0 0
    %457 = vmatpush1.bf16.msra.mxu0 0
    %458 = vmatprep.subr.bf16.mxu0 0
    %459 = vmatpush1.bf16.msra.mxu0 0
    %460 = vmatprep.subr.bf16.mxu0 0
    %461 = vmatpush1.bf16.msra.mxu0 0
    %462 = vmatprep.subr.bf16.mxu0 0
    %463 = vmatpush1.bf16.msra.mxu0 0
    %464 = vmatprep.subr.bf16.mxu0 0
    %465 = vmatpush1.bf16.msra.mxu0 0
    %466 = vmatprep.subr.bf16.mxu0 0
    %467 = vmatpush1.bf16.msra.mxu0 0
    %468 = vmatprep.subr.bf16.mxu0 0
    %469 = vmatpush1.bf16.msra.mxu0 0
    %470 = vmatprep.subr.bf16.mxu0 0
    %471 = vmatpush1.bf16.msra.mxu0 0
    %472 = vmatprep.subr.bf16.mxu0 0
    %473 = vmatpush1.bf16.msra.mxu0 0
    %474 = vmatprep.subr.bf16.mxu0 0
    %475 = vmatpush1.bf16.msra.mxu0 0
    %476 = vmatprep.mubr.bf16.mxu0 0
    %477 = vmatmul.mubr.bf16.gmra.mrb[0].mxu0 %v286
    %v478 = vpop.f32.mrb[0].mxu0
    %v479 = vadd.f32 %v196, %v478
    %v480 = vpop.f32.mrb[0].mxu0
    %v481 = vpop.f32.mrb[0].mxu0
    %v482 = vadd.f32 %v196, %v481
    %v483 = vpop.f32.mrb[0].mxu0
    %484 = vmatprep.mubr.bf16.mxu0 0
    %485 = vmatmul.mubr.bf16.gmra.mrb[0].mxu0 %v289
    %v486 = vpop.f32.mrb[0].mxu0
    %v487 = vadd.f32 %v196, %v486
    %v488 = vpop.f32.mrb[0].mxu0
    %v489 = vpop.f32.mrb[0].mxu0
    %v490 = vpop.f32.mrb[0].mxu0
    %491 = vdwg.mxu0
    %v492 = vpack.c.bf16 %v330, %v326
    %v493 = vpack.c.bf16 %v332, %v328
    %v494 = vpack.c.bf16 %v381, %v377
    %v495 = vpack.c.bf16 %v383, %v379
    %v496 = vpack.c.bf16 %v432, %v428
    %v497 = vpack.c.bf16 %v434, %v430
    %v498 = vpack.c.bf16 %v482, %v479
    %v499 = vpack.c.bf16 %v336, %v336
    %v500 = vpack.c.bf16 %v338, %v338
    %v501 = vpack.c.bf16 %v387, %v387
    %v502 = vpack.c.bf16 %v389, %v389
    %v503 = vpack.c.bf16 %v438, %v438
    %v504 = vpack.c.bf16 %v440, %v440
    %v505 = vpack.c.bf16 %v487, %v487
    %v506 = vld [vmem:[#allocation8] sm:$0xff]
    %v507 = vld [vmem:[#allocation8 + $0x8] sm:$0xff]
    %v508 = vld [vmem:[#allocation8 + $0x10] sm:$0xff]
    %v509 = vld [vmem:[#allocation8 + $0x18] sm:$0xf]
    %v510 = vld [vmem:[#allocation8 + $0x1c] sm:$0xff]
    %v511 = vld [vmem:[#allocation8 + $0x24] sm:$0xff]
    %v512 = vld [vmem:[#allocation8 + $0x2c] sm:$0xff]
    %v513 = vld [vmem:[#allocation8 + $0x34] sm:$0xf]
    %v514 = vld [vmem:[#allocation8 + $0x38] sm:$0xff]
    %v515 = vld [vmem:[#allocation8 + $0x40] sm:$0xff]
    %v516 = vld [vmem:[#allocation8 + $0x48] sm:$0xff]
    %v517 = vld [vmem:[#allocation8 + $0x50] sm:$0xf]
    %v518 = vld [vmem:[#allocation8 + $0x54] sm:$0xff]
    %v519 = vld [vmem:[#allocation8 + $0x5c] sm:$0xff]
    %v520 = vld [vmem:[#allocation8 + $0x64] sm:$0xff]
    %v521 = vld [vmem:[#allocation8 + $0x6c] sm:$0xf]
    %v522 = vld [vmem:[#allocation8 + $0x70] sm:$0xff]
    %v523 = vld [vmem:[#allocation8 + $0x78] sm:$0xff]
    %v524 = vld [vmem:[#allocation8 + $0x80] sm:$0xff]
    %v525 = vld [vmem:[#allocation8 + $0x88] sm:$0xf]
    %v526 = vld [vmem:[#allocation8 + $0x8c] sm:$0xff]
    %v527 = vld [vmem:[#allocation8 + $0x94] sm:$0xff]
    %v528 = vld [vmem:[#allocation8 + $0x9c] sm:$0xff]
    %v529 = vld [vmem:[#allocation8 + $0xa4] sm:$0xf]
    %v530 = vld [vmem:[#allocation8 + $0xa8] sm:$0xff]
    %v531 = vld [vmem:[#allocation8 + $0xb0] sm:$0xff]
    %v532 = vld [vmem:[#allocation8 + $0xb8] sm:$0xff]
    %v533 = vld [vmem:[#allocation8 + $0xc0] sm:$0xf]
    %v534 = vld [vmem:[#allocation8 + $0xc4] sm:$0xff]
    %v535 = vld [vmem:[#allocation8 + $0xcc] sm:$0xff]
    %v536 = vld [vmem:[#allocation8 + $0xd4] sm:$0xff]
    %v537 = vld [vmem:[#allocation8 + $0xdc] sm:$0xf]
    %v538 = vld [vmem:[#allocation8 + $0xe0] sm:$0xff]
    %v539 = vld [vmem:[#allocation8 + $0xe8] sm:$0xff]
    %v540 = vld [vmem:[#allocation8 + $0xf0] sm:$0xff]
    %v541 = vld [vmem:[#allocation8 + $0xf8] sm:$0xf]
    %v542 = vld [vmem:[#allocation8 + $0xfc] sm:$0xff]
    %v543 = vld [vmem:[#allocation8 + $0x104] sm:$0xff]
    %v544 = vld [vmem:[#allocation8 + $0x10c] sm:$0xff]
    %v545 = vld [vmem:[#allocation8 + $0x114] sm:$0xf]
    %v546 = vld [vmem:[#allocation8 + $0x118] sm:$0xff]
    %v547 = vld [vmem:[#allocation8 + $0x120] sm:$0xff]
    %v548 = vld [vmem:[#allocation8 + $0x128] sm:$0xff]
    %v549 = vld [vmem:[#allocation8 + $0x130] sm:$0xf]
    %v550 = vld [vmem:[#allocation8 + $0x134] sm:$0xff]
    %v551 = vld [vmem:[#allocation8 + $0x13c] sm:$0xff]
    %v552 = vld [vmem:[#allocation8 + $0x144] sm:$0xff]
    %v553 = vld [vmem:[#allocation8 + $0x14c] sm:$0xf]
    %v554 = vld [vmem:[#allocation8 + $0x150] sm:$0xff]
    %v555 = vld [vmem:[#allocation8 + $0x158] sm:$0xff]
    %v556 = vld [vmem:[#allocation8 + $0x160] sm:$0xff]
    %v557 = vld [vmem:[#allocation8 + $0x168] sm:$0xf]
    %v558 = vld [vmem:[#allocation8 + $0x16c] sm:$0xff]
    %v559 = vld [vmem:[#allocation8 + $0x174] sm:$0xff]
    %v560 = vld [vmem:[#allocation8 + $0x17c] sm:$0xff]
    %v561 = vld [vmem:[#allocation8 + $0x184] sm:$0xf]
    %v562 = vld [vmem:[#allocation8 + $0x188] sm:$0xff]
    %v563 = vld [vmem:[#allocation8 + $0x190] sm:$0xff]
    %v564 = vld [vmem:[#allocation8 + $0x198] sm:$0xff]
    %v565 = vld [vmem:[#allocation8 + $0x1a0] sm:$0xf]
    %v566 = vld [vmem:[#allocation8 + $0x1a4] sm:$0xff]
    %v567 = vld [vmem:[#allocation8 + $0x1ac] sm:$0xff]
    %v568 = vld [vmem:[#allocation8 + $0x1b4] sm:$0xff]
    %v569 = vld [vmem:[#allocation8 + $0x1bc] sm:$0xf]
    %v570 = vld [vmem:[#allocation8 + $0x1c0] sm:$0xff]
    %v571 = vld [vmem:[#allocation8 + $0x1c8] sm:$0xff]
    %v572 = vld [vmem:[#allocation8 + $0x1d0] sm:$0xff]
    %v573 = vld [vmem:[#allocation8 + $0x1d8] sm:$0xf]
    %v574 = vld [vmem:[#allocation8 + $0x1dc] sm:$0xff]
    %v575 = vld [vmem:[#allocation8 + $0x1e4] sm:$0xff]
    %v576 = vld [vmem:[#allocation8 + $0x1ec] sm:$0xff]
    %v577 = vld [vmem:[#allocation8 + $0x1f4] sm:$0xf]
    %v578 = vld [vmem:[#allocation8 + $0x1f8] sm:$0xff]
    %v579 = vld [vmem:[#allocation8 + $0x200] sm:$0xff]
    %v580 = vld [vmem:[#allocation8 + $0x208] sm:$0xff]
    %v581 = vld [vmem:[#allocation8 + $0x210] sm:$0xf]
    %v582 = vld [vmem:[#allocation8 + $0x214] sm:$0xff]
    %v583 = vld [vmem:[#allocation8 + $0x21c] sm:$0xff]
    %v584 = vld [vmem:[#allocation8 + $0x224] sm:$0xff]
    %v585 = vld [vmem:[#allocation8 + $0x22c] sm:$0xf]
    %v586 = vld [vmem:[#allocation8 + $0x230] sm:$0xff]
    %v587 = vld [vmem:[#allocation8 + $0x238] sm:$0xff]
    %v588 = vld [vmem:[#allocation8 + $0x240] sm:$0xff]
    %v589 = vld [vmem:[#allocation8 + $0x248] sm:$0xf]
    %v590 = vld [vmem:[#allocation8 + $0x24c] sm:$0xff]
    %v591 = vld [vmem:[#allocation8 + $0x254] sm:$0xff]
    %v592 = vld [vmem:[#allocation8 + $0x25c] sm:$0xff]
    %v593 = vld [vmem:[#allocation8 + $0x264] sm:$0xf]
    %v594 = vld [vmem:[#allocation8 + $0x268] sm:$0xff]
    %v595 = vld [vmem:[#allocation8 + $0x270] sm:$0xff]
    %v596 = vld [vmem:[#allocation8 + $0x278] sm:$0xff]
    %v597 = vld [vmem:[#allocation8 + $0x280] sm:$0xf]
    %v598 = vld [vmem:[#allocation8 + $0x284] sm:$0xff]
    %v599 = vld [vmem:[#allocation8 + $0x28c] sm:$0xff]
    %v600 = vld [vmem:[#allocation8 + $0x294] sm:$0xff]
    %v601 = vld [vmem:[#allocation8 + $0x29c] sm:$0xf]
    %v602 = vld [vmem:[#allocation8 + $0x2a0] sm:$0xff]
    %v603 = vld [vmem:[#allocation8 + $0x2a8] sm:$0xff]
    %v604 = vld [vmem:[#allocation8 + $0x2b0] sm:$0xff]
    %v605 = vld [vmem:[#allocation8 + $0x2b8] sm:$0xf]
    %v606 = vld [vmem:[#allocation8 + $0x2bc] sm:$0xff]
    %v607 = vld [vmem:[#allocation8 + $0x2c4] sm:$0xff]
    %v608 = vld [vmem:[#allocation8 + $0x2cc] sm:$0xff]
    %v609 = vld [vmem:[#allocation8 + $0x2d4] sm:$0xf]
    %v610 = vld [vmem:[#allocation8 + $0x2d8] sm:$0xff]
    %v611 = vld [vmem:[#allocation8 + $0x2e0] sm:$0xff]
    %v612 = vld [vmem:[#allocation8 + $0x2e8] sm:$0xff]
    %v613 = vld [vmem:[#allocation8 + $0x2f0] sm:$0xf]
    %v614 = vld [vmem:[#allocation8 + $0x2f4] sm:$0xff]
    %v615 = vld [vmem:[#allocation8 + $0x2fc] sm:$0xff]
    %v616 = vld [vmem:[#allocation8 + $0x304] sm:$0xff]
    %v617 = vld [vmem:[#allocation8 + $0x30c] sm:$0xf]
    %v618 = vld [vmem:[#allocation8 + $0x310] sm:$0xff]
    %v619 = vld [vmem:[#allocation8 + $0x318] sm:$0xff]
    %v620 = vld [vmem:[#allocation8 + $0x320] sm:$0xff]
    %v621 = vld [vmem:[#allocation8 + $0x328] sm:$0xf]
    %v622 = vld [vmem:[#allocation8 + $0x32c] sm:$0xff]
    %v623 = vld [vmem:[#allocation8 + $0x334] sm:$0xff]
    %v624 = vld [vmem:[#allocation8 + $0x33c] sm:$0xff]
    %v625 = vld [vmem:[#allocation8 + $0x344] sm:$0xf]
    %v626 = vld [vmem:[#allocation8 + $0x348] sm:$0xff]
    %v627 = vld [vmem:[#allocation8 + $0x350] sm:$0xff]
    %v628 = vld [vmem:[#allocation8 + $0x358] sm:$0xff]
    %v629 = vld [vmem:[#allocation8 + $0x360] sm:$0xf]
    %v630 = vld [vmem:[#allocation8 + $0x364] sm:$0xff]
    %v631 = vld [vmem:[#allocation8 + $0x36c] sm:$0xff]
    %v632 = vld [vmem:[#allocation8 + $0x374] sm:$0xff]
    %v633 = vld [vmem:[#allocation8 + $0x37c] sm:$0xf]
    %v634 = vld [vmem:[#allocation8 + $0x380] sm:$0xff]
    %v635 = vld [vmem:[#allocation8 + $0x388] sm:$0xff]
    %v636 = vld [vmem:[#allocation8 + $0x390] sm:$0xff]
    %v637 = vld [vmem:[#allocation8 + $0x398] sm:$0xf]
    %v638 = vld [vmem:[#allocation8 + $0x39c] sm:$0xff]
    %v639 = vld [vmem:[#allocation8 + $0x3a4] sm:$0xff]
    %v640 = vld [vmem:[#allocation8 + $0x3ac] sm:$0xff]
    %v641 = vld [vmem:[#allocation8 + $0x3b4] sm:$0xf]
    %v642 = vld [vmem:[#allocation8 + $0x3b8] sm:$0xff]
    %v643 = vld [vmem:[#allocation8 + $0x3c0] sm:$0xff]
    %v644 = vld [vmem:[#allocation8 + $0x3c8] sm:$0xff]
    %v645 = vld [vmem:[#allocation8 + $0x3d0] sm:$0xf]
    %v646 = vld [vmem:[#allocation8 + $0x3d4] sm:$0xff]
    %v647 = vld [vmem:[#allocation8 + $0x3dc] sm:$0xff]
    %v648 = vld [vmem:[#allocation8 + $0x3e4] sm:$0xff]
    %v649 = vld [vmem:[#allocation8 + $0x3ec] sm:$0xf]
    %v650 = vld [vmem:[#allocation8 + $0x3f0] sm:$0xff]
    %v651 = vld [vmem:[#allocation8 + $0x3f8] sm:$0xff]
    %v652 = vld [vmem:[#allocation8 + $0x400] sm:$0xff]
    %v653 = vld [vmem:[#allocation8 + $0x408] sm:$0xf]
    %v654 = vld [vmem:[#allocation8 + $0x40c] sm:$0xff]
    %v655 = vld [vmem:[#allocation8 + $0x414] sm:$0xff]
    %v656 = vld [vmem:[#allocation8 + $0x41c] sm:$0xff]
    %v657 = vld [vmem:[#allocation8 + $0x424] sm:$0xf]
    %v658 = vld [vmem:[#allocation8 + $0x428] sm:$0xff]
    %v659 = vld [vmem:[#allocation8 + $0x430] sm:$0xff]
    %v660 = vld [vmem:[#allocation8 + $0x438] sm:$0xff]
    %v661 = vld [vmem:[#allocation8 + $0x440] sm:$0xf]
    %v662 = vld [vmem:[#allocation8 + $0x444] sm:$0xff]
    %v663 = vld [vmem:[#allocation8 + $0x44c] sm:$0xff]
    %v664 = vld [vmem:[#allocation8 + $0x454] sm:$0xff]
    %v665 = vld [vmem:[#allocation8 + $0x45c] sm:$0xf]
    %v666 = vld [vmem:[#allocation8 + $0x460] sm:$0xff]
    %v667 = vld [vmem:[#allocation8 + $0x468] sm:$0xff]
    %v668 = vld [vmem:[#allocation8 + $0x470] sm:$0xff]
    %v669 = vld [vmem:[#allocation8 + $0x478] sm:$0xf]
    %v670 = vld [vmem:[#allocation8 + $0x47c] sm:$0xff]
    %v671 = vld [vmem:[#allocation8 + $0x484] sm:$0xff]
    %v672 = vld [vmem:[#allocation8 + $0x48c] sm:$0xff]
    %v673 = vld [vmem:[#allocation8 + $0x494] sm:$0xf]
    %v674 = vld [vmem:[#allocation8 + $0x498] sm:$0xff]
    %v675 = vld [vmem:[#allocation8 + $0x4a0] sm:$0xff]
    %v676 = vld [vmem:[#allocation8 + $0x4a8] sm:$0xff]
    %v677 = vld [vmem:[#allocation8 + $0x4b0] sm:$0xf]
    %v678 = vld [vmem:[#allocation8 + $0x4b4] sm:$0xff]
    %v679 = vld [vmem:[#allocation8 + $0x4bc] sm:$0xff]
    %v680 = vld [vmem:[#allocation8 + $0x4c4] sm:$0xff]
    %v681 = vld [vmem:[#allocation8 + $0x4cc] sm:$0xf]
    %v682 = vld [vmem:[#allocation8 + $0x4d0] sm:$0xff]
    %v683 = vld [vmem:[#allocation8 + $0x4d8] sm:$0xff]
    %v684 = vld [vmem:[#allocation8 + $0x4e0] sm:$0xff]
    %v685 = vld [vmem:[#allocation8 + $0x4e8] sm:$0xf]
    %v686 = vld [vmem:[#allocation8 + $0x4ec] sm:$0xff]
    %v687 = vld [vmem:[#allocation8 + $0x4f4] sm:$0xff]
    %v688 = vld [vmem:[#allocation8 + $0x4fc] sm:$0xff]
    %v689 = vld [vmem:[#allocation8 + $0x504] sm:$0xf]
    %v690 = vld [vmem:[#allocation8 + $0x508] sm:$0xff]
    %v691 = vld [vmem:[#allocation8 + $0x510] sm:$0xff]
    %v692 = vld [vmem:[#allocation8 + $0x518] sm:$0xff]
    %v693 = vld [vmem:[#allocation8 + $0x520] sm:$0xf]
    %v694 = vld [vmem:[#allocation8 + $0x524] sm:$0xff]
    %v695 = vld [vmem:[#allocation8 + $0x52c] sm:$0xff]
    %v696 = vld [vmem:[#allocation8 + $0x534] sm:$0xff]
    %v697 = vld [vmem:[#allocation8 + $0x53c] sm:$0xf]
    %v698 = vld [vmem:[#allocation8 + $0x540] sm:$0xff]
    %v699 = vld [vmem:[#allocation8 + $0x548] sm:$0xff]
    %v700 = vld [vmem:[#allocation8 + $0x550] sm:$0xff]
    %v701 = vld [vmem:[#allocation8 + $0x558] sm:$0xf]
    %v702 = vld [vmem:[#allocation8 + $0x55c] sm:$0xff]
    %v703 = vld [vmem:[#allocation8 + $0x564] sm:$0xff]
    %v704 = vld [vmem:[#allocation8 + $0x56c] sm:$0xff]
    %v705 = vld [vmem:[#allocation8 + $0x574] sm:$0xf]
    %v706 = vld [vmem:[#allocation8 + $0x578] sm:$0xff]
    %v707 = vld [vmem:[#allocation8 + $0x580] sm:$0xff]
    %v708 = vld [vmem:[#allocation8 + $0x588] sm:$0xff]
    %v709 = vld [vmem:[#allocation8 + $0x590] sm:$0xf]
    %v710 = vld [vmem:[#allocation8 + $0x594] sm:$0xff]
    %v711 = vld [vmem:[#allocation8 + $0x59c] sm:$0xff]
    %v712 = vld [vmem:[#allocation8 + $0x5a4] sm:$0xff]
    %v713 = vld [vmem:[#allocation8 + $0x5ac] sm:$0xf]
    %v714 = vld [vmem:[#allocation8 + $0x5b0] sm:$0xff]
    %v715 = vld [vmem:[#allocation8 + $0x5b8] sm:$0xff]
    %v716 = vld [vmem:[#allocation8 + $0x5c0] sm:$0xff]
    %v717 = vld [vmem:[#allocation8 + $0x5c8] sm:$0xf]
    %v718 = vld [vmem:[#allocation8 + $0x5cc] sm:$0xff]
    %v719 = vld [vmem:[#allocation8 + $0x5d4] sm:$0xff]
    %v720 = vld [vmem:[#allocation8 + $0x5dc] sm:$0xff]
    %v721 = vld [vmem:[#allocation8 + $0x5e4] sm:$0xf]
    %v722 = vld [vmem:[#allocation8 + $0x5e8] sm:$0xff]
    %v723 = vld [vmem:[#allocation8 + $0x5f0] sm:$0xff]
    %v724 = vld [vmem:[#allocation8 + $0x5f8] sm:$0xff]
    %v725 = vld [vmem:[#allocation8 + $0x600] sm:$0xf]
    %v726 = vld [vmem:[#allocation8 + $0x604] sm:$0xff]
    %v727 = vld [vmem:[#allocation8 + $0x60c] sm:$0xff]
    %v728 = vld [vmem:[#allocation8 + $0x614] sm:$0xff]
    %v729 = vld [vmem:[#allocation8 + $0x61c] sm:$0xf]
    %v730 = vld [vmem:[#allocation8 + $0x620] sm:$0xff]
    %v731 = vld [vmem:[#allocation8 + $0x628] sm:$0xff]
    %v732 = vld [vmem:[#allocation8 + $0x630] sm:$0xff]
    %v733 = vld [vmem:[#allocation8 + $0x638] sm:$0xf]
    %v734 = vld [vmem:[#allocation8 + $0x63c] sm:$0xff]
    %v735 = vld [vmem:[#allocation8 + $0x644] sm:$0xff]
    %v736 = vld [vmem:[#allocation8 + $0x64c] sm:$0xff]
    %v737 = vld [vmem:[#allocation8 + $0x654] sm:$0xf]
    %v738 = vld [vmem:[#allocation8 + $0x658] sm:$0xff]
    %v739 = vld [vmem:[#allocation8 + $0x660] sm:$0xff]
    %v740 = vld [vmem:[#allocation8 + $0x668] sm:$0xff]
    %v741 = vld [vmem:[#allocation8 + $0x670] sm:$0xf]
    %v742 = vld [vmem:[#allocation8 + $0x674] sm:$0xff]
    %v743 = vld [vmem:[#allocation8 + $0x67c] sm:$0xff]
    %v744 = vld [vmem:[#allocation8 + $0x684] sm:$0xff]
    %v745 = vld [vmem:[#allocation8 + $0x68c] sm:$0xf]
    %v746 = vld [vmem:[#allocation8 + $0x690] sm:$0xff]
    %v747 = vld [vmem:[#allocation8 + $0x698] sm:$0xff]
    %v748 = vld [vmem:[#allocation8 + $0x6a0] sm:$0xff]
    %v749 = vld [vmem:[#allocation8 + $0x6a8] sm:$0xf]
    %v750 = vld [vmem:[#allocation8 + $0x6ac] sm:$0xff]
    %v751 = vld [vmem:[#allocation8 + $0x6b4] sm:$0xff]
    %v752 = vld [vmem:[#allocation8 + $0x6bc] sm:$0xff]
    %v753 = vld [vmem:[#allocation8 + $0x6c4] sm:$0xf]
    %v754 = vld [vmem:[#allocation8 + $0x6c8] sm:$0xff]
    %v755 = vld [vmem:[#allocation8 + $0x6d0] sm:$0xff]
    %v756 = vld [vmem:[#allocation8 + $0x6d8] sm:$0xff]
    %v757 = vld [vmem:[#allocation8 + $0x6e0] sm:$0xf]
    %v758 = vld [vmem:[#allocation8 + $0x6e4] sm:$0xff]
    %v759 = vld [vmem:[#allocation8 + $0x6ec] sm:$0xff]
    %v760 = vld [vmem:[#allocation8 + $0x6f4] sm:$0xff]
    %v761 = vld [vmem:[#allocation8 + $0x6fc] sm:$0xf]
    %v762 = vld [vmem:[#allocation8 + $0x700] sm:$0xff]
    %v763 = vld [vmem:[#allocation8 + $0x708] sm:$0xff]
    %v764 = vld [vmem:[#allocation8 + $0x710] sm:$0xff]
    %v765 = vld [vmem:[#allocation8 + $0x718] sm:$0xf]
    %v766 = vld [vmem:[#allocation8 + $0x71c] sm:$0xff]
    %v767 = vld [vmem:[#allocation8 + $0x724] sm:$0xff]
    %v768 = vld [vmem:[#allocation8 + $0x72c] sm:$0xff]
    %v769 = vld [vmem:[#allocation8 + $0x734] sm:$0xf]
    %v770 = vld [vmem:[#allocation8 + $0x738] sm:$0xff]
    %v771 = vld [vmem:[#allocation8 + $0x740] sm:$0xff]
    %v772 = vld [vmem:[#allocation8 + $0x748] sm:$0xff]
    %v773 = vld [vmem:[#allocation8 + $0x750] sm:$0xf]
    %v774 = vld [vmem:[#allocation8 + $0x754] sm:$0xff]
    %v775 = vld [vmem:[#allocation8 + $0x75c] sm:$0xff]
    %v776 = vld [vmem:[#allocation8 + $0x764] sm:$0xff]
    %v777 = vld [vmem:[#allocation8 + $0x76c] sm:$0xf]
    %v778 = vld [vmem:[#allocation8 + $0x770] sm:$0xff]
    %v779 = vld [vmem:[#allocation8 + $0x778] sm:$0xff]
    %v780 = vld [vmem:[#allocation8 + $0x780] sm:$0xff]
    %v781 = vld [vmem:[#allocation8 + $0x788] sm:$0xf]
    %v782 = vld [vmem:[#allocation8 + $0x78c] sm:$0xff]
    %v783 = vld [vmem:[#allocation8 + $0x794] sm:$0xff]
    %v784 = vld [vmem:[#allocation8 + $0x79c] sm:$0xff]
    %v785 = vld [vmem:[#allocation8 + $0x7a4] sm:$0xf]
    %v786 = vld [vmem:[#allocation8 + $0x7a8] sm:$0xff]
    %v787 = vld [vmem:[#allocation8 + $0x7b0] sm:$0xff]
    %v788 = vld [vmem:[#allocation8 + $0x7b8] sm:$0xff]
    %v789 = vld [vmem:[#allocation8 + $0x7c0] sm:$0xf]
    %v790 = vld [vmem:[#allocation8 + $0x7c4] sm:$0xff]
    %v791 = vld [vmem:[#allocation8 + $0x7cc] sm:$0xff]
    %v792 = vld [vmem:[#allocation8 + $0x7d4] sm:$0xff]
    %v793 = vld [vmem:[#allocation8 + $0x7dc] sm:$0xf]
    %v794 = vld [vmem:[#allocation8 + $0x7e0] sm:$0xff]
    %v795 = vld [vmem:[#allocation8 + $0x7e8] sm:$0xff]
    %v796 = vld [vmem:[#allocation8 + $0x7f0] sm:$0xff]
    %v797 = vld [vmem:[#allocation8 + $0x7f8] sm:$0xf]
    %v798 = vld [vmem:[#allocation8 + $0x7fc] sm:$0xff]
    %v799 = vld [vmem:[#allocation8 + $0x804] sm:$0xff]
    %v800 = vld [vmem:[#allocation8 + $0x80c] sm:$0xff]
    %v801 = vld [vmem:[#allocation8 + $0x814] sm:$0xf]
    %v802 = vld [vmem:[#allocation8 + $0x818] sm:$0xff]
    %v803 = vld [vmem:[#allocation8 + $0x820] sm:$0xff]
    %v804 = vld [vmem:[#allocation8 + $0x828] sm:$0xff]
    %v805 = vld [vmem:[#allocation8 + $0x830] sm:$0xf]
    %v806 = vld [vmem:[#allocation8 + $0x834] sm:$0xff]
    %v807 = vld [vmem:[#allocation8 + $0x83c] sm:$0xff]
    %v808 = vld [vmem:[#allocation8 + $0x844] sm:$0xff]
    %v809 = vld [vmem:[#allocation8 + $0x84c] sm:$0xf]
    %v810 = vld [vmem:[#allocation8 + $0x850] sm:$0xff]
    %v811 = vld [vmem:[#allocation8 + $0x858] sm:$0xff]
    %v812 = vld [vmem:[#allocation8 + $0x860] sm:$0xff]
    %v813 = vld [vmem:[#allocation8 + $0x868] sm:$0xf]
    %v814 = vld [vmem:[#allocation8 + $0x86c] sm:$0xff]
    %v815 = vld [vmem:[#allocation8 + $0x874] sm:$0xff]
    %v816 = vld [vmem:[#allocation8 + $0x87c] sm:$0xff]
    %v817 = vld [vmem:[#allocation8 + $0x884] sm:$0xf]
    %v818 = vld [vmem:[#allocation8 + $0x888] sm:$0xff]
    %v819 = vld [vmem:[#allocation8 + $0x890] sm:$0xff]
    %v820 = vld [vmem:[#allocation8 + $0x898] sm:$0xff]
    %v821 = vld [vmem:[#allocation8 + $0x8a0] sm:$0xf]
    %v822 = vld [vmem:[#allocation8 + $0x8a4] sm:$0xff]
    %v823 = vld [vmem:[#allocation8 + $0x8ac] sm:$0xff]
    %v824 = vld [vmem:[#allocation8 + $0x8b4] sm:$0xff]
    %v825 = vld [vmem:[#allocation8 + $0x8bc] sm:$0xf]
    %v826 = vld [vmem:[#allocation8 + $0x8c0] sm:$0xff]
    %v827 = vld [vmem:[#allocation8 + $0x8c8] sm:$0xff]
    %v828 = vld [vmem:[#allocation8 + $0x8d0] sm:$0xff]
    %v829 = vld [vmem:[#allocation8 + $0x8d8] sm:$0xf]
    %v830 = vld [vmem:[#allocation8 + $0x8dc] sm:$0xff]
    %v831 = vld [vmem:[#allocation8 + $0x8e4] sm:$0xff]
    %v832 = vld [vmem:[#allocation8 + $0x8ec] sm:$0xff]
    %v833 = vld [vmem:[#allocation8 + $0x8f4] sm:$0xf]
    %v834 = vld [vmem:[#allocation8 + $0x8f8] sm:$0xff]
    %v835 = vld [vmem:[#allocation8 + $0x900] sm:$0xff]
    %v836 = vld [vmem:[#allocation8 + $0x908] sm:$0xff]
    %v837 = vld [vmem:[#allocation8 + $0x910] sm:$0xf]
    %v838 = vld [vmem:[#allocation8 + $0x914] sm:$0xff]
    %v839 = vld [vmem:[#allocation8 + $0x91c] sm:$0xff]
    %v840 = vld [vmem:[#allocation8 + $0x924] sm:$0xff]
    %v841 = vld [vmem:[#allocation8 + $0x92c] sm:$0xf]
    %v842 = vld [vmem:[#allocation8 + $0x930] sm:$0xff]
    %v843 = vld [vmem:[#allocation8 + $0x938] sm:$0xff]
    %v844 = vld [vmem:[#allocation8 + $0x940] sm:$0xff]
    %v845 = vld [vmem:[#allocation8 + $0x948] sm:$0xf]
    %v846 = vld [vmem:[#allocation8 + $0x94c] sm:$0xff]
    %v847 = vld [vmem:[#allocation8 + $0x954] sm:$0xff]
    %v848 = vld [vmem:[#allocation8 + $0x95c] sm:$0xff]
    %v849 = vld [vmem:[#allocation8 + $0x964] sm:$0xf]
    %v850 = vld [vmem:[#allocation8 + $0x968] sm:$0xff]
    %v851 = vld [vmem:[#allocation8 + $0x970] sm:$0xff]
    %v852 = vld [vmem:[#allocation8 + $0x978] sm:$0xff]
    %v853 = vld [vmem:[#allocation8 + $0x980] sm:$0xf]
    %v854 = vld [vmem:[#allocation8 + $0x984] sm:$0xff]
    %v855 = vld [vmem:[#allocation8 + $0x98c] sm:$0xff]
    %v856 = vld [vmem:[#allocation8 + $0x994] sm:$0xff]
    %v857 = vld [vmem:[#allocation8 + $0x99c] sm:$0xf]
    %v858 = vld [vmem:[#allocation8 + $0x9a0] sm:$0xff]
    %v859 = vld [vmem:[#allocation8 + $0x9a8] sm:$0xff]
    %v860 = vld [vmem:[#allocation8 + $0x9b0] sm:$0xff]
    %v861 = vld [vmem:[#allocation8 + $0x9b8] sm:$0xf]
    %v862 = vld [vmem:[#allocation8 + $0x9bc] sm:$0xff]
    %v863 = vld [vmem:[#allocation8 + $0x9c4] sm:$0xff]
    %v864 = vld [vmem:[#allocation8 + $0x9cc] sm:$0xff]
    %v865 = vld [vmem:[#allocation8 + $0x9d4] sm:$0xf]
    %v866 = vld [vmem:[#allocation8 + $0x9d8] sm:$0xff]
    %v867 = vld [vmem:[#allocation8 + $0x9e0] sm:$0xff]
    %v868 = vld [vmem:[#allocation8 + $0x9e8] sm:$0xff]
    %v869 = vld [vmem:[#allocation8 + $0x9f0] sm:$0xf]
    %v870 = vld [vmem:[#allocation8 + $0x9f4] sm:$0xff]
    %v871 = vld [vmem:[#allocation8 + $0x9fc] sm:$0xff]
    %v872 = vld [vmem:[#allocation8 + $0xa04] sm:$0xff]
    %v873 = vld [vmem:[#allocation8 + $0xa0c] sm:$0xf]
    %v874 = vld [vmem:[#allocation8 + $0xa10] sm:$0xff]
    %v875 = vld [vmem:[#allocation8 + $0xa18] sm:$0xff]
    %v876 = vld [vmem:[#allocation8 + $0xa20] sm:$0xff]
    %v877 = vld [vmem:[#allocation8 + $0xa28] sm:$0xf]
    %v878 = vld [vmem:[#allocation8 + $0xa2c] sm:$0xff]
    %v879 = vld [vmem:[#allocation8 + $0xa34] sm:$0xff]
    %v880 = vld [vmem:[#allocation8 + $0xa3c] sm:$0xff]
    %v881 = vld [vmem:[#allocation8 + $0xa44] sm:$0xf]
    %v882 = vld [vmem:[#allocation8 + $0xa48] sm:$0xff]
    %v883 = vld [vmem:[#allocation8 + $0xa50] sm:$0xff]
    %v884 = vld [vmem:[#allocation8 + $0xa58] sm:$0xff]
    %v885 = vld [vmem:[#allocation8 + $0xa60] sm:$0xf]
    %v886 = vld [vmem:[#allocation8 + $0xa64] sm:$0xff]
    %v887 = vld [vmem:[#allocation8 + $0xa6c] sm:$0xff]
    %v888 = vld [vmem:[#allocation8 + $0xa74] sm:$0xff]
    %v889 = vld [vmem:[#allocation8 + $0xa7c] sm:$0xf]
    %v890 = vld [vmem:[#allocation8 + $0xa80] sm:$0xff]
    %v891 = vld [vmem:[#allocation8 + $0xa88] sm:$0xff]
    %v892 = vld [vmem:[#allocation8 + $0xa90] sm:$0xff]
    %v893 = vld [vmem:[#allocation8 + $0xa98] sm:$0xf]
    %v894 = vld [vmem:[#allocation8 + $0xa9c] sm:$0xff]
    %v895 = vld [vmem:[#allocation8 + $0xaa4] sm:$0xff]
    %v896 = vld [vmem:[#allocation8 + $0xaac] sm:$0xff]
    %v897 = vld [vmem:[#allocation8 + $0xab4] sm:$0xf]
    %v898 = vld [vmem:[#allocation8 + $0xab8] sm:$0xff]
    %v899 = vld [vmem:[#allocation8 + $0xac0] sm:$0xff]
    %v900 = vld [vmem:[#allocation8 + $0xac8] sm:$0xff]
    %v901 = vld [vmem:[#allocation8 + $0xad0] sm:$0xf]
    %v902 = vld [vmem:[#allocation8 + $0xad4] sm:$0xff]
    %v903 = vld [vmem:[#allocation8 + $0xadc] sm:$0xff]
    %v904 = vld [vmem:[#allocation8 + $0xae4] sm:$0xff]
    %v905 = vld [vmem:[#allocation8 + $0xaec] sm:$0xf]
    %v906 = vld [vmem:[#allocation8 + $0xaf0] sm:$0xff]
    %v907 = vld [vmem:[#allocation8 + $0xaf8] sm:$0xff]
    %v908 = vld [vmem:[#allocation8 + $0xb00] sm:$0xff]
    %v909 = vld [vmem:[#allocation8 + $0xb08] sm:$0xf]
    %v910 = vld [vmem:[#allocation8 + $0xb0c] sm:$0xff]
    %v911 = vld [vmem:[#allocation8 + $0xb14] sm:$0xff]
    %v912 = vld [vmem:[#allocation8 + $0xb1c] sm:$0xff]
    %v913 = vld [vmem:[#allocation8 + $0xb24] sm:$0xf]
    %v914 = vld [vmem:[#allocation8 + $0xb28] sm:$0xff]
    %v915 = vld [vmem:[#allocation8 + $0xb30] sm:$0xff]
    %v916 = vld [vmem:[#allocation8 + $0xb38] sm:$0xff]
    %v917 = vld [vmem:[#allocation8 + $0xb40] sm:$0xf]
    %v918 = vld [vmem:[#allocation8 + $0xb44] sm:$0xff]
    %v919 = vld [vmem:[#allocation8 + $0xb4c] sm:$0xff]
    %v920 = vld [vmem:[#allocation8 + $0xb54] sm:$0xff]
    %v921 = vld [vmem:[#allocation8 + $0xb5c] sm:$0xf]
    %v922 = vld [vmem:[#allocation8 + $0xb60] sm:$0xff]
    %v923 = vld [vmem:[#allocation8 + $0xb68] sm:$0xff]
    %v924 = vld [vmem:[#allocation8 + $0xb70] sm:$0xff]
    %v925 = vld [vmem:[#allocation8 + $0xb78] sm:$0xf]
    %v926 = vld [vmem:[#allocation8 + $0xb7c] sm:$0xff]
    %v927 = vld [vmem:[#allocation8 + $0xb84] sm:$0xff]
    %v928 = vld [vmem:[#allocation8 + $0xb8c] sm:$0xff]
    %v929 = vld [vmem:[#allocation8 + $0xb94] sm:$0xf]
    %v930 = vld [vmem:[#allocation8 + $0xb98] sm:$0xff]
    %v931 = vld [vmem:[#allocation8 + $0xba0] sm:$0xff]
    %v932 = vld [vmem:[#allocation8 + $0xba8] sm:$0xff]
    %v933 = vld [vmem:[#allocation8 + $0xbb0] sm:$0xf]
    %v934 = vld [vmem:[#allocation8 + $0xbb4] sm:$0xff]
    %v935 = vld [vmem:[#allocation8 + $0xbbc] sm:$0xff]
    %v936 = vld [vmem:[#allocation8 + $0xbc4] sm:$0xff]
    %v937 = vld [vmem:[#allocation8 + $0xbcc] sm:$0xf]
    %v938 = vld [vmem:[#allocation8 + $0xbd0] sm:$0xff]
    %v939 = vld [vmem:[#allocation8 + $0xbd8] sm:$0xff]
    %v940 = vld [vmem:[#allocation8 + $0xbe0] sm:$0xff]
    %v941 = vld [vmem:[#allocation8 + $0xbe8] sm:$0xf]
    %v942 = vld [vmem:[#allocation8 + $0xbec] sm:$0xff]
    %v943 = vld [vmem:[#allocation8 + $0xbf4] sm:$0xff]
    %v944 = vld [vmem:[#allocation8 + $0xbfc] sm:$0xff]
    %v945 = vld [vmem:[#allocation8 + $0xc04] sm:$0xf]
    %v946 = vld [vmem:[#allocation8 + $0xc08] sm:$0xff]
    %v947 = vld [vmem:[#allocation8 + $0xc10] sm:$0xff]
    %v948 = vld [vmem:[#allocation8 + $0xc18] sm:$0xff]
    %v949 = vld [vmem:[#allocation8 + $0xc20] sm:$0xf]
    %v950 = vld [vmem:[#allocation8 + $0xc24] sm:$0xff]
    %v951 = vld [vmem:[#allocation8 + $0xc2c] sm:$0xff]
    %v952 = vld [vmem:[#allocation8 + $0xc34] sm:$0xff]
    %v953 = vld [vmem:[#allocation8 + $0xc3c] sm:$0xf]
    %v954 = vld [vmem:[#allocation10] sm:$0xff]
    %v956 = vlaneseq
    %v957 = vshrl.u32 %v956, 7
    %v958 = vsub.s32 0, %v957
    %v959 = vrot.slane %v954, %v958
    %v960 = vlaneseq
    %v961 = vshrl.u32 %v960, 7
    %v962 = vsub.s32 1, %v961
    %v963 = vrot.slane %v954, %v962
    %v964 = vlaneseq
    %v965 = vshrl.u32 %v964, 7
    %v966 = vsub.s32 2, %v965
    %v967 = vrot.slane %v954, %v966
    %v968 = vlaneseq
    %v969 = vshrl.u32 %v968, 7
    %v970 = vsub.s32 3, %v969
    %v971 = vrot.slane %v954, %v970
    %v972 = vlaneseq
    %v973 = vshrl.u32 %v972, 7
    %v974 = vsub.s32 4, %v973
    %v975 = vrot.slane %v954, %v974
    %v976 = vlaneseq
    %v977 = vshrl.u32 %v976, 7
    %v978 = vsub.s32 5, %v977
    %v979 = vrot.slane %v954, %v978
    %v980 = vlaneseq
    %v981 = vshrl.u32 %v980, 7
    %v982 = vsub.s32 6, %v981
    %v983 = vrot.slane %v954, %v982
    %v1439 = vunpack.c.l.b16 %v506
    %v1440 = vunpack.c.h.b16 %v506
    %v1441 = vunpack.c.l.b16 %v507
    %v1442 = vunpack.c.h.b16 %v507
    %v1443 = vunpack.c.l.b16 %v508
    %v1444 = vunpack.c.h.b16 %v508
    %v1445 = vunpack.c.l.b16 %v509
    %v1446 = vunpack.c.l.b16 %v510
    %v1447 = vunpack.c.h.b16 %v510
    %v1448 = vunpack.c.l.b16 %v511
    %v1449 = vunpack.c.h.b16 %v511
    %v1450 = vunpack.c.l.b16 %v512
    %v1451 = vunpack.c.h.b16 %v512
    %v1452 = vunpack.c.l.b16 %v513
    %v1453 = vunpack.c.l.b16 %v514
    %v1454 = vunpack.c.h.b16 %v514
    %v1455 = vunpack.c.l.b16 %v515
    %v1456 = vunpack.c.h.b16 %v515
    %v1457 = vunpack.c.l.b16 %v516
    %v1458 = vunpack.c.h.b16 %v516
    %v1459 = vunpack.c.l.b16 %v517
    %v1460 = vunpack.c.l.b16 %v518
    %v1461 = vunpack.c.h.b16 %v518
    %v1462 = vunpack.c.l.b16 %v519
    %v1463 = vunpack.c.h.b16 %v519
    %v1464 = vunpack.c.l.b16 %v520
    %v1465 = vunpack.c.h.b16 %v520
    %v1466 = vunpack.c.l.b16 %v521
    %v1467 = vunpack.c.l.b16 %v522
    %v1468 = vunpack.c.h.b16 %v522
    %v1469 = vunpack.c.l.b16 %v523
    %v1470 = vunpack.c.h.b16 %v523
    %v1471 = vunpack.c.l.b16 %v524
    %v1472 = vunpack.c.h.b16 %v524
    %v1473 = vunpack.c.l.b16 %v525
    %v1474 = vunpack.c.l.b16 %v526
    %v1475 = vunpack.c.h.b16 %v526
    %v1476 = vunpack.c.l.b16 %v527
    %v1477 = vunpack.c.h.b16 %v527
    %v1478 = vunpack.c.l.b16 %v528
    %v1479 = vunpack.c.h.b16 %v528
    %v1480 = vunpack.c.l.b16 %v529
    %v1481 = vunpack.c.l.b16 %v530
    %v1482 = vunpack.c.h.b16 %v530
    %v1483 = vunpack.c.l.b16 %v531
    %v1484 = vunpack.c.h.b16 %v531
    %v1485 = vunpack.c.l.b16 %v532
    %v1486 = vunpack.c.h.b16 %v532
    %v1487 = vunpack.c.l.b16 %v533
    %v1488 = vunpack.c.l.b16 %v534
    %v1489 = vunpack.c.h.b16 %v534
    %v1490 = vunpack.c.l.b16 %v535
    %v1491 = vunpack.c.h.b16 %v535
    %v1492 = vunpack.c.l.b16 %v536
    %v1493 = vunpack.c.h.b16 %v536
    %v1494 = vunpack.c.l.b16 %v537
    %v1495 = vunpack.c.l.b16 %v538
    %v1496 = vunpack.c.h.b16 %v538
    %v1497 = vunpack.c.l.b16 %v539
    %v1498 = vunpack.c.h.b16 %v539
    %v1499 = vunpack.c.l.b16 %v540
    %v1500 = vunpack.c.h.b16 %v540
    %v1501 = vunpack.c.l.b16 %v541
    %v1502 = vunpack.c.l.b16 %v542
    %v1503 = vunpack.c.h.b16 %v542
    %v1504 = vunpack.c.l.b16 %v543
    %v1505 = vunpack.c.h.b16 %v543
    %v1506 = vunpack.c.l.b16 %v544
    %v1507 = vunpack.c.h.b16 %v544
    %v1508 = vunpack.c.l.b16 %v545
    %v1509 = vunpack.c.l.b16 %v546
    %v1510 = vunpack.c.h.b16 %v546
    %v1511 = vunpack.c.l.b16 %v547
    %v1512 = vunpack.c.h.b16 %v547
    %v1513 = vunpack.c.l.b16 %v548
    %v1514 = vunpack.c.h.b16 %v548
    %v1515 = vunpack.c.l.b16 %v549
    %v1516 = vunpack.c.l.b16 %v550
    %v1517 = vunpack.c.h.b16 %v550
    %v1518 = vunpack.c.l.b16 %v551
    %v1519 = vunpack.c.h.b16 %v551
    %v1520 = vunpack.c.l.b16 %v552
    %v1521 = vunpack.c.h.b16 %v552
    %v1522 = vunpack.c.l.b16 %v553
    %v1523 = vunpack.c.l.b16 %v554
    %v1524 = vunpack.c.h.b16 %v554
    %v1525 = vunpack.c.l.b16 %v555
    %v1526 = vunpack.c.h.b16 %v555
    %v1527 = vunpack.c.l.b16 %v556
    %v1528 = vunpack.c.h.b16 %v556
    %v1529 = vunpack.c.l.b16 %v557
    %v1530 = vunpack.c.l.b16 %v558
    %v1531 = vunpack.c.h.b16 %v558
    %v1532 = vunpack.c.l.b16 %v559
    %v1533 = vunpack.c.h.b16 %v559
    %v1534 = vunpack.c.l.b16 %v560
    %v1535 = vunpack.c.h.b16 %v560
    %v1536 = vunpack.c.l.b16 %v561
    %v1537 = vunpack.c.l.b16 %v562
    %v1538 = vunpack.c.h.b16 %v562
    %v1539 = vunpack.c.l.b16 %v563
    %v1540 = vunpack.c.h.b16 %v563
    %v1541 = vunpack.c.l.b16 %v564
    %v1542 = vunpack.c.h.b16 %v564
    %v1543 = vunpack.c.l.b16 %v565
    %v1544 = vunpack.c.l.b16 %v566
    %v1545 = vunpack.c.h.b16 %v566
    %v1546 = vunpack.c.l.b16 %v567
    %v1547 = vunpack.c.h.b16 %v567
    %v1548 = vunpack.c.l.b16 %v568
    %v1549 = vunpack.c.h.b16 %v568
    %v1550 = vunpack.c.l.b16 %v569
    %v1551 = vunpack.c.l.b16 %v570
    %v1552 = vunpack.c.h.b16 %v570
    %v1553 = vunpack.c.l.b16 %v571
    %v1554 = vunpack.c.h.b16 %v571
    %v1555 = vunpack.c.l.b16 %v572
    %v1556 = vunpack.c.h.b16 %v572
    %v1557 = vunpack.c.l.b16 %v573
    %v1558 = vunpack.c.l.b16 %v574
    %v1559 = vunpack.c.h.b16 %v574
    %v1560 = vunpack.c.l.b16 %v575
    %v1561 = vunpack.c.h.b16 %v575
    %v1562 = vunpack.c.l.b16 %v576
    %v1563 = vunpack.c.h.b16 %v576
    %v1564 = vunpack.c.l.b16 %v577
    %v1565 = vunpack.c.l.b16 %v578
    %v1566 = vunpack.c.h.b16 %v578
    %v1567 = vunpack.c.l.b16 %v579
    %v1568 = vunpack.c.h.b16 %v579
    %v1569 = vunpack.c.l.b16 %v580
    %v1570 = vunpack.c.h.b16 %v580
    %v1571 = vunpack.c.l.b16 %v581
    %v1572 = vunpack.c.l.b16 %v582
    %v1573 = vunpack.c.h.b16 %v582
    %v1574 = vunpack.c.l.b16 %v583
    %v1575 = vunpack.c.h.b16 %v583
    %v1576 = vunpack.c.l.b16 %v584
    %v1577 = vunpack.c.h.b16 %v584
    %v1578 = vunpack.c.l.b16 %v585
    %v1579 = vunpack.c.l.b16 %v586
    %v1580 = vunpack.c.h.b16 %v586
    %v1581 = vunpack.c.l.b16 %v587
    %v1582 = vunpack.c.h.b16 %v587
    %v1583 = vunpack.c.l.b16 %v588
    %v1584 = vunpack.c.h.b16 %v588
    %v1585 = vunpack.c.l.b16 %v589
    %v1586 = vunpack.c.l.b16 %v590
    %v1587 = vunpack.c.h.b16 %v590
    %v1588 = vunpack.c.l.b16 %v591
    %v1589 = vunpack.c.h.b16 %v591
    %v1590 = vunpack.c.l.b16 %v592
    %v1591 = vunpack.c.h.b16 %v592
    %v1592 = vunpack.c.l.b16 %v593
    %v1593 = vunpack.c.l.b16 %v594
    %v1594 = vunpack.c.h.b16 %v594
    %v1595 = vunpack.c.l.b16 %v595
    %v1596 = vunpack.c.h.b16 %v595
    %v1597 = vunpack.c.l.b16 %v596
    %v1598 = vunpack.c.h.b16 %v596
    %v1599 = vunpack.c.l.b16 %v597
    %v1600 = vunpack.c.l.b16 %v598
    %v1601 = vunpack.c.h.b16 %v598
    %v1602 = vunpack.c.l.b16 %v599
    %v1603 = vunpack.c.h.b16 %v599
    %v1604 = vunpack.c.l.b16 %v600
    %v1605 = vunpack.c.h.b16 %v600
    %v1606 = vunpack.c.l.b16 %v601
    %v1607 = vunpack.c.l.b16 %v602
    %v1608 = vunpack.c.h.b16 %v602
    %v1609 = vunpack.c.l.b16 %v603
    %v1610 = vunpack.c.h.b16 %v603
    %v1611 = vunpack.c.l.b16 %v604
    %v1612 = vunpack.c.h.b16 %v604
    %v1613 = vunpack.c.l.b16 %v605
    %v1614 = vunpack.c.l.b16 %v606
    %v1615 = vunpack.c.h.b16 %v606
    %v1616 = vunpack.c.l.b16 %v607
    %v1617 = vunpack.c.h.b16 %v607
    %v1618 = vunpack.c.l.b16 %v608
    %v1619 = vunpack.c.h.b16 %v608
    %v1620 = vunpack.c.l.b16 %v609
    %v1621 = vunpack.c.l.b16 %v610
    %v1622 = vunpack.c.h.b16 %v610
    %v1623 = vunpack.c.l.b16 %v611
    %v1624 = vunpack.c.h.b16 %v611
    %v1625 = vunpack.c.l.b16 %v612
    %v1626 = vunpack.c.h.b16 %v612
    %v1627 = vunpack.c.l.b16 %v613
    %v1628 = vunpack.c.l.b16 %v614
    %v1629 = vunpack.c.h.b16 %v614
    %v1630 = vunpack.c.l.b16 %v615
    %v1631 = vunpack.c.h.b16 %v615
    %v1632 = vunpack.c.l.b16 %v616
    %v1633 = vunpack.c.h.b16 %v616
    %v1634 = vunpack.c.l.b16 %v617
    %v1635 = vunpack.c.l.b16 %v618
    %v1636 = vunpack.c.h.b16 %v618
    %v1637 = vunpack.c.l.b16 %v619
    %v1638 = vunpack.c.h.b16 %v619
    %v1639 = vunpack.c.l.b16 %v620
    %v1640 = vunpack.c.h.b16 %v620
    %v1641 = vunpack.c.l.b16 %v621
    %v1642 = vunpack.c.l.b16 %v622
    %v1643 = vunpack.c.h.b16 %v622
    %v1644 = vunpack.c.l.b16 %v623
    %v1645 = vunpack.c.h.b16 %v623
    %v1646 = vunpack.c.l.b16 %v624
    %v1647 = vunpack.c.h.b16 %v624
    %v1648 = vunpack.c.l.b16 %v625
    %v1649 = vunpack.c.l.b16 %v626
    %v1650 = vunpack.c.h.b16 %v626
    %v1651 = vunpack.c.l.b16 %v627
    %v1652 = vunpack.c.h.b16 %v627
    %v1653 = vunpack.c.l.b16 %v628
    %v1654 = vunpack.c.h.b16 %v628
    %v1655 = vunpack.c.l.b16 %v629
    %v1656 = vunpack.c.l.b16 %v630
    %v1657 = vunpack.c.h.b16 %v630
    %v1658 = vunpack.c.l.b16 %v631
    %v1659 = vunpack.c.h.b16 %v631
    %v1660 = vunpack.c.l.b16 %v632
    %v1661 = vunpack.c.h.b16 %v632
    %v1662 = vunpack.c.l.b16 %v633
    %v1663 = vunpack.c.l.b16 %v634
    %v1664 = vunpack.c.h.b16 %v634
    %v1665 = vunpack.c.l.b16 %v635
    %v1666 = vunpack.c.h.b16 %v635
    %v1667 = vunpack.c.l.b16 %v636
    %v1668 = vunpack.c.h.b16 %v636
    %v1669 = vunpack.c.l.b16 %v637
    %v1670 = vunpack.c.l.b16 %v638
    %v1671 = vunpack.c.h.b16 %v638
    %v1672 = vunpack.c.l.b16 %v639
    %v1673 = vunpack.c.h.b16 %v639
    %v1674 = vunpack.c.l.b16 %v640
    %v1675 = vunpack.c.h.b16 %v640
    %v1676 = vunpack.c.l.b16 %v641
    %v1677 = vunpack.c.l.b16 %v642
    %v1678 = vunpack.c.h.b16 %v642
    %v1679 = vunpack.c.l.b16 %v643
    %v1680 = vunpack.c.h.b16 %v643
    %v1681 = vunpack.c.l.b16 %v644
    %v1682 = vunpack.c.h.b16 %v644
    %v1683 = vunpack.c.l.b16 %v645
    %v1684 = vunpack.c.l.b16 %v646
    %v1685 = vunpack.c.h.b16 %v646
    %v1686 = vunpack.c.l.b16 %v647
    %v1687 = vunpack.c.h.b16 %v647
    %v1688 = vunpack.c.l.b16 %v648
    %v1689 = vunpack.c.h.b16 %v648
    %v1690 = vunpack.c.l.b16 %v649
    %v1691 = vunpack.c.l.b16 %v650
    %v1692 = vunpack.c.h.b16 %v650
    %v1693 = vunpack.c.l.b16 %v651
    %v1694 = vunpack.c.h.b16 %v651
    %v1695 = vunpack.c.l.b16 %v652
    %v1696 = vunpack.c.h.b16 %v652
    %v1697 = vunpack.c.l.b16 %v653
    %v1698 = vunpack.c.l.b16 %v654
    %v1699 = vunpack.c.h.b16 %v654
    %v1700 = vunpack.c.l.b16 %v655
    %v1701 = vunpack.c.h.b16 %v655
    %v1702 = vunpack.c.l.b16 %v656
    %v1703 = vunpack.c.h.b16 %v656
    %v1704 = vunpack.c.l.b16 %v657
    %v1705 = vunpack.c.l.b16 %v658
    %v1706 = vunpack.c.h.b16 %v658
    %v1707 = vunpack.c.l.b16 %v659
    %v1708 = vunpack.c.h.b16 %v659
    %v1709 = vunpack.c.l.b16 %v660
    %v1710 = vunpack.c.h.b16 %v660
    %v1711 = vunpack.c.l.b16 %v661
    %v1712 = vunpack.c.l.b16 %v662
    %v1713 = vunpack.c.h.b16 %v662
    %v1714 = vunpack.c.l.b16 %v663
    %v1715 = vunpack.c.h.b16 %v663
    %v1716 = vunpack.c.l.b16 %v664
    %v1717 = vunpack.c.h.b16 %v664
    %v1718 = vunpack.c.l.b16 %v665
    %v1719 = vunpack.c.l.b16 %v666
    %v1720 = vunpack.c.h.b16 %v666
    %v1721 = vunpack.c.l.b16 %v667
    %v1722 = vunpack.c.h.b16 %v667
    %v1723 = vunpack.c.l.b16 %v668
    %v1724 = vunpack.c.h.b16 %v668
    %v1725 = vunpack.c.l.b16 %v669
    %v1726 = vunpack.c.l.b16 %v670
    %v1727 = vunpack.c.h.b16 %v670
    %v1728 = vunpack.c.l.b16 %v671
    %v1729 = vunpack.c.h.b16 %v671
    %v1730 = vunpack.c.l.b16 %v672
    %v1731 = vunpack.c.h.b16 %v672
    %v1732 = vunpack.c.l.b16 %v673
    %v1733 = vunpack.c.l.b16 %v674
    %v1734 = vunpack.c.h.b16 %v674
    %v1735 = vunpack.c.l.b16 %v675
    %v1736 = vunpack.c.h.b16 %v675
    %v1737 = vunpack.c.l.b16 %v676
    %v1738 = vunpack.c.h.b16 %v676
    %v1739 = vunpack.c.l.b16 %v677
    %v1740 = vunpack.c.l.b16 %v678
    %v1741 = vunpack.c.h.b16 %v678
    %v1742 = vunpack.c.l.b16 %v679
    %v1743 = vunpack.c.h.b16 %v679
    %v1744 = vunpack.c.l.b16 %v680
    %v1745 = vunpack.c.h.b16 %v680
    %v1746 = vunpack.c.l.b16 %v681
    %v1747 = vunpack.c.l.b16 %v682
    %v1748 = vunpack.c.h.b16 %v682
    %v1749 = vunpack.c.l.b16 %v683
    %v1750 = vunpack.c.h.b16 %v683
    %v1751 = vunpack.c.l.b16 %v684
    %v1752 = vunpack.c.h.b16 %v684
    %v1753 = vunpack.c.l.b16 %v685
    %v1754 = vunpack.c.l.b16 %v686
    %v1755 = vunpack.c.h.b16 %v686
    %v1756 = vunpack.c.l.b16 %v687
    %v1757 = vunpack.c.h.b16 %v687
    %v1758 = vunpack.c.l.b16 %v688
    %v1759 = vunpack.c.h.b16 %v688
    %v1760 = vunpack.c.l.b16 %v689
    %v1761 = vunpack.c.l.b16 %v690
    %v1762 = vunpack.c.h.b16 %v690
    %v1763 = vunpack.c.l.b16 %v691
    %v1764 = vunpack.c.h.b16 %v691
    %v1765 = vunpack.c.l.b16 %v692
    %v1766 = vunpack.c.h.b16 %v692
    %v1767 = vunpack.c.l.b16 %v693
    %v1768 = vunpack.c.l.b16 %v694
    %v1769 = vunpack.c.h.b16 %v694
    %v1770 = vunpack.c.l.b16 %v695
    %v1771 = vunpack.c.h.b16 %v695
    %v1772 = vunpack.c.l.b16 %v696
    %v1773 = vunpack.c.h.b16 %v696
    %v1774 = vunpack.c.l.b16 %v697
    %v1775 = vunpack.c.l.b16 %v698
    %v1776 = vunpack.c.h.b16 %v698
    %v1777 = vunpack.c.l.b16 %v699
    %v1778 = vunpack.c.h.b16 %v699
    %v1779 = vunpack.c.l.b16 %v700
    %v1780 = vunpack.c.h.b16 %v700
    %v1781 = vunpack.c.l.b16 %v701
    %v1782 = vunpack.c.l.b16 %v702
    %v1783 = vunpack.c.h.b16 %v702
    %v1784 = vunpack.c.l.b16 %v703
    %v1785 = vunpack.c.h.b16 %v703
    %v1786 = vunpack.c.l.b16 %v704
    %v1787 = vunpack.c.h.b16 %v704
    %v1788 = vunpack.c.l.b16 %v705
    %v1789 = vunpack.c.l.b16 %v706
    %v1790 = vunpack.c.h.b16 %v706
    %v1791 = vunpack.c.l.b16 %v707
    %v1792 = vunpack.c.h.b16 %v707
    %v1793 = vunpack.c.l.b16 %v708
    %v1794 = vunpack.c.h.b16 %v708
    %v1795 = vunpack.c.l.b16 %v709
    %v1796 = vunpack.c.l.b16 %v710
    %v1797 = vunpack.c.h.b16 %v710
    %v1798 = vunpack.c.l.b16 %v711
    %v1799 = vunpack.c.h.b16 %v711
    %v1800 = vunpack.c.l.b16 %v712
    %v1801 = vunpack.c.h.b16 %v712
    %v1802 = vunpack.c.l.b16 %v713
    %v1803 = vunpack.c.l.b16 %v714
    %v1804 = vunpack.c.h.b16 %v714
    %v1805 = vunpack.c.l.b16 %v715
    %v1806 = vunpack.c.h.b16 %v715
    %v1807 = vunpack.c.l.b16 %v716
    %v1808 = vunpack.c.h.b16 %v716
    %v1809 = vunpack.c.l.b16 %v717
    %v1810 = vunpack.c.l.b16 %v718
    %v1811 = vunpack.c.h.b16 %v718
    %v1812 = vunpack.c.l.b16 %v719
    %v1813 = vunpack.c.h.b16 %v719
    %v1814 = vunpack.c.l.b16 %v720
    %v1815 = vunpack.c.h.b16 %v720
    %v1816 = vunpack.c.l.b16 %v721
    %v1817 = vunpack.c.l.b16 %v722
    %v1818 = vunpack.c.h.b16 %v722
    %v1819 = vunpack.c.l.b16 %v723
    %v1820 = vunpack.c.h.b16 %v723
    %v1821 = vunpack.c.l.b16 %v724
    %v1822 = vunpack.c.h.b16 %v724
    %v1823 = vunpack.c.l.b16 %v725
    %v1824 = vunpack.c.l.b16 %v726
    %v1825 = vunpack.c.h.b16 %v726
    %v1826 = vunpack.c.l.b16 %v727
    %v1827 = vunpack.c.h.b16 %v727
    %v1828 = vunpack.c.l.b16 %v728
    %v1829 = vunpack.c.h.b16 %v728
    %v1830 = vunpack.c.l.b16 %v729
    %v1831 = vunpack.c.l.b16 %v730
    %v1832 = vunpack.c.h.b16 %v730
    %v1833 = vunpack.c.l.b16 %v731
    %v1834 = vunpack.c.h.b16 %v731
    %v1835 = vunpack.c.l.b16 %v732
    %v1836 = vunpack.c.h.b16 %v732
    %v1837 = vunpack.c.l.b16 %v733
    %v1838 = vunpack.c.l.b16 %v734
    %v1839 = vunpack.c.h.b16 %v734
    %v1840 = vunpack.c.l.b16 %v735
    %v1841 = vunpack.c.h.b16 %v735
    %v1842 = vunpack.c.l.b16 %v736
    %v1843 = vunpack.c.h.b16 %v736
    %v1844 = vunpack.c.l.b16 %v737
    %v1845 = vunpack.c.l.b16 %v738
    %v1846 = vunpack.c.h.b16 %v738
    %v1847 = vunpack.c.l.b16 %v739
    %v1848 = vunpack.c.h.b16 %v739
    %v1849 = vunpack.c.l.b16 %v740
    %v1850 = vunpack.c.h.b16 %v740
    %v1851 = vunpack.c.l.b16 %v741
    %v1852 = vunpack.c.l.b16 %v742
    %v1853 = vunpack.c.h.b16 %v742
    %v1854 = vunpack.c.l.b16 %v743
    %v1855 = vunpack.c.h.b16 %v743
    %v1856 = vunpack.c.l.b16 %v744
    %v1857 = vunpack.c.h.b16 %v744
    %v1858 = vunpack.c.l.b16 %v745
    %v1859 = vunpack.c.l.b16 %v746
    %v1860 = vunpack.c.h.b16 %v746
    %v1861 = vunpack.c.l.b16 %v747
    %v1862 = vunpack.c.h.b16 %v747
    %v1863 = vunpack.c.l.b16 %v748
    %v1864 = vunpack.c.h.b16 %v748
    %v1865 = vunpack.c.l.b16 %v749
    %v1866 = vunpack.c.l.b16 %v750
    %v1867 = vunpack.c.h.b16 %v750
    %v1868 = vunpack.c.l.b16 %v751
    %v1869 = vunpack.c.h.b16 %v751
    %v1870 = vunpack.c.l.b16 %v752
    %v1871 = vunpack.c.h.b16 %v752
    %v1872 = vunpack.c.l.b16 %v753
    %v1873 = vunpack.c.l.b16 %v754
    %v1874 = vunpack.c.h.b16 %v754
    %v1875 = vunpack.c.l.b16 %v755
    %v1876 = vunpack.c.h.b16 %v755
    %v1877 = vunpack.c.l.b16 %v756
    %v1878 = vunpack.c.h.b16 %v756
    %v1879 = vunpack.c.l.b16 %v757
    %v1880 = vunpack.c.l.b16 %v758
    %v1881 = vunpack.c.h.b16 %v758
    %v1882 = vunpack.c.l.b16 %v759
    %v1883 = vunpack.c.h.b16 %v759
    %v1884 = vunpack.c.l.b16 %v760
    %v1885 = vunpack.c.h.b16 %v760
    %v1886 = vunpack.c.l.b16 %v761
    %v1887 = vunpack.c.l.b16 %v762
    %v1888 = vunpack.c.h.b16 %v762
    %v1889 = vunpack.c.l.b16 %v763
    %v1890 = vunpack.c.h.b16 %v763
    %v1891 = vunpack.c.l.b16 %v764
    %v1892 = vunpack.c.h.b16 %v764
    %v1893 = vunpack.c.l.b16 %v765
    %v1894 = vunpack.c.l.b16 %v766
    %v1895 = vunpack.c.h.b16 %v766
    %v1896 = vunpack.c.l.b16 %v767
    %v1897 = vunpack.c.h.b16 %v767
    %v1898 = vunpack.c.l.b16 %v768
    %v1899 = vunpack.c.h.b16 %v768
    %v1900 = vunpack.c.l.b16 %v769
    %v1901 = vunpack.c.l.b16 %v770
    %v1902 = vunpack.c.h.b16 %v770
    %v1903 = vunpack.c.l.b16 %v771
    %v1904 = vunpack.c.h.b16 %v771
    %v1905 = vunpack.c.l.b16 %v772
    %v1906 = vunpack.c.h.b16 %v772
    %v1907 = vunpack.c.l.b16 %v773
    %v1908 = vunpack.c.l.b16 %v774
    %v1909 = vunpack.c.h.b16 %v774
    %v1910 = vunpack.c.l.b16 %v775
    %v1911 = vunpack.c.h.b16 %v775
    %v1912 = vunpack.c.l.b16 %v776
    %v1913 = vunpack.c.h.b16 %v776
    %v1914 = vunpack.c.l.b16 %v777
    %v1915 = vunpack.c.l.b16 %v778
    %v1916 = vunpack.c.h.b16 %v778
    %v1917 = vunpack.c.l.b16 %v779
    %v1918 = vunpack.c.h.b16 %v779
    %v1919 = vunpack.c.l.b16 %v780
    %v1920 = vunpack.c.h.b16 %v780
    %v1921 = vunpack.c.l.b16 %v781
    %v1922 = vunpack.c.l.b16 %v782
    %v1923 = vunpack.c.h.b16 %v782
    %v1924 = vunpack.c.l.b16 %v783
    %v1925 = vunpack.c.h.b16 %v783
    %v1926 = vunpack.c.l.b16 %v784
    %v1927 = vunpack.c.h.b16 %v784
    %v1928 = vunpack.c.l.b16 %v785
    %v1929 = vunpack.c.l.b16 %v786
    %v1930 = vunpack.c.h.b16 %v786
    %v1931 = vunpack.c.l.b16 %v787
    %v1932 = vunpack.c.h.b16 %v787
    %v1933 = vunpack.c.l.b16 %v788
    %v1934 = vunpack.c.h.b16 %v788
    %v1935 = vunpack.c.l.b16 %v789
    %v1936 = vunpack.c.l.b16 %v790
    %v1937 = vunpack.c.h.b16 %v790
    %v1938 = vunpack.c.l.b16 %v791
    %v1939 = vunpack.c.h.b16 %v791
    %v1940 = vunpack.c.l.b16 %v792
    %v1941 = vunpack.c.h.b16 %v792
    %v1942 = vunpack.c.l.b16 %v793
    %v1943 = vunpack.c.l.b16 %v794
    %v1944 = vunpack.c.h.b16 %v794
    %v1945 = vunpack.c.l.b16 %v795
    %v1946 = vunpack.c.h.b16 %v795
    %v1947 = vunpack.c.l.b16 %v796
    %v1948 = vunpack.c.h.b16 %v796
    %v1949 = vunpack.c.l.b16 %v797
    %v1950 = vunpack.c.l.b16 %v798
    %v1951 = vunpack.c.h.b16 %v798
    %v1952 = vunpack.c.l.b16 %v799
    %v1953 = vunpack.c.h.b16 %v799
    %v1954 = vunpack.c.l.b16 %v800
    %v1955 = vunpack.c.h.b16 %v800
    %v1956 = vunpack.c.l.b16 %v801
    %v1957 = vunpack.c.l.b16 %v802
    %v1958 = vunpack.c.h.b16 %v802
    %v1959 = vunpack.c.l.b16 %v803
    %v1960 = vunpack.c.h.b16 %v803
    %v1961 = vunpack.c.l.b16 %v804
    %v1962 = vunpack.c.h.b16 %v804
    %v1963 = vunpack.c.l.b16 %v805
    %v1964 = vunpack.c.l.b16 %v806
    %v1965 = vunpack.c.h.b16 %v806
    %v1966 = vunpack.c.l.b16 %v807
    %v1967 = vunpack.c.h.b16 %v807
    %v1968 = vunpack.c.l.b16 %v808
    %v1969 = vunpack.c.h.b16 %v808
    %v1970 = vunpack.c.l.b16 %v809
    %v1971 = vunpack.c.l.b16 %v810
    %v1972 = vunpack.c.h.b16 %v810
    %v1973 = vunpack.c.l.b16 %v811
    %v1974 = vunpack.c.h.b16 %v811
    %v1975 = vunpack.c.l.b16 %v812
    %v1976 = vunpack.c.h.b16 %v812
    %v1977 = vunpack.c.l.b16 %v813
    %v1978 = vunpack.c.l.b16 %v814
    %v1979 = vunpack.c.h.b16 %v814
    %v1980 = vunpack.c.l.b16 %v815
    %v1981 = vunpack.c.h.b16 %v815
    %v1982 = vunpack.c.l.b16 %v816
    %v1983 = vunpack.c.h.b16 %v816
    %v1984 = vunpack.c.l.b16 %v817
    %v1985 = vunpack.c.l.b16 %v818
    %v1986 = vunpack.c.h.b16 %v818
    %v1987 = vunpack.c.l.b16 %v819
    %v1988 = vunpack.c.h.b16 %v819
    %v1989 = vunpack.c.l.b16 %v820
    %v1990 = vunpack.c.h.b16 %v820
    %v1991 = vunpack.c.l.b16 %v821
    %v1992 = vunpack.c.l.b16 %v822
    %v1993 = vunpack.c.h.b16 %v822
    %v1994 = vunpack.c.l.b16 %v823
    %v1995 = vunpack.c.h.b16 %v823
    %v1996 = vunpack.c.l.b16 %v824
    %v1997 = vunpack.c.h.b16 %v824
    %v1998 = vunpack.c.l.b16 %v825
    %v1999 = vunpack.c.l.b16 %v826
    %v2000 = vunpack.c.h.b16 %v826
    %v2001 = vunpack.c.l.b16 %v827
    %v2002 = vunpack.c.h.b16 %v827
    %v2003 = vunpack.c.l.b16 %v828
    %v2004 = vunpack.c.h.b16 %v828
    %v2005 = vunpack.c.l.b16 %v829
    %v2006 = vunpack.c.l.b16 %v830
    %v2007 = vunpack.c.h.b16 %v830
    %v2008 = vunpack.c.l.b16 %v831
    %v2009 = vunpack.c.h.b16 %v831
    %v2010 = vunpack.c.l.b16 %v832
    %v2011 = vunpack.c.h.b16 %v832
    %v2012 = vunpack.c.l.b16 %v833
    %v2013 = vunpack.c.l.b16 %v834
    %v2014 = vunpack.c.h.b16 %v834
    %v2015 = vunpack.c.l.b16 %v835
    %v2016 = vunpack.c.h.b16 %v835
    %v2017 = vunpack.c.l.b16 %v836
    %v2018 = vunpack.c.h.b16 %v836
    %v2019 = vunpack.c.l.b16 %v837
    %v2020 = vunpack.c.l.b16 %v838
    %v2021 = vunpack.c.h.b16 %v838
    %v2022 = vunpack.c.l.b16 %v839
    %v2023 = vunpack.c.h.b16 %v839
    %v2024 = vunpack.c.l.b16 %v840
    %v2025 = vunpack.c.h.b16 %v840
    %v2026 = vunpack.c.l.b16 %v841
    %v2027 = vunpack.c.l.b16 %v842
    %v2028 = vunpack.c.h.b16 %v842
    %v2029 = vunpack.c.l.b16 %v843
    %v2030 = vunpack.c.h.b16 %v843
    %v2031 = vunpack.c.l.b16 %v844
    %v2032 = vunpack.c.h.b16 %v844
    %v2033 = vunpack.c.l.b16 %v845
    %v2034 = vunpack.c.l.b16 %v846
    %v2035 = vunpack.c.h.b16 %v846
    %v2036 = vunpack.c.l.b16 %v847
    %v2037 = vunpack.c.h.b16 %v847
    %v2038 = vunpack.c.l.b16 %v848
    %v2039 = vunpack.c.h.b16 %v848
    %v2040 = vunpack.c.l.b16 %v849
    %v2041 = vunpack.c.l.b16 %v850
    %v2042 = vunpack.c.h.b16 %v850
    %v2043 = vunpack.c.l.b16 %v851
    %v2044 = vunpack.c.h.b16 %v851
    %v2045 = vunpack.c.l.b16 %v852
    %v2046 = vunpack.c.h.b16 %v852
    %v2047 = vunpack.c.l.b16 %v853
    %v2048 = vunpack.c.l.b16 %v854
    %v2049 = vunpack.c.h.b16 %v854
    %v2050 = vunpack.c.l.b16 %v855
    %v2051 = vunpack.c.h.b16 %v855
    %v2052 = vunpack.c.l.b16 %v856
    %v2053 = vunpack.c.h.b16 %v856
    %v2054 = vunpack.c.l.b16 %v857
    %v2055 = vunpack.c.l.b16 %v858
    %v2056 = vunpack.c.h.b16 %v858
    %v2057 = vunpack.c.l.b16 %v859
    %v2058 = vunpack.c.h.b16 %v859
    %v2059 = vunpack.c.l.b16 %v860
    %v2060 = vunpack.c.h.b16 %v860
    %v2061 = vunpack.c.l.b16 %v861
    %v2062 = vunpack.c.l.b16 %v862
    %v2063 = vunpack.c.h.b16 %v862
    %v2064 = vunpack.c.l.b16 %v863
    %v2065 = vunpack.c.h.b16 %v863
    %v2066 = vunpack.c.l.b16 %v864
    %v2067 = vunpack.c.h.b16 %v864
    %v2068 = vunpack.c.l.b16 %v865
    %v2069 = vunpack.c.l.b16 %v866
    %v2070 = vunpack.c.h.b16 %v866
    %v2071 = vunpack.c.l.b16 %v867
    %v2072 = vunpack.c.h.b16 %v867
    %v2073 = vunpack.c.l.b16 %v868
    %v2074 = vunpack.c.h.b16 %v868
    %v2075 = vunpack.c.l.b16 %v869
    %v2076 = vunpack.c.l.b16 %v870
    %v2077 = vunpack.c.h.b16 %v870
    %v2078 = vunpack.c.l.b16 %v871
    %v2079 = vunpack.c.h.b16 %v871
    %v2080 = vunpack.c.l.b16 %v872
    %v2081 = vunpack.c.h.b16 %v872
    %v2082 = vunpack.c.l.b16 %v873
    %v2083 = vunpack.c.l.b16 %v874
    %v2084 = vunpack.c.h.b16 %v874
    %v2085 = vunpack.c.l.b16 %v875
    %v2086 = vunpack.c.h.b16 %v875
    %v2087 = vunpack.c.l.b16 %v876
    %v2088 = vunpack.c.h.b16 %v876
    %v2089 = vunpack.c.l.b16 %v877
    %v2090 = vunpack.c.l.b16 %v878
    %v2091 = vunpack.c.h.b16 %v878
    %v2092 = vunpack.c.l.b16 %v879
    %v2093 = vunpack.c.h.b16 %v879
    %v2094 = vunpack.c.l.b16 %v880
    %v2095 = vunpack.c.h.b16 %v880
    %v2096 = vunpack.c.l.b16 %v881
    %v2097 = vunpack.c.l.b16 %v882
    %v2098 = vunpack.c.h.b16 %v882
    %v2099 = vunpack.c.l.b16 %v883
    %v2100 = vunpack.c.h.b16 %v883
    %v2101 = vunpack.c.l.b16 %v884
    %v2102 = vunpack.c.h.b16 %v884
    %v2103 = vunpack.c.l.b16 %v885
    %v2104 = vunpack.c.l.b16 %v886
    %v2105 = vunpack.c.h.b16 %v886
    %v2106 = vunpack.c.l.b16 %v887
    %v2107 = vunpack.c.h.b16 %v887
    %v2108 = vunpack.c.l.b16 %v888
    %v2109 = vunpack.c.h.b16 %v888
    %v2110 = vunpack.c.l.b16 %v889
    %v2111 = vunpack.c.l.b16 %v890
    %v2112 = vunpack.c.h.b16 %v890
    %v2113 = vunpack.c.l.b16 %v891
    %v2114 = vunpack.c.h.b16 %v891
    %v2115 = vunpack.c.l.b16 %v892
    %v2116 = vunpack.c.h.b16 %v892
    %v2117 = vunpack.c.l.b16 %v893
    %v2118 = vunpack.c.l.b16 %v894
    %v2119 = vunpack.c.h.b16 %v894
    %v2120 = vunpack.c.l.b16 %v895
    %v2121 = vunpack.c.h.b16 %v895
    %v2122 = vunpack.c.l.b16 %v896
    %v2123 = vunpack.c.h.b16 %v896
    %v2124 = vunpack.c.l.b16 %v897
    %v2125 = vunpack.c.l.b16 %v898
    %v2126 = vunpack.c.h.b16 %v898
    %v2127 = vunpack.c.l.b16 %v899
    %v2128 = vunpack.c.h.b16 %v899
    %v2129 = vunpack.c.l.b16 %v900
    %v2130 = vunpack.c.h.b16 %v900
    %v2131 = vunpack.c.l.b16 %v901
    %v2132 = vunpack.c.l.b16 %v902
    %v2133 = vunpack.c.h.b16 %v902
    %v2134 = vunpack.c.l.b16 %v903
    %v2135 = vunpack.c.h.b16 %v903
    %v2136 = vunpack.c.l.b16 %v904
    %v2137 = vunpack.c.h.b16 %v904
    %v2138 = vunpack.c.l.b16 %v905
    %v2139 = vunpack.c.l.b16 %v906
    %v2140 = vunpack.c.h.b16 %v906
    %v2141 = vunpack.c.l.b16 %v907
    %v2142 = vunpack.c.h.b16 %v907
    %v2143 = vunpack.c.l.b16 %v908
    %v2144 = vunpack.c.h.b16 %v908
    %v2145 = vunpack.c.l.b16 %v909
    %v2146 = vunpack.c.l.b16 %v910
    %v2147 = vunpack.c.h.b16 %v910
    %v2148 = vunpack.c.l.b16 %v911
    %v2149 = vunpack.c.h.b16 %v911
    %v2150 = vunpack.c.l.b16 %v912
    %v2151 = vunpack.c.h.b16 %v912
    %v2152 = vunpack.c.l.b16 %v913
    %v2153 = vunpack.c.l.b16 %v914
    %v2154 = vunpack.c.h.b16 %v914
    %v2155 = vunpack.c.l.b16 %v915
    %v2156 = vunpack.c.h.b16 %v915
    %v2157 = vunpack.c.l.b16 %v916
    %v2158 = vunpack.c.h.b16 %v916
    %v2159 = vunpack.c.l.b16 %v917
    %v2160 = vunpack.c.l.b16 %v918
    %v2161 = vunpack.c.h.b16 %v918
    %v2162 = vunpack.c.l.b16 %v919
    %v2163 = vunpack.c.h.b16 %v919
    %v2164 = vunpack.c.l.b16 %v920
    %v2165 = vunpack.c.h.b16 %v920
    %v2166 = vunpack.c.l.b16 %v921
    %v2167 = vunpack.c.l.b16 %v922
    %v2168 = vunpack.c.h.b16 %v922
    %v2169 = vunpack.c.l.b16 %v923
    %v2170 = vunpack.c.h.b16 %v923
    %v2171 = vunpack.c.l.b16 %v924
    %v2172 = vunpack.c.h.b16 %v924
    %v2173 = vunpack.c.l.b16 %v925
    %v2174 = vunpack.c.l.b16 %v926
    %v2175 = vunpack.c.h.b16 %v926
    %v2176 = vunpack.c.l.b16 %v927
    %v2177 = vunpack.c.h.b16 %v927
    %v2178 = vunpack.c.l.b16 %v928
    %v2179 = vunpack.c.h.b16 %v928
    %v2180 = vunpack.c.l.b16 %v929
    %v2181 = vunpack.c.l.b16 %v930
    %v2182 = vunpack.c.h.b16 %v930
    %v2183 = vunpack.c.l.b16 %v931
    %v2184 = vunpack.c.h.b16 %v931
    %v2185 = vunpack.c.l.b16 %v932
    %v2186 = vunpack.c.h.b16 %v932
    %v2187 = vunpack.c.l.b16 %v933
    %v2188 = vunpack.c.l.b16 %v934
    %v2189 = vunpack.c.h.b16 %v934
    %v2190 = vunpack.c.l.b16 %v935
    %v2191 = vunpack.c.h.b16 %v935
    %v2192 = vunpack.c.l.b16 %v936
    %v2193 = vunpack.c.h.b16 %v936
    %v2194 = vunpack.c.l.b16 %v937
    %v2195 = vunpack.c.l.b16 %v938
    %v2196 = vunpack.c.h.b16 %v938
    %v2197 = vunpack.c.l.b16 %v939
    %v2198 = vunpack.c.h.b16 %v939
    %v2199 = vunpack.c.l.b16 %v940
    %v2200 = vunpack.c.h.b16 %v940
    %v2201 = vunpack.c.l.b16 %v941
    %v2202 = vunpack.c.l.b16 %v942
    %v2203 = vunpack.c.h.b16 %v942
    %v2204 = vunpack.c.l.b16 %v943
    %v2205 = vunpack.c.h.b16 %v943
    %v2206 = vunpack.c.l.b16 %v944
    %v2207 = vunpack.c.h.b16 %v944
    %v2208 = vunpack.c.l.b16 %v945
    %v2209 = vunpack.c.l.b16 %v946
    %v2210 = vunpack.c.h.b16 %v946
    %v2211 = vunpack.c.l.b16 %v947
    %v2212 = vunpack.c.h.b16 %v947
    %v2213 = vunpack.c.l.b16 %v948
    %v2214 = vunpack.c.h.b16 %v948
    %v2215 = vunpack.c.l.b16 %v949
    %v2216 = vunpack.c.l.b16 %v950
    %v2217 = vunpack.c.h.b16 %v950
    %v2218 = vunpack.c.l.b16 %v951
    %v2219 = vunpack.c.h.b16 %v951
    %v2220 = vunpack.c.l.b16 %v952
    %v2221 = vunpack.c.h.b16 %v952
    %v2222 = vunpack.c.l.b16 %v953
    %v2223 = vpack.c.b16 %v1446, %v1439
    %v2224 = vpack.c.b16 %v1447, %v1440
    %v2225 = vpack.c.b16 %v1448, %v1441
    %v2226 = vpack.c.b16 %v1449, %v1442
    %v2227 = vpack.c.b16 %v1450, %v1443
    %v2228 = vpack.c.b16 %v1451, %v1444
    %v2229 = vpack.c.b16 %v1452, %v1445
    %v2230 = vpack.c.b16 %v1460, %v1453
    %v2231 = vpack.c.b16 %v1461, %v1454
    %v2232 = vpack.c.b16 %v1462, %v1455
    %v2233 = vpack.c.b16 %v1463, %v1456
    %v2234 = vpack.c.b16 %v1464, %v1457
    %v2235 = vpack.c.b16 %v1465, %v1458
    %v2236 = vpack.c.b16 %v1466, %v1459
    %v2237 = vpack.c.b16 %v1474, %v1467
    %v2238 = vpack.c.b16 %v1475, %v1468
    %v2239 = vpack.c.b16 %v1476, %v1469
    %v2240 = vpack.c.b16 %v1477, %v1470
    %v2241 = vpack.c.b16 %v1478, %v1471
    %v2242 = vpack.c.b16 %v1479, %v1472
    %v2243 = vpack.c.b16 %v1480, %v1473
    %v2244 = vpack.c.b16 %v1488, %v1481
    %v2245 = vpack.c.b16 %v1489, %v1482
    %v2246 = vpack.c.b16 %v1490, %v1483
    %v2247 = vpack.c.b16 %v1491, %v1484
    %v2248 = vpack.c.b16 %v1492, %v1485
    %v2249 = vpack.c.b16 %v1493, %v1486
    %v2250 = vpack.c.b16 %v1494, %v1487
    %v2251 = vpack.c.b16 %v1502, %v1495
    %v2252 = vpack.c.b16 %v1503, %v1496
    %v2253 = vpack.c.b16 %v1504, %v1497
    %v2254 = vpack.c.b16 %v1505, %v1498
    %v2255 = vpack.c.b16 %v1506, %v1499
    %v2256 = vpack.c.b16 %v1507, %v1500
    %v2257 = vpack.c.b16 %v1508, %v1501
    %v2258 = vpack.c.b16 %v1516, %v1509
    %v2259 = vpack.c.b16 %v1517, %v1510
    %v2260 = vpack.c.b16 %v1518, %v1511
    %v2261 = vpack.c.b16 %v1519, %v1512
    %v2262 = vpack.c.b16 %v1520, %v1513
    %v2263 = vpack.c.b16 %v1521, %v1514
    %v2264 = vpack.c.b16 %v1522, %v1515
    %v2265 = vpack.c.b16 %v1530, %v1523
    %v2266 = vpack.c.b16 %v1531, %v1524
    %v2267 = vpack.c.b16 %v1532, %v1525
    %v2268 = vpack.c.b16 %v1533, %v1526
    %v2269 = vpack.c.b16 %v1534, %v1527
    %v2270 = vpack.c.b16 %v1535, %v1528
    %v2271 = vpack.c.b16 %v1536, %v1529
    %v2272 = vpack.c.b16 %v1544, %v1537
    %v2273 = vpack.c.b16 %v1545, %v1538
    %v2274 = vpack.c.b16 %v1546, %v1539
    %v2275 = vpack.c.b16 %v1547, %v1540
    %v2276 = vpack.c.b16 %v1548, %v1541
    %v2277 = vpack.c.b16 %v1549, %v1542
    %v2278 = vpack.c.b16 %v1550, %v1543
    %v2279 = vpack.c.b16 %v1558, %v1551
    %v2280 = vpack.c.b16 %v1559, %v1552
    %v2281 = vpack.c.b16 %v1560, %v1553
    %v2282 = vpack.c.b16 %v1561, %v1554
    %v2283 = vpack.c.b16 %v1562, %v1555
    %v2284 = vpack.c.b16 %v1563, %v1556
    %v2285 = vpack.c.b16 %v1564, %v1557
    %v2286 = vpack.c.b16 %v1572, %v1565
    %v2287 = vpack.c.b16 %v1573, %v1566
    %v2288 = vpack.c.b16 %v1574, %v1567
    %v2289 = vpack.c.b16 %v1575, %v1568
    %v2290 = vpack.c.b16 %v1576, %v1569
    %v2291 = vpack.c.b16 %v1577, %v1570
    %v2292 = vpack.c.b16 %v1578, %v1571
    %v2293 = vpack.c.b16 %v1586, %v1579
    %v2294 = vpack.c.b16 %v1587, %v1580
    %v2295 = vpack.c.b16 %v1588, %v1581
    %v2296 = vpack.c.b16 %v1589, %v1582
    %v2297 = vpack.c.b16 %v1590, %v1583
    %v2298 = vpack.c.b16 %v1591, %v1584
    %v2299 = vpack.c.b16 %v1592, %v1585
    %v2300 = vpack.c.b16 %v1600, %v1593
    %v2301 = vpack.c.b16 %v1601, %v1594
    %v2302 = vpack.c.b16 %v1602, %v1595
    %v2303 = vpack.c.b16 %v1603, %v1596
    %v2304 = vpack.c.b16 %v1604, %v1597
    %v2305 = vpack.c.b16 %v1605, %v1598
    %v2306 = vpack.c.b16 %v1606, %v1599
    %v2307 = vpack.c.b16 %v1614, %v1607
    %v2308 = vpack.c.b16 %v1615, %v1608
    %v2309 = vpack.c.b16 %v1616, %v1609
    %v2310 = vpack.c.b16 %v1617, %v1610
    %v2311 = vpack.c.b16 %v1618, %v1611
    %v2312 = vpack.c.b16 %v1619, %v1612
    %v2313 = vpack.c.b16 %v1620, %v1613
    %v2314 = vpack.c.b16 %v1628, %v1621
    %v2315 = vpack.c.b16 %v1629, %v1622
    %v2316 = vpack.c.b16 %v1630, %v1623
    %v2317 = vpack.c.b16 %v1631, %v1624
    %v2318 = vpack.c.b16 %v1632, %v1625
    %v2319 = vpack.c.b16 %v1633, %v1626
    %v2320 = vpack.c.b16 %v1634, %v1627
    %v2321 = vpack.c.b16 %v1642, %v1635
    %v2322 = vpack.c.b16 %v1643, %v1636
    %v2323 = vpack.c.b16 %v1644, %v1637
    %v2324 = vpack.c.b16 %v1645, %v1638
    %v2325 = vpack.c.b16 %v1646, %v1639
    %v2326 = vpack.c.b16 %v1647, %v1640
    %v2327 = vpack.c.b16 %v1648, %v1641
    %v2328 = vpack.c.b16 %v1656, %v1649
    %v2329 = vpack.c.b16 %v1657, %v1650
    %v2330 = vpack.c.b16 %v1658, %v1651
    %v2331 = vpack.c.b16 %v1659, %v1652
    %v2332 = vpack.c.b16 %v1660, %v1653
    %v2333 = vpack.c.b16 %v1661, %v1654
    %v2334 = vpack.c.b16 %v1662, %v1655
    %v2335 = vpack.c.b16 %v1670, %v1663
    %v2336 = vpack.c.b16 %v1671, %v1664
    %v2337 = vpack.c.b16 %v1672, %v1665
    %v2338 = vpack.c.b16 %v1673, %v1666
    %v2339 = vpack.c.b16 %v1674, %v1667
    %v2340 = vpack.c.b16 %v1675, %v1668
    %v2341 = vpack.c.b16 %v1676, %v1669
    %v2342 = vpack.c.b16 %v1684, %v1677
    %v2343 = vpack.c.b16 %v1685, %v1678
    %v2344 = vpack.c.b16 %v1686, %v1679
    %v2345 = vpack.c.b16 %v1687, %v1680
    %v2346 = vpack.c.b16 %v1688, %v1681
    %v2347 = vpack.c.b16 %v1689, %v1682
    %v2348 = vpack.c.b16 %v1690, %v1683
    %v2349 = vpack.c.b16 %v1698, %v1691
    %v2350 = vpack.c.b16 %v1699, %v1692
    %v2351 = vpack.c.b16 %v1700, %v1693
    %v2352 = vpack.c.b16 %v1701, %v1694
    %v2353 = vpack.c.b16 %v1702, %v1695
    %v2354 = vpack.c.b16 %v1703, %v1696
    %v2355 = vpack.c.b16 %v1704, %v1697
    %v2356 = vpack.c.b16 %v1712, %v1705
    %v2357 = vpack.c.b16 %v1713, %v1706
    %v2358 = vpack.c.b16 %v1714, %v1707
    %v2359 = vpack.c.b16 %v1715, %v1708
    %v2360 = vpack.c.b16 %v1716, %v1709
    %v2361 = vpack.c.b16 %v1717, %v1710
    %v2362 = vpack.c.b16 %v1718, %v1711
    %v2363 = vpack.c.b16 %v1726, %v1719
    %v2364 = vpack.c.b16 %v1727, %v1720
    %v2365 = vpack.c.b16 %v1728, %v1721
    %v2366 = vpack.c.b16 %v1729, %v1722
    %v2367 = vpack.c.b16 %v1730, %v1723
    %v2368 = vpack.c.b16 %v1731, %v1724
    %v2369 = vpack.c.b16 %v1732, %v1725
    %v2370 = vpack.c.b16 %v1740, %v1733
    %v2371 = vpack.c.b16 %v1741, %v1734
    %v2372 = vpack.c.b16 %v1742, %v1735
    %v2373 = vpack.c.b16 %v1743, %v1736
    %v2374 = vpack.c.b16 %v1744, %v1737
    %v2375 = vpack.c.b16 %v1745, %v1738
    %v2376 = vpack.c.b16 %v1746, %v1739
    %v2377 = vpack.c.b16 %v1754, %v1747
    %v2378 = vpack.c.b16 %v1755, %v1748
    %v2379 = vpack.c.b16 %v1756, %v1749
    %v2380 = vpack.c.b16 %v1757, %v1750
    %v2381 = vpack.c.b16 %v1758, %v1751
    %v2382 = vpack.c.b16 %v1759, %v1752
    %v2383 = vpack.c.b16 %v1760, %v1753
    %v2384 = vpack.c.b16 %v1768, %v1761
    %v2385 = vpack.c.b16 %v1769, %v1762
    %v2386 = vpack.c.b16 %v1770, %v1763
    %v2387 = vpack.c.b16 %v1771, %v1764
    %v2388 = vpack.c.b16 %v1772, %v1765
    %v2389 = vpack.c.b16 %v1773, %v1766
    %v2390 = vpack.c.b16 %v1774, %v1767
    %v2391 = vpack.c.b16 %v1782, %v1775
    %v2392 = vpack.c.b16 %v1783, %v1776
    %v2393 = vpack.c.b16 %v1784, %v1777
    %v2394 = vpack.c.b16 %v1785, %v1778
    %v2395 = vpack.c.b16 %v1786, %v1779
    %v2396 = vpack.c.b16 %v1787, %v1780
    %v2397 = vpack.c.b16 %v1788, %v1781
    %v2398 = vpack.c.b16 %v1796, %v1789
    %v2399 = vpack.c.b16 %v1797, %v1790
    %v2400 = vpack.c.b16 %v1798, %v1791
    %v2401 = vpack.c.b16 %v1799, %v1792
    %v2402 = vpack.c.b16 %v1800, %v1793
    %v2403 = vpack.c.b16 %v1801, %v1794
    %v2404 = vpack.c.b16 %v1802, %v1795
    %v2405 = vpack.c.b16 %v1810, %v1803
    %v2406 = vpack.c.b16 %v1811, %v1804
    %v2407 = vpack.c.b16 %v1812, %v1805
    %v2408 = vpack.c.b16 %v1813, %v1806
    %v2409 = vpack.c.b16 %v1814, %v1807
    %v2410 = vpack.c.b16 %v1815, %v1808
    %v2411 = vpack.c.b16 %v1816, %v1809
    %v2412 = vpack.c.b16 %v1824, %v1817
    %v2413 = vpack.c.b16 %v1825, %v1818
    %v2414 = vpack.c.b16 %v1826, %v1819
    %v2415 = vpack.c.b16 %v1827, %v1820
    %v2416 = vpack.c.b16 %v1828, %v1821
    %v2417 = vpack.c.b16 %v1829, %v1822
    %v2418 = vpack.c.b16 %v1830, %v1823
    %v2419 = vpack.c.b16 %v1838, %v1831
    %v2420 = vpack.c.b16 %v1839, %v1832
    %v2421 = vpack.c.b16 %v1840, %v1833
    %v2422 = vpack.c.b16 %v1841, %v1834
    %v2423 = vpack.c.b16 %v1842, %v1835
    %v2424 = vpack.c.b16 %v1843, %v1836
    %v2425 = vpack.c.b16 %v1844, %v1837
    %v2426 = vpack.c.b16 %v1852, %v1845
    %v2427 = vpack.c.b16 %v1853, %v1846
    %v2428 = vpack.c.b16 %v1854, %v1847
    %v2429 = vpack.c.b16 %v1855, %v1848
    %v2430 = vpack.c.b16 %v1856, %v1849
    %v2431 = vpack.c.b16 %v1857, %v1850
    %v2432 = vpack.c.b16 %v1858, %v1851
    %v2433 = vpack.c.b16 %v1866, %v1859
    %v2434 = vpack.c.b16 %v1867, %v1860
    %v2435 = vpack.c.b16 %v1868, %v1861
    %v2436 = vpack.c.b16 %v1869, %v1862
    %v2437 = vpack.c.b16 %v1870, %v1863
    %v2438 = vpack.c.b16 %v1871, %v1864
    %v2439 = vpack.c.b16 %v1872, %v1865
    %v2440 = vpack.c.b16 %v1880, %v1873
    %v2441 = vpack.c.b16 %v1881, %v1874
    %v2442 = vpack.c.b16 %v1882, %v1875
    %v2443 = vpack.c.b16 %v1883, %v1876
    %v2444 = vpack.c.b16 %v1884, %v1877
    %v2445 = vpack.c.b16 %v1885, %v1878
    %v2446 = vpack.c.b16 %v1886, %v1879
    %v2447 = vpack.c.b16 %v1894, %v1887
    %v2448 = vpack.c.b16 %v1895, %v1888
    %v2449 = vpack.c.b16 %v1896, %v1889
    %v2450 = vpack.c.b16 %v1897, %v1890
    %v2451 = vpack.c.b16 %v1898, %v1891
    %v2452 = vpack.c.b16 %v1899, %v1892
    %v2453 = vpack.c.b16 %v1900, %v1893
    %v2454 = vpack.c.b16 %v1908, %v1901
    %v2455 = vpack.c.b16 %v1909, %v1902
    %v2456 = vpack.c.b16 %v1910, %v1903
    %v2457 = vpack.c.b16 %v1911, %v1904
    %v2458 = vpack.c.b16 %v1912, %v1905
    %v2459 = vpack.c.b16 %v1913, %v1906
    %v2460 = vpack.c.b16 %v1914, %v1907
    %v2461 = vpack.c.b16 %v1922, %v1915
    %v2462 = vpack.c.b16 %v1923, %v1916
    %v2463 = vpack.c.b16 %v1924, %v1917
    %v2464 = vpack.c.b16 %v1925, %v1918
    %v2465 = vpack.c.b16 %v1926, %v1919
    %v2466 = vpack.c.b16 %v1927, %v1920
    %v2467 = vpack.c.b16 %v1928, %v1921
    %v2468 = vpack.c.b16 %v1936, %v1929
    %v2469 = vpack.c.b16 %v1937, %v1930
    %v2470 = vpack.c.b16 %v1938, %v1931
    %v2471 = vpack.c.b16 %v1939, %v1932
    %v2472 = vpack.c.b16 %v1940, %v1933
    %v2473 = vpack.c.b16 %v1941, %v1934
    %v2474 = vpack.c.b16 %v1942, %v1935
    %v2475 = vpack.c.b16 %v1950, %v1943
    %v2476 = vpack.c.b16 %v1951, %v1944
    %v2477 = vpack.c.b16 %v1952, %v1945
    %v2478 = vpack.c.b16 %v1953, %v1946
    %v2479 = vpack.c.b16 %v1954, %v1947
    %v2480 = vpack.c.b16 %v1955, %v1948
    %v2481 = vpack.c.b16 %v1956, %v1949
    %v2482 = vpack.c.b16 %v1964, %v1957
    %v2483 = vpack.c.b16 %v1965, %v1958
    %v2484 = vpack.c.b16 %v1966, %v1959
    %v2485 = vpack.c.b16 %v1967, %v1960
    %v2486 = vpack.c.b16 %v1968, %v1961
    %v2487 = vpack.c.b16 %v1969, %v1962
    %v2488 = vpack.c.b16 %v1970, %v1963
    %v2489 = vpack.c.b16 %v1978, %v1971
    %v2490 = vpack.c.b16 %v1979, %v1972
    %v2491 = vpack.c.b16 %v1980, %v1973
    %v2492 = vpack.c.b16 %v1981, %v1974
    %v2493 = vpack.c.b16 %v1982, %v1975
    %v2494 = vpack.c.b16 %v1983, %v1976
    %v2495 = vpack.c.b16 %v1984, %v1977
    %v2496 = vpack.c.b16 %v1992, %v1985
    %v2497 = vpack.c.b16 %v1993, %v1986
    %v2498 = vpack.c.b16 %v1994, %v1987
    %v2499 = vpack.c.b16 %v1995, %v1988
    %v2500 = vpack.c.b16 %v1996, %v1989
    %v2501 = vpack.c.b16 %v1997, %v1990
    %v2502 = vpack.c.b16 %v1998, %v1991
    %v2503 = vpack.c.b16 %v2006, %v1999
    %v2504 = vpack.c.b16 %v2007, %v2000
    %v2505 = vpack.c.b16 %v2008, %v2001
    %v2506 = vpack.c.b16 %v2009, %v2002
    %v2507 = vpack.c.b16 %v2010, %v2003
    %v2508 = vpack.c.b16 %v2011, %v2004
    %v2509 = vpack.c.b16 %v2012, %v2005
    %v2510 = vpack.c.b16 %v2020, %v2013
    %v2511 = vpack.c.b16 %v2021, %v2014
    %v2512 = vpack.c.b16 %v2022, %v2015
    %v2513 = vpack.c.b16 %v2023, %v2016
    %v2514 = vpack.c.b16 %v2024, %v2017
    %v2515 = vpack.c.b16 %v2025, %v2018
    %v2516 = vpack.c.b16 %v2026, %v2019
    %v2517 = vpack.c.b16 %v2034, %v2027
    %v2518 = vpack.c.b16 %v2035, %v2028
    %v2519 = vpack.c.b16 %v2036, %v2029
    %v2520 = vpack.c.b16 %v2037, %v2030
    %v2521 = vpack.c.b16 %v2038, %v2031
    %v2522 = vpack.c.b16 %v2039, %v2032
    %v2523 = vpack.c.b16 %v2040, %v2033
    %v2524 = vpack.c.b16 %v2048, %v2041
    %v2525 = vpack.c.b16 %v2049, %v2042
    %v2526 = vpack.c.b16 %v2050, %v2043
    %v2527 = vpack.c.b16 %v2051, %v2044
    %v2528 = vpack.c.b16 %v2052, %v2045
    %v2529 = vpack.c.b16 %v2053, %v2046
    %v2530 = vpack.c.b16 %v2054, %v2047
    %v2531 = vpack.c.b16 %v2062, %v2055
    %v2532 = vpack.c.b16 %v2063, %v2056
    %v2533 = vpack.c.b16 %v2064, %v2057
    %v2534 = vpack.c.b16 %v2065, %v2058
    %v2535 = vpack.c.b16 %v2066, %v2059
    %v2536 = vpack.c.b16 %v2067, %v2060
    %v2537 = vpack.c.b16 %v2068, %v2061
    %v2538 = vpack.c.b16 %v2076, %v2069
    %v2539 = vpack.c.b16 %v2077, %v2070
    %v2540 = vpack.c.b16 %v2078, %v2071
    %v2541 = vpack.c.b16 %v2079, %v2072
    %v2542 = vpack.c.b16 %v2080, %v2073
    %v2543 = vpack.c.b16 %v2081, %v2074
    %v2544 = vpack.c.b16 %v2082, %v2075
    %v2545 = vpack.c.b16 %v2090, %v2083
    %v2546 = vpack.c.b16 %v2091, %v2084
    %v2547 = vpack.c.b16 %v2092, %v2085
    %v2548 = vpack.c.b16 %v2093, %v2086
    %v2549 = vpack.c.b16 %v2094, %v2087
    %v2550 = vpack.c.b16 %v2095, %v2088
    %v2551 = vpack.c.b16 %v2096, %v2089
    %v2552 = vpack.c.b16 %v2104, %v2097
    %v2553 = vpack.c.b16 %v2105, %v2098
    %v2554 = vpack.c.b16 %v2106, %v2099
    %v2555 = vpack.c.b16 %v2107, %v2100
    %v2556 = vpack.c.b16 %v2108, %v2101
    %v2557 = vpack.c.b16 %v2109, %v2102
    %v2558 = vpack.c.b16 %v2110, %v2103
    %v2559 = vpack.c.b16 %v2118, %v2111
    %v2560 = vpack.c.b16 %v2119, %v2112
    %v2561 = vpack.c.b16 %v2120, %v2113
    %v2562 = vpack.c.b16 %v2121, %v2114
    %v2563 = vpack.c.b16 %v2122, %v2115
    %v2564 = vpack.c.b16 %v2123, %v2116
    %v2565 = vpack.c.b16 %v2124, %v2117
    %v2566 = vpack.c.b16 %v2132, %v2125
    %v2567 = vpack.c.b16 %v2133, %v2126
    %v2568 = vpack.c.b16 %v2134, %v2127
    %v2569 = vpack.c.b16 %v2135, %v2128
    %v2570 = vpack.c.b16 %v2136, %v2129
    %v2571 = vpack.c.b16 %v2137, %v2130
    %v2572 = vpack.c.b16 %v2138, %v2131
    %v2573 = vpack.c.b16 %v2146, %v2139
    %v2574 = vpack.c.b16 %v2147, %v2140
    %v2575 = vpack.c.b16 %v2148, %v2141
    %v2576 = vpack.c.b16 %v2149, %v2142
    %v2577 = vpack.c.b16 %v2150, %v2143
    %v2578 = vpack.c.b16 %v2151, %v2144
    %v2579 = vpack.c.b16 %v2152, %v2145
    %v2580 = vpack.c.b16 %v2160, %v2153
    %v2581 = vpack.c.b16 %v2161, %v2154
    %v2582 = vpack.c.b16 %v2162, %v2155
    %v2583 = vpack.c.b16 %v2163, %v2156
    %v2584 = vpack.c.b16 %v2164, %v2157
    %v2585 = vpack.c.b16 %v2165, %v2158
    %v2586 = vpack.c.b16 %v2166, %v2159
    %v2587 = vpack.c.b16 %v2174, %v2167
    %v2588 = vpack.c.b16 %v2175, %v2168
    %v2589 = vpack.c.b16 %v2176, %v2169
    %v2590 = vpack.c.b16 %v2177, %v2170
    %v2591 = vpack.c.b16 %v2178, %v2171
    %v2592 = vpack.c.b16 %v2179, %v2172
    %v2593 = vpack.c.b16 %v2180, %v2173
    %v2594 = vpack.c.b16 %v2188, %v2181
    %v2595 = vpack.c.b16 %v2189, %v2182
    %v2596 = vpack.c.b16 %v2190, %v2183
    %v2597 = vpack.c.b16 %v2191, %v2184
    %v2598 = vpack.c.b16 %v2192, %v2185
    %v2599 = vpack.c.b16 %v2193, %v2186
    %v2600 = vpack.c.b16 %v2194, %v2187
    %v2601 = vpack.c.b16 %v2202, %v2195
    %v2602 = vpack.c.b16 %v2203, %v2196
    %v2603 = vpack.c.b16 %v2204, %v2197
    %v2604 = vpack.c.b16 %v2205, %v2198
    %v2605 = vpack.c.b16 %v2206, %v2199
    %v2606 = vpack.c.b16 %v2207, %v2200
    %v2607 = vpack.c.b16 %v2208, %v2201
    %v2608 = vpack.c.b16 %v2216, %v2209
    %v2609 = vpack.c.b16 %v2217, %v2210
    %v2610 = vpack.c.b16 %v2218, %v2211
    %v2611 = vpack.c.b16 %v2219, %v2212
    %v2612 = vpack.c.b16 %v2220, %v2213
    %v2613 = vpack.c.b16 %v2221, %v2214
    %v2614 = vpack.c.b16 %v2222, %v2215
    %3007 = vmatprep.subr.bf16.mxu0 %v2224
    %3008 = vmatpush1.bf16.msra.mxu0 %v2223
    %3009 = vmatprep.subr.bf16.mxu0 %v2231
    %3010 = vmatpush1.bf16.msra.mxu0 %v2230
    %3011 = vmatprep.subr.bf16.mxu0 %v2238
    %3012 = vmatpush1.bf16.msra.mxu0 %v2237
    %3013 = vmatprep.subr.bf16.mxu0 %v2245
    %3014 = vmatpush1.bf16.msra.mxu0 %v2244
    %3015 = vmatprep.subr.bf16.mxu0 %v2252
    %3016 = vmatpush1.bf16.msra.mxu0 %v2251
    %3017 = vmatprep.subr.bf16.mxu0 %v2259
    %3018 = vmatpush1.bf16.msra.mxu0 %v2258
    %3019 = vmatprep.subr.bf16.mxu0 %v2266
    %3020 = vmatpush1.bf16.msra.mxu0 %v2265
    %3021 = vmatprep.subr.bf16.mxu0 %v2273
    %3022 = vmatpush1.bf16.msra.mxu0 %v2272
    %3023 = vmatprep.subr.bf16.mxu0 %v2280
    %3024 = vmatpush1.bf16.msra.mxu0 %v2279
    %3025 = vmatprep.subr.bf16.mxu0 %v2287
    %3026 = vmatpush1.bf16.msra.mxu0 %v2286
    %3027 = vmatprep.subr.bf16.mxu0 %v2294
    %3028 = vmatpush1.bf16.msra.mxu0 %v2293
    %3029 = vmatprep.subr.bf16.mxu0 %v2301
    %3030 = vmatpush1.bf16.msra.mxu0 %v2300
    %3031 = vmatprep.subr.bf16.mxu0 %v2308
    %3032 = vmatpush1.bf16.msra.mxu0 %v2307
    %3033 = vmatprep.subr.bf16.mxu0 %v2315
    %3034 = vmatpush1.bf16.msra.mxu0 %v2314
    %3035 = vmatprep.subr.bf16.mxu0 %v2322
    %3036 = vmatpush1.bf16.msra.mxu0 %v2321
    %3037 = vmatprep.subr.bf16.mxu0 %v2329
    %3038 = vmatpush1.bf16.msra.mxu0 %v2328
    %3039 = vmatprep.mubr.bf16.mxu0 %v493
    %3040 = vmatmul.mubr.bf16.gmra.mrb[0].mxu0 %v492
    %v3041 = vpop.f32.mrb[0].mxu0
    %v3042 = vadd.f32 %v959, %v3041
    %v3043 = vpop.f32.mrb[0].mxu0
    %v3044 = vadd.f32 %v963, %v3043
    %v3045 = vpop.f32.mrb[0].mxu0
    %v3046 = vadd.f32 %v959, %v3045
    %v3047 = vpop.f32.mrb[0].mxu0
    %v3048 = vadd.f32 %v963, %v3047
    %3049 = vmatprep.mubr.bf16.mxu0 %v500
    %3050 = vmatmul.mubr.bf16.gmra.mrb[0].mxu0 %v499
    %v3051 = vpop.f32.mrb[0].mxu0
    %v3052 = vadd.f32 %v959, %v3051
    %v3053 = vpop.f32.mrb[0].mxu0
    %v3054 = vadd.f32 %v963, %v3053
    %v3055 = vpop.f32.mrb[0].mxu0
    %v3056 = vpop.f32.mrb[0].mxu0
    %3057 = vdwg.mxu0
    %3058 = vmatprep.subr.bf16.mxu0 %v2336
    %3059 = vmatpush1.bf16.msra.mxu0 %v2335
    %3060 = vmatprep.subr.bf16.mxu0 %v2343
    %3061 = vmatpush1.bf16.msra.mxu0 %v2342
    %3062 = vmatprep.subr.bf16.mxu0 %v2350
    %3063 = vmatpush1.bf16.msra.mxu0 %v2349
    %3064 = vmatprep.subr.bf16.mxu0 %v2357
    %3065 = vmatpush1.bf16.msra.mxu0 %v2356
    %3066 = vmatprep.subr.bf16.mxu0 %v2364
    %3067 = vmatpush1.bf16.msra.mxu0 %v2363
    %3068 = vmatprep.subr.bf16.mxu0 %v2371
    %3069 = vmatpush1.bf16.msra.mxu0 %v2370
    %3070 = vmatprep.subr.bf16.mxu0 %v2378
    %3071 = vmatpush1.bf16.msra.mxu0 %v2377
    %3072 = vmatprep.subr.bf16.mxu0 %v2385
    %3073 = vmatpush1.bf16.msra.mxu0 %v2384
    %3074 = vmatprep.subr.bf16.mxu0 %v2392
    %3075 = vmatpush1.bf16.msra.mxu0 %v2391
    %3076 = vmatprep.subr.bf16.mxu0 %v2399
    %3077 = vmatpush1.bf16.msra.mxu0 %v2398
    %3078 = vmatprep.subr.bf16.mxu0 %v2406
    %3079 = vmatpush1.bf16.msra.mxu0 %v2405
    %3080 = vmatprep.subr.bf16.mxu0 %v2413
    %3081 = vmatpush1.bf16.msra.mxu0 %v2412
    %3082 = vmatprep.subr.bf16.mxu0 %v2420
    %3083 = vmatpush1.bf16.msra.mxu0 %v2419
    %3084 = vmatprep.subr.bf16.mxu0 %v2427
    %3085 = vmatpush1.bf16.msra.mxu0 %v2426
    %3086 = vmatprep.subr.bf16.mxu0 %v2434
    %3087 = vmatpush1.bf16.msra.mxu0 %v2433
    %3088 = vmatprep.subr.bf16.mxu0 %v2441
    %3089 = vmatpush1.bf16.msra.mxu0 %v2440
    %3090 = vmatprep.mubr.bf16.mxu0 %v495
    %3091 = vmatmul.mubr.bf16.gmra.mrb[0].mxu0 %v494
    %v3092 = vpop.f32.mrb[0].mxu0
    %v3093 = vadd.f32 %v3042, %v3092
    %v3094 = vpop.f32.mrb[0].mxu0
    %v3095 = vadd.f32 %v3044, %v3094
    %v3096 = vpop.f32.mrb[0].mxu0
    %v3097 = vadd.f32 %v3046, %v3096
    %v3098 = vpop.f32.mrb[0].mxu0
    %v3099 = vadd.f32 %v3048, %v3098
    %3100 = vmatprep.mubr.bf16.mxu0 %v502
    %3101 = vmatmul.mubr.bf16.gmra.mrb[0].mxu0 %v501
    %v3102 = vpop.f32.mrb[0].mxu0
    %v3103 = vadd.f32 %v3052, %v3102
    %v3104 = vpop.f32.mrb[0].mxu0
    %v3105 = vadd.f32 %v3054, %v3104
    %v3106 = vpop.f32.mrb[0].mxu0
    %v3107 = vpop.f32.mrb[0].mxu0
    %3108 = vdwg.mxu0
    %3109 = vmatprep.subr.bf16.mxu0 %v2448
    %3110 = vmatpush1.bf16.msra.mxu0 %v2447
    %3111 = vmatprep.subr.bf16.mxu0 %v2455
    %3112 = vmatpush1.bf16.msra.mxu0 %v2454
    %3113 = vmatprep.subr.bf16.mxu0 %v2462
    %3114 = vmatpush1.bf16.msra.mxu0 %v2461
    %3115 = vmatprep.subr.bf16.mxu0 %v2469
    %3116 = vmatpush1.bf16.msra.mxu0 %v2468
    %3117 = vmatprep.subr.bf16.mxu0 %v2476
    %3118 = vmatpush1.bf16.msra.mxu0 %v2475
    %3119 = vmatprep.subr.bf16.mxu0 %v2483
    %3120 = vmatpush1.bf16.msra.mxu0 %v2482
    %3121 = vmatprep.subr.bf16.mxu0 %v2490
    %3122 = vmatpush1.bf16.msra.mxu0 %v2489
    %3123 = vmatprep.subr.bf16.mxu0 %v2497
    %3124 = vmatpush1.bf16.msra.mxu0 %v2496
    %3125 = vmatprep.subr.bf16.mxu0 %v2504
    %3126 = vmatpush1.bf16.msra.mxu0 %v2503
    %3127 = vmatprep.subr.bf16.mxu0 %v2511
    %3128 = vmatpush1.bf16.msra.mxu0 %v2510
    %3129 = vmatprep.subr.bf16.mxu0 %v2518
    %3130 = vmatpush1.bf16.msra.mxu0 %v2517
    %3131 = vmatprep.subr.bf16.mxu0 %v2525
    %3132 = vmatpush1.bf16.msra.mxu0 %v2524
    %3133 = vmatprep.subr.bf16.mxu0 %v2532
    %3134 = vmatpush1.bf16.msra.mxu0 %v2531
    %3135 = vmatprep.subr.bf16.mxu0 %v2539
    %3136 = vmatpush1.bf16.msra.mxu0 %v2538
    %3137 = vmatprep.subr.bf16.mxu0 %v2546
    %3138 = vmatpush1.bf16.msra.mxu0 %v2545
    %3139 = vmatprep.subr.bf16.mxu0 %v2553
    %3140 = vmatpush1.bf16.msra.mxu0 %v2552
    %3141 = vmatprep.mubr.bf16.mxu0 %v497
    %3142 = vmatmul.mubr.bf16.gmra.mrb[0].mxu0 %v496
    %v3143 = vpop.f32.mrb[0].mxu0
    %v3144 = vadd.f32 %v3093, %v3143
    %v3145 = vpop.f32.mrb[0].mxu0
    %v3146 = vadd.f32 %v3095, %v3145
    %v3147 = vpop.f32.mrb[0].mxu0
    %v3148 = vadd.f32 %v3097, %v3147
    %v3149 = vpop.f32.mrb[0].mxu0
    %v3150 = vadd.f32 %v3099, %v3149
    %3151 = vmatprep.mubr.bf16.mxu0 %v504
    %3152 = vmatmul.mubr.bf16.gmra.mrb[0].mxu0 %v503
    %v3153 = vpop.f32.mrb[0].mxu0
    %v3154 = vadd.f32 %v3103, %v3153
    %v3155 = vpop.f32.mrb[0].mxu0
    %v3156 = vadd.f32 %v3105, %v3155
    %v3157 = vpop.f32.mrb[0].mxu0
    %v3158 = vpop.f32.mrb[0].mxu0
    %3159 = vdwg.mxu0
    %3160 = vmatprep.subr.bf16.mxu0 %v2560
    %3161 = vmatpush1.bf16.msra.mxu0 %v2559
    %3162 = vmatprep.subr.bf16.mxu0 %v2567
    %3163 = vmatpush1.bf16.msra.mxu0 %v2566
    %3164 = vmatprep.subr.bf16.mxu0 %v2574
    %3165 = vmatpush1.bf16.msra.mxu0 %v2573
    %3166 = vmatprep.subr.bf16.mxu0 %v2581
    %3167 = vmatpush1.bf16.msra.mxu0 %v2580
    %3168 = vmatprep.subr.bf16.mxu0 %v2588
    %3169 = vmatpush1.bf16.msra.mxu0 %v2587
    %3170 = vmatprep.subr.bf16.mxu0 %v2595
    %3171 = vmatpush1.bf16.msra.mxu0 %v2594
    %3172 = vmatprep.subr.bf16.mxu0 %v2602
    %3173 = vmatpush1.bf16.msra.mxu0 %v2601
    %3174 = vmatprep.subr.bf16.mxu0 %v2609
    %3175 = vmatpush1.bf16.msra.mxu0 %v2608
    %3176 = vmatprep.subr.bf16.mxu0 0
    %3177 = vmatpush1.bf16.msra.mxu0 0
    %3178 = vmatprep.subr.bf16.mxu0 0
    %3179 = vmatpush1.bf16.msra.mxu0 0
    %3180 = vmatprep.subr.bf16.mxu0 0
    %3181 = vmatpush1.bf16.msra.mxu0 0
    %3182 = vmatprep.subr.bf16.mxu0 0
    %3183 = vmatpush1.bf16.msra.mxu0 0
    %3184 = vmatprep.subr.bf16.mxu0 0
    %3185 = vmatpush1.bf16.msra.mxu0 0
    %3186 = vmatprep.subr.bf16.mxu0 0
    %3187 = vmatpush1.bf16.msra.mxu0 0
    %3188 = vmatprep.subr.bf16.mxu0 0
    %3189 = vmatpush1.bf16.msra.mxu0 0
    %3190 = vmatprep.subr.bf16.mxu0 0
    %3191 = vmatpush1.bf16.msra.mxu0 0
    %3192 = vmatprep.mubr.bf16.mxu0 0
    %3193 = vmatmul.mubr.bf16.gmra.mrb[0].mxu0 %v498
    %v3194 = vpop.f32.mrb[0].mxu0
    %v3195 = vadd.f32 %v3144, %v3194
    %v3196 = vpop.f32.mrb[0].mxu0
    %v3197 = vadd.f32 %v3146, %v3196
    %v3198 = vpop.f32.mrb[0].mxu0
    %v3199 = vadd.f32 %v3148, %v3198
    %v3200 = vpop.f32.mrb[0].mxu0
    %v3201 = vadd.f32 %v3150, %v3200
    %3202 = vmatprep.mubr.bf16.mxu0 0
    %3203 = vmatmul.mubr.bf16.gmra.mrb[0].mxu0 %v505
    %v3204 = vpop.f32.mrb[0].mxu0
    %v3205 = vadd.f32 %v3154, %v3204
    %v3206 = vpop.f32.mrb[0].mxu0
    %v3207 = vadd.f32 %v3156, %v3206
    %v3208 = vpop.f32.mrb[0].mxu0
    %v3209 = vpop.f32.mrb[0].mxu0
    %3210 = vdwg.mxu0
    %3211 = vmatprep.subr.bf16.mxu0 %v2226
    %3212 = vmatpush1.bf16.msra.mxu0 %v2225
    %3213 = vmatprep.subr.bf16.mxu0 %v2233
    %3214 = vmatpush1.bf16.msra.mxu0 %v2232
    %3215 = vmatprep.subr.bf16.mxu0 %v2240
    %3216 = vmatpush1.bf16.msra.mxu0 %v2239
    %3217 = vmatprep.subr.bf16.mxu0 %v2247
    %3218 = vmatpush1.bf16.msra.mxu0 %v2246
    %3219 = vmatprep.subr.bf16.mxu0 %v2254
    %3220 = vmatpush1.bf16.msra.mxu0 %v2253
    %3221 = vmatprep.subr.bf16.mxu0 %v2261
    %3222 = vmatpush1.bf16.msra.mxu0 %v2260
    %3223 = vmatprep.subr.bf16.mxu0 %v2268
    %3224 = vmatpush1.bf16.msra.mxu0 %v2267
    %3225 = vmatprep.subr.bf16.mxu0 %v2275
    %3226 = vmatpush1.bf16.msra.mxu0 %v2274
    %3227 = vmatprep.subr.bf16.mxu0 %v2282
    %3228 = vmatpush1.bf16.msra.mxu0 %v2281
    %3229 = vmatprep.subr.bf16.mxu0 %v2289
    %3230 = vmatpush1.bf16.msra.mxu0 %v2288
    %3231 = vmatprep.subr.bf16.mxu0 %v2296
    %3232 = vmatpush1.bf16.msra.mxu0 %v2295
    %3233 = vmatprep.subr.bf16.mxu0 %v2303
    %3234 = vmatpush1.bf16.msra.mxu0 %v2302
    %3235 = vmatprep.subr.bf16.mxu0 %v2310
    %3236 = vmatpush1.bf16.msra.mxu0 %v2309
    %3237 = vmatprep.subr.bf16.mxu0 %v2317
    %3238 = vmatpush1.bf16.msra.mxu0 %v2316
    %3239 = vmatprep.subr.bf16.mxu0 %v2324
    %3240 = vmatpush1.bf16.msra.mxu0 %v2323
    %3241 = vmatprep.subr.bf16.mxu0 %v2331
    %3242 = vmatpush1.bf16.msra.mxu0 %v2330
    %3243 = vmatprep.mubr.bf16.mxu0 %v493
    %3244 = vmatmul.mubr.bf16.gmra.mrb[0].mxu0 %v492
    %v3245 = vpop.f32.mrb[0].mxu0
    %v3246 = vadd.f32 %v967, %v3245
    %v3247 = vpop.f32.mrb[0].mxu0
    %v3248 = vadd.f32 %v971, %v3247
    %v3249 = vpop.f32.mrb[0].mxu0
    %v3250 = vadd.f32 %v967, %v3249
    %v3251 = vpop.f32.mrb[0].mxu0
    %v3252 = vadd.f32 %v971, %v3251
    %3253 = vmatprep.mubr.bf16.mxu0 %v500
    %3254 = vmatmul.mubr.bf16.gmra.mrb[0].mxu0 %v499
    %v3255 = vpop.f32.mrb[0].mxu0
    %v3256 = vadd.f32 %v967, %v3255
    %v3257 = vpop.f32.mrb[0].mxu0
    %v3258 = vadd.f32 %v971, %v3257
    %v3259 = vpop.f32.mrb[0].mxu0
    %v3260 = vpop.f32.mrb[0].mxu0
    %3261 = vdwg.mxu0
    %3262 = vmatprep.subr.bf16.mxu0 %v2338
    %3263 = vmatpush1.bf16.msra.mxu0 %v2337
    %3264 = vmatprep.subr.bf16.mxu0 %v2345
    %3265 = vmatpush1.bf16.msra.mxu0 %v2344
    %3266 = vmatprep.subr.bf16.mxu0 %v2352
    %3267 = vmatpush1.bf16.msra.mxu0 %v2351
    %3268 = vmatprep.subr.bf16.mxu0 %v2359
    %3269 = vmatpush1.bf16.msra.mxu0 %v2358
    %3270 = vmatprep.subr.bf16.mxu0 %v2366
    %3271 = vmatpush1.bf16.msra.mxu0 %v2365
    %3272 = vmatprep.subr.bf16.mxu0 %v2373
    %3273 = vmatpush1.bf16.msra.mxu0 %v2372
    %3274 = vmatprep.subr.bf16.mxu0 %v2380
    %3275 = vmatpush1.bf16.msra.mxu0 %v2379
    %3276 = vmatprep.subr.bf16.mxu0 %v2387
    %3277 = vmatpush1.bf16.msra.mxu0 %v2386
    %3278 = vmatprep.subr.bf16.mxu0 %v2394
    %3279 = vmatpush1.bf16.msra.mxu0 %v2393
    %3280 = vmatprep.subr.bf16.mxu0 %v2401
    %3281 = vmatpush1.bf16.msra.mxu0 %v2400
    %3282 = vmatprep.subr.bf16.mxu0 %v2408
    %3283 = vmatpush1.bf16.msra.mxu0 %v2407
    %3284 = vmatprep.subr.bf16.mxu0 %v2415
    %3285 = vmatpush1.bf16.msra.mxu0 %v2414
    %3286 = vmatprep.subr.bf16.mxu0 %v2422
    %3287 = vmatpush1.bf16.msra.mxu0 %v2421
    %3288 = vmatprep.subr.bf16.mxu0 %v2429
    %3289 = vmatpush1.bf16.msra.mxu0 %v2428
    %3290 = vmatprep.subr.bf16.mxu0 %v2436
    %3291 = vmatpush1.bf16.msra.mxu0 %v2435
    %3292 = vmatprep.subr.bf16.mxu0 %v2443
    %3293 = vmatpush1.bf16.msra.mxu0 %v2442
    %3294 = vmatprep.mubr.bf16.mxu0 %v495
    %3295 = vmatmul.mubr.bf16.gmra.mrb[0].mxu0 %v494
    %v3296 = vpop.f32.mrb[0].mxu0
    %v3297 = vadd.f32 %v3246, %v3296
    %v3298 = vpop.f32.mrb[0].mxu0
    %v3299 = vadd.f32 %v3248, %v3298
    %v3300 = vpop.f32.mrb[0].mxu0
    %v3301 = vadd.f32 %v3250, %v3300
    %v3302 = vpop.f32.mrb[0].mxu0
    %v3303 = vadd.f32 %v3252, %v3302
    %3304 = vmatprep.mubr.bf16.mxu0 %v502
    %3305 = vmatmul.mubr.bf16.gmra.mrb[0].mxu0 %v501
    %v3306 = vpop.f32.mrb[0].mxu0
    %v3307 = vadd.f32 %v3256, %v3306
    %v3308 = vpop.f32.mrb[0].mxu0
    %v3309 = vadd.f32 %v3258, %v3308
    %v3310 = vpop.f32.mrb[0].mxu0
    %v3311 = vpop.f32.mrb[0].mxu0
    %3312 = vdwg.mxu0
    %3313 = vmatprep.subr.bf16.mxu0 %v2450
    %3314 = vmatpush1.bf16.msra.mxu0 %v2449
    %3315 = vmatprep.subr.bf16.mxu0 %v2457
    %3316 = vmatpush1.bf16.msra.mxu0 %v2456
    %3317 = vmatprep.subr.bf16.mxu0 %v2464
    %3318 = vmatpush1.bf16.msra.mxu0 %v2463
    %3319 = vmatprep.subr.bf16.mxu0 %v2471
    %3320 = vmatpush1.bf16.msra.mxu0 %v2470
    %3321 = vmatprep.subr.bf16.mxu0 %v2478
    %3322 = vmatpush1.bf16.msra.mxu0 %v2477
    %3323 = vmatprep.subr.bf16.mxu0 %v2485
    %3324 = vmatpush1.bf16.msra.mxu0 %v2484
    %3325 = vmatprep.subr.bf16.mxu0 %v2492
    %3326 = vmatpush1.bf16.msra.mxu0 %v2491
    %3327 = vmatprep.subr.bf16.mxu0 %v2499
    %3328 = vmatpush1.bf16.msra.mxu0 %v2498
    %3329 = vmatprep.subr.bf16.mxu0 %v2506
    %3330 = vmatpush1.bf16.msra.mxu0 %v2505
    %3331 = vmatprep.subr.bf16.mxu0 %v2513
    %3332 = vmatpush1.bf16.msra.mxu0 %v2512
    %3333 = vmatprep.subr.bf16.mxu0 %v2520
    %3334 = vmatpush1.bf16.msra.mxu0 %v2519
    %3335 = vmatprep.subr.bf16.mxu0 %v2527
    %3336 = vmatpush1.bf16.msra.mxu0 %v2526
    %3337 = vmatprep.subr.bf16.mxu0 %v2534
    %3338 = vmatpush1.bf16.msra.mxu0 %v2533
    %3339 = vmatprep.subr.bf16.mxu0 %v2541
    %3340 = vmatpush1.bf16.msra.mxu0 %v2540
    %3341 = vmatprep.subr.bf16.mxu0 %v2548
    %3342 = vmatpush1.bf16.msra.mxu0 %v2547
    %3343 = vmatprep.subr.bf16.mxu0 %v2555
    %3344 = vmatpush1.bf16.msra.mxu0 %v2554
    %3345 = vmatprep.mubr.bf16.mxu0 %v497
    %3346 = vmatmul.mubr.bf16.gmra.mrb[0].mxu0 %v496
    %v3347 = vpop.f32.mrb[0].mxu0
    %v3348 = vadd.f32 %v3297, %v3347
    %v3349 = vpop.f32.mrb[0].mxu0
    %v3350 = vadd.f32 %v3299, %v3349
    %v3351 = vpop.f32.mrb[0].mxu0
    %v3352 = vadd.f32 %v3301, %v3351
    %v3353 = vpop.f32.mrb[0].mxu0
    %v3354 = vadd.f32 %v3303, %v3353
    %3355 = vmatprep.mubr.bf16.mxu0 %v504
    %3356 = vmatmul.mubr.bf16.gmra.mrb[0].mxu0 %v503
    %v3357 = vpop.f32.mrb[0].mxu0
    %v3358 = vadd.f32 %v3307, %v3357
    %v3359 = vpop.f32.mrb[0].mxu0
    %v3360 = vadd.f32 %v3309, %v3359
    %v3361 = vpop.f32.mrb[0].mxu0
    %v3362 = vpop.f32.mrb[0].mxu0
    %3363 = vdwg.mxu0
    %3364 = vmatprep.subr.bf16.mxu0 %v2562
    %3365 = vmatpush1.bf16.msra.mxu0 %v2561
    %3366 = vmatprep.subr.bf16.mxu0 %v2569
    %3367 = vmatpush1.bf16.msra.mxu0 %v2568
    %3368 = vmatprep.subr.bf16.mxu0 %v2576
    %3369 = vmatpush1.bf16.msra.mxu0 %v2575
    %3370 = vmatprep.subr.bf16.mxu0 %v2583
    %3371 = vmatpush1.bf16.msra.mxu0 %v2582
    %3372 = vmatprep.subr.bf16.mxu0 %v2590
    %3373 = vmatpush1.bf16.msra.mxu0 %v2589
    %3374 = vmatprep.subr.bf16.mxu0 %v2597
    %3375 = vmatpush1.bf16.msra.mxu0 %v2596
    %3376 = vmatprep.subr.bf16.mxu0 %v2604
    %3377 = vmatpush1.bf16.msra.mxu0 %v2603
    %3378 = vmatprep.subr.bf16.mxu0 %v2611
    %3379 = vmatpush1.bf16.msra.mxu0 %v2610
    %3380 = vmatprep.subr.bf16.mxu0 0
    %3381 = vmatpush1.bf16.msra.mxu0 0
    %3382 = vmatprep.subr.bf16.mxu0 0
    %3383 = vmatpush1.bf16.msra.mxu0 0
    %3384 = vmatprep.subr.bf16.mxu0 0
    %3385 = vmatpush1.bf16.msra.mxu0 0
    %3386 = vmatprep.subr.bf16.mxu0 0
    %3387 = vmatpush1.bf16.msra.mxu0 0
    %3388 = vmatprep.subr.bf16.mxu0 0
    %3389 = vmatpush1.bf16.msra.mxu0 0
    %3390 = vmatprep.subr.bf16.mxu0 0
    %3391 = vmatpush1.bf16.msra.mxu0 0
    %3392 = vmatprep.subr.bf16.mxu0 0
    %3393 = vmatpush1.bf16.msra.mxu0 0
    %3394 = vmatprep.subr.bf16.mxu0 0
    %3395 = vmatpush1.bf16.msra.mxu0 0
    %3396 = vmatprep.mubr.bf16.mxu0 0
    %3397 = vmatmul.mubr.bf16.gmra.mrb[0].mxu0 %v498
    %v3398 = vpop.f32.mrb[0].mxu0
    %v3399 = vadd.f32 %v3348, %v3398
    %v3400 = vpop.f32.mrb[0].mxu0
    %v3401 = vadd.f32 %v3350, %v3400
    %v3402 = vpop.f32.mrb[0].mxu0
    %v3403 = vadd.f32 %v3352, %v3402
    %v3404 = vpop.f32.mrb[0].mxu0
    %v3405 = vadd.f32 %v3354, %v3404
    %3406 = vmatprep.mubr.bf16.mxu0 0
    %3407 = vmatmul.mubr.bf16.gmra.mrb[0].mxu0 %v505
    %v3408 = vpop.f32.mrb[0].mxu0
    %v3409 = vadd.f32 %v3358, %v3408
    %v3410 = vpop.f32.mrb[0].mxu0
    %v3411 = vadd.f32 %v3360, %v3410
    %v3412 = vpop.f32.mrb[0].mxu0
    %v3413 = vpop.f32.mrb[0].mxu0
    %3414 = vdwg.mxu0
    %3415 = vmatprep.subr.bf16.mxu0 %v2228
    %3416 = vmatpush1.bf16.msra.mxu0 %v2227
    %3417 = vmatprep.subr.bf16.mxu0 %v2235
    %3418 = vmatpush1.bf16.msra.mxu0 %v2234
    %3419 = vmatprep.subr.bf16.mxu0 %v2242
    %3420 = vmatpush1.bf16.msra.mxu0 %v2241
    %3421 = vmatprep.subr.bf16.mxu0 %v2249
    %3422 = vmatpush1.bf16.msra.mxu0 %v2248
    %3423 = vmatprep.subr.bf16.mxu0 %v2256
    %3424 = vmatpush1.bf16.msra.mxu0 %v2255
    %3425 = vmatprep.subr.bf16.mxu0 %v2263
    %3426 = vmatpush1.bf16.msra.mxu0 %v2262
    %3427 = vmatprep.subr.bf16.mxu0 %v2270
    %3428 = vmatpush1.bf16.msra.mxu0 %v2269
    %3429 = vmatprep.subr.bf16.mxu0 %v2277
    %3430 = vmatpush1.bf16.msra.mxu0 %v2276
    %3431 = vmatprep.subr.bf16.mxu0 %v2284
    %3432 = vmatpush1.bf16.msra.mxu0 %v2283
    %3433 = vmatprep.subr.bf16.mxu0 %v2291
    %3434 = vmatpush1.bf16.msra.mxu0 %v2290
    %3435 = vmatprep.subr.bf16.mxu0 %v2298
    %3436 = vmatpush1.bf16.msra.mxu0 %v2297
    %3437 = vmatprep.subr.bf16.mxu0 %v2305
    %3438 = vmatpush1.bf16.msra.mxu0 %v2304
    %3439 = vmatprep.subr.bf16.mxu0 %v2312
    %3440 = vmatpush1.bf16.msra.mxu0 %v2311
    %3441 = vmatprep.subr.bf16.mxu0 %v2319
    %3442 = vmatpush1.bf16.msra.mxu0 %v2318
    %3443 = vmatprep.subr.bf16.mxu0 %v2326
    %3444 = vmatpush1.bf16.msra.mxu0 %v2325
    %3445 = vmatprep.subr.bf16.mxu0 %v2333
    %3446 = vmatpush1.bf16.msra.mxu0 %v2332
    %3447 = vmatprep.mubr.bf16.mxu0 %v493
    %3448 = vmatmul.mubr.bf16.gmra.mrb[0].mxu0 %v492
    %v3449 = vpop.f32.mrb[0].mxu0
    %v3450 = vadd.f32 %v975, %v3449
    %v3451 = vpop.f32.mrb[0].mxu0
    %v3452 = vadd.f32 %v979, %v3451
    %v3453 = vpop.f32.mrb[0].mxu0
    %v3454 = vadd.f32 %v975, %v3453
    %v3455 = vpop.f32.mrb[0].mxu0
    %v3456 = vadd.f32 %v979, %v3455
    %3457 = vmatprep.mubr.bf16.mxu0 %v500
    %3458 = vmatmul.mubr.bf16.gmra.mrb[0].mxu0 %v499
    %v3459 = vpop.f32.mrb[0].mxu0
    %v3460 = vadd.f32 %v975, %v3459
    %v3461 = vpop.f32.mrb[0].mxu0
    %v3462 = vadd.f32 %v979, %v3461
    %v3463 = vpop.f32.mrb[0].mxu0
    %v3464 = vpop.f32.mrb[0].mxu0
    %3465 = vdwg.mxu0
    %3466 = vmatprep.subr.bf16.mxu0 %v2340
    %3467 = vmatpush1.bf16.msra.mxu0 %v2339
    %3468 = vmatprep.subr.bf16.mxu0 %v2347
    %3469 = vmatpush1.bf16.msra.mxu0 %v2346
    %3470 = vmatprep.subr.bf16.mxu0 %v2354
    %3471 = vmatpush1.bf16.msra.mxu0 %v2353
    %3472 = vmatprep.subr.bf16.mxu0 %v2361
    %3473 = vmatpush1.bf16.msra.mxu0 %v2360
    %3474 = vmatprep.subr.bf16.mxu0 %v2368
    %3475 = vmatpush1.bf16.msra.mxu0 %v2367
    %3476 = vmatprep.subr.bf16.mxu0 %v2375
    %3477 = vmatpush1.bf16.msra.mxu0 %v2374
    %3478 = vmatprep.subr.bf16.mxu0 %v2382
    %3479 = vmatpush1.bf16.msra.mxu0 %v2381
    %3480 = vmatprep.subr.bf16.mxu0 %v2389
    %3481 = vmatpush1.bf16.msra.mxu0 %v2388
    %3482 = vmatprep.subr.bf16.mxu0 %v2396
    %3483 = vmatpush1.bf16.msra.mxu0 %v2395
    %3484 = vmatprep.subr.bf16.mxu0 %v2403
    %3485 = vmatpush1.bf16.msra.mxu0 %v2402
    %3486 = vmatprep.subr.bf16.mxu0 %v2410
    %3487 = vmatpush1.bf16.msra.mxu0 %v2409
    %3488 = vmatprep.subr.bf16.mxu0 %v2417
    %3489 = vmatpush1.bf16.msra.mxu0 %v2416
    %3490 = vmatprep.subr.bf16.mxu0 %v2424
    %3491 = vmatpush1.bf16.msra.mxu0 %v2423
    %3492 = vmatprep.subr.bf16.mxu0 %v2431
    %3493 = vmatpush1.bf16.msra.mxu0 %v2430
    %3494 = vmatprep.subr.bf16.mxu0 %v2438
    %3495 = vmatpush1.bf16.msra.mxu0 %v2437
    %3496 = vmatprep.subr.bf16.mxu0 %v2445
    %3497 = vmatpush1.bf16.msra.mxu0 %v2444
    %3498 = vmatprep.mubr.bf16.mxu0 %v495
    %3499 = vmatmul.mubr.bf16.gmra.mrb[0].mxu0 %v494
    %v3500 = vpop.f32.mrb[0].mxu0
    %v3501 = vadd.f32 %v3450, %v3500
    %v3502 = vpop.f32.mrb[0].mxu0
    %v3503 = vadd.f32 %v3452, %v3502
    %v3504 = vpop.f32.mrb[0].mxu0
    %v3505 = vadd.f32 %v3454, %v3504
    %v3506 = vpop.f32.mrb[0].mxu0
    %v3507 = vadd.f32 %v3456, %v3506
    %3508 = vmatprep.mubr.bf16.mxu0 %v502
    %3509 = vmatmul.mubr.bf16.gmra.mrb[0].mxu0 %v501
    %v3510 = vpop.f32.mrb[0].mxu0
    %v3511 = vadd.f32 %v3460, %v3510
    %v3512 = vpop.f32.mrb[0].mxu0
    %v3513 = vadd.f32 %v3462, %v3512
    %v3514 = vpop.f32.mrb[0].mxu0
    %v3515 = vpop.f32.mrb[0].mxu0
    %3516 = vdwg.mxu0
    %3517 = vmatprep.subr.bf16.mxu0 %v2452
    %3518 = vmatpush1.bf16.msra.mxu0 %v2451
    %3519 = vmatprep.subr.bf16.mxu0 %v2459
    %3520 = vmatpush1.bf16.msra.mxu0 %v2458
    %3521 = vmatprep.subr.bf16.mxu0 %v2466
    %3522 = vmatpush1.bf16.msra.mxu0 %v2465
    %3523 = vmatprep.subr.bf16.mxu0 %v2473
    %3524 = vmatpush1.bf16.msra.mxu0 %v2472
    %3525 = vmatprep.subr.bf16.mxu0 %v2480
    %3526 = vmatpush1.bf16.msra.mxu0 %v2479
    %3527 = vmatprep.subr.bf16.mxu0 %v2487
    %3528 = vmatpush1.bf16.msra.mxu0 %v2486
    %3529 = vmatprep.subr.bf16.mxu0 %v2494
    %3530 = vmatpush1.bf16.msra.mxu0 %v2493
    %3531 = vmatprep.subr.bf16.mxu0 %v2501
    %3532 = vmatpush1.bf16.msra.mxu0 %v2500
    %3533 = vmatprep.subr.bf16.mxu0 %v2508
    %3534 = vmatpush1.bf16.msra.mxu0 %v2507
    %3535 = vmatprep.subr.bf16.mxu0 %v2515
    %3536 = vmatpush1.bf16.msra.mxu0 %v2514
    %3537 = vmatprep.subr.bf16.mxu0 %v2522
    %3538 = vmatpush1.bf16.msra.mxu0 %v2521
    %3539 = vmatprep.subr.bf16.mxu0 %v2529
    %3540 = vmatpush1.bf16.msra.mxu0 %v2528
    %3541 = vmatprep.subr.bf16.mxu0 %v2536
    %3542 = vmatpush1.bf16.msra.mxu0 %v2535
    %3543 = vmatprep.subr.bf16.mxu0 %v2543
    %3544 = vmatpush1.bf16.msra.mxu0 %v2542
    %3545 = vmatprep.subr.bf16.mxu0 %v2550
    %3546 = vmatpush1.bf16.msra.mxu0 %v2549
    %3547 = vmatprep.subr.bf16.mxu0 %v2557
    %3548 = vmatpush1.bf16.msra.mxu0 %v2556
    %3549 = vmatprep.mubr.bf16.mxu0 %v497
    %3550 = vmatmul.mubr.bf16.gmra.mrb[0].mxu0 %v496
    %v3551 = vpop.f32.mrb[0].mxu0
    %v3552 = vadd.f32 %v3501, %v3551
    %v3553 = vpop.f32.mrb[0].mxu0
    %v3554 = vadd.f32 %v3503, %v3553
    %v3555 = vpop.f32.mrb[0].mxu0
    %v3556 = vadd.f32 %v3505, %v3555
    %v3557 = vpop.f32.mrb[0].mxu0
    %v3558 = vadd.f32 %v3507, %v3557
    %3559 = vmatprep.mubr.bf16.mxu0 %v504
    %3560 = vmatmul.mubr.bf16.gmra.mrb[0].mxu0 %v503
    %v3561 = vpop.f32.mrb[0].mxu0
    %v3562 = vadd.f32 %v3511, %v3561
    %v3563 = vpop.f32.mrb[0].mxu0
    %v3564 = vadd.f32 %v3513, %v3563
    %v3565 = vpop.f32.mrb[0].mxu0
    %v3566 = vpop.f32.mrb[0].mxu0
    %3567 = vdwg.mxu0
    %3568 = vmatprep.subr.bf16.mxu0 %v2564
    %3569 = vmatpush1.bf16.msra.mxu0 %v2563
    %3570 = vmatprep.subr.bf16.mxu0 %v2571
    %3571 = vmatpush1.bf16.msra.mxu0 %v2570
    %3572 = vmatprep.subr.bf16.mxu0 %v2578
    %3573 = vmatpush1.bf16.msra.mxu0 %v2577
    %3574 = vmatprep.subr.bf16.mxu0 %v2585
    %3575 = vmatpush1.bf16.msra.mxu0 %v2584
    %3576 = vmatprep.subr.bf16.mxu0 %v2592
    %3577 = vmatpush1.bf16.msra.mxu0 %v2591
    %3578 = vmatprep.subr.bf16.mxu0 %v2599
    %3579 = vmatpush1.bf16.msra.mxu0 %v2598
    %3580 = vmatprep.subr.bf16.mxu0 %v2606
    %3581 = vmatpush1.bf16.msra.mxu0 %v2605
    %3582 = vmatprep.subr.bf16.mxu0 %v2613
    %3583 = vmatpush1.bf16.msra.mxu0 %v2612
    %3584 = vmatprep.subr.bf16.mxu0 0
    %3585 = vmatpush1.bf16.msra.mxu0 0
    %3586 = vmatprep.subr.bf16.mxu0 0
    %3587 = vmatpush1.bf16.msra.mxu0 0
    %3588 = vmatprep.subr.bf16.mxu0 0
    %3589 = vmatpush1.bf16.msra.mxu0 0
    %3590 = vmatprep.subr.bf16.mxu0 0
    %3591 = vmatpush1.bf16.msra.mxu0 0
    %3592 = vmatprep.subr.bf16.mxu0 0
    %3593 = vmatpush1.bf16.msra.mxu0 0
    %3594 = vmatprep.subr.bf16.mxu0 0
    %3595 = vmatpush1.bf16.msra.mxu0 0
    %3596 = vmatprep.subr.bf16.mxu0 0
    %3597 = vmatpush1.bf16.msra.mxu0 0
    %3598 = vmatprep.subr.bf16.mxu0 0
    %3599 = vmatpush1.bf16.msra.mxu0 0
    %3600 = vmatprep.mubr.bf16.mxu0 0
    %3601 = vmatmul.mubr.bf16.gmra.mrb[0].mxu0 %v498
    %v3602 = vpop.f32.mrb[0].mxu0
    %v3603 = vadd.f32 %v3552, %v3602
    %v3604 = vpop.f32.mrb[0].mxu0
    %v3605 = vadd.f32 %v3554, %v3604
    %v3606 = vpop.f32.mrb[0].mxu0
    %v3607 = vadd.f32 %v3556, %v3606
    %v3608 = vpop.f32.mrb[0].mxu0
    %v3609 = vadd.f32 %v3558, %v3608
    %3610 = vmatprep.mubr.bf16.mxu0 0
    %3611 = vmatmul.mubr.bf16.gmra.mrb[0].mxu0 %v505
    %v3612 = vpop.f32.mrb[0].mxu0
    %v3613 = vadd.f32 %v3562, %v3612
    %v3614 = vpop.f32.mrb[0].mxu0
    %v3615 = vadd.f32 %v3564, %v3614
    %v3616 = vpop.f32.mrb[0].mxu0
    %v3617 = vpop.f32.mrb[0].mxu0
    %3618 = vdwg.mxu0
    %3619 = vmatprep.subr.bf16.mxu0 0
    %3620 = vmatpush1.bf16.msra.mxu0 %v2229
    %3621 = vmatprep.subr.bf16.mxu0 0
    %3622 = vmatpush1.bf16.msra.mxu0 %v2236
    %3623 = vmatprep.subr.bf16.mxu0 0
    %3624 = vmatpush1.bf16.msra.mxu0 %v2243
    %3625 = vmatprep.subr.bf16.mxu0 0
    %3626 = vmatpush1.bf16.msra.mxu0 %v2250
    %3627 = vmatprep.subr.bf16.mxu0 0
    %3628 = vmatpush1.bf16.msra.mxu0 %v2257
    %3629 = vmatprep.subr.bf16.mxu0 0
    %3630 = vmatpush1.bf16.msra.mxu0 %v2264
    %3631 = vmatprep.subr.bf16.mxu0 0
    %3632 = vmatpush1.bf16.msra.mxu0 %v2271
    %3633 = vmatprep.subr.bf16.mxu0 0
    %3634 = vmatpush1.bf16.msra.mxu0 %v2278
    %3635 = vmatprep.subr.bf16.mxu0 0
    %3636 = vmatpush1.bf16.msra.mxu0 %v2285
    %3637 = vmatprep.subr.bf16.mxu0 0
    %3638 = vmatpush1.bf16.msra.mxu0 %v2292
    %3639 = vmatprep.subr.bf16.mxu0 0
    %3640 = vmatpush1.bf16.msra.mxu0 %v2299
    %3641 = vmatprep.subr.bf16.mxu0 0
    %3642 = vmatpush1.bf16.msra.mxu0 %v2306
    %3643 = vmatprep.subr.bf16.mxu0 0
    %3644 = vmatpush1.bf16.msra.mxu0 %v2313
    %3645 = vmatprep.subr.bf16.mxu0 0
    %3646 = vmatpush1.bf16.msra.mxu0 %v2320
    %3647 = vmatprep.subr.bf16.mxu0 0
    %3648 = vmatpush1.bf16.msra.mxu0 %v2327
    %3649 = vmatprep.subr.bf16.mxu0 0
    %3650 = vmatpush1.bf16.msra.mxu0 %v2334
    %3651 = vmatprep.mubr.bf16.mxu0 %v493
    %3652 = vmatmul.mubr.bf16.gmra.mrb[0].mxu0 %v492
    %v3653 = vpop.f32.mrb[0].mxu0
    %v3654 = vadd.f32 %v983, %v3653
    %v3655 = vpop.f32.mrb[0].mxu0
    %v3656 = vpop.f32.mrb[0].mxu0
    %v3657 = vadd.f32 %v983, %v3656
    %v3658 = vpop.f32.mrb[0].mxu0
    %3659 = vmatprep.mubr.bf16.mxu0 %v500
    %3660 = vmatmul.mubr.bf16.gmra.mrb[0].mxu0 %v499
    %v3661 = vpop.f32.mrb[0].mxu0
    %v3662 = vadd.f32 %v983, %v3661
    %v3663 = vpop.f32.mrb[0].mxu0
    %v3664 = vpop.f32.mrb[0].mxu0
    %v3665 = vpop.f32.mrb[0].mxu0
    %3666 = vdwg.mxu0
    %3667 = vmatprep.subr.bf16.mxu0 0
    %3668 = vmatpush1.bf16.msra.mxu0 %v2341
    %3669 = vmatprep.subr.bf16.mxu0 0
    %3670 = vmatpush1.bf16.msra.mxu0 %v2348
    %3671 = vmatprep.subr.bf16.mxu0 0
    %3672 = vmatpush1.bf16.msra.mxu0 %v2355
    %3673 = vmatprep.subr.bf16.mxu0 0
    %3674 = vmatpush1.bf16.msra.mxu0 %v2362
    %3675 = vmatprep.subr.bf16.mxu0 0
    %3676 = vmatpush1.bf16.msra.mxu0 %v2369
    %3677 = vmatprep.subr.bf16.mxu0 0
    %3678 = vmatpush1.bf16.msra.mxu0 %v2376
    %3679 = vmatprep.subr.bf16.mxu0 0
    %3680 = vmatpush1.bf16.msra.mxu0 %v2383
    %3681 = vmatprep.subr.bf16.mxu0 0
    %3682 = vmatpush1.bf16.msra.mxu0 %v2390
    %3683 = vmatprep.subr.bf16.mxu0 0
    %3684 = vmatpush1.bf16.msra.mxu0 %v2397
    %3685 = vmatprep.subr.bf16.mxu0 0
    %3686 = vmatpush1.bf16.msra.mxu0 %v2404
    %3687 = vmatprep.subr.bf16.mxu0 0
    %3688 = vmatpush1.bf16.msra.mxu0 %v2411
    %3689 = vmatprep.subr.bf16.mxu0 0
    %3690 = vmatpush1.bf16.msra.mxu0 %v2418
    %3691 = vmatprep.subr.bf16.mxu0 0
    %3692 = vmatpush1.bf16.msra.mxu0 %v2425
    %3693 = vmatprep.subr.bf16.mxu0 0
    %3694 = vmatpush1.bf16.msra.mxu0 %v2432
    %3695 = vmatprep.subr.bf16.mxu0 0
    %3696 = vmatpush1.bf16.msra.mxu0 %v2439
    %3697 = vmatprep.subr.bf16.mxu0 0
    %3698 = vmatpush1.bf16.msra.mxu0 %v2446
    %3699 = vmatprep.mubr.bf16.mxu0 %v495
    %3700 = vmatmul.mubr.bf16.gmra.mrb[0].mxu0 %v494
    %v3701 = vpop.f32.mrb[0].mxu0
    %v3702 = vadd.f32 %v3654, %v3701
    %v3703 = vpop.f32.mrb[0].mxu0
    %v3704 = vpop.f32.mrb[0].mxu0
    %v3705 = vadd.f32 %v3657, %v3704
    %v3706 = vpop.f32.mrb[0].mxu0
    %3707 = vmatprep.mubr.bf16.mxu0 %v502
    %3708 = vmatmul.mubr.bf16.gmra.mrb[0].mxu0 %v501
    %v3709 = vpop.f32.mrb[0].mxu0
    %v3710 = vadd.f32 %v3662, %v3709
    %v3711 = vpop.f32.mrb[0].mxu0
    %v3712 = vpop.f32.mrb[0].mxu0
    %v3713 = vpop.f32.mrb[0].mxu0
    %3714 = vdwg.mxu0
    %3715 = vmatprep.subr.bf16.mxu0 0
    %3716 = vmatpush1.bf16.msra.mxu0 %v2453
    %3717 = vmatprep.subr.bf16.mxu0 0
    %3718 = vmatpush1.bf16.msra.mxu0 %v2460
    %3719 = vmatprep.subr.bf16.mxu0 0
    %3720 = vmatpush1.bf16.msra.mxu0 %v2467
    %3721 = vmatprep.subr.bf16.mxu0 0
    %3722 = vmatpush1.bf16.msra.mxu0 %v2474
    %3723 = vmatprep.subr.bf16.mxu0 0
    %3724 = vmatpush1.bf16.msra.mxu0 %v2481
    %3725 = vmatprep.subr.bf16.mxu0 0
    %3726 = vmatpush1.bf16.msra.mxu0 %v2488
    %3727 = vmatprep.subr.bf16.mxu0 0
    %3728 = vmatpush1.bf16.msra.mxu0 %v2495
    %3729 = vmatprep.subr.bf16.mxu0 0
    %3730 = vmatpush1.bf16.msra.mxu0 %v2502
    %3731 = vmatprep.subr.bf16.mxu0 0
    %3732 = vmatpush1.bf16.msra.mxu0 %v2509
    %3733 = vmatprep.subr.bf16.mxu0 0
    %3734 = vmatpush1.bf16.msra.mxu0 %v2516
    %3735 = vmatprep.subr.bf16.mxu0 0
    %3736 = vmatpush1.bf16.msra.mxu0 %v2523
    %3737 = vmatprep.subr.bf16.mxu0 0
    %3738 = vmatpush1.bf16.msra.mxu0 %v2530
    %3739 = vmatprep.subr.bf16.mxu0 0
    %3740 = vmatpush1.bf16.msra.mxu0 %v2537
    %3741 = vmatprep.subr.bf16.mxu0 0
    %3742 = vmatpush1.bf16.msra.mxu0 %v2544
    %3743 = vmatprep.subr.bf16.mxu0 0
    %3744 = vmatpush1.bf16.msra.mxu0 %v2551
    %3745 = vmatprep.subr.bf16.mxu0 0
    %3746 = vmatpush1.bf16.msra.mxu0 %v2558
    %3747 = vmatprep.mubr.bf16.mxu0 %v497
    %3748 = vmatmul.mubr.bf16.gmra.mrb[0].mxu0 %v496
    %v3749 = vpop.f32.mrb[0].mxu0
    %v3750 = vadd.f32 %v3702, %v3749
    %v3751 = vpop.f32.mrb[0].mxu0
    %v3752 = vpop.f32.mrb[0].mxu0
    %v3753 = vadd.f32 %v3705, %v3752
    %v3754 = vpop.f32.mrb[0].mxu0
    %3755 = vmatprep.mubr.bf16.mxu0 %v504
    %3756 = vmatmul.mubr.bf16.gmra.mrb[0].mxu0 %v503
    %v3757 = vpop.f32.mrb[0].mxu0
    %v3758 = vadd.f32 %v3710, %v3757
    %v3759 = vpop.f32.mrb[0].mxu0
    %v3760 = vpop.f32.mrb[0].mxu0
    %v3761 = vpop.f32.mrb[0].mxu0
    %3762 = vdwg.mxu0
    %3763 = vmatprep.subr.bf16.mxu0 0
    %3764 = vmatpush1.bf16.msra.mxu0 %v2565
    %3765 = vmatprep.subr.bf16.mxu0 0
    %3766 = vmatpush1.bf16.msra.mxu0 %v2572
    %3767 = vmatprep.subr.bf16.mxu0 0
    %3768 = vmatpush1.bf16.msra.mxu0 %v2579
    %3769 = vmatprep.subr.bf16.mxu0 0
    %3770 = vmatpush1.bf16.msra.mxu0 %v2586
    %3771 = vmatprep.subr.bf16.mxu0 0
    %3772 = vmatpush1.bf16.msra.mxu0 %v2593
    %3773 = vmatprep.subr.bf16.mxu0 0
    %3774 = vmatpush1.bf16.msra.mxu0 %v2600
    %3775 = vmatprep.subr.bf16.mxu0 0
    %3776 = vmatpush1.bf16.msra.mxu0 %v2607
    %3777 = vmatprep.subr.bf16.mxu0 0
    %3778 = vmatpush1.bf16.msra.mxu0 %v2614
    %3779 = vmatprep.subr.bf16.mxu0 0
    %3780 = vmatpush1.bf16.msra.mxu0 0
    %3781 = vmatprep.subr.bf16.mxu0 0
    %3782 = vmatpush1.bf16.msra.mxu0 0
    %3783 = vmatprep.subr.bf16.mxu0 0
    %3784 = vmatpush1.bf16.msra.mxu0 0
    %3785 = vmatprep.subr.bf16.mxu0 0
    %3786 = vmatpush1.bf16.msra.mxu0 0
    %3787 = vmatprep.subr.bf16.mxu0 0
    %3788 = vmatpush1.bf16.msra.mxu0 0
    %3789 = vmatprep.subr.bf16.mxu0 0
    %3790 = vmatpush1.bf16.msra.mxu0 0
    %3791 = vmatprep.subr.bf16.mxu0 0
    %3792 = vmatpush1.bf16.msra.mxu0 0
    %3793 = vmatprep.subr.bf16.mxu0 0
    %3794 = vmatpush1.bf16.msra.mxu0 0
    %3795 = vmatprep.mubr.bf16.mxu0 0
    %3796 = vmatmul.mubr.bf16.gmra.mrb[0].mxu0 %v498
    %v3797 = vpop.f32.mrb[0].mxu0
    %v3798 = vadd.f32 %v3750, %v3797
    %v3799 = vpop.f32.mrb[0].mxu0
    %v3800 = vpop.f32.mrb[0].mxu0
    %v3801 = vadd.f32 %v3753, %v3800
    %v3802 = vpop.f32.mrb[0].mxu0
    %3803 = vmatprep.mubr.bf16.mxu0 0
    %3804 = vmatmul.mubr.bf16.gmra.mrb[0].mxu0 %v505
    %v3805 = vpop.f32.mrb[0].mxu0
    %v3806 = vadd.f32 %v3758, %v3805
    %v3807 = vpop.f32.mrb[0].mxu0
    %v3808 = vpop.f32.mrb[0].mxu0
    %v3809 = vpop.f32.mrb[0].mxu0
    %3810 = vdwg.mxu0
    %v3811 = vpack.c.bf16 %v3199, %v3195
    %v3812 = vpack.c.bf16 %v3201, %v3197
    %v3813 = vpack.c.bf16 %v3403, %v3399
    %v3814 = vpack.c.bf16 %v3405, %v3401
    %v3815 = vpack.c.bf16 %v3607, %v3603
    %v3816 = vpack.c.bf16 %v3609, %v3605
    %v3817 = vpack.c.bf16 %v3801, %v3798
    %v3818 = vpack.c.bf16 %v3205, %v3205
    %v3819 = vpack.c.bf16 %v3207, %v3207
    %v3820 = vpack.c.bf16 %v3409, %v3409
    %v3821 = vpack.c.bf16 %v3411, %v3411
    %v3822 = vpack.c.bf16 %v3613, %v3613
    %v3823 = vpack.c.bf16 %v3615, %v3615
    %v3824 = vpack.c.bf16 %v3806, %v3806
    %v3825 = vld [vmem:[#allocation11] sm:$0xff]
    %v3826 = vld [vmem:[#allocation11 + $0x8] sm:$0xff]
    %v3827 = vld [vmem:[#allocation11 + $0x10] sm:$0xff]
    %v3828 = vld [vmem:[#allocation11 + $0x18] sm:$0xf]
    %v3829 = vld [vmem:[#allocation11 + $0x1c] sm:$0xff]
    %v3830 = vld [vmem:[#allocation11 + $0x24] sm:$0xff]
    %v3831 = vld [vmem:[#allocation11 + $0x2c] sm:$0xff]
    %v3832 = vld [vmem:[#allocation11 + $0x34] sm:$0xf]
    %v3833 = vld [vmem:[#allocation11 + $0x38] sm:$0xff]
    %v3834 = vld [vmem:[#allocation11 + $0x40] sm:$0xff]
    %v3835 = vld [vmem:[#allocation11 + $0x48] sm:$0xff]
    %v3836 = vld [vmem:[#allocation11 + $0x50] sm:$0xf]
    %v3837 = vld [vmem:[#allocation11 + $0x54] sm:$0xff]
    %v3838 = vld [vmem:[#allocation11 + $0x5c] sm:$0xff]
    %v3839 = vld [vmem:[#allocation11 + $0x64] sm:$0xff]
    %v3840 = vld [vmem:[#allocation11 + $0x6c] sm:$0xf]
    %v3841 = vld [vmem:[#allocation11 + $0x70] sm:$0xff]
    %v3842 = vld [vmem:[#allocation11 + $0x78] sm:$0xff]
    %v3843 = vld [vmem:[#allocation11 + $0x80] sm:$0xff]
    %v3844 = vld [vmem:[#allocation11 + $0x88] sm:$0xf]
    %v3845 = vld [vmem:[#allocation11 + $0x8c] sm:$0xff]
    %v3846 = vld [vmem:[#allocation11 + $0x94] sm:$0xff]
    %v3847 = vld [vmem:[#allocation11 + $0x9c] sm:$0xff]
    %v3848 = vld [vmem:[#allocation11 + $0xa4] sm:$0xf]
    %v3849 = vld [vmem:[#allocation11 + $0xa8] sm:$0xff]
    %v3850 = vld [vmem:[#allocation11 + $0xb0] sm:$0xff]
    %v3851 = vld [vmem:[#allocation11 + $0xb8] sm:$0xff]
    %v3852 = vld [vmem:[#allocation11 + $0xc0] sm:$0xf]
    %v3853 = vld [vmem:[#allocation11 + $0xc4] sm:$0xff]
    %v3854 = vld [vmem:[#allocation11 + $0xcc] sm:$0xff]
    %v3855 = vld [vmem:[#allocation11 + $0xd4] sm:$0xff]
    %v3856 = vld [vmem:[#allocation11 + $0xdc] sm:$0xf]
    %v3857 = vld [vmem:[#allocation11 + $0xe0] sm:$0xff]
    %v3858 = vld [vmem:[#allocation11 + $0xe8] sm:$0xff]
    %v3859 = vld [vmem:[#allocation11 + $0xf0] sm:$0xff]
    %v3860 = vld [vmem:[#allocation11 + $0xf8] sm:$0xf]
    %v3861 = vld [vmem:[#allocation11 + $0xfc] sm:$0xff]
    %v3862 = vld [vmem:[#allocation11 + $0x104] sm:$0xff]
    %v3863 = vld [vmem:[#allocation11 + $0x10c] sm:$0xff]
    %v3864 = vld [vmem:[#allocation11 + $0x114] sm:$0xf]
    %v3865 = vld [vmem:[#allocation11 + $0x118] sm:$0xff]
    %v3866 = vld [vmem:[#allocation11 + $0x120] sm:$0xff]
    %v3867 = vld [vmem:[#allocation11 + $0x128] sm:$0xff]
    %v3868 = vld [vmem:[#allocation11 + $0x130] sm:$0xf]
    %v3869 = vld [vmem:[#allocation11 + $0x134] sm:$0xff]
    %v3870 = vld [vmem:[#allocation11 + $0x13c] sm:$0xff]
    %v3871 = vld [vmem:[#allocation11 + $0x144] sm:$0xff]
    %v3872 = vld [vmem:[#allocation11 + $0x14c] sm:$0xf]
    %v3873 = vld [vmem:[#allocation11 + $0x150] sm:$0xff]
    %v3874 = vld [vmem:[#allocation11 + $0x158] sm:$0xff]
    %v3875 = vld [vmem:[#allocation11 + $0x160] sm:$0xff]
    %v3876 = vld [vmem:[#allocation11 + $0x168] sm:$0xf]
    %v3877 = vld [vmem:[#allocation11 + $0x16c] sm:$0xff]
    %v3878 = vld [vmem:[#allocation11 + $0x174] sm:$0xff]
    %v3879 = vld [vmem:[#allocation11 + $0x17c] sm:$0xff]
    %v3880 = vld [vmem:[#allocation11 + $0x184] sm:$0xf]
    %v3881 = vld [vmem:[#allocation11 + $0x188] sm:$0xff]
    %v3882 = vld [vmem:[#allocation11 + $0x190] sm:$0xff]
    %v3883 = vld [vmem:[#allocation11 + $0x198] sm:$0xff]
    %v3884 = vld [vmem:[#allocation11 + $0x1a0] sm:$0xf]
    %v3885 = vld [vmem:[#allocation11 + $0x1a4] sm:$0xff]
    %v3886 = vld [vmem:[#allocation11 + $0x1ac] sm:$0xff]
    %v3887 = vld [vmem:[#allocation11 + $0x1b4] sm:$0xff]
    %v3888 = vld [vmem:[#allocation11 + $0x1bc] sm:$0xf]
    %v3889 = vld [vmem:[#allocation11 + $0x1c0] sm:$0xff]
    %v3890 = vld [vmem:[#allocation11 + $0x1c8] sm:$0xff]
    %v3891 = vld [vmem:[#allocation11 + $0x1d0] sm:$0xff]
    %v3892 = vld [vmem:[#allocation11 + $0x1d8] sm:$0xf]
    %v3893 = vld [vmem:[#allocation11 + $0x1dc] sm:$0xff]
    %v3894 = vld [vmem:[#allocation11 + $0x1e4] sm:$0xff]
    %v3895 = vld [vmem:[#allocation11 + $0x1ec] sm:$0xff]
    %v3896 = vld [vmem:[#allocation11 + $0x1f4] sm:$0xf]
    %v3897 = vld [vmem:[#allocation11 + $0x1f8] sm:$0xff]
    %v3898 = vld [vmem:[#allocation11 + $0x200] sm:$0xff]
    %v3899 = vld [vmem:[#allocation11 + $0x208] sm:$0xff]
    %v3900 = vld [vmem:[#allocation11 + $0x210] sm:$0xf]
    %v3901 = vld [vmem:[#allocation11 + $0x214] sm:$0xff]
    %v3902 = vld [vmem:[#allocation11 + $0x21c] sm:$0xff]
    %v3903 = vld [vmem:[#allocation11 + $0x224] sm:$0xff]
    %v3904 = vld [vmem:[#allocation11 + $0x22c] sm:$0xf]
    %v3905 = vld [vmem:[#allocation11 + $0x230] sm:$0xff]
    %v3906 = vld [vmem:[#allocation11 + $0x238] sm:$0xff]
    %v3907 = vld [vmem:[#allocation11 + $0x240] sm:$0xff]
    %v3908 = vld [vmem:[#allocation11 + $0x248] sm:$0xf]
    %v3909 = vld [vmem:[#allocation11 + $0x24c] sm:$0xff]
    %v3910 = vld [vmem:[#allocation11 + $0x254] sm:$0xff]
    %v3911 = vld [vmem:[#allocation11 + $0x25c] sm:$0xff]
    %v3912 = vld [vmem:[#allocation11 + $0x264] sm:$0xf]
    %v3913 = vld [vmem:[#allocation11 + $0x268] sm:$0xff]
    %v3914 = vld [vmem:[#allocation11 + $0x270] sm:$0xff]
    %v3915 = vld [vmem:[#allocation11 + $0x278] sm:$0xff]
    %v3916 = vld [vmem:[#allocation11 + $0x280] sm:$0xf]
    %v3917 = vld [vmem:[#allocation11 + $0x284] sm:$0xff]
    %v3918 = vld [vmem:[#allocation11 + $0x28c] sm:$0xff]
    %v3919 = vld [vmem:[#allocation11 + $0x294] sm:$0xff]
    %v3920 = vld [vmem:[#allocation11 + $0x29c] sm:$0xf]
    %v3921 = vld [vmem:[#allocation11 + $0x2a0] sm:$0xff]
    %v3922 = vld [vmem:[#allocation11 + $0x2a8] sm:$0xff]
    %v3923 = vld [vmem:[#allocation11 + $0x2b0] sm:$0xff]
    %v3924 = vld [vmem:[#allocation11 + $0x2b8] sm:$0xf]
    %v3925 = vld [vmem:[#allocation11 + $0x2bc] sm:$0xff]
    %v3926 = vld [vmem:[#allocation11 + $0x2c4] sm:$0xff]
    %v3927 = vld [vmem:[#allocation11 + $0x2cc] sm:$0xff]
    %v3928 = vld [vmem:[#allocation11 + $0x2d4] sm:$0xf]
    %v3929 = vld [vmem:[#allocation11 + $0x2d8] sm:$0xff]
    %v3930 = vld [vmem:[#allocation11 + $0x2e0] sm:$0xff]
    %v3931 = vld [vmem:[#allocation11 + $0x2e8] sm:$0xff]
    %v3932 = vld [vmem:[#allocation11 + $0x2f0] sm:$0xf]
    %v3933 = vld [vmem:[#allocation11 + $0x2f4] sm:$0xff]
    %v3934 = vld [vmem:[#allocation11 + $0x2fc] sm:$0xff]
    %v3935 = vld [vmem:[#allocation11 + $0x304] sm:$0xff]
    %v3936 = vld [vmem:[#allocation11 + $0x30c] sm:$0xf]
    %v3937 = vld [vmem:[#allocation11 + $0x310] sm:$0xff]
    %v3938 = vld [vmem:[#allocation11 + $0x318] sm:$0xff]
    %v3939 = vld [vmem:[#allocation11 + $0x320] sm:$0xff]
    %v3940 = vld [vmem:[#allocation11 + $0x328] sm:$0xf]
    %v3941 = vld [vmem:[#allocation11 + $0x32c] sm:$0xff]
    %v3942 = vld [vmem:[#allocation11 + $0x334] sm:$0xff]
    %v3943 = vld [vmem:[#allocation11 + $0x33c] sm:$0xff]
    %v3944 = vld [vmem:[#allocation11 + $0x344] sm:$0xf]
    %v3945 = vld [vmem:[#allocation11 + $0x348] sm:$0xff]
    %v3946 = vld [vmem:[#allocation11 + $0x350] sm:$0xff]
    %v3947 = vld [vmem:[#allocation11 + $0x358] sm:$0xff]
    %v3948 = vld [vmem:[#allocation11 + $0x360] sm:$0xf]
    %v3949 = vld [vmem:[#allocation11 + $0x364] sm:$0xff]
    %v3950 = vld [vmem:[#allocation11 + $0x36c] sm:$0xff]
    %v3951 = vld [vmem:[#allocation11 + $0x374] sm:$0xff]
    %v3952 = vld [vmem:[#allocation11 + $0x37c] sm:$0xf]
    %v3953 = vld [vmem:[#allocation11 + $0x380] sm:$0xff]
    %v3954 = vld [vmem:[#allocation11 + $0x388] sm:$0xff]
    %v3955 = vld [vmem:[#allocation11 + $0x390] sm:$0xff]
    %v3956 = vld [vmem:[#allocation11 + $0x398] sm:$0xf]
    %v3957 = vld [vmem:[#allocation11 + $0x39c] sm:$0xff]
    %v3958 = vld [vmem:[#allocation11 + $0x3a4] sm:$0xff]
    %v3959 = vld [vmem:[#allocation11 + $0x3ac] sm:$0xff]
    %v3960 = vld [vmem:[#allocation11 + $0x3b4] sm:$0xf]
    %v3961 = vld [vmem:[#allocation11 + $0x3b8] sm:$0xff]
    %v3962 = vld [vmem:[#allocation11 + $0x3c0] sm:$0xff]
    %v3963 = vld [vmem:[#allocation11 + $0x3c8] sm:$0xff]
    %v3964 = vld [vmem:[#allocation11 + $0x3d0] sm:$0xf]
    %v3965 = vld [vmem:[#allocation11 + $0x3d4] sm:$0xff]
    %v3966 = vld [vmem:[#allocation11 + $0x3dc] sm:$0xff]
    %v3967 = vld [vmem:[#allocation11 + $0x3e4] sm:$0xff]
    %v3968 = vld [vmem:[#allocation11 + $0x3ec] sm:$0xf]
    %v3969 = vld [vmem:[#allocation11 + $0x3f0] sm:$0xff]
    %v3970 = vld [vmem:[#allocation11 + $0x3f8] sm:$0xff]
    %v3971 = vld [vmem:[#allocation11 + $0x400] sm:$0xff]
    %v3972 = vld [vmem:[#allocation11 + $0x408] sm:$0xf]
    %v3973 = vld [vmem:[#allocation11 + $0x40c] sm:$0xff]
    %v3974 = vld [vmem:[#allocation11 + $0x414] sm:$0xff]
    %v3975 = vld [vmem:[#allocation11 + $0x41c] sm:$0xff]
    %v3976 = vld [vmem:[#allocation11 + $0x424] sm:$0xf]
    %v3977 = vld [vmem:[#allocation11 + $0x428] sm:$0xff]
    %v3978 = vld [vmem:[#allocation11 + $0x430] sm:$0xff]
    %v3979 = vld [vmem:[#allocation11 + $0x438] sm:$0xff]
    %v3980 = vld [vmem:[#allocation11 + $0x440] sm:$0xf]
    %v3981 = vld [vmem:[#allocation11 + $0x444] sm:$0xff]
    %v3982 = vld [vmem:[#allocation11 + $0x44c] sm:$0xff]
    %v3983 = vld [vmem:[#allocation11 + $0x454] sm:$0xff]
    %v3984 = vld [vmem:[#allocation11 + $0x45c] sm:$0xf]
    %v3985 = vld [vmem:[#allocation11 + $0x460] sm:$0xff]
    %v3986 = vld [vmem:[#allocation11 + $0x468] sm:$0xff]
    %v3987 = vld [vmem:[#allocation11 + $0x470] sm:$0xff]
    %v3988 = vld [vmem:[#allocation11 + $0x478] sm:$0xf]
    %v3989 = vld [vmem:[#allocation11 + $0x47c] sm:$0xff]
    %v3990 = vld [vmem:[#allocation11 + $0x484] sm:$0xff]
    %v3991 = vld [vmem:[#allocation11 + $0x48c] sm:$0xff]
    %v3992 = vld [vmem:[#allocation11 + $0x494] sm:$0xf]
    %v3993 = vld [vmem:[#allocation11 + $0x498] sm:$0xff]
    %v3994 = vld [vmem:[#allocation11 + $0x4a0] sm:$0xff]
    %v3995 = vld [vmem:[#allocation11 + $0x4a8] sm:$0xff]
    %v3996 = vld [vmem:[#allocation11 + $0x4b0] sm:$0xf]
    %v3997 = vld [vmem:[#allocation11 + $0x4b4] sm:$0xff]
    %v3998 = vld [vmem:[#allocation11 + $0x4bc] sm:$0xff]
    %v3999 = vld [vmem:[#allocation11 + $0x4c4] sm:$0xff]
    %v4000 = vld [vmem:[#allocation11 + $0x4cc] sm:$0xf]
    %v4001 = vld [vmem:[#allocation11 + $0x4d0] sm:$0xff]
    %v4002 = vld [vmem:[#allocation11 + $0x4d8] sm:$0xff]
    %v4003 = vld [vmem:[#allocation11 + $0x4e0] sm:$0xff]
    %v4004 = vld [vmem:[#allocation11 + $0x4e8] sm:$0xf]
    %v4005 = vld [vmem:[#allocation11 + $0x4ec] sm:$0xff]
    %v4006 = vld [vmem:[#allocation11 + $0x4f4] sm:$0xff]
    %v4007 = vld [vmem:[#allocation11 + $0x4fc] sm:$0xff]
    %v4008 = vld [vmem:[#allocation11 + $0x504] sm:$0xf]
    %v4009 = vld [vmem:[#allocation11 + $0x508] sm:$0xff]
    %v4010 = vld [vmem:[#allocation11 + $0x510] sm:$0xff]
    %v4011 = vld [vmem:[#allocation11 + $0x518] sm:$0xff]
    %v4012 = vld [vmem:[#allocation11 + $0x520] sm:$0xf]
    %v4013 = vld [vmem:[#allocation11 + $0x524] sm:$0xff]
    %v4014 = vld [vmem:[#allocation11 + $0x52c] sm:$0xff]
    %v4015 = vld [vmem:[#allocation11 + $0x534] sm:$0xff]
    %v4016 = vld [vmem:[#allocation11 + $0x53c] sm:$0xf]
    %v4017 = vld [vmem:[#allocation11 + $0x540] sm:$0xff]
    %v4018 = vld [vmem:[#allocation11 + $0x548] sm:$0xff]
    %v4019 = vld [vmem:[#allocation11 + $0x550] sm:$0xff]
    %v4020 = vld [vmem:[#allocation11 + $0x558] sm:$0xf]
    %v4021 = vld [vmem:[#allocation11 + $0x55c] sm:$0xff]
    %v4022 = vld [vmem:[#allocation11 + $0x564] sm:$0xff]
    %v4023 = vld [vmem:[#allocation11 + $0x56c] sm:$0xff]
    %v4024 = vld [vmem:[#allocation11 + $0x574] sm:$0xf]
    %v4025 = vld [vmem:[#allocation11 + $0x578] sm:$0xff]
    %v4026 = vld [vmem:[#allocation11 + $0x580] sm:$0xff]
    %v4027 = vld [vmem:[#allocation11 + $0x588] sm:$0xff]
    %v4028 = vld [vmem:[#allocation11 + $0x590] sm:$0xf]
    %v4029 = vld [vmem:[#allocation11 + $0x594] sm:$0xff]
    %v4030 = vld [vmem:[#allocation11 + $0x59c] sm:$0xff]
    %v4031 = vld [vmem:[#allocation11 + $0x5a4] sm:$0xff]
    %v4032 = vld [vmem:[#allocation11 + $0x5ac] sm:$0xf]
    %v4033 = vld [vmem:[#allocation11 + $0x5b0] sm:$0xff]
    %v4034 = vld [vmem:[#allocation11 + $0x5b8] sm:$0xff]
    %v4035 = vld [vmem:[#allocation11 + $0x5c0] sm:$0xff]
    %v4036 = vld [vmem:[#allocation11 + $0x5c8] sm:$0xf]
    %v4037 = vld [vmem:[#allocation11 + $0x5cc] sm:$0xff]
    %v4038 = vld [vmem:[#allocation11 + $0x5d4] sm:$0xff]
    %v4039 = vld [vmem:[#allocation11 + $0x5dc] sm:$0xff]
    %v4040 = vld [vmem:[#allocation11 + $0x5e4] sm:$0xf]
    %v4041 = vld [vmem:[#allocation11 + $0x5e8] sm:$0xff]
    %v4042 = vld [vmem:[#allocation11 + $0x5f0] sm:$0xff]
    %v4043 = vld [vmem:[#allocation11 + $0x5f8] sm:$0xff]
    %v4044 = vld [vmem:[#allocation11 + $0x600] sm:$0xf]
    %v4045 = vld [vmem:[#allocation11 + $0x604] sm:$0xff]
    %v4046 = vld [vmem:[#allocation11 + $0x60c] sm:$0xff]
    %v4047 = vld [vmem:[#allocation11 + $0x614] sm:$0xff]
    %v4048 = vld [vmem:[#allocation11 + $0x61c] sm:$0xf]
    %v4049 = vld [vmem:[#allocation11 + $0x620] sm:$0xff]
    %v4050 = vld [vmem:[#allocation11 + $0x628] sm:$0xff]
    %v4051 = vld [vmem:[#allocation11 + $0x630] sm:$0xff]
    %v4052 = vld [vmem:[#allocation11 + $0x638] sm:$0xf]
    %v4053 = vld [vmem:[#allocation11 + $0x63c] sm:$0xff]
    %v4054 = vld [vmem:[#allocation11 + $0x644] sm:$0xff]
    %v4055 = vld [vmem:[#allocation11 + $0x64c] sm:$0xff]
    %v4056 = vld [vmem:[#allocation11 + $0x654] sm:$0xf]
    %v4057 = vld [vmem:[#allocation11 + $0x658] sm:$0xff]
    %v4058 = vld [vmem:[#allocation11 + $0x660] sm:$0xff]
    %v4059 = vld [vmem:[#allocation11 + $0x668] sm:$0xff]
    %v4060 = vld [vmem:[#allocation11 + $0x670] sm:$0xf]
    %v4061 = vld [vmem:[#allocation11 + $0x674] sm:$0xff]
    %v4062 = vld [vmem:[#allocation11 + $0x67c] sm:$0xff]
    %v4063 = vld [vmem:[#allocation11 + $0x684] sm:$0xff]
    %v4064 = vld [vmem:[#allocation11 + $0x68c] sm:$0xf]
    %v4065 = vld [vmem:[#allocation11 + $0x690] sm:$0xff]
    %v4066 = vld [vmem:[#allocation11 + $0x698] sm:$0xff]
    %v4067 = vld [vmem:[#allocation11 + $0x6a0] sm:$0xff]
    %v4068 = vld [vmem:[#allocation11 + $0x6a8] sm:$0xf]
    %v4069 = vld [vmem:[#allocation11 + $0x6ac] sm:$0xff]
    %v4070 = vld [vmem:[#allocation11 + $0x6b4] sm:$0xff]
    %v4071 = vld [vmem:[#allocation11 + $0x6bc] sm:$0xff]
    %v4072 = vld [vmem:[#allocation11 + $0x6c4] sm:$0xf]
    %v4073 = vld [vmem:[#allocation11 + $0x6c8] sm:$0xff]
    %v4074 = vld [vmem:[#allocation11 + $0x6d0] sm:$0xff]
    %v4075 = vld [vmem:[#allocation11 + $0x6d8] sm:$0xff]
    %v4076 = vld [vmem:[#allocation11 + $0x6e0] sm:$0xf]
    %v4077 = vld [vmem:[#allocation11 + $0x6e4] sm:$0xff]
    %v4078 = vld [vmem:[#allocation11 + $0x6ec] sm:$0xff]
    %v4079 = vld [vmem:[#allocation11 + $0x6f4] sm:$0xff]
    %v4080 = vld [vmem:[#allocation11 + $0x6fc] sm:$0xf]
    %v4081 = vld [vmem:[#allocation11 + $0x700] sm:$0xff]
    %v4082 = vld [vmem:[#allocation11 + $0x708] sm:$0xff]
    %v4083 = vld [vmem:[#allocation11 + $0x710] sm:$0xff]
    %v4084 = vld [vmem:[#allocation11 + $0x718] sm:$0xf]
    %v4085 = vld [vmem:[#allocation11 + $0x71c] sm:$0xff]
    %v4086 = vld [vmem:[#allocation11 + $0x724] sm:$0xff]
    %v4087 = vld [vmem:[#allocation11 + $0x72c] sm:$0xff]
    %v4088 = vld [vmem:[#allocation11 + $0x734] sm:$0xf]
    %v4089 = vld [vmem:[#allocation11 + $0x738] sm:$0xff]
    %v4090 = vld [vmem:[#allocation11 + $0x740] sm:$0xff]
    %v4091 = vld [vmem:[#allocation11 + $0x748] sm:$0xff]
    %v4092 = vld [vmem:[#allocation11 + $0x750] sm:$0xf]
    %v4093 = vld [vmem:[#allocation11 + $0x754] sm:$0xff]
    %v4094 = vld [vmem:[#allocation11 + $0x75c] sm:$0xff]
    %v4095 = vld [vmem:[#allocation11 + $0x764] sm:$0xff]
    %v4096 = vld [vmem:[#allocation11 + $0x76c] sm:$0xf]
    %v4097 = vld [vmem:[#allocation11 + $0x770] sm:$0xff]
    %v4098 = vld [vmem:[#allocation11 + $0x778] sm:$0xff]
    %v4099 = vld [vmem:[#allocation11 + $0x780] sm:$0xff]
    %v4100 = vld [vmem:[#allocation11 + $0x788] sm:$0xf]
    %v4101 = vld [vmem:[#allocation11 + $0x78c] sm:$0xff]
    %v4102 = vld [vmem:[#allocation11 + $0x794] sm:$0xff]
    %v4103 = vld [vmem:[#allocation11 + $0x79c] sm:$0xff]
    %v4104 = vld [vmem:[#allocation11 + $0x7a4] sm:$0xf]
    %v4105 = vld [vmem:[#allocation11 + $0x7a8] sm:$0xff]
    %v4106 = vld [vmem:[#allocation11 + $0x7b0] sm:$0xff]
    %v4107 = vld [vmem:[#allocation11 + $0x7b8] sm:$0xff]
    %v4108 = vld [vmem:[#allocation11 + $0x7c0] sm:$0xf]
    %v4109 = vld [vmem:[#allocation11 + $0x7c4] sm:$0xff]
    %v4110 = vld [vmem:[#allocation11 + $0x7cc] sm:$0xff]
    %v4111 = vld [vmem:[#allocation11 + $0x7d4] sm:$0xff]
    %v4112 = vld [vmem:[#allocation11 + $0x7dc] sm:$0xf]
    %v4113 = vld [vmem:[#allocation11 + $0x7e0] sm:$0xff]
    %v4114 = vld [vmem:[#allocation11 + $0x7e8] sm:$0xff]
    %v4115 = vld [vmem:[#allocation11 + $0x7f0] sm:$0xff]
    %v4116 = vld [vmem:[#allocation11 + $0x7f8] sm:$0xf]
    %v4117 = vld [vmem:[#allocation11 + $0x7fc] sm:$0xff]
    %v4118 = vld [vmem:[#allocation11 + $0x804] sm:$0xff]
    %v4119 = vld [vmem:[#allocation11 + $0x80c] sm:$0xff]
    %v4120 = vld [vmem:[#allocation11 + $0x814] sm:$0xf]
    %v4121 = vld [vmem:[#allocation11 + $0x818] sm:$0xff]
    %v4122 = vld [vmem:[#allocation11 + $0x820] sm:$0xff]
    %v4123 = vld [vmem:[#allocation11 + $0x828] sm:$0xff]
    %v4124 = vld [vmem:[#allocation11 + $0x830] sm:$0xf]
    %v4125 = vld [vmem:[#allocation11 + $0x834] sm:$0xff]
    %v4126 = vld [vmem:[#allocation11 + $0x83c] sm:$0xff]
    %v4127 = vld [vmem:[#allocation11 + $0x844] sm:$0xff]
    %v4128 = vld [vmem:[#allocation11 + $0x84c] sm:$0xf]
    %v4129 = vld [vmem:[#allocation11 + $0x850] sm:$0xff]
    %v4130 = vld [vmem:[#allocation11 + $0x858] sm:$0xff]
    %v4131 = vld [vmem:[#allocation11 + $0x860] sm:$0xff]
    %v4132 = vld [vmem:[#allocation11 + $0x868] sm:$0xf]
    %v4133 = vld [vmem:[#allocation11 + $0x86c] sm:$0xff]
    %v4134 = vld [vmem:[#allocation11 + $0x874] sm:$0xff]
    %v4135 = vld [vmem:[#allocation11 + $0x87c] sm:$0xff]
    %v4136 = vld [vmem:[#allocation11 + $0x884] sm:$0xf]
    %v4137 = vld [vmem:[#allocation11 + $0x888] sm:$0xff]
    %v4138 = vld [vmem:[#allocation11 + $0x890] sm:$0xff]
    %v4139 = vld [vmem:[#allocation11 + $0x898] sm:$0xff]
    %v4140 = vld [vmem:[#allocation11 + $0x8a0] sm:$0xf]
    %v4141 = vld [vmem:[#allocation11 + $0x8a4] sm:$0xff]
    %v4142 = vld [vmem:[#allocation11 + $0x8ac] sm:$0xff]
    %v4143 = vld [vmem:[#allocation11 + $0x8b4] sm:$0xff]
    %v4144 = vld [vmem:[#allocation11 + $0x8bc] sm:$0xf]
    %v4145 = vld [vmem:[#allocation11 + $0x8c0] sm:$0xff]
    %v4146 = vld [vmem:[#allocation11 + $0x8c8] sm:$0xff]
    %v4147 = vld [vmem:[#allocation11 + $0x8d0] sm:$0xff]
    %v4148 = vld [vmem:[#allocation11 + $0x8d8] sm:$0xf]
    %v4149 = vld [vmem:[#allocation11 + $0x8dc] sm:$0xff]
    %v4150 = vld [vmem:[#allocation11 + $0x8e4] sm:$0xff]
    %v4151 = vld [vmem:[#allocation11 + $0x8ec] sm:$0xff]
    %v4152 = vld [vmem:[#allocation11 + $0x8f4] sm:$0xf]
    %v4153 = vld [vmem:[#allocation11 + $0x8f8] sm:$0xff]
    %v4154 = vld [vmem:[#allocation11 + $0x900] sm:$0xff]
    %v4155 = vld [vmem:[#allocation11 + $0x908] sm:$0xff]
    %v4156 = vld [vmem:[#allocation11 + $0x910] sm:$0xf]
    %v4157 = vld [vmem:[#allocation11 + $0x914] sm:$0xff]
    %v4158 = vld [vmem:[#allocation11 + $0x91c] sm:$0xff]
    %v4159 = vld [vmem:[#allocation11 + $0x924] sm:$0xff]
    %v4160 = vld [vmem:[#allocation11 + $0x92c] sm:$0xf]
    %v4161 = vld [vmem:[#allocation11 + $0x930] sm:$0xff]
    %v4162 = vld [vmem:[#allocation11 + $0x938] sm:$0xff]
    %v4163 = vld [vmem:[#allocation11 + $0x940] sm:$0xff]
    %v4164 = vld [vmem:[#allocation11 + $0x948] sm:$0xf]
    %v4165 = vld [vmem:[#allocation11 + $0x94c] sm:$0xff]
    %v4166 = vld [vmem:[#allocation11 + $0x954] sm:$0xff]
    %v4167 = vld [vmem:[#allocation11 + $0x95c] sm:$0xff]
    %v4168 = vld [vmem:[#allocation11 + $0x964] sm:$0xf]
    %v4169 = vld [vmem:[#allocation11 + $0x968] sm:$0xff]
    %v4170 = vld [vmem:[#allocation11 + $0x970] sm:$0xff]
    %v4171 = vld [vmem:[#allocation11 + $0x978] sm:$0xff]
    %v4172 = vld [vmem:[#allocation11 + $0x980] sm:$0xf]
    %v4173 = vld [vmem:[#allocation11 + $0x984] sm:$0xff]
    %v4174 = vld [vmem:[#allocation11 + $0x98c] sm:$0xff]
    %v4175 = vld [vmem:[#allocation11 + $0x994] sm:$0xff]
    %v4176 = vld [vmem:[#allocation11 + $0x99c] sm:$0xf]
    %v4177 = vld [vmem:[#allocation11 + $0x9a0] sm:$0xff]
    %v4178 = vld [vmem:[#allocation11 + $0x9a8] sm:$0xff]
    %v4179 = vld [vmem:[#allocation11 + $0x9b0] sm:$0xff]
    %v4180 = vld [vmem:[#allocation11 + $0x9b8] sm:$0xf]
    %v4181 = vld [vmem:[#allocation11 + $0x9bc] sm:$0xff]
    %v4182 = vld [vmem:[#allocation11 + $0x9c4] sm:$0xff]
    %v4183 = vld [vmem:[#allocation11 + $0x9cc] sm:$0xff]
    %v4184 = vld [vmem:[#allocation11 + $0x9d4] sm:$0xf]
    %v4185 = vld [vmem:[#allocation11 + $0x9d8] sm:$0xff]
    %v4186 = vld [vmem:[#allocation11 + $0x9e0] sm:$0xff]
    %v4187 = vld [vmem:[#allocation11 + $0x9e8] sm:$0xff]
    %v4188 = vld [vmem:[#allocation11 + $0x9f0] sm:$0xf]
    %v4189 = vld [vmem:[#allocation11 + $0x9f4] sm:$0xff]
    %v4190 = vld [vmem:[#allocation11 + $0x9fc] sm:$0xff]
    %v4191 = vld [vmem:[#allocation11 + $0xa04] sm:$0xff]
    %v4192 = vld [vmem:[#allocation11 + $0xa0c] sm:$0xf]
    %v4193 = vld [vmem:[#allocation11 + $0xa10] sm:$0xff]
    %v4194 = vld [vmem:[#allocation11 + $0xa18] sm:$0xff]
    %v4195 = vld [vmem:[#allocation11 + $0xa20] sm:$0xff]
    %v4196 = vld [vmem:[#allocation11 + $0xa28] sm:$0xf]
    %v4197 = vld [vmem:[#allocation11 + $0xa2c] sm:$0xff]
    %v4198 = vld [vmem:[#allocation11 + $0xa34] sm:$0xff]
    %v4199 = vld [vmem:[#allocation11 + $0xa3c] sm:$0xff]
    %v4200 = vld [vmem:[#allocation11 + $0xa44] sm:$0xf]
    %v4201 = vld [vmem:[#allocation11 + $0xa48] sm:$0xff]
    %v4202 = vld [vmem:[#allocation11 + $0xa50] sm:$0xff]
    %v4203 = vld [vmem:[#allocation11 + $0xa58] sm:$0xff]
    %v4204 = vld [vmem:[#allocation11 + $0xa60] sm:$0xf]
    %v4205 = vld [vmem:[#allocation11 + $0xa64] sm:$0xff]
    %v4206 = vld [vmem:[#allocation11 + $0xa6c] sm:$0xff]
    %v4207 = vld [vmem:[#allocation11 + $0xa74] sm:$0xff]
    %v4208 = vld [vmem:[#allocation11 + $0xa7c] sm:$0xf]
    %v4209 = vld [vmem:[#allocation11 + $0xa80] sm:$0xff]
    %v4210 = vld [vmem:[#allocation11 + $0xa88] sm:$0xff]
    %v4211 = vld [vmem:[#allocation11 + $0xa90] sm:$0xff]
    %v4212 = vld [vmem:[#allocation11 + $0xa98] sm:$0xf]
    %v4213 = vld [vmem:[#allocation11 + $0xa9c] sm:$0xff]
    %v4214 = vld [vmem:[#allocation11 + $0xaa4] sm:$0xff]
    %v4215 = vld [vmem:[#allocation11 + $0xaac] sm:$0xff]
    %v4216 = vld [vmem:[#allocation11 + $0xab4] sm:$0xf]
    %v4217 = vld [vmem:[#allocation11 + $0xab8] sm:$0xff]
    %v4218 = vld [vmem:[#allocation11 + $0xac0] sm:$0xff]
    %v4219 = vld [vmem:[#allocation11 + $0xac8] sm:$0xff]
    %v4220 = vld [vmem:[#allocation11 + $0xad0] sm:$0xf]
    %v4221 = vld [vmem:[#allocation11 + $0xad4] sm:$0xff]
    %v4222 = vld [vmem:[#allocation11 + $0xadc] sm:$0xff]
    %v4223 = vld [vmem:[#allocation11 + $0xae4] sm:$0xff]
    %v4224 = vld [vmem:[#allocation11 + $0xaec] sm:$0xf]
    %v4225 = vld [vmem:[#allocation11 + $0xaf0] sm:$0xff]
    %v4226 = vld [vmem:[#allocation11 + $0xaf8] sm:$0xff]
    %v4227 = vld [vmem:[#allocation11 + $0xb00] sm:$0xff]
    %v4228 = vld [vmem:[#allocation11 + $0xb08] sm:$0xf]
    %v4229 = vld [vmem:[#allocation11 + $0xb0c] sm:$0xff]
    %v4230 = vld [vmem:[#allocation11 + $0xb14] sm:$0xff]
    %v4231 = vld [vmem:[#allocation11 + $0xb1c] sm:$0xff]
    %v4232 = vld [vmem:[#allocation11 + $0xb24] sm:$0xf]
    %v4233 = vld [vmem:[#allocation11 + $0xb28] sm:$0xff]
    %v4234 = vld [vmem:[#allocation11 + $0xb30] sm:$0xff]
    %v4235 = vld [vmem:[#allocation11 + $0xb38] sm:$0xff]
    %v4236 = vld [vmem:[#allocation11 + $0xb40] sm:$0xf]
    %v4237 = vld [vmem:[#allocation11 + $0xb44] sm:$0xff]
    %v4238 = vld [vmem:[#allocation11 + $0xb4c] sm:$0xff]
    %v4239 = vld [vmem:[#allocation11 + $0xb54] sm:$0xff]
    %v4240 = vld [vmem:[#allocation11 + $0xb5c] sm:$0xf]
    %v4241 = vld [vmem:[#allocation11 + $0xb60] sm:$0xff]
    %v4242 = vld [vmem:[#allocation11 + $0xb68] sm:$0xff]
    %v4243 = vld [vmem:[#allocation11 + $0xb70] sm:$0xff]
    %v4244 = vld [vmem:[#allocation11 + $0xb78] sm:$0xf]
    %v4245 = vld [vmem:[#allocation11 + $0xb7c] sm:$0xff]
    %v4246 = vld [vmem:[#allocation11 + $0xb84] sm:$0xff]
    %v4247 = vld [vmem:[#allocation11 + $0xb8c] sm:$0xff]
    %v4248 = vld [vmem:[#allocation11 + $0xb94] sm:$0xf]
    %v4249 = vld [vmem:[#allocation11 + $0xb98] sm:$0xff]
    %v4250 = vld [vmem:[#allocation11 + $0xba0] sm:$0xff]
    %v4251 = vld [vmem:[#allocation11 + $0xba8] sm:$0xff]
    %v4252 = vld [vmem:[#allocation11 + $0xbb0] sm:$0xf]
    %v4253 = vld [vmem:[#allocation11 + $0xbb4] sm:$0xff]
    %v4254 = vld [vmem:[#allocation11 + $0xbbc] sm:$0xff]
    %v4255 = vld [vmem:[#allocation11 + $0xbc4] sm:$0xff]
    %v4256 = vld [vmem:[#allocation11 + $0xbcc] sm:$0xf]
    %v4257 = vld [vmem:[#allocation11 + $0xbd0] sm:$0xff]
    %v4258 = vld [vmem:[#allocation11 + $0xbd8] sm:$0xff]
    %v4259 = vld [vmem:[#allocation11 + $0xbe0] sm:$0xff]
    %v4260 = vld [vmem:[#allocation11 + $0xbe8] sm:$0xf]
    %v4261 = vld [vmem:[#allocation11 + $0xbec] sm:$0xff]
    %v4262 = vld [vmem:[#allocation11 + $0xbf4] sm:$0xff]
    %v4263 = vld [vmem:[#allocation11 + $0xbfc] sm:$0xff]
    %v4264 = vld [vmem:[#allocation11 + $0xc04] sm:$0xf]
    %v4265 = vld [vmem:[#allocation11 + $0xc08] sm:$0xff]
    %v4266 = vld [vmem:[#allocation11 + $0xc10] sm:$0xff]
    %v4267 = vld [vmem:[#allocation11 + $0xc18] sm:$0xff]
    %v4268 = vld [vmem:[#allocation11 + $0xc20] sm:$0xf]
    %v4269 = vld [vmem:[#allocation11 + $0xc24] sm:$0xff]
    %v4270 = vld [vmem:[#allocation11 + $0xc2c] sm:$0xff]
    %v4271 = vld [vmem:[#allocation11 + $0xc34] sm:$0xff]
    %v4272 = vld [vmem:[#allocation11 + $0xc3c] sm:$0xf]
    %v4273 = vld [vmem:[#allocation13] sm:$0xff]
    %v4275 = vlaneseq
    %v4276 = vshrl.u32 %v4275, 7
    %v4277 = vsub.s32 0, %v4276
    %v4278 = vrot.slane %v4273, %v4277
    %v4279 = vlaneseq
    %v4280 = vshrl.u32 %v4279, 7
    %v4281 = vsub.s32 1, %v4280
    %v4282 = vrot.slane %v4273, %v4281
    %v4283 = vlaneseq
    %v4284 = vshrl.u32 %v4283, 7
    %v4285 = vsub.s32 2, %v4284
    %v4286 = vrot.slane %v4273, %v4285
    %v4287 = vlaneseq
    %v4288 = vshrl.u32 %v4287, 7
    %v4289 = vsub.s32 3, %v4288
    %v4290 = vrot.slane %v4273, %v4289
    %v4291 = vlaneseq
    %v4292 = vshrl.u32 %v4291, 7
    %v4293 = vsub.s32 4, %v4292
    %v4294 = vrot.slane %v4273, %v4293
    %v4295 = vlaneseq
    %v4296 = vshrl.u32 %v4295, 7
    %v4297 = vsub.s32 5, %v4296
    %v4298 = vrot.slane %v4273, %v4297
    %v4299 = vlaneseq
    %v4300 = vshrl.u32 %v4299, 7
    %v4301 = vsub.s32 6, %v4300
    %v4302 = vrot.slane %v4273, %v4301
    %v4758 = vunpack.c.l.b16 %v3825
    %v4759 = vunpack.c.h.b16 %v3825
    %v4760 = vunpack.c.l.b16 %v3826
    %v4761 = vunpack.c.h.b16 %v3826
    %v4762 = vunpack.c.l.b16 %v3827
    %v4763 = vunpack.c.h.b16 %v3827
    %v4764 = vunpack.c.l.b16 %v3828
    %v4765 = vunpack.c.l.b16 %v3829
    %v4766 = vunpack.c.h.b16 %v3829
    %v4767 = vunpack.c.l.b16 %v3830
    %v4768 = vunpack.c.h.b16 %v3830
    %v4769 = vunpack.c.l.b16 %v3831
    %v4770 = vunpack.c.h.b16 %v3831
    %v4771 = vunpack.c.l.b16 %v3832
    %v4772 = vunpack.c.l.b16 %v3833
    %v4773 = vunpack.c.h.b16 %v3833
    %v4774 = vunpack.c.l.b16 %v3834
    %v4775 = vunpack.c.h.b16 %v3834
    %v4776 = vunpack.c.l.b16 %v3835
    %v4777 = vunpack.c.h.b16 %v3835
    %v4778 = vunpack.c.l.b16 %v3836
    %v4779 = vunpack.c.l.b16 %v3837
    %v4780 = vunpack.c.h.b16 %v3837
    %v4781 = vunpack.c.l.b16 %v3838
    %v4782 = vunpack.c.h.b16 %v3838
    %v4783 = vunpack.c.l.b16 %v3839
    %v4784 = vunpack.c.h.b16 %v3839
    %v4785 = vunpack.c.l.b16 %v3840
    %v4786 = vunpack.c.l.b16 %v3841
    %v4787 = vunpack.c.h.b16 %v3841
    %v4788 = vunpack.c.l.b16 %v3842
    %v4789 = vunpack.c.h.b16 %v3842
    %v4790 = vunpack.c.l.b16 %v3843
    %v4791 = vunpack.c.h.b16 %v3843
    %v4792 = vunpack.c.l.b16 %v3844
    %v4793 = vunpack.c.l.b16 %v3845
    %v4794 = vunpack.c.h.b16 %v3845
    %v4795 = vunpack.c.l.b16 %v3846
    %v4796 = vunpack.c.h.b16 %v3846
    %v4797 = vunpack.c.l.b16 %v3847
    %v4798 = vunpack.c.h.b16 %v3847
    %v4799 = vunpack.c.l.b16 %v3848
    %v4800 = vunpack.c.l.b16 %v3849
    %v4801 = vunpack.c.h.b16 %v3849
    %v4802 = vunpack.c.l.b16 %v3850
    %v4803 = vunpack.c.h.b16 %v3850
    %v4804 = vunpack.c.l.b16 %v3851
    %v4805 = vunpack.c.h.b16 %v3851
    %v4806 = vunpack.c.l.b16 %v3852
    %v4807 = vunpack.c.l.b16 %v3853
    %v4808 = vunpack.c.h.b16 %v3853
    %v4809 = vunpack.c.l.b16 %v3854
    %v4810 = vunpack.c.h.b16 %v3854
    %v4811 = vunpack.c.l.b16 %v3855
    %v4812 = vunpack.c.h.b16 %v3855
    %v4813 = vunpack.c.l.b16 %v3856
    %v4814 = vunpack.c.l.b16 %v3857
    %v4815 = vunpack.c.h.b16 %v3857
    %v4816 = vunpack.c.l.b16 %v3858
    %v4817 = vunpack.c.h.b16 %v3858
    %v4818 = vunpack.c.l.b16 %v3859
    %v4819 = vunpack.c.h.b16 %v3859
    %v4820 = vunpack.c.l.b16 %v3860
    %v4821 = vunpack.c.l.b16 %v3861
    %v4822 = vunpack.c.h.b16 %v3861
    %v4823 = vunpack.c.l.b16 %v3862
    %v4824 = vunpack.c.h.b16 %v3862
    %v4825 = vunpack.c.l.b16 %v3863
    %v4826 = vunpack.c.h.b16 %v3863
    %v4827 = vunpack.c.l.b16 %v3864
    %v4828 = vunpack.c.l.b16 %v3865
    %v4829 = vunpack.c.h.b16 %v3865
    %v4830 = vunpack.c.l.b16 %v3866
    %v4831 = vunpack.c.h.b16 %v3866
    %v4832 = vunpack.c.l.b16 %v3867
    %v4833 = vunpack.c.h.b16 %v3867
    %v4834 = vunpack.c.l.b16 %v3868
    %v4835 = vunpack.c.l.b16 %v3869
    %v4836 = vunpack.c.h.b16 %v3869
    %v4837 = vunpack.c.l.b16 %v3870
    %v4838 = vunpack.c.h.b16 %v3870
    %v4839 = vunpack.c.l.b16 %v3871
    %v4840 = vunpack.c.h.b16 %v3871
    %v4841 = vunpack.c.l.b16 %v3872
    %v4842 = vunpack.c.l.b16 %v3873
    %v4843 = vunpack.c.h.b16 %v3873
    %v4844 = vunpack.c.l.b16 %v3874
    %v4845 = vunpack.c.h.b16 %v3874
    %v4846 = vunpack.c.l.b16 %v3875
    %v4847 = vunpack.c.h.b16 %v3875
    %v4848 = vunpack.c.l.b16 %v3876
    %v4849 = vunpack.c.l.b16 %v3877
    %v4850 = vunpack.c.h.b16 %v3877
    %v4851 = vunpack.c.l.b16 %v3878
    %v4852 = vunpack.c.h.b16 %v3878
    %v4853 = vunpack.c.l.b16 %v3879
    %v4854 = vunpack.c.h.b16 %v3879
    %v4855 = vunpack.c.l.b16 %v3880
    %v4856 = vunpack.c.l.b16 %v3881
    %v4857 = vunpack.c.h.b16 %v3881
    %v4858 = vunpack.c.l.b16 %v3882
    %v4859 = vunpack.c.h.b16 %v3882
    %v4860 = vunpack.c.l.b16 %v3883
    %v4861 = vunpack.c.h.b16 %v3883
    %v4862 = vunpack.c.l.b16 %v3884
    %v4863 = vunpack.c.l.b16 %v3885
    %v4864 = vunpack.c.h.b16 %v3885
    %v4865 = vunpack.c.l.b16 %v3886
    %v4866 = vunpack.c.h.b16 %v3886
    %v4867 = vunpack.c.l.b16 %v3887
    %v4868 = vunpack.c.h.b16 %v3887
    %v4869 = vunpack.c.l.b16 %v3888
    %v4870 = vunpack.c.l.b16 %v3889
    %v4871 = vunpack.c.h.b16 %v3889
    %v4872 = vunpack.c.l.b16 %v3890
    %v4873 = vunpack.c.h.b16 %v3890
    %v4874 = vunpack.c.l.b16 %v3891
    %v4875 = vunpack.c.h.b16 %v3891
    %v4876 = vunpack.c.l.b16 %v3892
    %v4877 = vunpack.c.l.b16 %v3893
    %v4878 = vunpack.c.h.b16 %v3893
    %v4879 = vunpack.c.l.b16 %v3894
    %v4880 = vunpack.c.h.b16 %v3894
    %v4881 = vunpack.c.l.b16 %v3895
    %v4882 = vunpack.c.h.b16 %v3895
    %v4883 = vunpack.c.l.b16 %v3896
    %v4884 = vunpack.c.l.b16 %v3897
    %v4885 = vunpack.c.h.b16 %v3897
    %v4886 = vunpack.c.l.b16 %v3898
    %v4887 = vunpack.c.h.b16 %v3898
    %v4888 = vunpack.c.l.b16 %v3899
    %v4889 = vunpack.c.h.b16 %v3899
    %v4890 = vunpack.c.l.b16 %v3900
    %v4891 = vunpack.c.l.b16 %v3901
    %v4892 = vunpack.c.h.b16 %v3901
    %v4893 = vunpack.c.l.b16 %v3902
    %v4894 = vunpack.c.h.b16 %v3902
    %v4895 = vunpack.c.l.b16 %v3903
    %v4896 = vunpack.c.h.b16 %v3903
    %v4897 = vunpack.c.l.b16 %v3904
    %v4898 = vunpack.c.l.b16 %v3905
    %v4899 = vunpack.c.h.b16 %v3905
    %v4900 = vunpack.c.l.b16 %v3906
    %v4901 = vunpack.c.h.b16 %v3906
    %v4902 = vunpack.c.l.b16 %v3907
    %v4903 = vunpack.c.h.b16 %v3907
    %v4904 = vunpack.c.l.b16 %v3908
    %v4905 = vunpack.c.l.b16 %v3909
    %v4906 = vunpack.c.h.b16 %v3909
    %v4907 = vunpack.c.l.b16 %v3910
    %v4908 = vunpack.c.h.b16 %v3910
    %v4909 = vunpack.c.l.b16 %v3911
    %v4910 = vunpack.c.h.b16 %v3911
    %v4911 = vunpack.c.l.b16 %v3912
    %v4912 = vunpack.c.l.b16 %v3913
    %v4913 = vunpack.c.h.b16 %v3913
    %v4914 = vunpack.c.l.b16 %v3914
    %v4915 = vunpack.c.h.b16 %v3914
    %v4916 = vunpack.c.l.b16 %v3915
    %v4917 = vunpack.c.h.b16 %v3915
    %v4918 = vunpack.c.l.b16 %v3916
    %v4919 = vunpack.c.l.b16 %v3917
    %v4920 = vunpack.c.h.b16 %v3917
    %v4921 = vunpack.c.l.b16 %v3918
    %v4922 = vunpack.c.h.b16 %v3918
    %v4923 = vunpack.c.l.b16 %v3919
    %v4924 = vunpack.c.h.b16 %v3919
    %v4925 = vunpack.c.l.b16 %v3920
    %v4926 = vunpack.c.l.b16 %v3921
    %v4927 = vunpack.c.h.b16 %v3921
    %v4928 = vunpack.c.l.b16 %v3922
    %v4929 = vunpack.c.h.b16 %v3922
    %v4930 = vunpack.c.l.b16 %v3923
    %v4931 = vunpack.c.h.b16 %v3923
    %v4932 = vunpack.c.l.b16 %v3924
    %v4933 = vunpack.c.l.b16 %v3925
    %v4934 = vunpack.c.h.b16 %v3925
    %v4935 = vunpack.c.l.b16 %v3926
    %v4936 = vunpack.c.h.b16 %v3926
    %v4937 = vunpack.c.l.b16 %v3927
    %v4938 = vunpack.c.h.b16 %v3927
    %v4939 = vunpack.c.l.b16 %v3928
    %v4940 = vunpack.c.l.b16 %v3929
    %v4941 = vunpack.c.h.b16 %v3929
    %v4942 = vunpack.c.l.b16 %v3930
    %v4943 = vunpack.c.h.b16 %v3930
    %v4944 = vunpack.c.l.b16 %v3931
    %v4945 = vunpack.c.h.b16 %v3931
    %v4946 = vunpack.c.l.b16 %v3932
    %v4947 = vunpack.c.l.b16 %v3933
    %v4948 = vunpack.c.h.b16 %v3933
    %v4949 = vunpack.c.l.b16 %v3934
    %v4950 = vunpack.c.h.b16 %v3934
    %v4951 = vunpack.c.l.b16 %v3935
    %v4952 = vunpack.c.h.b16 %v3935
    %v4953 = vunpack.c.l.b16 %v3936
    %v4954 = vunpack.c.l.b16 %v3937
    %v4955 = vunpack.c.h.b16 %v3937
    %v4956 = vunpack.c.l.b16 %v3938
    %v4957 = vunpack.c.h.b16 %v3938
    %v4958 = vunpack.c.l.b16 %v3939
    %v4959 = vunpack.c.h.b16 %v3939
    %v4960 = vunpack.c.l.b16 %v3940
    %v4961 = vunpack.c.l.b16 %v3941
    %v4962 = vunpack.c.h.b16 %v3941
    %v4963 = vunpack.c.l.b16 %v3942
    %v4964 = vunpack.c.h.b16 %v3942
    %v4965 = vunpack.c.l.b16 %v3943
    %v4966 = vunpack.c.h.b16 %v3943
    %v4967 = vunpack.c.l.b16 %v3944
    %v4968 = vunpack.c.l.b16 %v3945
    %v4969 = vunpack.c.h.b16 %v3945
    %v4970 = vunpack.c.l.b16 %v3946
    %v4971 = vunpack.c.h.b16 %v3946
    %v4972 = vunpack.c.l.b16 %v3947
    %v4973 = vunpack.c.h.b16 %v3947
    %v4974 = vunpack.c.l.b16 %v3948
    %v4975 = vunpack.c.l.b16 %v3949
    %v4976 = vunpack.c.h.b16 %v3949
    %v4977 = vunpack.c.l.b16 %v3950
    %v4978 = vunpack.c.h.b16 %v3950
    %v4979 = vunpack.c.l.b16 %v3951
    %v4980 = vunpack.c.h.b16 %v3951
    %v4981 = vunpack.c.l.b16 %v3952
    %v4982 = vunpack.c.l.b16 %v3953
    %v4983 = vunpack.c.h.b16 %v3953
    %v4984 = vunpack.c.l.b16 %v3954
    %v4985 = vunpack.c.h.b16 %v3954
    %v4986 = vunpack.c.l.b16 %v3955
    %v4987 = vunpack.c.h.b16 %v3955
    %v4988 = vunpack.c.l.b16 %v3956
    %v4989 = vunpack.c.l.b16 %v3957
    %v4990 = vunpack.c.h.b16 %v3957
    %v4991 = vunpack.c.l.b16 %v3958
    %v4992 = vunpack.c.h.b16 %v3958
    %v4993 = vunpack.c.l.b16 %v3959
    %v4994 = vunpack.c.h.b16 %v3959
    %v4995 = vunpack.c.l.b16 %v3960
    %v4996 = vunpack.c.l.b16 %v3961
    %v4997 = vunpack.c.h.b16 %v3961
    %v4998 = vunpack.c.l.b16 %v3962
    %v4999 = vunpack.c.h.b16 %v3962
    %v5000 = vunpack.c.l.b16 %v3963
    %v5001 = vunpack.c.h.b16 %v3963
    %v5002 = vunpack.c.l.b16 %v3964
    %v5003 = vunpack.c.l.b16 %v3965
    %v5004 = vunpack.c.h.b16 %v3965
    %v5005 = vunpack.c.l.b16 %v3966
    %v5006 = vunpack.c.h.b16 %v3966
    %v5007 = vunpack.c.l.b16 %v3967
    %v5008 = vunpack.c.h.b16 %v3967
    %v5009 = vunpack.c.l.b16 %v3968
    %v5010 = vunpack.c.l.b16 %v3969
    %v5011 = vunpack.c.h.b16 %v3969
    %v5012 = vunpack.c.l.b16 %v3970
    %v5013 = vunpack.c.h.b16 %v3970
    %v5014 = vunpack.c.l.b16 %v3971
    %v5015 = vunpack.c.h.b16 %v3971
    %v5016 = vunpack.c.l.b16 %v3972
    %v5017 = vunpack.c.l.b16 %v3973
    %v5018 = vunpack.c.h.b16 %v3973
    %v5019 = vunpack.c.l.b16 %v3974
    %v5020 = vunpack.c.h.b16 %v3974
    %v5021 = vunpack.c.l.b16 %v3975
    %v5022 = vunpack.c.h.b16 %v3975
    %v5023 = vunpack.c.l.b16 %v3976
    %v5024 = vunpack.c.l.b16 %v3977
    %v5025 = vunpack.c.h.b16 %v3977
    %v5026 = vunpack.c.l.b16 %v3978
    %v5027 = vunpack.c.h.b16 %v3978
    %v5028 = vunpack.c.l.b16 %v3979
    %v5029 = vunpack.c.h.b16 %v3979
    %v5030 = vunpack.c.l.b16 %v3980
    %v5031 = vunpack.c.l.b16 %v3981
    %v5032 = vunpack.c.h.b16 %v3981
    %v5033 = vunpack.c.l.b16 %v3982
    %v5034 = vunpack.c.h.b16 %v3982
    %v5035 = vunpack.c.l.b16 %v3983
    %v5036 = vunpack.c.h.b16 %v3983
    %v5037 = vunpack.c.l.b16 %v3984
    %v5038 = vunpack.c.l.b16 %v3985
    %v5039 = vunpack.c.h.b16 %v3985
    %v5040 = vunpack.c.l.b16 %v3986
    %v5041 = vunpack.c.h.b16 %v3986
    %v5042 = vunpack.c.l.b16 %v3987
    %v5043 = vunpack.c.h.b16 %v3987
    %v5044 = vunpack.c.l.b16 %v3988
    %v5045 = vunpack.c.l.b16 %v3989
    %v5046 = vunpack.c.h.b16 %v3989
    %v5047 = vunpack.c.l.b16 %v3990
    %v5048 = vunpack.c.h.b16 %v3990
    %v5049 = vunpack.c.l.b16 %v3991
    %v5050 = vunpack.c.h.b16 %v3991
    %v5051 = vunpack.c.l.b16 %v3992
    %v5052 = vunpack.c.l.b16 %v3993
    %v5053 = vunpack.c.h.b16 %v3993
    %v5054 = vunpack.c.l.b16 %v3994
    %v5055 = vunpack.c.h.b16 %v3994
    %v5056 = vunpack.c.l.b16 %v3995
    %v5057 = vunpack.c.h.b16 %v3995
    %v5058 = vunpack.c.l.b16 %v3996
    %v5059 = vunpack.c.l.b16 %v3997
    %v5060 = vunpack.c.h.b16 %v3997
    %v5061 = vunpack.c.l.b16 %v3998
    %v5062 = vunpack.c.h.b16 %v3998
    %v5063 = vunpack.c.l.b16 %v3999
    %v5064 = vunpack.c.h.b16 %v3999
    %v5065 = vunpack.c.l.b16 %v4000
    %v5066 = vunpack.c.l.b16 %v4001
    %v5067 = vunpack.c.h.b16 %v4001
    %v5068 = vunpack.c.l.b16 %v4002
    %v5069 = vunpack.c.h.b16 %v4002
    %v5070 = vunpack.c.l.b16 %v4003
    %v5071 = vunpack.c.h.b16 %v4003
    %v5072 = vunpack.c.l.b16 %v4004
    %v5073 = vunpack.c.l.b16 %v4005
    %v5074 = vunpack.c.h.b16 %v4005
    %v5075 = vunpack.c.l.b16 %v4006
    %v5076 = vunpack.c.h.b16 %v4006
    %v5077 = vunpack.c.l.b16 %v4007
    %v5078 = vunpack.c.h.b16 %v4007
    %v5079 = vunpack.c.l.b16 %v4008
    %v5080 = vunpack.c.l.b16 %v4009
    %v5081 = vunpack.c.h.b16 %v4009
    %v5082 = vunpack.c.l.b16 %v4010
    %v5083 = vunpack.c.h.b16 %v4010
    %v5084 = vunpack.c.l.b16 %v4011
    %v5085 = vunpack.c.h.b16 %v4011
    %v5086 = vunpack.c.l.b16 %v4012
    %v5087 = vunpack.c.l.b16 %v4013
    %v5088 = vunpack.c.h.b16 %v4013
    %v5089 = vunpack.c.l.b16 %v4014
    %v5090 = vunpack.c.h.b16 %v4014
    %v5091 = vunpack.c.l.b16 %v4015
    %v5092 = vunpack.c.h.b16 %v4015
    %v5093 = vunpack.c.l.b16 %v4016
    %v5094 = vunpack.c.l.b16 %v4017
    %v5095 = vunpack.c.h.b16 %v4017
    %v5096 = vunpack.c.l.b16 %v4018
    %v5097 = vunpack.c.h.b16 %v4018
    %v5098 = vunpack.c.l.b16 %v4019
    %v5099 = vunpack.c.h.b16 %v4019
    %v5100 = vunpack.c.l.b16 %v4020
    %v5101 = vunpack.c.l.b16 %v4021
    %v5102 = vunpack.c.h.b16 %v4021
    %v5103 = vunpack.c.l.b16 %v4022
    %v5104 = vunpack.c.h.b16 %v4022
    %v5105 = vunpack.c.l.b16 %v4023
    %v5106 = vunpack.c.h.b16 %v4023
    %v5107 = vunpack.c.l.b16 %v4024
    %v5108 = vunpack.c.l.b16 %v4025
    %v5109 = vunpack.c.h.b16 %v4025
    %v5110 = vunpack.c.l.b16 %v4026
    %v5111 = vunpack.c.h.b16 %v4026
    %v5112 = vunpack.c.l.b16 %v4027
    %v5113 = vunpack.c.h.b16 %v4027
    %v5114 = vunpack.c.l.b16 %v4028
    %v5115 = vunpack.c.l.b16 %v4029
    %v5116 = vunpack.c.h.b16 %v4029
    %v5117 = vunpack.c.l.b16 %v4030
    %v5118 = vunpack.c.h.b16 %v4030
    %v5119 = vunpack.c.l.b16 %v4031
    %v5120 = vunpack.c.h.b16 %v4031
    %v5121 = vunpack.c.l.b16 %v4032
    %v5122 = vunpack.c.l.b16 %v4033
    %v5123 = vunpack.c.h.b16 %v4033
    %v5124 = vunpack.c.l.b16 %v4034
    %v5125 = vunpack.c.h.b16 %v4034
    %v5126 = vunpack.c.l.b16 %v4035
    %v5127 = vunpack.c.h.b16 %v4035
    %v5128 = vunpack.c.l.b16 %v4036
    %v5129 = vunpack.c.l.b16 %v4037
    %v5130 = vunpack.c.h.b16 %v4037
    %v5131 = vunpack.c.l.b16 %v4038
    %v5132 = vunpack.c.h.b16 %v4038
    %v5133 = vunpack.c.l.b16 %v4039
    %v5134 = vunpack.c.h.b16 %v4039
    %v5135 = vunpack.c.l.b16 %v4040
    %v5136 = vunpack.c.l.b16 %v4041
    %v5137 = vunpack.c.h.b16 %v4041
    %v5138 = vunpack.c.l.b16 %v4042
    %v5139 = vunpack.c.h.b16 %v4042
    %v5140 = vunpack.c.l.b16 %v4043
    %v5141 = vunpack.c.h.b16 %v4043
    %v5142 = vunpack.c.l.b16 %v4044
    %v5143 = vunpack.c.l.b16 %v4045
    %v5144 = vunpack.c.h.b16 %v4045
    %v5145 = vunpack.c.l.b16 %v4046
    %v5146 = vunpack.c.h.b16 %v4046
    %v5147 = vunpack.c.l.b16 %v4047
    %v5148 = vunpack.c.h.b16 %v4047
    %v5149 = vunpack.c.l.b16 %v4048
    %v5150 = vunpack.c.l.b16 %v4049
    %v5151 = vunpack.c.h.b16 %v4049
    %v5152 = vunpack.c.l.b16 %v4050
    %v5153 = vunpack.c.h.b16 %v4050
    %v5154 = vunpack.c.l.b16 %v4051
    %v5155 = vunpack.c.h.b16 %v4051
    %v5156 = vunpack.c.l.b16 %v4052
    %v5157 = vunpack.c.l.b16 %v4053
    %v5158 = vunpack.c.h.b16 %v4053
    %v5159 = vunpack.c.l.b16 %v4054
    %v5160 = vunpack.c.h.b16 %v4054
    %v5161 = vunpack.c.l.b16 %v4055
    %v5162 = vunpack.c.h.b16 %v4055
    %v5163 = vunpack.c.l.b16 %v4056
    %v5164 = vunpack.c.l.b16 %v4057
    %v5165 = vunpack.c.h.b16 %v4057
    %v5166 = vunpack.c.l.b16 %v4058
    %v5167 = vunpack.c.h.b16 %v4058
    %v5168 = vunpack.c.l.b16 %v4059
    %v5169 = vunpack.c.h.b16 %v4059
    %v5170 = vunpack.c.l.b16 %v4060
    %v5171 = vunpack.c.l.b16 %v4061
    %v5172 = vunpack.c.h.b16 %v4061
    %v5173 = vunpack.c.l.b16 %v4062
    %v5174 = vunpack.c.h.b16 %v4062
    %v5175 = vunpack.c.l.b16 %v4063
    %v5176 = vunpack.c.h.b16 %v4063
    %v5177 = vunpack.c.l.b16 %v4064
    %v5178 = vunpack.c.l.b16 %v4065
    %v5179 = vunpack.c.h.b16 %v4065
    %v5180 = vunpack.c.l.b16 %v4066
    %v5181 = vunpack.c.h.b16 %v4066
    %v5182 = vunpack.c.l.b16 %v4067
    %v5183 = vunpack.c.h.b16 %v4067
    %v5184 = vunpack.c.l.b16 %v4068
    %v5185 = vunpack.c.l.b16 %v4069
    %v5186 = vunpack.c.h.b16 %v4069
    %v5187 = vunpack.c.l.b16 %v4070
    %v5188 = vunpack.c.h.b16 %v4070
    %v5189 = vunpack.c.l.b16 %v4071
    %v5190 = vunpack.c.h.b16 %v4071
    %v5191 = vunpack.c.l.b16 %v4072
    %v5192 = vunpack.c.l.b16 %v4073
    %v5193 = vunpack.c.h.b16 %v4073
    %v5194 = vunpack.c.l.b16 %v4074
    %v5195 = vunpack.c.h.b16 %v4074
    %v5196 = vunpack.c.l.b16 %v4075
    %v5197 = vunpack.c.h.b16 %v4075
    %v5198 = vunpack.c.l.b16 %v4076
    %v5199 = vunpack.c.l.b16 %v4077
    %v5200 = vunpack.c.h.b16 %v4077
    %v5201 = vunpack.c.l.b16 %v4078
    %v5202 = vunpack.c.h.b16 %v4078
    %v5203 = vunpack.c.l.b16 %v4079
    %v5204 = vunpack.c.h.b16 %v4079
    %v5205 = vunpack.c.l.b16 %v4080
    %v5206 = vunpack.c.l.b16 %v4081
    %v5207 = vunpack.c.h.b16 %v4081
    %v5208 = vunpack.c.l.b16 %v4082
    %v5209 = vunpack.c.h.b16 %v4082
    %v5210 = vunpack.c.l.b16 %v4083
    %v5211 = vunpack.c.h.b16 %v4083
    %v5212 = vunpack.c.l.b16 %v4084
    %v5213 = vunpack.c.l.b16 %v4085
    %v5214 = vunpack.c.h.b16 %v4085
    %v5215 = vunpack.c.l.b16 %v4086
    %v5216 = vunpack.c.h.b16 %v4086
    %v5217 = vunpack.c.l.b16 %v4087
    %v5218 = vunpack.c.h.b16 %v4087
    %v5219 = vunpack.c.l.b16 %v4088
    %v5220 = vunpack.c.l.b16 %v4089
    %v5221 = vunpack.c.h.b16 %v4089
    %v5222 = vunpack.c.l.b16 %v4090
    %v5223 = vunpack.c.h.b16 %v4090
    %v5224 = vunpack.c.l.b16 %v4091
    %v5225 = vunpack.c.h.b16 %v4091
    %v5226 = vunpack.c.l.b16 %v4092
    %v5227 = vunpack.c.l.b16 %v4093
    %v5228 = vunpack.c.h.b16 %v4093
    %v5229 = vunpack.c.l.b16 %v4094
    %v5230 = vunpack.c.h.b16 %v4094
    %v5231 = vunpack.c.l.b16 %v4095
    %v5232 = vunpack.c.h.b16 %v4095
    %v5233 = vunpack.c.l.b16 %v4096
    %v5234 = vunpack.c.l.b16 %v4097
    %v5235 = vunpack.c.h.b16 %v4097
    %v5236 = vunpack.c.l.b16 %v4098
    %v5237 = vunpack.c.h.b16 %v4098
    %v5238 = vunpack.c.l.b16 %v4099
    %v5239 = vunpack.c.h.b16 %v4099
    %v5240 = vunpack.c.l.b16 %v4100
    %v5241 = vunpack.c.l.b16 %v4101
    %v5242 = vunpack.c.h.b16 %v4101
    %v5243 = vunpack.c.l.b16 %v4102
    %v5244 = vunpack.c.h.b16 %v4102
    %v5245 = vunpack.c.l.b16 %v4103
    %v5246 = vunpack.c.h.b16 %v4103
    %v5247 = vunpack.c.l.b16 %v4104
    %v5248 = vunpack.c.l.b16 %v4105
    %v5249 = vunpack.c.h.b16 %v4105
    %v5250 = vunpack.c.l.b16 %v4106
    %v5251 = vunpack.c.h.b16 %v4106
    %v5252 = vunpack.c.l.b16 %v4107
    %v5253 = vunpack.c.h.b16 %v4107
    %v5254 = vunpack.c.l.b16 %v4108
    %v5255 = vunpack.c.l.b16 %v4109
    %v5256 = vunpack.c.h.b16 %v4109
    %v5257 = vunpack.c.l.b16 %v4110
    %v5258 = vunpack.c.h.b16 %v4110
    %v5259 = vunpack.c.l.b16 %v4111
    %v5260 = vunpack.c.h.b16 %v4111
    %v5261 = vunpack.c.l.b16 %v4112
    %v5262 = vunpack.c.l.b16 %v4113
    %v5263 = vunpack.c.h.b16 %v4113
    %v5264 = vunpack.c.l.b16 %v4114
    %v5265 = vunpack.c.h.b16 %v4114
    %v5266 = vunpack.c.l.b16 %v4115
    %v5267 = vunpack.c.h.b16 %v4115
    %v5268 = vunpack.c.l.b16 %v4116
    %v5269 = vunpack.c.l.b16 %v4117
    %v5270 = vunpack.c.h.b16 %v4117
    %v5271 = vunpack.c.l.b16 %v4118
    %v5272 = vunpack.c.h.b16 %v4118
    %v5273 = vunpack.c.l.b16 %v4119
    %v5274 = vunpack.c.h.b16 %v4119
    %v5275 = vunpack.c.l.b16 %v4120
    %v5276 = vunpack.c.l.b16 %v4121
    %v5277 = vunpack.c.h.b16 %v4121
    %v5278 = vunpack.c.l.b16 %v4122
    %v5279 = vunpack.c.h.b16 %v4122
    %v5280 = vunpack.c.l.b16 %v4123
    %v5281 = vunpack.c.h.b16 %v4123
    %v5282 = vunpack.c.l.b16 %v4124
    %v5283 = vunpack.c.l.b16 %v4125
    %v5284 = vunpack.c.h.b16 %v4125
    %v5285 = vunpack.c.l.b16 %v4126
    %v5286 = vunpack.c.h.b16 %v4126
    %v5287 = vunpack.c.l.b16 %v4127
    %v5288 = vunpack.c.h.b16 %v4127
    %v5289 = vunpack.c.l.b16 %v4128
    %v5290 = vunpack.c.l.b16 %v4129
    %v5291 = vunpack.c.h.b16 %v4129
    %v5292 = vunpack.c.l.b16 %v4130
    %v5293 = vunpack.c.h.b16 %v4130
    %v5294 = vunpack.c.l.b16 %v4131
    %v5295 = vunpack.c.h.b16 %v4131
    %v5296 = vunpack.c.l.b16 %v4132
    %v5297 = vunpack.c.l.b16 %v4133
    %v5298 = vunpack.c.h.b16 %v4133
    %v5299 = vunpack.c.l.b16 %v4134
    %v5300 = vunpack.c.h.b16 %v4134
    %v5301 = vunpack.c.l.b16 %v4135
    %v5302 = vunpack.c.h.b16 %v4135
    %v5303 = vunpack.c.l.b16 %v4136
    %v5304 = vunpack.c.l.b16 %v4137
    %v5305 = vunpack.c.h.b16 %v4137
    %v5306 = vunpack.c.l.b16 %v4138
    %v5307 = vunpack.c.h.b16 %v4138
    %v5308 = vunpack.c.l.b16 %v4139
    %v5309 = vunpack.c.h.b16 %v4139
    %v5310 = vunpack.c.l.b16 %v4140
    %v5311 = vunpack.c.l.b16 %v4141
    %v5312 = vunpack.c.h.b16 %v4141
    %v5313 = vunpack.c.l.b16 %v4142
    %v5314 = vunpack.c.h.b16 %v4142
    %v5315 = vunpack.c.l.b16 %v4143
    %v5316 = vunpack.c.h.b16 %v4143
    %v5317 = vunpack.c.l.b16 %v4144
    %v5318 = vunpack.c.l.b16 %v4145
    %v5319 = vunpack.c.h.b16 %v4145
    %v5320 = vunpack.c.l.b16 %v4146
    %v5321 = vunpack.c.h.b16 %v4146
    %v5322 = vunpack.c.l.b16 %v4147
    %v5323 = vunpack.c.h.b16 %v4147
    %v5324 = vunpack.c.l.b16 %v4148
    %v5325 = vunpack.c.l.b16 %v4149
    %v5326 = vunpack.c.h.b16 %v4149
    %v5327 = vunpack.c.l.b16 %v4150
    %v5328 = vunpack.c.h.b16 %v4150
    %v5329 = vunpack.c.l.b16 %v4151
    %v5330 = vunpack.c.h.b16 %v4151
    %v5331 = vunpack.c.l.b16 %v4152
    %v5332 = vunpack.c.l.b16 %v4153
    %v5333 = vunpack.c.h.b16 %v4153
    %v5334 = vunpack.c.l.b16 %v4154
    %v5335 = vunpack.c.h.b16 %v4154
    %v5336 = vunpack.c.l.b16 %v4155
    %v5337 = vunpack.c.h.b16 %v4155
    %v5338 = vunpack.c.l.b16 %v4156
    %v5339 = vunpack.c.l.b16 %v4157
    %v5340 = vunpack.c.h.b16 %v4157
    %v5341 = vunpack.c.l.b16 %v4158
    %v5342 = vunpack.c.h.b16 %v4158
    %v5343 = vunpack.c.l.b16 %v4159
    %v5344 = vunpack.c.h.b16 %v4159
    %v5345 = vunpack.c.l.b16 %v4160
    %v5346 = vunpack.c.l.b16 %v4161
    %v5347 = vunpack.c.h.b16 %v4161
    %v5348 = vunpack.c.l.b16 %v4162
    %v5349 = vunpack.c.h.b16 %v4162
    %v5350 = vunpack.c.l.b16 %v4163
    %v5351 = vunpack.c.h.b16 %v4163
    %v5352 = vunpack.c.l.b16 %v4164
    %v5353 = vunpack.c.l.b16 %v4165
    %v5354 = vunpack.c.h.b16 %v4165
    %v5355 = vunpack.c.l.b16 %v4166
    %v5356 = vunpack.c.h.b16 %v4166
    %v5357 = vunpack.c.l.b16 %v4167
    %v5358 = vunpack.c.h.b16 %v4167
    %v5359 = vunpack.c.l.b16 %v4168
    %v5360 = vunpack.c.l.b16 %v4169
    %v5361 = vunpack.c.h.b16 %v4169
    %v5362 = vunpack.c.l.b16 %v4170
    %v5363 = vunpack.c.h.b16 %v4170
    %v5364 = vunpack.c.l.b16 %v4171
    %v5365 = vunpack.c.h.b16 %v4171
    %v5366 = vunpack.c.l.b16 %v4172
    %v5367 = vunpack.c.l.b16 %v4173
    %v5368 = vunpack.c.h.b16 %v4173
    %v5369 = vunpack.c.l.b16 %v4174
    %v5370 = vunpack.c.h.b16 %v4174
    %v5371 = vunpack.c.l.b16 %v4175
    %v5372 = vunpack.c.h.b16 %v4175
    %v5373 = vunpack.c.l.b16 %v4176
    %v5374 = vunpack.c.l.b16 %v4177
    %v5375 = vunpack.c.h.b16 %v4177
    %v5376 = vunpack.c.l.b16 %v4178
    %v5377 = vunpack.c.h.b16 %v4178
    %v5378 = vunpack.c.l.b16 %v4179
    %v5379 = vunpack.c.h.b16 %v4179
    %v5380 = vunpack.c.l.b16 %v4180
    %v5381 = vunpack.c.l.b16 %v4181
    %v5382 = vunpack.c.h.b16 %v4181
    %v5383 = vunpack.c.l.b16 %v4182
    %v5384 = vunpack.c.h.b16 %v4182
    %v5385 = vunpack.c.l.b16 %v4183
    %v5386 = vunpack.c.h.b16 %v4183
    %v5387 = vunpack.c.l.b16 %v4184
    %v5388 = vunpack.c.l.b16 %v4185
    %v5389 = vunpack.c.h.b16 %v4185
    %v5390 = vunpack.c.l.b16 %v4186
    %v5391 = vunpack.c.h.b16 %v4186
    %v5392 = vunpack.c.l.b16 %v4187
    %v5393 = vunpack.c.h.b16 %v4187
    %v5394 = vunpack.c.l.b16 %v4188
    %v5395 = vunpack.c.l.b16 %v4189
    %v5396 = vunpack.c.h.b16 %v4189
    %v5397 = vunpack.c.l.b16 %v4190
    %v5398 = vunpack.c.h.b16 %v4190
    %v5399 = vunpack.c.l.b16 %v4191
    %v5400 = vunpack.c.h.b16 %v4191
    %v5401 = vunpack.c.l.b16 %v4192
    %v5402 = vunpack.c.l.b16 %v4193
    %v5403 = vunpack.c.h.b16 %v4193
    %v5404 = vunpack.c.l.b16 %v4194
    %v5405 = vunpack.c.h.b16 %v4194
    %v5406 = vunpack.c.l.b16 %v4195
    %v5407 = vunpack.c.h.b16 %v4195
    %v5408 = vunpack.c.l.b16 %v4196
    %v5409 = vunpack.c.l.b16 %v4197
    %v5410 = vunpack.c.h.b16 %v4197
    %v5411 = vunpack.c.l.b16 %v4198
    %v5412 = vunpack.c.h.b16 %v4198
    %v5413 = vunpack.c.l.b16 %v4199
    %v5414 = vunpack.c.h.b16 %v4199
    %v5415 = vunpack.c.l.b16 %v4200
    %v5416 = vunpack.c.l.b16 %v4201
    %v5417 = vunpack.c.h.b16 %v4201
    %v5418 = vunpack.c.l.b16 %v4202
    %v5419 = vunpack.c.h.b16 %v4202
    %v5420 = vunpack.c.l.b16 %v4203
    %v5421 = vunpack.c.h.b16 %v4203
    %v5422 = vunpack.c.l.b16 %v4204
    %v5423 = vunpack.c.l.b16 %v4205
    %v5424 = vunpack.c.h.b16 %v4205
    %v5425 = vunpack.c.l.b16 %v4206
    %v5426 = vunpack.c.h.b16 %v4206
    %v5427 = vunpack.c.l.b16 %v4207
    %v5428 = vunpack.c.h.b16 %v4207
    %v5429 = vunpack.c.l.b16 %v4208
    %v5430 = vunpack.c.l.b16 %v4209
    %v5431 = vunpack.c.h.b16 %v4209
    %v5432 = vunpack.c.l.b16 %v4210
    %v5433 = vunpack.c.h.b16 %v4210
    %v5434 = vunpack.c.l.b16 %v4211
    %v5435 = vunpack.c.h.b16 %v4211
    %v5436 = vunpack.c.l.b16 %v4212
    %v5437 = vunpack.c.l.b16 %v4213
    %v5438 = vunpack.c.h.b16 %v4213
    %v5439 = vunpack.c.l.b16 %v4214
    %v5440 = vunpack.c.h.b16 %v4214
    %v5441 = vunpack.c.l.b16 %v4215
    %v5442 = vunpack.c.h.b16 %v4215
    %v5443 = vunpack.c.l.b16 %v4216
    %v5444 = vunpack.c.l.b16 %v4217
    %v5445 = vunpack.c.h.b16 %v4217
    %v5446 = vunpack.c.l.b16 %v4218
    %v5447 = vunpack.c.h.b16 %v4218
    %v5448 = vunpack.c.l.b16 %v4219
    %v5449 = vunpack.c.h.b16 %v4219
    %v5450 = vunpack.c.l.b16 %v4220
    %v5451 = vunpack.c.l.b16 %v4221
    %v5452 = vunpack.c.h.b16 %v4221
    %v5453 = vunpack.c.l.b16 %v4222
    %v5454 = vunpack.c.h.b16 %v4222
    %v5455 = vunpack.c.l.b16 %v4223
    %v5456 = vunpack.c.h.b16 %v4223
    %v5457 = vunpack.c.l.b16 %v4224
    %v5458 = vunpack.c.l.b16 %v4225
    %v5459 = vunpack.c.h.b16 %v4225
    %v5460 = vunpack.c.l.b16 %v4226
    %v5461 = vunpack.c.h.b16 %v4226
    %v5462 = vunpack.c.l.b16 %v4227
    %v5463 = vunpack.c.h.b16 %v4227
    %v5464 = vunpack.c.l.b16 %v4228
    %v5465 = vunpack.c.l.b16 %v4229
    %v5466 = vunpack.c.h.b16 %v4229
    %v5467 = vunpack.c.l.b16 %v4230
    %v5468 = vunpack.c.h.b16 %v4230
    %v5469 = vunpack.c.l.b16 %v4231
    %v5470 = vunpack.c.h.b16 %v4231
    %v5471 = vunpack.c.l.b16 %v4232
    %v5472 = vunpack.c.l.b16 %v4233
    %v5473 = vunpack.c.h.b16 %v4233
    %v5474 = vunpack.c.l.b16 %v4234
    %v5475 = vunpack.c.h.b16 %v4234
    %v5476 = vunpack.c.l.b16 %v4235
    %v5477 = vunpack.c.h.b16 %v4235
    %v5478 = vunpack.c.l.b16 %v4236
    %v5479 = vunpack.c.l.b16 %v4237
    %v5480 = vunpack.c.h.b16 %v4237
    %v5481 = vunpack.c.l.b16 %v4238
    %v5482 = vunpack.c.h.b16 %v4238
    %v5483 = vunpack.c.l.b16 %v4239
    %v5484 = vunpack.c.h.b16 %v4239
    %v5485 = vunpack.c.l.b16 %v4240
    %v5486 = vunpack.c.l.b16 %v4241
    %v5487 = vunpack.c.h.b16 %v4241
    %v5488 = vunpack.c.l.b16 %v4242
    %v5489 = vunpack.c.h.b16 %v4242
    %v5490 = vunpack.c.l.b16 %v4243
    %v5491 = vunpack.c.h.b16 %v4243
    %v5492 = vunpack.c.l.b16 %v4244
    %v5493 = vunpack.c.l.b16 %v4245
    %v5494 = vunpack.c.h.b16 %v4245
    %v5495 = vunpack.c.l.b16 %v4246
    %v5496 = vunpack.c.h.b16 %v4246
    %v5497 = vunpack.c.l.b16 %v4247
    %v5498 = vunpack.c.h.b16 %v4247
    %v5499 = vunpack.c.l.b16 %v4248
    %v5500 = vunpack.c.l.b16 %v4249
    %v5501 = vunpack.c.h.b16 %v4249
    %v5502 = vunpack.c.l.b16 %v4250
    %v5503 = vunpack.c.h.b16 %v4250
    %v5504 = vunpack.c.l.b16 %v4251
    %v5505 = vunpack.c.h.b16 %v4251
    %v5506 = vunpack.c.l.b16 %v4252
    %v5507 = vunpack.c.l.b16 %v4253
    %v5508 = vunpack.c.h.b16 %v4253
    %v5509 = vunpack.c.l.b16 %v4254
    %v5510 = vunpack.c.h.b16 %v4254
    %v5511 = vunpack.c.l.b16 %v4255
    %v5512 = vunpack.c.h.b16 %v4255
    %v5513 = vunpack.c.l.b16 %v4256
    %v5514 = vunpack.c.l.b16 %v4257
    %v5515 = vunpack.c.h.b16 %v4257
    %v5516 = vunpack.c.l.b16 %v4258
    %v5517 = vunpack.c.h.b16 %v4258
    %v5518 = vunpack.c.l.b16 %v4259
    %v5519 = vunpack.c.h.b16 %v4259
    %v5520 = vunpack.c.l.b16 %v4260
    %v5521 = vunpack.c.l.b16 %v4261
    %v5522 = vunpack.c.h.b16 %v4261
    %v5523 = vunpack.c.l.b16 %v4262
    %v5524 = vunpack.c.h.b16 %v4262
    %v5525 = vunpack.c.l.b16 %v4263
    %v5526 = vunpack.c.h.b16 %v4263
    %v5527 = vunpack.c.l.b16 %v4264
    %v5528 = vunpack.c.l.b16 %v4265
    %v5529 = vunpack.c.h.b16 %v4265
    %v5530 = vunpack.c.l.b16 %v4266
    %v5531 = vunpack.c.h.b16 %v4266
    %v5532 = vunpack.c.l.b16 %v4267
    %v5533 = vunpack.c.h.b16 %v4267
    %v5534 = vunpack.c.l.b16 %v4268
    %v5535 = vunpack.c.l.b16 %v4269
    %v5536 = vunpack.c.h.b16 %v4269
    %v5537 = vunpack.c.l.b16 %v4270
    %v5538 = vunpack.c.h.b16 %v4270
    %v5539 = vunpack.c.l.b16 %v4271
    %v5540 = vunpack.c.h.b16 %v4271
    %v5541 = vunpack.c.l.b16 %v4272
    %v5542 = vpack.c.b16 %v4765, %v4758
    %v5543 = vpack.c.b16 %v4766, %v4759
    %v5544 = vpack.c.b16 %v4767, %v4760
    %v5545 = vpack.c.b16 %v4768, %v4761
    %v5546 = vpack.c.b16 %v4769, %v4762
    %v5547 = vpack.c.b16 %v4770, %v4763
    %v5548 = vpack.c.b16 %v4771, %v4764
    %v5549 = vpack.c.b16 %v4779, %v4772
    %v5550 = vpack.c.b16 %v4780, %v4773
    %v5551 = vpack.c.b16 %v4781, %v4774
    %v5552 = vpack.c.b16 %v4782, %v4775
    %v5553 = vpack.c.b16 %v4783, %v4776
    %v5554 = vpack.c.b16 %v4784, %v4777
    %v5555 = vpack.c.b16 %v4785, %v4778
    %v5556 = vpack.c.b16 %v4793, %v4786
    %v5557 = vpack.c.b16 %v4794, %v4787
    %v5558 = vpack.c.b16 %v4795, %v4788
    %v5559 = vpack.c.b16 %v4796, %v4789
    %v5560 = vpack.c.b16 %v4797, %v4790
    %v5561 = vpack.c.b16 %v4798, %v4791
    %v5562 = vpack.c.b16 %v4799, %v4792
    %v5563 = vpack.c.b16 %v4807, %v4800
    %v5564 = vpack.c.b16 %v4808, %v4801
    %v5565 = vpack.c.b16 %v4809, %v4802
    %v5566 = vpack.c.b16 %v4810, %v4803
    %v5567 = vpack.c.b16 %v4811, %v4804
    %v5568 = vpack.c.b16 %v4812, %v4805
    %v5569 = vpack.c.b16 %v4813, %v4806
    %v5570 = vpack.c.b16 %v4821, %v4814
    %v5571 = vpack.c.b16 %v4822, %v4815
    %v5572 = vpack.c.b16 %v4823, %v4816
    %v5573 = vpack.c.b16 %v4824, %v4817
    %v5574 = vpack.c.b16 %v4825, %v4818
    %v5575 = vpack.c.b16 %v4826, %v4819
    %v5576 = vpack.c.b16 %v4827, %v4820
    %v5577 = vpack.c.b16 %v4835, %v4828
    %v5578 = vpack.c.b16 %v4836, %v4829
    %v5579 = vpack.c.b16 %v4837, %v4830
    %v5580 = vpack.c.b16 %v4838, %v4831
    %v5581 = vpack.c.b16 %v4839, %v4832
    %v5582 = vpack.c.b16 %v4840, %v4833
    %v5583 = vpack.c.b16 %v4841, %v4834
    %v5584 = vpack.c.b16 %v4849, %v4842
    %v5585 = vpack.c.b16 %v4850, %v4843
    %v5586 = vpack.c.b16 %v4851, %v4844
    %v5587 = vpack.c.b16 %v4852, %v4845
    %v5588 = vpack.c.b16 %v4853, %v4846
    %v5589 = vpack.c.b16 %v4854, %v4847
    %v5590 = vpack.c.b16 %v4855, %v4848
    %v5591 = vpack.c.b16 %v4863, %v4856
    %v5592 = vpack.c.b16 %v4864, %v4857
    %v5593 = vpack.c.b16 %v4865, %v4858
    %v5594 = vpack.c.b16 %v4866, %v4859
    %v5595 = vpack.c.b16 %v4867, %v4860
    %v5596 = vpack.c.b16 %v4868, %v4861
    %v5597 = vpack.c.b16 %v4869, %v4862
    %v5598 = vpack.c.b16 %v4877, %v4870
    %v5599 = vpack.c.b16 %v4878, %v4871
    %v5600 = vpack.c.b16 %v4879, %v4872
    %v5601 = vpack.c.b16 %v4880, %v4873
    %v5602 = vpack.c.b16 %v4881, %v4874
    %v5603 = vpack.c.b16 %v4882, %v4875
    %v5604 = vpack.c.b16 %v4883, %v4876
    %v5605 = vpack.c.b16 %v4891, %v4884
    %v5606 = vpack.c.b16 %v4892, %v4885
    %v5607 = vpack.c.b16 %v4893, %v4886
    %v5608 = vpack.c.b16 %v4894, %v4887
    %v5609 = vpack.c.b16 %v4895, %v4888
    %v5610 = vpack.c.b16 %v4896, %v4889
    %v5611 = vpack.c.b16 %v4897, %v4890
    %v5612 = vpack.c.b16 %v4905, %v4898
    %v5613 = vpack.c.b16 %v4906, %v4899
    %v5614 = vpack.c.b16 %v4907, %v4900
    %v5615 = vpack.c.b16 %v4908, %v4901
    %v5616 = vpack.c.b16 %v4909, %v4902
    %v5617 = vpack.c.b16 %v4910, %v4903
    %v5618 = vpack.c.b16 %v4911, %v4904
    %v5619 = vpack.c.b16 %v4919, %v4912
    %v5620 = vpack.c.b16 %v4920, %v4913
    %v5621 = vpack.c.b16 %v4921, %v4914
    %v5622 = vpack.c.b16 %v4922, %v4915
    %v5623 = vpack.c.b16 %v4923, %v4916
    %v5624 = vpack.c.b16 %v4924, %v4917
    %v5625 = vpack.c.b16 %v4925, %v4918
    %v5626 = vpack.c.b16 %v4933, %v4926
    %v5627 = vpack.c.b16 %v4934, %v4927
    %v5628 = vpack.c.b16 %v4935, %v4928
    %v5629 = vpack.c.b16 %v4936, %v4929
    %v5630 = vpack.c.b16 %v4937, %v4930
    %v5631 = vpack.c.b16 %v4938, %v4931
    %v5632 = vpack.c.b16 %v4939, %v4932
    %v5633 = vpack.c.b16 %v4947, %v4940
    %v5634 = vpack.c.b16 %v4948, %v4941
    %v5635 = vpack.c.b16 %v4949, %v4942
    %v5636 = vpack.c.b16 %v4950, %v4943
    %v5637 = vpack.c.b16 %v4951, %v4944
    %v5638 = vpack.c.b16 %v4952, %v4945
    %v5639 = vpack.c.b16 %v4953, %v4946
    %v5640 = vpack.c.b16 %v4961, %v4954
    %v5641 = vpack.c.b16 %v4962, %v4955
    %v5642 = vpack.c.b16 %v4963, %v4956
    %v5643 = vpack.c.b16 %v4964, %v4957
    %v5644 = vpack.c.b16 %v4965, %v4958
    %v5645 = vpack.c.b16 %v4966, %v4959
    %v5646 = vpack.c.b16 %v4967, %v4960
    %v5647 = vpack.c.b16 %v4975, %v4968
    %v5648 = vpack.c.b16 %v4976, %v4969
    %v5649 = vpack.c.b16 %v4977, %v4970
    %v5650 = vpack.c.b16 %v4978, %v4971
    %v5651 = vpack.c.b16 %v4979, %v4972
    %v5652 = vpack.c.b16 %v4980, %v4973
    %v5653 = vpack.c.b16 %v4981, %v4974
    %v5654 = vpack.c.b16 %v4989, %v4982
    %v5655 = vpack.c.b16 %v4990, %v4983
    %v5656 = vpack.c.b16 %v4991, %v4984
    %v5657 = vpack.c.b16 %v4992, %v4985
    %v5658 = vpack.c.b16 %v4993, %v4986
    %v5659 = vpack.c.b16 %v4994, %v4987
    %v5660 = vpack.c.b16 %v4995, %v4988
    %v5661 = vpack.c.b16 %v5003, %v4996
    %v5662 = vpack.c.b16 %v5004, %v4997
    %v5663 = vpack.c.b16 %v5005, %v4998
    %v5664 = vpack.c.b16 %v5006, %v4999
    %v5665 = vpack.c.b16 %v5007, %v5000
    %v5666 = vpack.c.b16 %v5008, %v5001
    %v5667 = vpack.c.b16 %v5009, %v5002
    %v5668 = vpack.c.b16 %v5017, %v5010
    %v5669 = vpack.c.b16 %v5018, %v5011
    %v5670 = vpack.c.b16 %v5019, %v5012
    %v5671 = vpack.c.b16 %v5020, %v5013
    %v5672 = vpack.c.b16 %v5021, %v5014
    %v5673 = vpack.c.b16 %v5022, %v5015
    %v5674 = vpack.c.b16 %v5023, %v5016
    %v5675 = vpack.c.b16 %v5031, %v5024
    %v5676 = vpack.c.b16 %v5032, %v5025
    %v5677 = vpack.c.b16 %v5033, %v5026
    %v5678 = vpack.c.b16 %v5034, %v5027
    %v5679 = vpack.c.b16 %v5035, %v5028
    %v5680 = vpack.c.b16 %v5036, %v5029
    %v5681 = vpack.c.b16 %v5037, %v5030
    %v5682 = vpack.c.b16 %v5045, %v5038
    %v5683 = vpack.c.b16 %v5046, %v5039
    %v5684 = vpack.c.b16 %v5047, %v5040
    %v5685 = vpack.c.b16 %v5048, %v5041
    %v5686 = vpack.c.b16 %v5049, %v5042
    %v5687 = vpack.c.b16 %v5050, %v5043
    %v5688 = vpack.c.b16 %v5051, %v5044
    %v5689 = vpack.c.b16 %v5059, %v5052
    %v5690 = vpack.c.b16 %v5060, %v5053
    %v5691 = vpack.c.b16 %v5061, %v5054
    %v5692 = vpack.c.b16 %v5062, %v5055
    %v5693 = vpack.c.b16 %v5063, %v5056
    %v5694 = vpack.c.b16 %v5064, %v5057
    %v5695 = vpack.c.b16 %v5065, %v5058
    %v5696 = vpack.c.b16 %v5073, %v5066
    %v5697 = vpack.c.b16 %v5074, %v5067
    %v5698 = vpack.c.b16 %v5075, %v5068
    %v5699 = vpack.c.b16 %v5076, %v5069
    %v5700 = vpack.c.b16 %v5077, %v5070
    %v5701 = vpack.c.b16 %v5078, %v5071
    %v5702 = vpack.c.b16 %v5079, %v5072
    %v5703 = vpack.c.b16 %v5087, %v5080
    %v5704 = vpack.c.b16 %v5088, %v5081
    %v5705 = vpack.c.b16 %v5089, %v5082
    %v5706 = vpack.c.b16 %v5090, %v5083
    %v5707 = vpack.c.b16 %v5091, %v5084
    %v5708 = vpack.c.b16 %v5092, %v5085
    %v5709 = vpack.c.b16 %v5093, %v5086
    %v5710 = vpack.c.b16 %v5101, %v5094
    %v5711 = vpack.c.b16 %v5102, %v5095
    %v5712 = vpack.c.b16 %v5103, %v5096
    %v5713 = vpack.c.b16 %v5104, %v5097
    %v5714 = vpack.c.b16 %v5105, %v5098
    %v5715 = vpack.c.b16 %v5106, %v5099
    %v5716 = vpack.c.b16 %v5107, %v5100
    %v5717 = vpack.c.b16 %v5115, %v5108
    %v5718 = vpack.c.b16 %v5116, %v5109
    %v5719 = vpack.c.b16 %v5117, %v5110
    %v5720 = vpack.c.b16 %v5118, %v5111
    %v5721 = vpack.c.b16 %v5119, %v5112
    %v5722 = vpack.c.b16 %v5120, %v5113
    %v5723 = vpack.c.b16 %v5121, %v5114
    %v5724 = vpack.c.b16 %v5129, %v5122
    %v5725 = vpack.c.b16 %v5130, %v5123
    %v5726 = vpack.c.b16 %v5131, %v5124
    %v5727 = vpack.c.b16 %v5132, %v5125
    %v5728 = vpack.c.b16 %v5133, %v5126
    %v5729 = vpack.c.b16 %v5134, %v5127
    %v5730 = vpack.c.b16 %v5135, %v5128
    %v5731 = vpack.c.b16 %v5143, %v5136
    %v5732 = vpack.c.b16 %v5144, %v5137
    %v5733 = vpack.c.b16 %v5145, %v5138
    %v5734 = vpack.c.b16 %v5146, %v5139
    %v5735 = vpack.c.b16 %v5147, %v5140
    %v5736 = vpack.c.b16 %v5148, %v5141
    %v5737 = vpack.c.b16 %v5149, %v5142
    %v5738 = vpack.c.b16 %v5157, %v5150
    %v5739 = vpack.c.b16 %v5158, %v5151
    %v5740 = vpack.c.b16 %v5159, %v5152
    %v5741 = vpack.c.b16 %v5160, %v5153
    %v5742 = vpack.c.b16 %v5161, %v5154
    %v5743 = vpack.c.b16 %v5162, %v5155
    %v5744 = vpack.c.b16 %v5163, %v5156
    %v5745 = vpack.c.b16 %v5171, %v5164
    %v5746 = vpack.c.b16 %v5172, %v5165
    %v5747 = vpack.c.b16 %v5173, %v5166
    %v5748 = vpack.c.b16 %v5174, %v5167
    %v5749 = vpack.c.b16 %v5175, %v5168
    %v5750 = vpack.c.b16 %v5176, %v5169
    %v5751 = vpack.c.b16 %v5177, %v5170
    %v5752 = vpack.c.b16 %v5185, %v5178
    %v5753 = vpack.c.b16 %v5186, %v5179
    %v5754 = vpack.c.b16 %v5187, %v5180
    %v5755 = vpack.c.b16 %v5188, %v5181
    %v5756 = vpack.c.b16 %v5189, %v5182
    %v5757 = vpack.c.b16 %v5190, %v5183
    %v5758 = vpack.c.b16 %v5191, %v5184
    %v5759 = vpack.c.b16 %v5199, %v5192
    %v5760 = vpack.c.b16 %v5200, %v5193
    %v5761 = vpack.c.b16 %v5201, %v5194
    %v5762 = vpack.c.b16 %v5202, %v5195
    %v5763 = vpack.c.b16 %v5203, %v5196
    %v5764 = vpack.c.b16 %v5204, %v5197
    %v5765 = vpack.c.b16 %v5205, %v5198
    %v5766 = vpack.c.b16 %v5213, %v5206
    %v5767 = vpack.c.b16 %v5214, %v5207
    %v5768 = vpack.c.b16 %v5215, %v5208
    %v5769 = vpack.c.b16 %v5216, %v5209
    %v5770 = vpack.c.b16 %v5217, %v5210
    %v5771 = vpack.c.b16 %v5218, %v5211
    %v5772 = vpack.c.b16 %v5219, %v5212
    %v5773 = vpack.c.b16 %v5227, %v5220
    %v5774 = vpack.c.b16 %v5228, %v5221
    %v5775 = vpack.c.b16 %v5229, %v5222
    %v5776 = vpack.c.b16 %v5230, %v5223
    %v5777 = vpack.c.b16 %v5231, %v5224
    %v5778 = vpack.c.b16 %v5232, %v5225
    %v5779 = vpack.c.b16 %v5233, %v5226
    %v5780 = vpack.c.b16 %v5241, %v5234
    %v5781 = vpack.c.b16 %v5242, %v5235
    %v5782 = vpack.c.b16 %v5243, %v5236
    %v5783 = vpack.c.b16 %v5244, %v5237
    %v5784 = vpack.c.b16 %v5245, %v5238
    %v5785 = vpack.c.b16 %v5246, %v5239
    %v5786 = vpack.c.b16 %v5247, %v5240
    %v5787 = vpack.c.b16 %v5255, %v5248
    %v5788 = vpack.c.b16 %v5256, %v5249
    %v5789 = vpack.c.b16 %v5257, %v5250
    %v5790 = vpack.c.b16 %v5258, %v5251
    %v5791 = vpack.c.b16 %v5259, %v5252
    %v5792 = vpack.c.b16 %v5260, %v5253
    %v5793 = vpack.c.b16 %v5261, %v5254
    %v5794 = vpack.c.b16 %v5269, %v5262
    %v5795 = vpack.c.b16 %v5270, %v5263
    %v5796 = vpack.c.b16 %v5271, %v5264
    %v5797 = vpack.c.b16 %v5272, %v5265
    %v5798 = vpack.c.b16 %v5273, %v5266
    %v5799 = vpack.c.b16 %v5274, %v5267
    %v5800 = vpack.c.b16 %v5275, %v5268
    %v5801 = vpack.c.b16 %v5283, %v5276
    %v5802 = vpack.c.b16 %v5284, %v5277
    %v5803 = vpack.c.b16 %v5285, %v5278
    %v5804 = vpack.c.b16 %v5286, %v5279
    %v5805 = vpack.c.b16 %v5287, %v5280
    %v5806 = vpack.c.b16 %v5288, %v5281
    %v5807 = vpack.c.b16 %v5289, %v5282
    %v5808 = vpack.c.b16 %v5297, %v5290
    %v5809 = vpack.c.b16 %v5298, %v5291
    %v5810 = vpack.c.b16 %v5299, %v5292
    %v5811 = vpack.c.b16 %v5300, %v5293
    %v5812 = vpack.c.b16 %v5301, %v5294
    %v5813 = vpack.c.b16 %v5302, %v5295
    %v5814 = vpack.c.b16 %v5303, %v5296
    %v5815 = vpack.c.b16 %v5311, %v5304
    %v5816 = vpack.c.b16 %v5312, %v5305
    %v5817 = vpack.c.b16 %v5313, %v5306
    %v5818 = vpack.c.b16 %v5314, %v5307
    %v5819 = vpack.c.b16 %v5315, %v5308
    %v5820 = vpack.c.b16 %v5316, %v5309
    %v5821 = vpack.c.b16 %v5317, %v5310
    %v5822 = vpack.c.b16 %v5325, %v5318
    %v5823 = vpack.c.b16 %v5326, %v5319
    %v5824 = vpack.c.b16 %v5327, %v5320
    %v5825 = vpack.c.b16 %v5328, %v5321
    %v5826 = vpack.c.b16 %v5329, %v5322
    %v5827 = vpack.c.b16 %v5330, %v5323
    %v5828 = vpack.c.b16 %v5331, %v5324
    %v5829 = vpack.c.b16 %v5339, %v5332
    %v5830 = vpack.c.b16 %v5340, %v5333
    %v5831 = vpack.c.b16 %v5341, %v5334
    %v5832 = vpack.c.b16 %v5342, %v5335
    %v5833 = vpack.c.b16 %v5343, %v5336
    %v5834 = vpack.c.b16 %v5344, %v5337
    %v5835 = vpack.c.b16 %v5345, %v5338
    %v5836 = vpack.c.b16 %v5353, %v5346
    %v5837 = vpack.c.b16 %v5354, %v5347
    %v5838 = vpack.c.b16 %v5355, %v5348
    %v5839 = vpack.c.b16 %v5356, %v5349
    %v5840 = vpack.c.b16 %v5357, %v5350
    %v5841 = vpack.c.b16 %v5358, %v5351
    %v5842 = vpack.c.b16 %v5359, %v5352
    %v5843 = vpack.c.b16 %v5367, %v5360
    %v5844 = vpack.c.b16 %v5368, %v5361
    %v5845 = vpack.c.b16 %v5369, %v5362
    %v5846 = vpack.c.b16 %v5370, %v5363
    %v5847 = vpack.c.b16 %v5371, %v5364
    %v5848 = vpack.c.b16 %v5372, %v5365
    %v5849 = vpack.c.b16 %v5373, %v5366
    %v5850 = vpack.c.b16 %v5381, %v5374
    %v5851 = vpack.c.b16 %v5382, %v5375
    %v5852 = vpack.c.b16 %v5383, %v5376
    %v5853 = vpack.c.b16 %v5384, %v5377
    %v5854 = vpack.c.b16 %v5385, %v5378
    %v5855 = vpack.c.b16 %v5386, %v5379
    %v5856 = vpack.c.b16 %v5387, %v5380
    %v5857 = vpack.c.b16 %v5395, %v5388
    %v5858 = vpack.c.b16 %v5396, %v5389
    %v5859 = vpack.c.b16 %v5397, %v5390
    %v5860 = vpack.c.b16 %v5398, %v5391
    %v5861 = vpack.c.b16 %v5399, %v5392
    %v5862 = vpack.c.b16 %v5400, %v5393
    %v5863 = vpack.c.b16 %v5401, %v5394
    %v5864 = vpack.c.b16 %v5409, %v5402
    %v5865 = vpack.c.b16 %v5410, %v5403
    %v5866 = vpack.c.b16 %v5411, %v5404
    %v5867 = vpack.c.b16 %v5412, %v5405
    %v5868 = vpack.c.b16 %v5413, %v5406
    %v5869 = vpack.c.b16 %v5414, %v5407
    %v5870 = vpack.c.b16 %v5415, %v5408
    %v5871 = vpack.c.b16 %v5423, %v5416
    %v5872 = vpack.c.b16 %v5424, %v5417
    %v5873 = vpack.c.b16 %v5425, %v5418
    %v5874 = vpack.c.b16 %v5426, %v5419
    %v5875 = vpack.c.b16 %v5427, %v5420
    %v5876 = vpack.c.b16 %v5428, %v5421
    %v5877 = vpack.c.b16 %v5429, %v5422
    %v5878 = vpack.c.b16 %v5437, %v5430
    %v5879 = vpack.c.b16 %v5438, %v5431
    %v5880 = vpack.c.b16 %v5439, %v5432
    %v5881 = vpack.c.b16 %v5440, %v5433
    %v5882 = vpack.c.b16 %v5441, %v5434
    %v5883 = vpack.c.b16 %v5442, %v5435
    %v5884 = vpack.c.b16 %v5443, %v5436
    %v5885 = vpack.c.b16 %v5451, %v5444
    %v5886 = vpack.c.b16 %v5452, %v5445
    %v5887 = vpack.c.b16 %v5453, %v5446
    %v5888 = vpack.c.b16 %v5454, %v5447
    %v5889 = vpack.c.b16 %v5455, %v5448
    %v5890 = vpack.c.b16 %v5456, %v5449
    %v5891 = vpack.c.b16 %v5457, %v5450
    %v5892 = vpack.c.b16 %v5465, %v5458
    %v5893 = vpack.c.b16 %v5466, %v5459
    %v5894 = vpack.c.b16 %v5467, %v5460
    %v5895 = vpack.c.b16 %v5468, %v5461
    %v5896 = vpack.c.b16 %v5469, %v5462
    %v5897 = vpack.c.b16 %v5470, %v5463
    %v5898 = vpack.c.b16 %v5471, %v5464
    %v5899 = vpack.c.b16 %v5479, %v5472
    %v5900 = vpack.c.b16 %v5480, %v5473
    %v5901 = vpack.c.b16 %v5481, %v5474
    %v5902 = vpack.c.b16 %v5482, %v5475
    %v5903 = vpack.c.b16 %v5483, %v5476
    %v5904 = vpack.c.b16 %v5484, %v5477
    %v5905 = vpack.c.b16 %v5485, %v5478
    %v5906 = vpack.c.b16 %v5493, %v5486
    %v5907 = vpack.c.b16 %v5494, %v5487
    %v5908 = vpack.c.b16 %v5495, %v5488
    %v5909 = vpack.c.b16 %v5496, %v5489
    %v5910 = vpack.c.b16 %v5497, %v5490
    %v5911 = vpack.c.b16 %v5498, %v5491
    %v5912 = vpack.c.b16 %v5499, %v5492
    %v5913 = vpack.c.b16 %v5507, %v5500
    %v5914 = vpack.c.b16 %v5508, %v5501
    %v5915 = vpack.c.b16 %v5509, %v5502
    %v5916 = vpack.c.b16 %v5510, %v5503
    %v5917 = vpack.c.b16 %v5511, %v5504
    %v5918 = vpack.c.b16 %v5512, %v5505
    %v5919 = vpack.c.b16 %v5513, %v5506
    %v5920 = vpack.c.b16 %v5521, %v5514
    %v5921 = vpack.c.b16 %v5522, %v5515
    %v5922 = vpack.c.b16 %v5523, %v5516
    %v5923 = vpack.c.b16 %v5524, %v5517
    %v5924 = vpack.c.b16 %v5525, %v5518
    %v5925 = vpack.c.b16 %v5526, %v5519
    %v5926 = vpack.c.b16 %v5527, %v5520
    %v5927 = vpack.c.b16 %v5535, %v5528
    %v5928 = vpack.c.b16 %v5536, %v5529
    %v5929 = vpack.c.b16 %v5537, %v5530
    %v5930 = vpack.c.b16 %v5538, %v5531
    %v5931 = vpack.c.b16 %v5539, %v5532
    %v5932 = vpack.c.b16 %v5540, %v5533
    %v5933 = vpack.c.b16 %v5541, %v5534
    %6326 = vmatprep.subr.bf16.mxu0 %v5543
    %6327 = vmatpush1.bf16.msra.mxu0 %v5542
    %6328 = vmatprep.subr.bf16.mxu0 %v5550
    %6329 = vmatpush1.bf16.msra.mxu0 %v5549
    %6330 = vmatprep.subr.bf16.mxu0 %v5557
    %6331 = vmatpush1.bf16.msra.mxu0 %v5556
    %6332 = vmatprep.subr.bf16.mxu0 %v5564
    %6333 = vmatpush1.bf16.msra.mxu0 %v5563
    %6334 = vmatprep.subr.bf16.mxu0 %v5571
    %6335 = vmatpush1.bf16.msra.mxu0 %v5570
    %6336 = vmatprep.subr.bf16.mxu0 %v5578
    %6337 = vmatpush1.bf16.msra.mxu0 %v5577
    %6338 = vmatprep.subr.bf16.mxu0 %v5585
    %6339 = vmatpush1.bf16.msra.mxu0 %v5584
    %6340 = vmatprep.subr.bf16.mxu0 %v5592
    %6341 = vmatpush1.bf16.msra.mxu0 %v5591
    %6342 = vmatprep.subr.bf16.mxu0 %v5599
    %6343 = vmatpush1.bf16.msra.mxu0 %v5598
    %6344 = vmatprep.subr.bf16.mxu0 %v5606
    %6345 = vmatpush1.bf16.msra.mxu0 %v5605
    %6346 = vmatprep.subr.bf16.mxu0 %v5613
    %6347 = vmatpush1.bf16.msra.mxu0 %v5612
    %6348 = vmatprep.subr.bf16.mxu0 %v5620
    %6349 = vmatpush1.bf16.msra.mxu0 %v5619
    %6350 = vmatprep.subr.bf16.mxu0 %v5627
    %6351 = vmatpush1.bf16.msra.mxu0 %v5626
    %6352 = vmatprep.subr.bf16.mxu0 %v5634
    %6353 = vmatpush1.bf16.msra.mxu0 %v5633
    %6354 = vmatprep.subr.bf16.mxu0 %v5641
    %6355 = vmatpush1.bf16.msra.mxu0 %v5640
    %6356 = vmatprep.subr.bf16.mxu0 %v5648
    %6357 = vmatpush1.bf16.msra.mxu0 %v5647
    %6358 = vmatprep.mubr.bf16.mxu0 %v3812
    %6359 = vmatmul.mubr.bf16.gmra.mrb[0].mxu0 %v3811
    %v6360 = vpop.f32.mrb[0].mxu0
    %v6361 = vadd.f32 %v4278, %v6360
    %v6362 = vpop.f32.mrb[0].mxu0
    %v6363 = vadd.f32 %v4282, %v6362
    %v6364 = vpop.f32.mrb[0].mxu0
    %v6365 = vadd.f32 %v4278, %v6364
    %v6366 = vpop.f32.mrb[0].mxu0
    %v6367 = vadd.f32 %v4282, %v6366
    %6368 = vmatprep.mubr.bf16.mxu0 %v3819
    %6369 = vmatmul.mubr.bf16.gmra.mrb[0].mxu0 %v3818
    %v6370 = vpop.f32.mrb[0].mxu0
    %v6371 = vadd.f32 %v4278, %v6370
    %v6372 = vpop.f32.mrb[0].mxu0
    %v6373 = vadd.f32 %v4282, %v6372
    %v6374 = vpop.f32.mrb[0].mxu0
    %v6375 = vpop.f32.mrb[0].mxu0
    %6376 = vdwg.mxu0
    %6377 = vmatprep.subr.bf16.mxu0 %v5655
    %6378 = vmatpush1.bf16.msra.mxu0 %v5654
    %6379 = vmatprep.subr.bf16.mxu0 %v5662
    %6380 = vmatpush1.bf16.msra.mxu0 %v5661
    %6381 = vmatprep.subr.bf16.mxu0 %v5669
    %6382 = vmatpush1.bf16.msra.mxu0 %v5668
    %6383 = vmatprep.subr.bf16.mxu0 %v5676
    %6384 = vmatpush1.bf16.msra.mxu0 %v5675
    %6385 = vmatprep.subr.bf16.mxu0 %v5683
    %6386 = vmatpush1.bf16.msra.mxu0 %v5682
    %6387 = vmatprep.subr.bf16.mxu0 %v5690
    %6388 = vmatpush1.bf16.msra.mxu0 %v5689
    %6389 = vmatprep.subr.bf16.mxu0 %v5697
    %6390 = vmatpush1.bf16.msra.mxu0 %v5696
    %6391 = vmatprep.subr.bf16.mxu0 %v5704
    %6392 = vmatpush1.bf16.msra.mxu0 %v5703
    %6393 = vmatprep.subr.bf16.mxu0 %v5711
    %6394 = vmatpush1.bf16.msra.mxu0 %v5710
    %6395 = vmatprep.subr.bf16.mxu0 %v5718
    %6396 = vmatpush1.bf16.msra.mxu0 %v5717
    %6397 = vmatprep.subr.bf16.mxu0 %v5725
    %6398 = vmatpush1.bf16.msra.mxu0 %v5724
    %6399 = vmatprep.subr.bf16.mxu0 %v5732
    %6400 = vmatpush1.bf16.msra.mxu0 %v5731
    %6401 = vmatprep.subr.bf16.mxu0 %v5739
    %6402 = vmatpush1.bf16.msra.mxu0 %v5738
    %6403 = vmatprep.subr.bf16.mxu0 %v5746
    %6404 = vmatpush1.bf16.msra.mxu0 %v5745
    %6405 = vmatprep.subr.bf16.mxu0 %v5753
    %6406 = vmatpush1.bf16.msra.mxu0 %v5752
    %6407 = vmatprep.subr.bf16.mxu0 %v5760
    %6408 = vmatpush1.bf16.msra.mxu0 %v5759
    %6409 = vmatprep.mubr.bf16.mxu0 %v3814
    %6410 = vmatmul.mubr.bf16.gmra.mrb[0].mxu0 %v3813
    %v6411 = vpop.f32.mrb[0].mxu0
    %v6412 = vadd.f32 %v6361, %v6411
    %v6413 = vpop.f32.mrb[0].mxu0
    %v6414 = vadd.f32 %v6363, %v6413
    %v6415 = vpop.f32.mrb[0].mxu0
    %v6416 = vadd.f32 %v6365, %v6415
    %v6417 = vpop.f32.mrb[0].mxu0
    %v6418 = vadd.f32 %v6367, %v6417
    %6419 = vmatprep.mubr.bf16.mxu0 %v3821
    %6420 = vmatmul.mubr.bf16.gmra.mrb[0].mxu0 %v3820
    %v6421 = vpop.f32.mrb[0].mxu0
    %v6422 = vadd.f32 %v6371, %v6421
    %v6423 = vpop.f32.mrb[0].mxu0
    %v6424 = vadd.f32 %v6373, %v6423
    %v6425 = vpop.f32.mrb[0].mxu0
    %v6426 = vpop.f32.mrb[0].mxu0
    %6427 = vdwg.mxu0
    %6428 = vmatprep.subr.bf16.mxu0 %v5767
    %6429 = vmatpush1.bf16.msra.mxu0 %v5766
    %6430 = vmatprep.subr.bf16.mxu0 %v5774
    %6431 = vmatpush1.bf16.msra.mxu0 %v5773
    %6432 = vmatprep.subr.bf16.mxu0 %v5781
    %6433 = vmatpush1.bf16.msra.mxu0 %v5780
    %6434 = vmatprep.subr.bf16.mxu0 %v5788
    %6435 = vmatpush1.bf16.msra.mxu0 %v5787
    %6436 = vmatprep.subr.bf16.mxu0 %v5795
    %6437 = vmatpush1.bf16.msra.mxu0 %v5794
    %6438 = vmatprep.subr.bf16.mxu0 %v5802
    %6439 = vmatpush1.bf16.msra.mxu0 %v5801
    %6440 = vmatprep.subr.bf16.mxu0 %v5809
    %6441 = vmatpush1.bf16.msra.mxu0 %v5808
    %6442 = vmatprep.subr.bf16.mxu0 %v5816
    %6443 = vmatpush1.bf16.msra.mxu0 %v5815
    %6444 = vmatprep.subr.bf16.mxu0 %v5823
    %6445 = vmatpush1.bf16.msra.mxu0 %v5822
    %6446 = vmatprep.subr.bf16.mxu0 %v5830
    %6447 = vmatpush1.bf16.msra.mxu0 %v5829
    %6448 = vmatprep.subr.bf16.mxu0 %v5837
    %6449 = vmatpush1.bf16.msra.mxu0 %v5836
    %6450 = vmatprep.subr.bf16.mxu0 %v5844
    %6451 = vmatpush1.bf16.msra.mxu0 %v5843
    %6452 = vmatprep.subr.bf16.mxu0 %v5851
    %6453 = vmatpush1.bf16.msra.mxu0 %v5850
    %6454 = vmatprep.subr.bf16.mxu0 %v5858
    %6455 = vmatpush1.bf16.msra.mxu0 %v5857
    %6456 = vmatprep.subr.bf16.mxu0 %v5865
    %6457 = vmatpush1.bf16.msra.mxu0 %v5864
    %6458 = vmatprep.subr.bf16.mxu0 %v5872
    %6459 = vmatpush1.bf16.msra.mxu0 %v5871
    %6460 = vmatprep.mubr.bf16.mxu0 %v3816
    %6461 = vmatmul.mubr.bf16.gmra.mrb[0].mxu0 %v3815
    %v6462 = vpop.f32.mrb[0].mxu0
    %v6463 = vadd.f32 %v6412, %v6462
    %v6464 = vpop.f32.mrb[0].mxu0
    %v6465 = vadd.f32 %v6414, %v6464
    %v6466 = vpop.f32.mrb[0].mxu0
    %v6467 = vadd.f32 %v6416, %v6466
    %v6468 = vpop.f32.mrb[0].mxu0
    %v6469 = vadd.f32 %v6418, %v6468
    %6470 = vmatprep.mubr.bf16.mxu0 %v3823
    %6471 = vmatmul.mubr.bf16.gmra.mrb[0].mxu0 %v3822
    %v6472 = vpop.f32.mrb[0].mxu0
    %v6473 = vadd.f32 %v6422, %v6472
    %v6474 = vpop.f32.mrb[0].mxu0
    %v6475 = vadd.f32 %v6424, %v6474
    %v6476 = vpop.f32.mrb[0].mxu0
    %v6477 = vpop.f32.mrb[0].mxu0
    %6478 = vdwg.mxu0
    %6479 = vmatprep.subr.bf16.mxu0 %v5879
    %6480 = vmatpush1.bf16.msra.mxu0 %v5878
    %6481 = vmatprep.subr.bf16.mxu0 %v5886
    %6482 = vmatpush1.bf16.msra.mxu0 %v5885
    %6483 = vmatprep.subr.bf16.mxu0 %v5893
    %6484 = vmatpush1.bf16.msra.mxu0 %v5892
    %6485 = vmatprep.subr.bf16.mxu0 %v5900
    %6486 = vmatpush1.bf16.msra.mxu0 %v5899
    %6487 = vmatprep.subr.bf16.mxu0 %v5907
    %6488 = vmatpush1.bf16.msra.mxu0 %v5906
    %6489 = vmatprep.subr.bf16.mxu0 %v5914
    %6490 = vmatpush1.bf16.msra.mxu0 %v5913
    %6491 = vmatprep.subr.bf16.mxu0 %v5921
    %6492 = vmatpush1.bf16.msra.mxu0 %v5920
    %6493 = vmatprep.subr.bf16.mxu0 %v5928
    %6494 = vmatpush1.bf16.msra.mxu0 %v5927
    %6495 = vmatprep.subr.bf16.mxu0 0
    %6496 = vmatpush1.bf16.msra.mxu0 0
    %6497 = vmatprep.subr.bf16.mxu0 0
    %6498 = vmatpush1.bf16.msra.mxu0 0
    %6499 = vmatprep.subr.bf16.mxu0 0
    %6500 = vmatpush1.bf16.msra.mxu0 0
    %6501 = vmatprep.subr.bf16.mxu0 0
    %6502 = vmatpush1.bf16.msra.mxu0 0
    %6503 = vmatprep.subr.bf16.mxu0 0
    %6504 = vmatpush1.bf16.msra.mxu0 0
    %6505 = vmatprep.subr.bf16.mxu0 0
    %6506 = vmatpush1.bf16.msra.mxu0 0
    %6507 = vmatprep.subr.bf16.mxu0 0
    %6508 = vmatpush1.bf16.msra.mxu0 0
    %6509 = vmatprep.subr.bf16.mxu0 0
    %6510 = vmatpush1.bf16.msra.mxu0 0
    %6511 = vmatprep.mubr.bf16.mxu0 0
    %6512 = vmatmul.mubr.bf16.gmra.mrb[0].mxu0 %v3817
    %v6513 = vpop.f32.mrb[0].mxu0
    %v6514 = vadd.f32 %v6463, %v6513
    %v6515 = vpop.f32.mrb[0].mxu0
    %v6516 = vadd.f32 %v6465, %v6515
    %v6517 = vpop.f32.mrb[0].mxu0
    %v6518 = vadd.f32 %v6467, %v6517
    %v6519 = vpop.f32.mrb[0].mxu0
    %v6520 = vadd.f32 %v6469, %v6519
    %6521 = vmatprep.mubr.bf16.mxu0 0
    %6522 = vmatmul.mubr.bf16.gmra.mrb[0].mxu0 %v3824
    %v6523 = vpop.f32.mrb[0].mxu0
    %v6524 = vadd.f32 %v6473, %v6523
    %v6525 = vpop.f32.mrb[0].mxu0
    %v6526 = vadd.f32 %v6475, %v6525
    %v6527 = vpop.f32.mrb[0].mxu0
    %v6528 = vpop.f32.mrb[0].mxu0
    %6529 = vdwg.mxu0
    %6530 = vmatprep.subr.bf16.mxu0 %v5545
    %6531 = vmatpush1.bf16.msra.mxu0 %v5544
    %6532 = vmatprep.subr.bf16.mxu0 %v5552
    %6533 = vmatpush1.bf16.msra.mxu0 %v5551
    %6534 = vmatprep.subr.bf16.mxu0 %v5559
    %6535 = vmatpush1.bf16.msra.mxu0 %v5558
    %6536 = vmatprep.subr.bf16.mxu0 %v5566
    %6537 = vmatpush1.bf16.msra.mxu0 %v5565
    %6538 = vmatprep.subr.bf16.mxu0 %v5573
    %6539 = vmatpush1.bf16.msra.mxu0 %v5572
    %6540 = vmatprep.subr.bf16.mxu0 %v5580
    %6541 = vmatpush1.bf16.msra.mxu0 %v5579
    %6542 = vmatprep.subr.bf16.mxu0 %v5587
    %6543 = vmatpush1.bf16.msra.mxu0 %v5586
    %6544 = vmatprep.subr.bf16.mxu0 %v5594
    %6545 = vmatpush1.bf16.msra.mxu0 %v5593
    %6546 = vmatprep.subr.bf16.mxu0 %v5601
    %6547 = vmatpush1.bf16.msra.mxu0 %v5600
    %6548 = vmatprep.subr.bf16.mxu0 %v5608
    %6549 = vmatpush1.bf16.msra.mxu0 %v5607
    %6550 = vmatprep.subr.bf16.mxu0 %v5615
    %6551 = vmatpush1.bf16.msra.mxu0 %v5614
    %6552 = vmatprep.subr.bf16.mxu0 %v5622
    %6553 = vmatpush1.bf16.msra.mxu0 %v5621
    %6554 = vmatprep.subr.bf16.mxu0 %v5629
    %6555 = vmatpush1.bf16.msra.mxu0 %v5628
    %6556 = vmatprep.subr.bf16.mxu0 %v5636
    %6557 = vmatpush1.bf16.msra.mxu0 %v5635
    %6558 = vmatprep.subr.bf16.mxu0 %v5643
    %6559 = vmatpush1.bf16.msra.mxu0 %v5642
    %6560 = vmatprep.subr.bf16.mxu0 %v5650
    %6561 = vmatpush1.bf16.msra.mxu0 %v5649
    %6562 = vmatprep.mubr.bf16.mxu0 %v3812
    %6563 = vmatmul.mubr.bf16.gmra.mrb[0].mxu0 %v3811
    %v6564 = vpop.f32.mrb[0].mxu0
    %v6565 = vadd.f32 %v4286, %v6564
    %v6566 = vpop.f32.mrb[0].mxu0
    %v6567 = vadd.f32 %v4290, %v6566
    %v6568 = vpop.f32.mrb[0].mxu0
    %v6569 = vadd.f32 %v4286, %v6568
    %v6570 = vpop.f32.mrb[0].mxu0
    %v6571 = vadd.f32 %v4290, %v6570
    %6572 = vmatprep.mubr.bf16.mxu0 %v3819
    %6573 = vmatmul.mubr.bf16.gmra.mrb[0].mxu0 %v3818
    %v6574 = vpop.f32.mrb[0].mxu0
    %v6575 = vadd.f32 %v4286, %v6574
    %v6576 = vpop.f32.mrb[0].mxu0
    %v6577 = vadd.f32 %v4290, %v6576
    %v6578 = vpop.f32.mrb[0].mxu0
    %v6579 = vpop.f32.mrb[0].mxu0
    %6580 = vdwg.mxu0
    %6581 = vmatprep.subr.bf16.mxu0 %v5657
    %6582 = vmatpush1.bf16.msra.mxu0 %v5656
    %6583 = vmatprep.subr.bf16.mxu0 %v5664
    %6584 = vmatpush1.bf16.msra.mxu0 %v5663
    %6585 = vmatprep.subr.bf16.mxu0 %v5671
    %6586 = vmatpush1.bf16.msra.mxu0 %v5670
    %6587 = vmatprep.subr.bf16.mxu0 %v5678
    %6588 = vmatpush1.bf16.msra.mxu0 %v5677
    %6589 = vmatprep.subr.bf16.mxu0 %v5685
    %6590 = vmatpush1.bf16.msra.mxu0 %v5684
    %6591 = vmatprep.subr.bf16.mxu0 %v5692
    %6592 = vmatpush1.bf16.msra.mxu0 %v5691
    %6593 = vmatprep.subr.bf16.mxu0 %v5699
    %6594 = vmatpush1.bf16.msra.mxu0 %v5698
    %6595 = vmatprep.subr.bf16.mxu0 %v5706
    %6596 = vmatpush1.bf16.msra.mxu0 %v5705
    %6597 = vmatprep.subr.bf16.mxu0 %v5713
    %6598 = vmatpush1.bf16.msra.mxu0 %v5712
    %6599 = vmatprep.subr.bf16.mxu0 %v5720
    %6600 = vmatpush1.bf16.msra.mxu0 %v5719
    %6601 = vmatprep.subr.bf16.mxu0 %v5727
    %6602 = vmatpush1.bf16.msra.mxu0 %v5726
    %6603 = vmatprep.subr.bf16.mxu0 %v5734
    %6604 = vmatpush1.bf16.msra.mxu0 %v5733
    %6605 = vmatprep.subr.bf16.mxu0 %v5741
    %6606 = vmatpush1.bf16.msra.mxu0 %v5740
    %6607 = vmatprep.subr.bf16.mxu0 %v5748
    %6608 = vmatpush1.bf16.msra.mxu0 %v5747
    %6609 = vmatprep.subr.bf16.mxu0 %v5755
    %6610 = vmatpush1.bf16.msra.mxu0 %v5754
    %6611 = vmatprep.subr.bf16.mxu0 %v5762
    %6612 = vmatpush1.bf16.msra.mxu0 %v5761
    %6613 = vmatprep.mubr.bf16.mxu0 %v3814
    %6614 = vmatmul.mubr.bf16.gmra.mrb[0].mxu0 %v3813
    %v6615 = vpop.f32.mrb[0].mxu0
    %v6616 = vadd.f32 %v6565, %v6615
    %v6617 = vpop.f32.mrb[0].mxu0
    %v6618 = vadd.f32 %v6567, %v6617
    %v6619 = vpop.f32.mrb[0].mxu0
    %v6620 = vadd.f32 %v6569, %v6619
    %v6621 = vpop.f32.mrb[0].mxu0
    %v6622 = vadd.f32 %v6571, %v6621
    %6623 = vmatprep.mubr.bf16.mxu0 %v3821
    %6624 = vmatmul.mubr.bf16.gmra.mrb[0].mxu0 %v3820
    %v6625 = vpop.f32.mrb[0].mxu0
    %v6626 = vadd.f32 %v6575, %v6625
    %v6627 = vpop.f32.mrb[0].mxu0
    %v6628 = vadd.f32 %v6577, %v6627
    %v6629 = vpop.f32.mrb[0].mxu0
    %v6630 = vpop.f32.mrb[0].mxu0
    %6631 = vdwg.mxu0
    %6632 = vmatprep.subr.bf16.mxu0 %v5769
    %6633 = vmatpush1.bf16.msra.mxu0 %v5768
    %6634 = vmatprep.subr.bf16.mxu0 %v5776
    %6635 = vmatpush1.bf16.msra.mxu0 %v5775
    %6636 = vmatprep.subr.bf16.mxu0 %v5783
    %6637 = vmatpush1.bf16.msra.mxu0 %v5782
    %6638 = vmatprep.subr.bf16.mxu0 %v5790
    %6639 = vmatpush1.bf16.msra.mxu0 %v5789
    %6640 = vmatprep.subr.bf16.mxu0 %v5797
    %6641 = vmatpush1.bf16.msra.mxu0 %v5796
    %6642 = vmatprep.subr.bf16.mxu0 %v5804
    %6643 = vmatpush1.bf16.msra.mxu0 %v5803
    %6644 = vmatprep.subr.bf16.mxu0 %v5811
    %6645 = vmatpush1.bf16.msra.mxu0 %v5810
    %6646 = vmatprep.subr.bf16.mxu0 %v5818
    %6647 = vmatpush1.bf16.msra.mxu0 %v5817
    %6648 = vmatprep.subr.bf16.mxu0 %v5825
    %6649 = vmatpush1.bf16.msra.mxu0 %v5824
    %6650 = vmatprep.subr.bf16.mxu0 %v5832
    %6651 = vmatpush1.bf16.msra.mxu0 %v5831
    %6652 = vmatprep.subr.bf16.mxu0 %v5839
    %6653 = vmatpush1.bf16.msra.mxu0 %v5838
    %6654 = vmatprep.subr.bf16.mxu0 %v5846
    %6655 = vmatpush1.bf16.msra.mxu0 %v5845
    %6656 = vmatprep.subr.bf16.mxu0 %v5853
    %6657 = vmatpush1.bf16.msra.mxu0 %v5852
    %6658 = vmatprep.subr.bf16.mxu0 %v5860
    %6659 = vmatpush1.bf16.msra.mxu0 %v5859
    %6660 = vmatprep.subr.bf16.mxu0 %v5867
    %6661 = vmatpush1.bf16.msra.mxu0 %v5866
    %6662 = vmatprep.subr.bf16.mxu0 %v5874
    %6663 = vmatpush1.bf16.msra.mxu0 %v5873
    %6664 = vmatprep.mubr.bf16.mxu0 %v3816
    %6665 = vmatmul.mubr.bf16.gmra.mrb[0].mxu0 %v3815
    %v6666 = vpop.f32.mrb[0].mxu0
    %v6667 = vadd.f32 %v6616, %v6666
    %v6668 = vpop.f32.mrb[0].mxu0
    %v6669 = vadd.f32 %v6618, %v6668
    %v6670 = vpop.f32.mrb[0].mxu0
    %v6671 = vadd.f32 %v6620, %v6670
    %v6672 = vpop.f32.mrb[0].mxu0
    %v6673 = vadd.f32 %v6622, %v6672
    %6674 = vmatprep.mubr.bf16.mxu0 %v3823
    %6675 = vmatmul.mubr.bf16.gmra.mrb[0].mxu0 %v3822
    %v6676 = vpop.f32.mrb[0].mxu0
    %v6677 = vadd.f32 %v6626, %v6676
    %v6678 = vpop.f32.mrb[0].mxu0
    %v6679 = vadd.f32 %v6628, %v6678
    %v6680 = vpop.f32.mrb[0].mxu0
    %v6681 = vpop.f32.mrb[0].mxu0
    %6682 = vdwg.mxu0
    %6683 = vmatprep.subr.bf16.mxu0 %v5881
    %6684 = vmatpush1.bf16.msra.mxu0 %v5880
    %6685 = vmatprep.subr.bf16.mxu0 %v5888
    %6686 = vmatpush1.bf16.msra.mxu0 %v5887
    %6687 = vmatprep.subr.bf16.mxu0 %v5895
    %6688 = vmatpush1.bf16.msra.mxu0 %v5894
    %6689 = vmatprep.subr.bf16.mxu0 %v5902
    %6690 = vmatpush1.bf16.msra.mxu0 %v5901
    %6691 = vmatprep.subr.bf16.mxu0 %v5909
    %6692 = vmatpush1.bf16.msra.mxu0 %v5908
    %6693 = vmatprep.subr.bf16.mxu0 %v5916
    %6694 = vmatpush1.bf16.msra.mxu0 %v5915
    %6695 = vmatprep.subr.bf16.mxu0 %v5923
    %6696 = vmatpush1.bf16.msra.mxu0 %v5922
    %6697 = vmatprep.subr.bf16.mxu0 %v5930
    %6698 = vmatpush1.bf16.msra.mxu0 %v5929
    %6699 = vmatprep.subr.bf16.mxu0 0
    %6700 = vmatpush1.bf16.msra.mxu0 0
    %6701 = vmatprep.subr.bf16.mxu0 0
    %6702 = vmatpush1.bf16.msra.mxu0 0
    %6703 = vmatprep.subr.bf16.mxu0 0
    %6704 = vmatpush1.bf16.msra.mxu0 0
    %6705 = vmatprep.subr.bf16.mxu0 0
    %6706 = vmatpush1.bf16.msra.mxu0 0
    %6707 = vmatprep.subr.bf16.mxu0 0
    %6708 = vmatpush1.bf16.msra.mxu0 0
    %6709 = vmatprep.subr.bf16.mxu0 0
    %6710 = vmatpush1.bf16.msra.mxu0 0
    %6711 = vmatprep.subr.bf16.mxu0 0
    %6712 = vmatpush1.bf16.msra.mxu0 0
    %6713 = vmatprep.subr.bf16.mxu0 0
    %6714 = vmatpush1.bf16.msra.mxu0 0
    %6715 = vmatprep.mubr.bf16.mxu0 0
    %6716 = vmatmul.mubr.bf16.gmra.mrb[0].mxu0 %v3817
    %v6717 = vpop.f32.mrb[0].mxu0
    %v6718 = vadd.f32 %v6667, %v6717
    %v6719 = vpop.f32.mrb[0].mxu0
    %v6720 = vadd.f32 %v6669, %v6719
    %v6721 = vpop.f32.mrb[0].mxu0
    %v6722 = vadd.f32 %v6671, %v6721
    %v6723 = vpop.f32.mrb[0].mxu0
    %v6724 = vadd.f32 %v6673, %v6723
    %6725 = vmatprep.mubr.bf16.mxu0 0
    %6726 = vmatmul.mubr.bf16.gmra.mrb[0].mxu0 %v3824
    %v6727 = vpop.f32.mrb[0].mxu0
    %v6728 = vadd.f32 %v6677, %v6727
    %v6729 = vpop.f32.mrb[0].mxu0
    %v6730 = vadd.f32 %v6679, %v6729
    %v6731 = vpop.f32.mrb[0].mxu0
    %v6732 = vpop.f32.mrb[0].mxu0
    %6733 = vdwg.mxu0
    %6734 = vmatprep.subr.bf16.mxu0 %v5547
    %6735 = vmatpush1.bf16.msra.mxu0 %v5546
    %6736 = vmatprep.subr.bf16.mxu0 %v5554
    %6737 = vmatpush1.bf16.msra.mxu0 %v5553
    %6738 = vmatprep.subr.bf16.mxu0 %v5561
    %6739 = vmatpush1.bf16.msra.mxu0 %v5560
    %6740 = vmatprep.subr.bf16.mxu0 %v5568
    %6741 = vmatpush1.bf16.msra.mxu0 %v5567
    %6742 = vmatprep.subr.bf16.mxu0 %v5575
    %6743 = vmatpush1.bf16.msra.mxu0 %v5574
    %6744 = vmatprep.subr.bf16.mxu0 %v5582
    %6745 = vmatpush1.bf16.msra.mxu0 %v5581
    %6746 = vmatprep.subr.bf16.mxu0 %v5589
    %6747 = vmatpush1.bf16.msra.mxu0 %v5588
    %6748 = vmatprep.subr.bf16.mxu0 %v5596
    %6749 = vmatpush1.bf16.msra.mxu0 %v5595
    %6750 = vmatprep.subr.bf16.mxu0 %v5603
    %6751 = vmatpush1.bf16.msra.mxu0 %v5602
    %6752 = vmatprep.subr.bf16.mxu0 %v5610
    %6753 = vmatpush1.bf16.msra.mxu0 %v5609
    %6754 = vmatprep.subr.bf16.mxu0 %v5617
    %6755 = vmatpush1.bf16.msra.mxu0 %v5616
    %6756 = vmatprep.subr.bf16.mxu0 %v5624
    %6757 = vmatpush1.bf16.msra.mxu0 %v5623
    %6758 = vmatprep.subr.bf16.mxu0 %v5631
    %6759 = vmatpush1.bf16.msra.mxu0 %v5630
    %6760 = vmatprep.subr.bf16.mxu0 %v5638
    %6761 = vmatpush1.bf16.msra.mxu0 %v5637
    %6762 = vmatprep.subr.bf16.mxu0 %v5645
    %6763 = vmatpush1.bf16.msra.mxu0 %v5644
    %6764 = vmatprep.subr.bf16.mxu0 %v5652
    %6765 = vmatpush1.bf16.msra.mxu0 %v5651
    %6766 = vmatprep.mubr.bf16.mxu0 %v3812
    %6767 = vmatmul.mubr.bf16.gmra.mrb[0].mxu0 %v3811
    %v6768 = vpop.f32.mrb[0].mxu0
    %v6769 = vadd.f32 %v4294, %v6768
    %v6770 = vpop.f32.mrb[0].mxu0
    %v6771 = vadd.f32 %v4298, %v6770
    %v6772 = vpop.f32.mrb[0].mxu0
    %v6773 = vadd.f32 %v4294, %v6772
    %v6774 = vpop.f32.mrb[0].mxu0
    %v6775 = vadd.f32 %v4298, %v6774
    %6776 = vmatprep.mubr.bf16.mxu0 %v3819
    %6777 = vmatmul.mubr.bf16.gmra.mrb[0].mxu0 %v3818
    %v6778 = vpop.f32.mrb[0].mxu0
    %v6779 = vadd.f32 %v4294, %v6778
    %v6780 = vpop.f32.mrb[0].mxu0
    %v6781 = vadd.f32 %v4298, %v6780
    %v6782 = vpop.f32.mrb[0].mxu0
    %v6783 = vpop.f32.mrb[0].mxu0
    %6784 = vdwg.mxu0
    %6785 = vmatprep.subr.bf16.mxu0 %v5659
    %6786 = vmatpush1.bf16.msra.mxu0 %v5658
    %6787 = vmatprep.subr.bf16.mxu0 %v5666
    %6788 = vmatpush1.bf16.msra.mxu0 %v5665
    %6789 = vmatprep.subr.bf16.mxu0 %v5673
    %6790 = vmatpush1.bf16.msra.mxu0 %v5672
    %6791 = vmatprep.subr.bf16.mxu0 %v5680
    %6792 = vmatpush1.bf16.msra.mxu0 %v5679
    %6793 = vmatprep.subr.bf16.mxu0 %v5687
    %6794 = vmatpush1.bf16.msra.mxu0 %v5686
    %6795 = vmatprep.subr.bf16.mxu0 %v5694
    %6796 = vmatpush1.bf16.msra.mxu0 %v5693
    %6797 = vmatprep.subr.bf16.mxu0 %v5701
    %6798 = vmatpush1.bf16.msra.mxu0 %v5700
    %6799 = vmatprep.subr.bf16.mxu0 %v5708
    %6800 = vmatpush1.bf16.msra.mxu0 %v5707
    %6801 = vmatprep.subr.bf16.mxu0 %v5715
    %6802 = vmatpush1.bf16.msra.mxu0 %v5714
    %6803 = vmatprep.subr.bf16.mxu0 %v5722
    %6804 = vmatpush1.bf16.msra.mxu0 %v5721
    %6805 = vmatprep.subr.bf16.mxu0 %v5729
    %6806 = vmatpush1.bf16.msra.mxu0 %v5728
    %6807 = vmatprep.subr.bf16.mxu0 %v5736
    %6808 = vmatpush1.bf16.msra.mxu0 %v5735
    %6809 = vmatprep.subr.bf16.mxu0 %v5743
    %6810 = vmatpush1.bf16.msra.mxu0 %v5742
    %6811 = vmatprep.subr.bf16.mxu0 %v5750
    %6812 = vmatpush1.bf16.msra.mxu0 %v5749
    %6813 = vmatprep.subr.bf16.mxu0 %v5757
    %6814 = vmatpush1.bf16.msra.mxu0 %v5756
    %6815 = vmatprep.subr.bf16.mxu0 %v5764
    %6816 = vmatpush1.bf16.msra.mxu0 %v5763
    %6817 = vmatprep.mubr.bf16.mxu0 %v3814
    %6818 = vmatmul.mubr.bf16.gmra.mrb[0].mxu0 %v3813
    %v6819 = vpop.f32.mrb[0].mxu0
    %v6820 = vadd.f32 %v6769, %v6819
    %v6821 = vpop.f32.mrb[0].mxu0
    %v6822 = vadd.f32 %v6771, %v6821
    %v6823 = vpop.f32.mrb[0].mxu0
    %v6824 = vadd.f32 %v6773, %v6823
    %v6825 = vpop.f32.mrb[0].mxu0
    %v6826 = vadd.f32 %v6775, %v6825
    %6827 = vmatprep.mubr.bf16.mxu0 %v3821
    %6828 = vmatmul.mubr.bf16.gmra.mrb[0].mxu0 %v3820
    %v6829 = vpop.f32.mrb[0].mxu0
    %v6830 = vadd.f32 %v6779, %v6829
    %v6831 = vpop.f32.mrb[0].mxu0
    %v6832 = vadd.f32 %v6781, %v6831
    %v6833 = vpop.f32.mrb[0].mxu0
    %v6834 = vpop.f32.mrb[0].mxu0
    %6835 = vdwg.mxu0
    %6836 = vmatprep.subr.bf16.mxu0 %v5771
    %6837 = vmatpush1.bf16.msra.mxu0 %v5770
    %6838 = vmatprep.subr.bf16.mxu0 %v5778
    %6839 = vmatpush1.bf16.msra.mxu0 %v5777
    %6840 = vmatprep.subr.bf16.mxu0 %v5785
    %6841 = vmatpush1.bf16.msra.mxu0 %v5784
    %6842 = vmatprep.subr.bf16.mxu0 %v5792
    %6843 = vmatpush1.bf16.msra.mxu0 %v5791
    %6844 = vmatprep.subr.bf16.mxu0 %v5799
    %6845 = vmatpush1.bf16.msra.mxu0 %v5798
    %6846 = vmatprep.subr.bf16.mxu0 %v5806
    %6847 = vmatpush1.bf16.msra.mxu0 %v5805
    %6848 = vmatprep.subr.bf16.mxu0 %v5813
    %6849 = vmatpush1.bf16.msra.mxu0 %v5812
    %6850 = vmatprep.subr.bf16.mxu0 %v5820
    %6851 = vmatpush1.bf16.msra.mxu0 %v5819
    %6852 = vmatprep.subr.bf16.mxu0 %v5827
    %6853 = vmatpush1.bf16.msra.mxu0 %v5826
    %6854 = vmatprep.subr.bf16.mxu0 %v5834
    %6855 = vmatpush1.bf16.msra.mxu0 %v5833
    %6856 = vmatprep.subr.bf16.mxu0 %v5841
    %6857 = vmatpush1.bf16.msra.mxu0 %v5840
    %6858 = vmatprep.subr.bf16.mxu0 %v5848
    %6859 = vmatpush1.bf16.msra.mxu0 %v5847
    %6860 = vmatprep.subr.bf16.mxu0 %v5855
    %6861 = vmatpush1.bf16.msra.mxu0 %v5854
    %6862 = vmatprep.subr.bf16.mxu0 %v5862
    %6863 = vmatpush1.bf16.msra.mxu0 %v5861
    %6864 = vmatprep.subr.bf16.mxu0 %v5869
    %6865 = vmatpush1.bf16.msra.mxu0 %v5868
    %6866 = vmatprep.subr.bf16.mxu0 %v5876
    %6867 = vmatpush1.bf16.msra.mxu0 %v5875
    %6868 = vmatprep.mubr.bf16.mxu0 %v3816
    %6869 = vmatmul.mubr.bf16.gmra.mrb[0].mxu0 %v3815
    %v6870 = vpop.f32.mrb[0].mxu0
    %v6871 = vadd.f32 %v6820, %v6870
    %v6872 = vpop.f32.mrb[0].mxu0
    %v6873 = vadd.f32 %v6822, %v6872
    %v6874 = vpop.f32.mrb[0].mxu0
    %v6875 = vadd.f32 %v6824, %v6874
    %v6876 = vpop.f32.mrb[0].mxu0
    %v6877 = vadd.f32 %v6826, %v6876
    %6878 = vmatprep.mubr.bf16.mxu0 %v3823
    %6879 = vmatmul.mubr.bf16.gmra.mrb[0].mxu0 %v3822
    %v6880 = vpop.f32.mrb[0].mxu0
    %v6881 = vadd.f32 %v6830, %v6880
    %v6882 = vpop.f32.mrb[0].mxu0
    %v6883 = vadd.f32 %v6832, %v6882
    %v6884 = vpop.f32.mrb[0].mxu0
    %v6885 = vpop.f32.mrb[0].mxu0
    %6886 = vdwg.mxu0
    %6887 = vmatprep.subr.bf16.mxu0 %v5883
    %6888 = vmatpush1.bf16.msra.mxu0 %v5882
    %6889 = vmatprep.subr.bf16.mxu0 %v5890
    %6890 = vmatpush1.bf16.msra.mxu0 %v5889
    %6891 = vmatprep.subr.bf16.mxu0 %v5897
    %6892 = vmatpush1.bf16.msra.mxu0 %v5896
    %6893 = vmatprep.subr.bf16.mxu0 %v5904
    %6894 = vmatpush1.bf16.msra.mxu0 %v5903
    %6895 = vmatprep.subr.bf16.mxu0 %v5911
    %6896 = vmatpush1.bf16.msra.mxu0 %v5910
    %6897 = vmatprep.subr.bf16.mxu0 %v5918
    %6898 = vmatpush1.bf16.msra.mxu0 %v5917
    %6899 = vmatprep.subr.bf16.mxu0 %v5925
    %6900 = vmatpush1.bf16.msra.mxu0 %v5924
    %6901 = vmatprep.subr.bf16.mxu0 %v5932
    %6902 = vmatpush1.bf16.msra.mxu0 %v5931
    %6903 = vmatprep.subr.bf16.mxu0 0
    %6904 = vmatpush1.bf16.msra.mxu0 0
    %6905 = vmatprep.subr.bf16.mxu0 0
    %6906 = vmatpush1.bf16.msra.mxu0 0
    %6907 = vmatprep.subr.bf16.mxu0 0
    %6908 = vmatpush1.bf16.msra.mxu0 0
    %6909 = vmatprep.subr.bf16.mxu0 0
    %6910 = vmatpush1.bf16.msra.mxu0 0
    %6911 = vmatprep.subr.bf16.mxu0 0
    %6912 = vmatpush1.bf16.msra.mxu0 0
    %6913 = vmatprep.subr.bf16.mxu0 0
    %6914 = vmatpush1.bf16.msra.mxu0 0
    %6915 = vmatprep.subr.bf16.mxu0 0
    %6916 = vmatpush1.bf16.msra.mxu0 0
    %6917 = vmatprep.subr.bf16.mxu0 0
    %6918 = vmatpush1.bf16.msra.mxu0 0
    %6919 = vmatprep.mubr.bf16.mxu0 0
    %6920 = vmatmul.mubr.bf16.gmra.mrb[0].mxu0 %v3817
    %v6921 = vpop.f32.mrb[0].mxu0
    %v6922 = vadd.f32 %v6871, %v6921
    %v6923 = vpop.f32.mrb[0].mxu0
    %v6924 = vadd.f32 %v6873, %v6923
    %v6925 = vpop.f32.mrb[0].mxu0
    %v6926 = vadd.f32 %v6875, %v6925
    %v6927 = vpop.f32.mrb[0].mxu0
    %v6928 = vadd.f32 %v6877, %v6927
    %6929 = vmatprep.mubr.bf16.mxu0 0
    %6930 = vmatmul.mubr.bf16.gmra.mrb[0].mxu0 %v3824
    %v6931 = vpop.f32.mrb[0].mxu0
    %v6932 = vadd.f32 %v6881, %v6931
    %v6933 = vpop.f32.mrb[0].mxu0
    %v6934 = vadd.f32 %v6883, %v6933
    %v6935 = vpop.f32.mrb[0].mxu0
    %v6936 = vpop.f32.mrb[0].mxu0
    %6937 = vdwg.mxu0
    %6938 = vmatprep.subr.bf16.mxu0 0
    %6939 = vmatpush1.bf16.msra.mxu0 %v5548
    %6940 = vmatprep.subr.bf16.mxu0 0
    %6941 = vmatpush1.bf16.msra.mxu0 %v5555
    %6942 = vmatprep.subr.bf16.mxu0 0
    %6943 = vmatpush1.bf16.msra.mxu0 %v5562
    %6944 = vmatprep.subr.bf16.mxu0 0
    %6945 = vmatpush1.bf16.msra.mxu0 %v5569
    %6946 = vmatprep.subr.bf16.mxu0 0
    %6947 = vmatpush1.bf16.msra.mxu0 %v5576
    %6948 = vmatprep.subr.bf16.mxu0 0
    %6949 = vmatpush1.bf16.msra.mxu0 %v5583
    %6950 = vmatprep.subr.bf16.mxu0 0
    %6951 = vmatpush1.bf16.msra.mxu0 %v5590
    %6952 = vmatprep.subr.bf16.mxu0 0
    %6953 = vmatpush1.bf16.msra.mxu0 %v5597
    %6954 = vmatprep.subr.bf16.mxu0 0
    %6955 = vmatpush1.bf16.msra.mxu0 %v5604
    %6956 = vmatprep.subr.bf16.mxu0 0
    %6957 = vmatpush1.bf16.msra.mxu0 %v5611
    %6958 = vmatprep.subr.bf16.mxu0 0
    %6959 = vmatpush1.bf16.msra.mxu0 %v5618
    %6960 = vmatprep.subr.bf16.mxu0 0
    %6961 = vmatpush1.bf16.msra.mxu0 %v5625
    %6962 = vmatprep.subr.bf16.mxu0 0
    %6963 = vmatpush1.bf16.msra.mxu0 %v5632
    %6964 = vmatprep.subr.bf16.mxu0 0
    %6965 = vmatpush1.bf16.msra.mxu0 %v5639
    %6966 = vmatprep.subr.bf16.mxu0 0
    %6967 = vmatpush1.bf16.msra.mxu0 %v5646
    %6968 = vmatprep.subr.bf16.mxu0 0
    %6969 = vmatpush1.bf16.msra.mxu0 %v5653
    %6970 = vmatprep.mubr.bf16.mxu0 %v3812
    %6971 = vmatmul.mubr.bf16.gmra.mrb[0].mxu0 %v3811
    %v6972 = vpop.f32.mrb[0].mxu0
    %v6973 = vadd.f32 %v4302, %v6972
    %v6974 = vpop.f32.mrb[0].mxu0
    %v6975 = vpop.f32.mrb[0].mxu0
    %v6976 = vadd.f32 %v4302, %v6975
    %v6977 = vpop.f32.mrb[0].mxu0
    %6978 = vmatprep.mubr.bf16.mxu0 %v3819
    %6979 = vmatmul.mubr.bf16.gmra.mrb[0].mxu0 %v3818
    %v6980 = vpop.f32.mrb[0].mxu0
    %v6981 = vadd.f32 %v4302, %v6980
    %v6982 = vpop.f32.mrb[0].mxu0
    %v6983 = vpop.f32.mrb[0].mxu0
    %v6984 = vpop.f32.mrb[0].mxu0
    %6985 = vdwg.mxu0
    %6986 = vmatprep.subr.bf16.mxu0 0
    %6987 = vmatpush1.bf16.msra.mxu0 %v5660
    %6988 = vmatprep.subr.bf16.mxu0 0
    %6989 = vmatpush1.bf16.msra.mxu0 %v5667
    %6990 = vmatprep.subr.bf16.mxu0 0
    %6991 = vmatpush1.bf16.msra.mxu0 %v5674
    %6992 = vmatprep.subr.bf16.mxu0 0
    %6993 = vmatpush1.bf16.msra.mxu0 %v5681
    %6994 = vmatprep.subr.bf16.mxu0 0
    %6995 = vmatpush1.bf16.msra.mxu0 %v5688
    %6996 = vmatprep.subr.bf16.mxu0 0
    %6997 = vmatpush1.bf16.msra.mxu0 %v5695
    %6998 = vmatprep.subr.bf16.mxu0 0
    %6999 = vmatpush1.bf16.msra.mxu0 %v5702
    %7000 = vmatprep.subr.bf16.mxu0 0
    %7001 = vmatpush1.bf16.msra.mxu0 %v5709
    %7002 = vmatprep.subr.bf16.mxu0 0
    %7003 = vmatpush1.bf16.msra.mxu0 %v5716
    %7004 = vmatprep.subr.bf16.mxu0 0
    %7005 = vmatpush1.bf16.msra.mxu0 %v5723
    %7006 = vmatprep.subr.bf16.mxu0 0
    %7007 = vmatpush1.bf16.msra.mxu0 %v5730
    %7008 = vmatprep.subr.bf16.mxu0 0
    %7009 = vmatpush1.bf16.msra.mxu0 %v5737
    %7010 = vmatprep.subr.bf16.mxu0 0
    %7011 = vmatpush1.bf16.msra.mxu0 %v5744
    %7012 = vmatprep.subr.bf16.mxu0 0
    %7013 = vmatpush1.bf16.msra.mxu0 %v5751
    %7014 = vmatprep.subr.bf16.mxu0 0
    %7015 = vmatpush1.bf16.msra.mxu0 %v5758
    %7016 = vmatprep.subr.bf16.mxu0 0
    %7017 = vmatpush1.bf16.msra.mxu0 %v5765
    %7018 = vmatprep.mubr.bf16.mxu0 %v3814
    %7019 = vmatmul.mubr.bf16.gmra.mrb[0].mxu0 %v3813
    %v7020 = vpop.f32.mrb[0].mxu0
    %v7021 = vadd.f32 %v6973, %v7020
    %v7022 = vpop.f32.mrb[0].mxu0
    %v7023 = vpop.f32.mrb[0].mxu0
    %v7024 = vadd.f32 %v6976, %v7023
    %v7025 = vpop.f32.mrb[0].mxu0
    %7026 = vmatprep.mubr.bf16.mxu0 %v3821
    %7027 = vmatmul.mubr.bf16.gmra.mrb[0].mxu0 %v3820
    %v7028 = vpop.f32.mrb[0].mxu0
    %v7029 = vadd.f32 %v6981, %v7028
    %v7030 = vpop.f32.mrb[0].mxu0
    %v7031 = vpop.f32.mrb[0].mxu0
    %v7032 = vpop.f32.mrb[0].mxu0
    %7033 = vdwg.mxu0
    %7034 = vmatprep.subr.bf16.mxu0 0
    %7035 = vmatpush1.bf16.msra.mxu0 %v5772
    %7036 = vmatprep.subr.bf16.mxu0 0
    %7037 = vmatpush1.bf16.msra.mxu0 %v5779
    %7038 = vmatprep.subr.bf16.mxu0 0
    %7039 = vmatpush1.bf16.msra.mxu0 %v5786
    %7040 = vmatprep.subr.bf16.mxu0 0
    %7041 = vmatpush1.bf16.msra.mxu0 %v5793
    %7042 = vmatprep.subr.bf16.mxu0 0
    %7043 = vmatpush1.bf16.msra.mxu0 %v5800
    %7044 = vmatprep.subr.bf16.mxu0 0
    %7045 = vmatpush1.bf16.msra.mxu0 %v5807
    %7046 = vmatprep.subr.bf16.mxu0 0
    %7047 = vmatpush1.bf16.msra.mxu0 %v5814
    %7048 = vmatprep.subr.bf16.mxu0 0
    %7049 = vmatpush1.bf16.msra.mxu0 %v5821
    %7050 = vmatprep.subr.bf16.mxu0 0
    %7051 = vmatpush1.bf16.msra.mxu0 %v5828
    %7052 = vmatprep.subr.bf16.mxu0 0
    %7053 = vmatpush1.bf16.msra.mxu0 %v5835
    %7054 = vmatprep.subr.bf16.mxu0 0
    %7055 = vmatpush1.bf16.msra.mxu0 %v5842
    %7056 = vmatprep.subr.bf16.mxu0 0
    %7057 = vmatpush1.bf16.msra.mxu0 %v5849
    %7058 = vmatprep.subr.bf16.mxu0 0
    %7059 = vmatpush1.bf16.msra.mxu0 %v5856
    %7060 = vmatprep.subr.bf16.mxu0 0
    %7061 = vmatpush1.bf16.msra.mxu0 %v5863
    %7062 = vmatprep.subr.bf16.mxu0 0
    %7063 = vmatpush1.bf16.msra.mxu0 %v5870
    %7064 = vmatprep.subr.bf16.mxu0 0
    %7065 = vmatpush1.bf16.msra.mxu0 %v5877
    %7066 = vmatprep.mubr.bf16.mxu0 %v3816
    %7067 = vmatmul.mubr.bf16.gmra.mrb[0].mxu0 %v3815
    %v7068 = vpop.f32.mrb[0].mxu0
    %v7069 = vadd.f32 %v7021, %v7068
    %v7070 = vpop.f32.mrb[0].mxu0
    %v7071 = vpop.f32.mrb[0].mxu0
    %v7072 = vadd.f32 %v7024, %v7071
    %v7073 = vpop.f32.mrb[0].mxu0
    %7074 = vmatprep.mubr.bf16.mxu0 %v3823
    %7075 = vmatmul.mubr.bf16.gmra.mrb[0].mxu0 %v3822
    %v7076 = vpop.f32.mrb[0].mxu0
    %v7077 = vadd.f32 %v7029, %v7076
    %v7078 = vpop.f32.mrb[0].mxu0
    %v7079 = vpop.f32.mrb[0].mxu0
    %v7080 = vpop.f32.mrb[0].mxu0
    %7081 = vdwg.mxu0
    %7082 = vmatprep.subr.bf16.mxu0 0
    %7083 = vmatpush1.bf16.msra.mxu0 %v5884
    %7084 = vmatprep.subr.bf16.mxu0 0
    %7085 = vmatpush1.bf16.msra.mxu0 %v5891
    %7086 = vmatprep.subr.bf16.mxu0 0
    %7087 = vmatpush1.bf16.msra.mxu0 %v5898
    %7088 = vmatprep.subr.bf16.mxu0 0
    %7089 = vmatpush1.bf16.msra.mxu0 %v5905
    %7090 = vmatprep.subr.bf16.mxu0 0
    %7091 = vmatpush1.bf16.msra.mxu0 %v5912
    %7092 = vmatprep.subr.bf16.mxu0 0
    %7093 = vmatpush1.bf16.msra.mxu0 %v5919
    %7094 = vmatprep.subr.bf16.mxu0 0
    %7095 = vmatpush1.bf16.msra.mxu0 %v5926
    %7096 = vmatprep.subr.bf16.mxu0 0
    %7097 = vmatpush1.bf16.msra.mxu0 %v5933
    %7098 = vmatprep.subr.bf16.mxu0 0
    %7099 = vmatpush1.bf16.msra.mxu0 0
    %7100 = vmatprep.subr.bf16.mxu0 0
    %7101 = vmatpush1.bf16.msra.mxu0 0
    %7102 = vmatprep.subr.bf16.mxu0 0
    %7103 = vmatpush1.bf16.msra.mxu0 0
    %7104 = vmatprep.subr.bf16.mxu0 0
    %7105 = vmatpush1.bf16.msra.mxu0 0
    %7106 = vmatprep.subr.bf16.mxu0 0
    %7107 = vmatpush1.bf16.msra.mxu0 0
    %7108 = vmatprep.subr.bf16.mxu0 0
    %7109 = vmatpush1.bf16.msra.mxu0 0
    %7110 = vmatprep.subr.bf16.mxu0 0
    %7111 = vmatpush1.bf16.msra.mxu0 0
    %7112 = vmatprep.subr.bf16.mxu0 0
    %7113 = vmatpush1.bf16.msra.mxu0 0
    %7114 = vmatprep.mubr.bf16.mxu0 0
    %7115 = vmatmul.mubr.bf16.gmra.mrb[0].mxu0 %v3817
    %v7116 = vpop.f32.mrb[0].mxu0
    %v7117 = vadd.f32 %v7069, %v7116
    %v7118 = vpop.f32.mrb[0].mxu0
    %v7119 = vpop.f32.mrb[0].mxu0
    %v7120 = vadd.f32 %v7072, %v7119
    %v7121 = vpop.f32.mrb[0].mxu0
    %7122 = vmatprep.mubr.bf16.mxu0 0
    %7123 = vmatmul.mubr.bf16.gmra.mrb[0].mxu0 %v3824
    %v7124 = vpop.f32.mrb[0].mxu0
    %v7125 = vadd.f32 %v7077, %v7124
    %v7126 = vpop.f32.mrb[0].mxu0
    %v7127 = vpop.f32.mrb[0].mxu0
    %v7128 = vpop.f32.mrb[0].mxu0
    %7129 = vdwg.mxu0
    %v7130 = vpack.c.bf16 %v6518, %v6514
    %v7131 = vpack.c.bf16 %v6520, %v6516
    %v7132 = vpack.c.bf16 %v6722, %v6718
    %v7133 = vpack.c.bf16 %v6724, %v6720
    %v7134 = vpack.c.bf16 %v6926, %v6922
    %v7135 = vpack.c.bf16 %v6928, %v6924
    %v7136 = vpack.c.bf16 %v7120, %v7117
    %v7137 = vpack.c.bf16 %v6524, %v6524
    %v7138 = vpack.c.bf16 %v6526, %v6526
    %v7139 = vpack.c.bf16 %v6728, %v6728
    %v7140 = vpack.c.bf16 %v6730, %v6730
    %v7141 = vpack.c.bf16 %v6932, %v6932
    %v7142 = vpack.c.bf16 %v6934, %v6934
    %v7143 = vpack.c.bf16 %v7125, %v7125
    %v7144 = vld [vmem:[#allocation14] sm:$0xf]
    %v7145 = vld [vmem:[#allocation14 + $0x4] sm:$0xf]
    %v7146 = vld [vmem:[#allocation14 + $0x8] sm:$0xf]
    %v7147 = vld [vmem:[#allocation14 + $0xc] sm:$0xf]
    %v7148 = vld [vmem:[#allocation14 + $0x10] sm:$0xf]
    %v7149 = vld [vmem:[#allocation14 + $0x14] sm:$0xf]
    %v7150 = vld [vmem:[#allocation14 + $0x18] sm:$0xf]
    %v7151 = vld [vmem:[#allocation14 + $0x1c] sm:$0xf]
    %v7152 = vld [vmem:[#allocation14 + $0x20] sm:$0xf]
    %v7153 = vld [vmem:[#allocation14 + $0x24] sm:$0xf]
    %v7154 = vld [vmem:[#allocation14 + $0x28] sm:$0xf]
    %v7155 = vld [vmem:[#allocation14 + $0x2c] sm:$0xf]
    %v7156 = vld [vmem:[#allocation14 + $0x30] sm:$0xf]
    %v7157 = vld [vmem:[#allocation14 + $0x34] sm:$0xf]
    %v7158 = vld [vmem:[#allocation14 + $0x38] sm:$0xf]
    %v7159 = vld [vmem:[#allocation14 + $0x3c] sm:$0xf]
    %v7160 = vld [vmem:[#allocation14 + $0x40] sm:$0xf]
    %v7161 = vld [vmem:[#allocation14 + $0x44] sm:$0xf]
    %v7162 = vld [vmem:[#allocation14 + $0x48] sm:$0xf]
    %v7163 = vld [vmem:[#allocation14 + $0x4c] sm:$0xf]
    %v7164 = vld [vmem:[#allocation14 + $0x50] sm:$0xf]
    %v7165 = vld [vmem:[#allocation14 + $0x54] sm:$0xf]
    %v7166 = vld [vmem:[#allocation14 + $0x58] sm:$0xf]
    %v7167 = vld [vmem:[#allocation14 + $0x5c] sm:$0xf]
    %v7168 = vld [vmem:[#allocation14 + $0x60] sm:$0xf]
    %v7169 = vld [vmem:[#allocation14 + $0x64] sm:$0xf]
    %v7170 = vld [vmem:[#allocation14 + $0x68] sm:$0xf]
    %v7171 = vld [vmem:[#allocation14 + $0x6c] sm:$0xf]
    %v7172 = vld [vmem:[#allocation14 + $0x70] sm:$0xf]
    %v7173 = vld [vmem:[#allocation14 + $0x74] sm:$0xf]
    %v7174 = vld [vmem:[#allocation14 + $0x78] sm:$0xf]
    %v7175 = vld [vmem:[#allocation14 + $0x7c] sm:$0xf]
    %v7176 = vld [vmem:[#allocation14 + $0x80] sm:$0xf]
    %v7177 = vld [vmem:[#allocation14 + $0x84] sm:$0xf]
    %v7178 = vld [vmem:[#allocation14 + $0x88] sm:$0xf]
    %v7179 = vld [vmem:[#allocation14 + $0x8c] sm:$0xf]
    %v7180 = vld [vmem:[#allocation14 + $0x90] sm:$0xf]
    %v7181 = vld [vmem:[#allocation14 + $0x94] sm:$0xf]
    %v7182 = vld [vmem:[#allocation14 + $0x98] sm:$0xf]
    %v7183 = vld [vmem:[#allocation14 + $0x9c] sm:$0xf]
    %v7184 = vld [vmem:[#allocation14 + $0xa0] sm:$0xf]
    %v7185 = vld [vmem:[#allocation14 + $0xa4] sm:$0xf]
    %v7186 = vld [vmem:[#allocation14 + $0xa8] sm:$0xf]
    %v7187 = vld [vmem:[#allocation14 + $0xac] sm:$0xf]
    %v7188 = vld [vmem:[#allocation14 + $0xb0] sm:$0xf]
    %v7189 = vld [vmem:[#allocation14 + $0xb4] sm:$0xf]
    %v7190 = vld [vmem:[#allocation14 + $0xb8] sm:$0xf]
    %v7191 = vld [vmem:[#allocation14 + $0xbc] sm:$0xf]
    %v7192 = vld [vmem:[#allocation14 + $0xc0] sm:$0xf]
    %v7193 = vld [vmem:[#allocation14 + $0xc4] sm:$0xf]
    %v7194 = vld [vmem:[#allocation14 + $0xc8] sm:$0xf]
    %v7195 = vld [vmem:[#allocation14 + $0xcc] sm:$0xf]
    %v7196 = vld [vmem:[#allocation14 + $0xd0] sm:$0xf]
    %v7197 = vld [vmem:[#allocation14 + $0xd4] sm:$0xf]
    %v7198 = vld [vmem:[#allocation14 + $0xd8] sm:$0xf]
    %v7199 = vld [vmem:[#allocation14 + $0xdc] sm:$0xf]
    %v7200 = vld [vmem:[#allocation14 + $0xe0] sm:$0xf]
    %v7201 = vld [vmem:[#allocation14 + $0xe4] sm:$0xf]
    %v7202 = vld [vmem:[#allocation14 + $0xe8] sm:$0xf]
    %v7203 = vld [vmem:[#allocation14 + $0xec] sm:$0xf]
    %v7204 = vld [vmem:[#allocation14 + $0xf0] sm:$0xf]
    %v7205 = vld [vmem:[#allocation14 + $0xf4] sm:$0xf]
    %v7206 = vld [vmem:[#allocation14 + $0xf8] sm:$0xf]
    %v7207 = vld [vmem:[#allocation14 + $0xfc] sm:$0xf]
    %v7208 = vld [vmem:[#allocation14 + $0x100] sm:$0xf]
    %v7209 = vld [vmem:[#allocation14 + $0x104] sm:$0xf]
    %v7210 = vld [vmem:[#allocation14 + $0x108] sm:$0xf]
    %v7211 = vld [vmem:[#allocation14 + $0x10c] sm:$0xf]
    %v7212 = vld [vmem:[#allocation14 + $0x110] sm:$0xf]
    %v7213 = vld [vmem:[#allocation14 + $0x114] sm:$0xf]
    %v7214 = vld [vmem:[#allocation14 + $0x118] sm:$0xf]
    %v7215 = vld [vmem:[#allocation14 + $0x11c] sm:$0xf]
    %v7216 = vld [vmem:[#allocation14 + $0x120] sm:$0xf]
    %v7217 = vld [vmem:[#allocation14 + $0x124] sm:$0xf]
    %v7218 = vld [vmem:[#allocation14 + $0x128] sm:$0xf]
    %v7219 = vld [vmem:[#allocation14 + $0x12c] sm:$0xf]
    %v7220 = vld [vmem:[#allocation14 + $0x130] sm:$0xf]
    %v7221 = vld [vmem:[#allocation14 + $0x134] sm:$0xf]
    %v7222 = vld [vmem:[#allocation14 + $0x138] sm:$0xf]
    %v7223 = vld [vmem:[#allocation14 + $0x13c] sm:$0xf]
    %v7224 = vld [vmem:[#allocation14 + $0x140] sm:$0xf]
    %v7225 = vld [vmem:[#allocation14 + $0x144] sm:$0xf]
    %v7226 = vld [vmem:[#allocation14 + $0x148] sm:$0xf]
    %v7227 = vld [vmem:[#allocation14 + $0x14c] sm:$0xf]
    %v7228 = vld [vmem:[#allocation14 + $0x150] sm:$0xf]
    %v7229 = vld [vmem:[#allocation14 + $0x154] sm:$0xf]
    %v7230 = vld [vmem:[#allocation14 + $0x158] sm:$0xf]
    %v7231 = vld [vmem:[#allocation14 + $0x15c] sm:$0xf]
    %v7232 = vld [vmem:[#allocation14 + $0x160] sm:$0xf]
    %v7233 = vld [vmem:[#allocation14 + $0x164] sm:$0xf]
    %v7234 = vld [vmem:[#allocation14 + $0x168] sm:$0xf]
    %v7235 = vld [vmem:[#allocation14 + $0x16c] sm:$0xf]
    %v7236 = vld [vmem:[#allocation14 + $0x170] sm:$0xf]
    %v7237 = vld [vmem:[#allocation14 + $0x174] sm:$0xf]
    %v7238 = vld [vmem:[#allocation14 + $0x178] sm:$0xf]
    %v7239 = vld [vmem:[#allocation14 + $0x17c] sm:$0xf]
    %v7240 = vld [vmem:[#allocation14 + $0x180] sm:$0xf]
    %v7241 = vld [vmem:[#allocation14 + $0x184] sm:$0xf]
    %v7242 = vld [vmem:[#allocation14 + $0x188] sm:$0xf]
    %v7243 = vld [vmem:[#allocation14 + $0x18c] sm:$0xf]
    %v7244 = vld [vmem:[#allocation14 + $0x190] sm:$0xf]
    %v7245 = vld [vmem:[#allocation14 + $0x194] sm:$0xf]
    %v7246 = vld [vmem:[#allocation14 + $0x198] sm:$0xf]
    %v7247 = vld [vmem:[#allocation14 + $0x19c] sm:$0xf]
    %v7248 = vld [vmem:[#allocation14 + $0x1a0] sm:$0xf]
    %v7249 = vld [vmem:[#allocation14 + $0x1a4] sm:$0xf]
    %v7250 = vld [vmem:[#allocation14 + $0x1a8] sm:$0xf]
    %v7251 = vld [vmem:[#allocation14 + $0x1ac] sm:$0xf]
    %v7252 = vld [vmem:[#allocation14 + $0x1b0] sm:$0xf]
    %v7253 = vld [vmem:[#allocation14 + $0x1b4] sm:$0xf]
    %v7254 = vld [vmem:[#allocation14 + $0x1b8] sm:$0xf]
    %v7255 = vld [vmem:[#allocation14 + $0x1bc] sm:$0xf]
    %v7256 = vld [vmem:[#allocation16] sm:$0x1]
    %v7258 = vlaneseq
    %v7259 = vshrl.u32 %v7258, 7
    %v7260 = vsub.s32 0, %v7259
    %v7261 = vrot.slane %v7256, %v7260
    %v7375 = vunpack.c.l.b16 %v7144
    %v7376 = vunpack.c.l.b16 %v7145
    %v7377 = vunpack.c.l.b16 %v7146
    %v7378 = vunpack.c.l.b16 %v7147
    %v7379 = vunpack.c.l.b16 %v7148
    %v7380 = vunpack.c.l.b16 %v7149
    %v7381 = vunpack.c.l.b16 %v7150
    %v7382 = vunpack.c.l.b16 %v7151
    %v7383 = vunpack.c.l.b16 %v7152
    %v7384 = vunpack.c.l.b16 %v7153
    %v7385 = vunpack.c.l.b16 %v7154
    %v7386 = vunpack.c.l.b16 %v7155
    %v7387 = vunpack.c.l.b16 %v7156
    %v7388 = vunpack.c.l.b16 %v7157
    %v7389 = vunpack.c.l.b16 %v7158
    %v7390 = vunpack.c.l.b16 %v7159
    %v7391 = vunpack.c.l.b16 %v7160
    %v7392 = vunpack.c.l.b16 %v7161
    %v7393 = vunpack.c.l.b16 %v7162
    %v7394 = vunpack.c.l.b16 %v7163
    %v7395 = vunpack.c.l.b16 %v7164
    %v7396 = vunpack.c.l.b16 %v7165
    %v7397 = vunpack.c.l.b16 %v7166
    %v7398 = vunpack.c.l.b16 %v7167
    %v7399 = vunpack.c.l.b16 %v7168
    %v7400 = vunpack.c.l.b16 %v7169
    %v7401 = vunpack.c.l.b16 %v7170
    %v7402 = vunpack.c.l.b16 %v7171
    %v7403 = vunpack.c.l.b16 %v7172
    %v7404 = vunpack.c.l.b16 %v7173
    %v7405 = vunpack.c.l.b16 %v7174
    %v7406 = vunpack.c.l.b16 %v7175
    %v7407 = vunpack.c.l.b16 %v7176
    %v7408 = vunpack.c.l.b16 %v7177
    %v7409 = vunpack.c.l.b16 %v7178
    %v7410 = vunpack.c.l.b16 %v7179
    %v7411 = vunpack.c.l.b16 %v7180
    %v7412 = vunpack.c.l.b16 %v7181
    %v7413 = vunpack.c.l.b16 %v7182
    %v7414 = vunpack.c.l.b16 %v7183
    %v7415 = vunpack.c.l.b16 %v7184
    %v7416 = vunpack.c.l.b16 %v7185
    %v7417 = vunpack.c.l.b16 %v7186
    %v7418 = vunpack.c.l.b16 %v7187
    %v7419 = vunpack.c.l.b16 %v7188
    %v7420 = vunpack.c.l.b16 %v7189
    %v7421 = vunpack.c.l.b16 %v7190
    %v7422 = vunpack.c.l.b16 %v7191
    %v7423 = vunpack.c.l.b16 %v7192
    %v7424 = vunpack.c.l.b16 %v7193
    %v7425 = vunpack.c.l.b16 %v7194
    %v7426 = vunpack.c.l.b16 %v7195
    %v7427 = vunpack.c.l.b16 %v7196
    %v7428 = vunpack.c.l.b16 %v7197
    %v7429 = vunpack.c.l.b16 %v7198
    %v7430 = vunpack.c.l.b16 %v7199
    %v7431 = vunpack.c.l.b16 %v7200
    %v7432 = vunpack.c.l.b16 %v7201
    %v7433 = vunpack.c.l.b16 %v7202
    %v7434 = vunpack.c.l.b16 %v7203
    %v7435 = vunpack.c.l.b16 %v7204
    %v7436 = vunpack.c.l.b16 %v7205
    %v7437 = vunpack.c.l.b16 %v7206
    %v7438 = vunpack.c.l.b16 %v7207
    %v7439 = vunpack.c.l.b16 %v7208
    %v7440 = vunpack.c.l.b16 %v7209
    %v7441 = vunpack.c.l.b16 %v7210
    %v7442 = vunpack.c.l.b16 %v7211
    %v7443 = vunpack.c.l.b16 %v7212
    %v7444 = vunpack.c.l.b16 %v7213
    %v7445 = vunpack.c.l.b16 %v7214
    %v7446 = vunpack.c.l.b16 %v7215
    %v7447 = vunpack.c.l.b16 %v7216
    %v7448 = vunpack.c.l.b16 %v7217
    %v7449 = vunpack.c.l.b16 %v7218
    %v7450 = vunpack.c.l.b16 %v7219
    %v7451 = vunpack.c.l.b16 %v7220
    %v7452 = vunpack.c.l.b16 %v7221
    %v7453 = vunpack.c.l.b16 %v7222
    %v7454 = vunpack.c.l.b16 %v7223
    %v7455 = vunpack.c.l.b16 %v7224
    %v7456 = vunpack.c.l.b16 %v7225
    %v7457 = vunpack.c.l.b16 %v7226
    %v7458 = vunpack.c.l.b16 %v7227
    %v7459 = vunpack.c.l.b16 %v7228
    %v7460 = vunpack.c.l.b16 %v7229
    %v7461 = vunpack.c.l.b16 %v7230
    %v7462 = vunpack.c.l.b16 %v7231
    %v7463 = vunpack.c.l.b16 %v7232
    %v7464 = vunpack.c.l.b16 %v7233
    %v7465 = vunpack.c.l.b16 %v7234
    %v7466 = vunpack.c.l.b16 %v7235
    %v7467 = vunpack.c.l.b16 %v7236
    %v7468 = vunpack.c.l.b16 %v7237
    %v7469 = vunpack.c.l.b16 %v7238
    %v7470 = vunpack.c.l.b16 %v7239
    %v7471 = vunpack.c.l.b16 %v7240
    %v7472 = vunpack.c.l.b16 %v7241
    %v7473 = vunpack.c.l.b16 %v7242
    %v7474 = vunpack.c.l.b16 %v7243
    %v7475 = vunpack.c.l.b16 %v7244
    %v7476 = vunpack.c.l.b16 %v7245
    %v7477 = vunpack.c.l.b16 %v7246
    %v7478 = vunpack.c.l.b16 %v7247
    %v7479 = vunpack.c.l.b16 %v7248
    %v7480 = vunpack.c.l.b16 %v7249
    %v7481 = vunpack.c.l.b16 %v7250
    %v7482 = vunpack.c.l.b16 %v7251
    %v7483 = vunpack.c.l.b16 %v7252
    %v7484 = vunpack.c.l.b16 %v7253
    %v7485 = vunpack.c.l.b16 %v7254
    %v7486 = vunpack.c.l.b16 %v7255
    %v7487 = vpack.c.b16 %v7376, %v7375
    %v7488 = vpack.c.b16 %v7378, %v7377
    %v7489 = vpack.c.b16 %v7380, %v7379
    %v7490 = vpack.c.b16 %v7382, %v7381
    %v7491 = vpack.c.b16 %v7384, %v7383
    %v7492 = vpack.c.b16 %v7386, %v7385
    %v7493 = vpack.c.b16 %v7388, %v7387
    %v7494 = vpack.c.b16 %v7390, %v7389
    %v7495 = vpack.c.b16 %v7392, %v7391
    %v7496 = vpack.c.b16 %v7394, %v7393
    %v7497 = vpack.c.b16 %v7396, %v7395
    %v7498 = vpack.c.b16 %v7398, %v7397
    %v7499 = vpack.c.b16 %v7400, %v7399
    %v7500 = vpack.c.b16 %v7402, %v7401
    %v7501 = vpack.c.b16 %v7404, %v7403
    %v7502 = vpack.c.b16 %v7406, %v7405
    %v7503 = vpack.c.b16 %v7408, %v7407
    %v7504 = vpack.c.b16 %v7410, %v7409
    %v7505 = vpack.c.b16 %v7412, %v7411
    %v7506 = vpack.c.b16 %v7414, %v7413
    %v7507 = vpack.c.b16 %v7416, %v7415
    %v7508 = vpack.c.b16 %v7418, %v7417
    %v7509 = vpack.c.b16 %v7420, %v7419
    %v7510 = vpack.c.b16 %v7422, %v7421
    %v7511 = vpack.c.b16 %v7424, %v7423
    %v7512 = vpack.c.b16 %v7426, %v7425
    %v7513 = vpack.c.b16 %v7428, %v7427
    %v7514 = vpack.c.b16 %v7430, %v7429
    %v7515 = vpack.c.b16 %v7432, %v7431
    %v7516 = vpack.c.b16 %v7434, %v7433
    %v7517 = vpack.c.b16 %v7436, %v7435
    %v7518 = vpack.c.b16 %v7438, %v7437
    %v7519 = vpack.c.b16 %v7440, %v7439
    %v7520 = vpack.c.b16 %v7442, %v7441
    %v7521 = vpack.c.b16 %v7444, %v7443
    %v7522 = vpack.c.b16 %v7446, %v7445
    %v7523 = vpack.c.b16 %v7448, %v7447
    %v7524 = vpack.c.b16 %v7450, %v7449
    %v7525 = vpack.c.b16 %v7452, %v7451
    %v7526 = vpack.c.b16 %v7454, %v7453
    %v7527 = vpack.c.b16 %v7456, %v7455
    %v7528 = vpack.c.b16 %v7458, %v7457
    %v7529 = vpack.c.b16 %v7460, %v7459
    %v7530 = vpack.c.b16 %v7462, %v7461
    %v7531 = vpack.c.b16 %v7464, %v7463
    %v7532 = vpack.c.b16 %v7466, %v7465
    %v7533 = vpack.c.b16 %v7468, %v7467
    %v7534 = vpack.c.b16 %v7470, %v7469
    %v7535 = vpack.c.b16 %v7472, %v7471
    %v7536 = vpack.c.b16 %v7474, %v7473
    %v7537 = vpack.c.b16 %v7476, %v7475
    %v7538 = vpack.c.b16 %v7478, %v7477
    %v7539 = vpack.c.b16 %v7480, %v7479
    %v7540 = vpack.c.b16 %v7482, %v7481
    %v7541 = vpack.c.b16 %v7484, %v7483
    %v7542 = vpack.c.b16 %v7486, %v7485
    %7599 = vmatprep.subr.bf16.mxu0 0
    %7600 = vmatpush1.bf16.msra.mxu0 %v7487
    %7601 = vmatprep.subr.bf16.mxu0 0
    %7602 = vmatpush1.bf16.msra.mxu0 %v7488
    %7603 = vmatprep.subr.bf16.mxu0 0
    %7604 = vmatpush1.bf16.msra.mxu0 %v7489
    %7605 = vmatprep.subr.bf16.mxu0 0
    %7606 = vmatpush1.bf16.msra.mxu0 %v7490
    %7607 = vmatprep.subr.bf16.mxu0 0
    %7608 = vmatpush1.bf16.msra.mxu0 %v7491
    %7609 = vmatprep.subr.bf16.mxu0 0
    %7610 = vmatpush1.bf16.msra.mxu0 %v7492
    %7611 = vmatprep.subr.bf16.mxu0 0
    %7612 = vmatpush1.bf16.msra.mxu0 %v7493
    %7613 = vmatprep.subr.bf16.mxu0 0
    %7614 = vmatpush1.bf16.msra.mxu0 %v7494
    %7615 = vmatprep.subr.bf16.mxu0 0
    %7616 = vmatpush1.bf16.msra.mxu0 %v7495
    %7617 = vmatprep.subr.bf16.mxu0 0
    %7618 = vmatpush1.bf16.msra.mxu0 %v7496
    %7619 = vmatprep.subr.bf16.mxu0 0
    %7620 = vmatpush1.bf16.msra.mxu0 %v7497
    %7621 = vmatprep.subr.bf16.mxu0 0
    %7622 = vmatpush1.bf16.msra.mxu0 %v7498
    %7623 = vmatprep.subr.bf16.mxu0 0
    %7624 = vmatpush1.bf16.msra.mxu0 %v7499
    %7625 = vmatprep.subr.bf16.mxu0 0
    %7626 = vmatpush1.bf16.msra.mxu0 %v7500
    %7627 = vmatprep.subr.bf16.mxu0 0
    %7628 = vmatpush1.bf16.msra.mxu0 %v7501
    %7629 = vmatprep.subr.bf16.mxu0 0
    %7630 = vmatpush1.bf16.msra.mxu0 %v7502
    %7631 = vmatprep.mubr.bf16.mxu0 %v7131
    %7632 = vmatmul.mubr.bf16.gmra.mrb[0].mxu0 %v7130
    %v7633 = vpop.f32.mrb[0].mxu0
    %v7634 = vadd.f32 %v7261, %v7633
    %v7635 = vpop.f32.mrb[0].mxu0
    %v7636 = vpop.f32.mrb[0].mxu0
    %v7637 = vadd.f32 %v7261, %v7636
    %v7638 = vpop.f32.mrb[0].mxu0
    %7639 = vmatprep.mubr.bf16.mxu0 %v7138
    %7640 = vmatmul.mubr.bf16.gmra.mrb[0].mxu0 %v7137
    %v7641 = vpop.f32.mrb[0].mxu0
    %v7642 = vadd.f32 %v7261, %v7641
    %v7643 = vpop.f32.mrb[0].mxu0
    %v7644 = vpop.f32.mrb[0].mxu0
    %v7645 = vpop.f32.mrb[0].mxu0
    %7646 = vdwg.mxu0
    %7647 = vmatprep.subr.bf16.mxu0 0
    %7648 = vmatpush1.bf16.msra.mxu0 %v7503
    %7649 = vmatprep.subr.bf16.mxu0 0
    %7650 = vmatpush1.bf16.msra.mxu0 %v7504
    %7651 = vmatprep.subr.bf16.mxu0 0
    %7652 = vmatpush1.bf16.msra.mxu0 %v7505
    %7653 = vmatprep.subr.bf16.mxu0 0
    %7654 = vmatpush1.bf16.msra.mxu0 %v7506
    %7655 = vmatprep.subr.bf16.mxu0 0
    %7656 = vmatpush1.bf16.msra.mxu0 %v7507
    %7657 = vmatprep.subr.bf16.mxu0 0
    %7658 = vmatpush1.bf16.msra.mxu0 %v7508
    %7659 = vmatprep.subr.bf16.mxu0 0
    %7660 = vmatpush1.bf16.msra.mxu0 %v7509
    %7661 = vmatprep.subr.bf16.mxu0 0
    %7662 = vmatpush1.bf16.msra.mxu0 %v7510
    %7663 = vmatprep.subr.bf16.mxu0 0
    %7664 = vmatpush1.bf16.msra.mxu0 %v7511
    %7665 = vmatprep.subr.bf16.mxu0 0
    %7666 = vmatpush1.bf16.msra.mxu0 %v7512
    %7667 = vmatprep.subr.bf16.mxu0 0
    %7668 = vmatpush1.bf16.msra.mxu0 %v7513
    %7669 = vmatprep.subr.bf16.mxu0 0
    %7670 = vmatpush1.bf16.msra.mxu0 %v7514
    %7671 = vmatprep.subr.bf16.mxu0 0
    %7672 = vmatpush1.bf16.msra.mxu0 %v7515
    %7673 = vmatprep.subr.bf16.mxu0 0
    %7674 = vmatpush1.bf16.msra.mxu0 %v7516
    %7675 = vmatprep.subr.bf16.mxu0 0
    %7676 = vmatpush1.bf16.msra.mxu0 %v7517
    %7677 = vmatprep.subr.bf16.mxu0 0
    %7678 = vmatpush1.bf16.msra.mxu0 %v7518
    %7679 = vmatprep.mubr.bf16.mxu0 %v7133
    %7680 = vmatmul.mubr.bf16.gmra.mrb[0].mxu0 %v7132
    %v7681 = vpop.f32.mrb[0].mxu0
    %v7682 = vadd.f32 %v7634, %v7681
    %v7683 = vpop.f32.mrb[0].mxu0
    %v7684 = vpop.f32.mrb[0].mxu0
    %v7685 = vadd.f32 %v7637, %v7684
    %v7686 = vpop.f32.mrb[0].mxu0
    %7687 = vmatprep.mubr.bf16.mxu0 %v7140
    %7688 = vmatmul.mubr.bf16.gmra.mrb[0].mxu0 %v7139
    %v7689 = vpop.f32.mrb[0].mxu0
    %v7690 = vadd.f32 %v7642, %v7689
    %v7691 = vpop.f32.mrb[0].mxu0
    %v7692 = vpop.f32.mrb[0].mxu0
    %v7693 = vpop.f32.mrb[0].mxu0
    %7694 = vdwg.mxu0
    %7695 = vmatprep.subr.bf16.mxu0 0
    %7696 = vmatpush1.bf16.msra.mxu0 %v7519
    %7697 = vmatprep.subr.bf16.mxu0 0
    %7698 = vmatpush1.bf16.msra.mxu0 %v7520
    %7699 = vmatprep.subr.bf16.mxu0 0
    %7700 = vmatpush1.bf16.msra.mxu0 %v7521
    %7701 = vmatprep.subr.bf16.mxu0 0
    %7702 = vmatpush1.bf16.msra.mxu0 %v7522
    %7703 = vmatprep.subr.bf16.mxu0 0
    %7704 = vmatpush1.bf16.msra.mxu0 %v7523
    %7705 = vmatprep.subr.bf16.mxu0 0
    %7706 = vmatpush1.bf16.msra.mxu0 %v7524
    %7707 = vmatprep.subr.bf16.mxu0 0
    %7708 = vmatpush1.bf16.msra.mxu0 %v7525
    %7709 = vmatprep.subr.bf16.mxu0 0
    %7710 = vmatpush1.bf16.msra.mxu0 %v7526
    %7711 = vmatprep.subr.bf16.mxu0 0
    %7712 = vmatpush1.bf16.msra.mxu0 %v7527
    %7713 = vmatprep.subr.bf16.mxu0 0
    %7714 = vmatpush1.bf16.msra.mxu0 %v7528
    %7715 = vmatprep.subr.bf16.mxu0 0
    %7716 = vmatpush1.bf16.msra.mxu0 %v7529
    %7717 = vmatprep.subr.bf16.mxu0 0
    %7718 = vmatpush1.bf16.msra.mxu0 %v7530
    %7719 = vmatprep.subr.bf16.mxu0 0
    %7720 = vmatpush1.bf16.msra.mxu0 %v7531
    %7721 = vmatprep.subr.bf16.mxu0 0
    %7722 = vmatpush1.bf16.msra.mxu0 %v7532
    %7723 = vmatprep.subr.bf16.mxu0 0
    %7724 = vmatpush1.bf16.msra.mxu0 %v7533
    %7725 = vmatprep.subr.bf16.mxu0 0
    %7726 = vmatpush1.bf16.msra.mxu0 %v7534
    %7727 = vmatprep.mubr.bf16.mxu0 %v7135
    %7728 = vmatmul.mubr.bf16.gmra.mrb[0].mxu0 %v7134
    %v7729 = vpop.f32.mrb[0].mxu0
    %v7730 = vadd.f32 %v7682, %v7729
    %v7731 = vpop.f32.mrb[0].mxu0
    %v7732 = vpop.f32.mrb[0].mxu0
    %v7733 = vadd.f32 %v7685, %v7732
    %v7734 = vpop.f32.mrb[0].mxu0
    %7735 = vmatprep.mubr.bf16.mxu0 %v7142
    %7736 = vmatmul.mubr.bf16.gmra.mrb[0].mxu0 %v7141
    %v7737 = vpop.f32.mrb[0].mxu0
    %v7738 = vadd.f32 %v7690, %v7737
    %v7739 = vpop.f32.mrb[0].mxu0
    %v7740 = vpop.f32.mrb[0].mxu0
    %v7741 = vpop.f32.mrb[0].mxu0
    %7742 = vdwg.mxu0
    %7743 = vmatprep.subr.bf16.mxu0 0
    %7744 = vmatpush1.bf16.msra.mxu0 %v7535
    %7745 = vmatprep.subr.bf16.mxu0 0
    %7746 = vmatpush1.bf16.msra.mxu0 %v7536
    %7747 = vmatprep.subr.bf16.mxu0 0
    %7748 = vmatpush1.bf16.msra.mxu0 %v7537
    %7749 = vmatprep.subr.bf16.mxu0 0
    %7750 = vmatpush1.bf16.msra.mxu0 %v7538
    %7751 = vmatprep.subr.bf16.mxu0 0
    %7752 = vmatpush1.bf16.msra.mxu0 %v7539
    %7753 = vmatprep.subr.bf16.mxu0 0
    %7754 = vmatpush1.bf16.msra.mxu0 %v7540
    %7755 = vmatprep.subr.bf16.mxu0 0
    %7756 = vmatpush1.bf16.msra.mxu0 %v7541
    %7757 = vmatprep.subr.bf16.mxu0 0
    %7758 = vmatpush1.bf16.msra.mxu0 %v7542
    %7759 = vmatprep.subr.bf16.mxu0 0
    %7760 = vmatpush1.bf16.msra.mxu0 0
    %7761 = vmatprep.subr.bf16.mxu0 0
    %7762 = vmatpush1.bf16.msra.mxu0 0
    %7763 = vmatprep.subr.bf16.mxu0 0
    %7764 = vmatpush1.bf16.msra.mxu0 0
    %7765 = vmatprep.subr.bf16.mxu0 0
    %7766 = vmatpush1.bf16.msra.mxu0 0
    %7767 = vmatprep.subr.bf16.mxu0 0
    %7768 = vmatpush1.bf16.msra.mxu0 0
    %7769 = vmatprep.subr.bf16.mxu0 0
    %7770 = vmatpush1.bf16.msra.mxu0 0
    %7771 = vmatprep.subr.bf16.mxu0 0
    %7772 = vmatpush1.bf16.msra.mxu0 0
    %7773 = vmatprep.subr.bf16.mxu0 0
    %7774 = vmatpush1.bf16.msra.mxu0 0
    %7775 = vmatprep.mubr.bf16.mxu0 0
    %7776 = vmatmul.mubr.bf16.gmra.mrb[0].mxu0 %v7136
    %v7777 = vpop.f32.mrb[0].mxu0
    %v7778 = vadd.f32 %v7730, %v7777
    %v7779 = vpop.f32.mrb[0].mxu0
    %v7780 = vpop.f32.mrb[0].mxu0
    %v7781 = vadd.f32 %v7733, %v7780
    %v7782 = vpop.f32.mrb[0].mxu0
    %7783 = vmatprep.mubr.bf16.mxu0 0
    %7784 = vmatmul.mubr.bf16.gmra.mrb[0].mxu0 %v7143
    %v7785 = vpop.f32.mrb[0].mxu0
    %v7786 = vadd.f32 %v7738, %v7785
    %v7787 = vpop.f32.mrb[0].mxu0
    %v7788 = vpop.f32.mrb[0].mxu0
    %v7789 = vpop.f32.mrb[0].mxu0
    %7790 = vdwg.mxu0
    %7791 = vst [vmem:[#allocation17] sm:$0xff] %v7778
    %7792 = vst [vmem:[#allocation17 + $0x8] sm:$0xff] %v7781
    %7793 = vst [vmem:[#allocation17 + $0x10] sm:$0xff] %v7786
    // Predicated region
    $region74: #{tpu_custom_call.1} parent=1 // pred_check
      _
    $region75: #{tpu_custom_call.1} parent=1 // pred_check_branch
      %7795 = sbr.rel (0) target = $region77
    $region76: #{tpu_custom_call.1} parent=1 // pred_region
      %s7797 = ssub.s32 384, 384
      %7798 = vsyncadd [#allocation4], %s7797
      %s7799 = sshll.u32 [#allocation17], 4
      %s7800 = int_to_ptr.vmem [resolvable:$true] %s7799
      %7805 = dma.vmem_to_hbm [thread:$0]  %s7800, 384, %s9, [#allocation4], 128, 128, 8
    $region77: #{tpu_custom_call.1} parent=1 // pred_fallthru
      _
    // Predicated region
    $region78: #{tpu_custom_call.1} parent=1 // pred_check
      _
    $region79: #{tpu_custom_call.1} parent=1 // pred_check_branch
      %7807 = sbr.rel (0) target = $region81
    $region80: #{tpu_custom_call.1} parent=1 // pred_region
      %7808 = dma.done [#allocation4], 384
    $region81: #{tpu_custom_call.1} parent=1 // pred_fallthru
      _
    %7809 = vsyncpa [#allocation3], 1
    %7810 = vsyncpa [#allocation6], 1
    %7811 = vsyncpa [#allocation9], 1
    %7812 = vsyncpa [#allocation12], 1
    %7813 = vsyncpa [#allocation15], 1
    %7814 = vsyncpa [#allocation4], 1

</llo_original>
